<compile_context>
chip_gen: v7x
topology: tpu7x:2x2x1
jax: 0.10.0
libtpu: 0.0.40
codegen_flags: <defaults>
</compile_context>

<pallas_src>
import numpy as np
import jax
import jax.numpy as jnp
from jax.experimental import pallas as pl
from jax.experimental.pallas import tpu as pltpu


def _round_up(x, m):
    return (x + m - 1) // m * m


# ----------------------------- glue helpers --------------------------------

def _phase_split_flat(x_nhwc, nrp):
    """(B,H,W,C) -> (B,4,nrp,C).

    Zero-pad spatially by 1, split into the four 2x2 parity phases
    x_pad[p::2, q::2], flatten each phase row-major over space and zero-pad
    the row count to nrp (slack so every in-kernel shifted slice is in-bounds
    and reads zeros, never out-of-bounds VMEM).
    """
    B, H, W, C = x_nhwc.shape
    xp = jnp.pad(x_nhwc, ((0, 0), (1, 1), (1, 1), (0, 0)))
    hp2, wp2 = H // 2 + 1, W // 2 + 1
    phases = []
    for p in range(2):
        for q in range(2):
            phases.append(xp[:, p::2, q::2, :].reshape(B, hp2 * wp2, C))
    out = jnp.stack(phases, axis=1)                      # (B, 4, hp2*wp2, C)
    return jnp.pad(out, ((0, 0), (0, 0), (0, nrp - hp2 * wp2), (0, 0)))


def _w_oihw_to_taps(w):
    """PyTorch OIHW 3x3 conv weight -> (9, Cin, Cout) tap matrices."""
    o, i, kh, kw = w.shape
    return jnp.transpose(w, (2, 3, 1, 0)).reshape(kh * kw, i, o)


def _blockdiag_taps(w_a, w_b):
    """Two OIHW convs on disjoint channel halves -> (9, Ia+Ib, Oa+Ob) block-diag."""
    ta = _w_oihw_to_taps(w_a)                            # (9, Ia, Oa)
    tb = _w_oihw_to_taps(w_b)                            # (9, Ib, Ob)
    _, ia, oa = ta.shape
    _, ib, ob = tb.shape
    top = jnp.concatenate([ta, jnp.zeros((9, ia, ob), ta.dtype)], axis=2)
    bot = jnp.concatenate([jnp.zeros((9, ib, oa), tb.dtype), tb], axis=2)
    return jnp.concatenate([top, bot], axis=1)           # (9, Ia+Ib, Oa+Ob)


# ------------------------------ kernels -------------------------------------

def _make_convpool_kernel(h2, wp2):
    """Fused 3x3 conv (pad=1) + bias + ReLU + 2x2 maxpool, in-kernel im2col.

    Input ref: (1, 4, nrp, Cin) parity-phase-split padded image (flattened).
    The conv output parity (oy, ox) selects which phase / row offset each of
    the 9 taps reads; the 2x2 maxpool is the elementwise max over the four
    parity accumulators.  Output rows are (h2, wp2)-flat; column wp2-1 is a
    garbage column stripped by the wrapper.
    """
    nrow = h2 * wp2

    def kernel(x_ref, w_ref, b_ref, o_ref):
        cout = o_ref.shape[-1]
        pooled = None
        for oy in range(2):                 # conv-output row parity
            for ox in range(2):             # conv-output col parity
                acc = jnp.zeros((nrow, cout), jnp.float32)
                for dh in range(3):
                    for dw in range(3):
                        sh, sw = oy + dh, ox + dw
                        ph = 2 * (sh % 2) + (sw % 2)
                        ofs = (sh // 2) * wp2 + (sw // 2)
                        lhs = x_ref[0, ph, ofs:ofs + nrow, :].astype(jnp.bfloat16)
                        acc = acc + jnp.dot(lhs, w_ref[3 * dh + dw],
                                            preferred_element_type=jnp.float32)
                pooled = acc if pooled is None else jnp.maximum(pooled, acc)
        o_ref[0] = jnp.maximum(pooled + b_ref[...], 0.0).astype(o_ref.dtype)

    return kernel


def _make_fuse_kernel(h, wpad):
    """3x3 fuse conv + ReLU + masked global-avg-pool + 1x1 det head + sigmoid."""
    nrow = h * wpad

    def kernel(x_ref, m_ref, wf_ref, bf_ref, wd_ref, bd_ref, p_ref, s_ref):
        cf = wf_ref.shape[-1]
        acc = jnp.zeros((nrow, cf), jnp.float32)
        for dh in range(3):
            for dw in range(3):
                ofs = dh * wpad + dw
                lhs = x_ref[0, ofs:ofs + nrow, :].astype(jnp.bfloat16)
                acc = acc + jnp.dot(lhs, wf_ref[3 * dh + dw],
                                    preferred_element_type=jnp.float32)
        y = jnp.maximum(acc + bf_ref[...], 0.0)
        # AdaptiveAvgPool2d((1,1)): mask kills the garbage columns and carries 1/(H*W)
        g = jnp.sum(y * m_ref[...], axis=0, keepdims=True)          # (1, cf)
        logits = jnp.dot(g, wd_ref[...],
                         preferred_element_type=jnp.float32) + bd_ref[...]
        p_ref[0] = logits
        s_ref[0] = 1.0 / (1.0 + jnp.exp(-logits))

    return kernel


# ------------------------------ wrappers -------------------------------------

def conv3x3_relu_pool2(x_nhwc, w9_bf16, bias):
    """x: (B,H,W,Cin) f32, w9: (9,Cin,Cout) bf16 -> (B,H//2,W//2,Cout) f32."""
    B, H, W, Cin = x_nhwc.shape
    Cout = w9_bf16.shape[-1]
    H2, W2 = H // 2, W // 2
    wp2 = W2 + 1
    nrow = H2 * wp2                          # pooled rows incl. 1 garbage column/row
    nrp = _round_up(nrow + wp2 + 2, 8)       # slack: max in-kernel offset is wp2+1
    xph = _phase_split_flat(x_nhwc, nrp)     # (B, 4, nrp, Cin)

    flops = 2 * B * 4 * 9 * nrow * Cin * Cout
    bytes_accessed = (xph.size * 4 + w9_bf16.size * 2 + Cout * 4
                      + B * nrow * Cout * 4)

    out = pl.pallas_call(
        _make_convpool_kernel(H2, wp2),
        out_shape=jax.ShapeDtypeStruct((B, nrow, Cout), jnp.float32),
        grid=(B,),
        in_specs=[
            pl.BlockSpec((1, 4, nrp, Cin), lambda b: (b, 0, 0, 0)),
            pl.BlockSpec((9, Cin, Cout), lambda b: (0, 0, 0)),
            pl.BlockSpec((1, Cout), lambda b: (0, 0)),
        ],
        out_specs=pl.BlockSpec((1, nrow, Cout), lambda b: (b, 0, 0)),
        compiler_params=pltpu.CompilerParams(
            dimension_semantics=("parallel",),
            vmem_limit_bytes=32 * 1024 * 1024),
        cost_estimate=pl.CostEstimate(flops=flops, transcendentals=0,
                                      bytes_accessed=bytes_accessed),
    )(xph, w9_bf16, bias.reshape(1, Cout).astype(jnp.float32))
    # strip the garbage column (j == W2) produced by the flat "wide" layout
    return out.reshape(B, H2, wp2, Cout)[:, :, :W2, :]


def fuse_avgpool_det(f_nhwc, wf9_bf16, bf, wd, bd):
    """Fuse conv + ReLU + global avg pool + det head (+ sigmoid), one kernel."""
    B, H, W, C = f_nhwc.shape
    Cd = wd.shape[-1]
    wpad = W + 2
    nrow = H * wpad
    nr = (H + 2) * wpad
    nrp = _round_up(nrow + 2 * wpad + 2, 8)
    fp = jnp.pad(f_nhwc, ((0, 0), (1, 1), (1, 1), (0, 0))).reshape(B, nr, C)
    fp = jnp.pad(fp, ((0, 0), (0, nrp - nr), (0, 0)))

    col = np.arange(nrow) % wpad
    mask = jnp.asarray((col < W).astype(np.float32) / float(H * W)).reshape(nrow, 1)

    flops = B * (2 * 9 * nrow * C * C + 2 * C * Cd)
    bytes_accessed = (fp.size * 4 + wf9_bf16.size * 2
                      + (C + C * Cd + Cd) * 4 + B * 2 * Cd * 4)

    p, s = pl.pallas_call(
        _make_fuse_kernel(H, wpad),
        out_shape=(jax.ShapeDtypeStruct((B, 1, Cd), jnp.float32),
                   jax.ShapeDtypeStruct((B, 1, Cd), jnp.float32)),
        grid=(B,),
        in_specs=[
            pl.BlockSpec((1, nrp, C), lambda b: (b, 0, 0)),
            pl.BlockSpec((nrow, 1), lambda b: (0, 0)),
            pl.BlockSpec((9, C, C), lambda b: (0, 0, 0)),
            pl.BlockSpec((1, C), lambda b: (0, 0)),
            pl.BlockSpec((C, Cd), lambda b: (0, 0)),
            pl.BlockSpec((1, Cd), lambda b: (0, 0)),
        ],
        out_specs=(pl.BlockSpec((1, 1, Cd), lambda b: (b, 0, 0)),
                   pl.BlockSpec((1, 1, Cd), lambda b: (b, 0, 0))),
        compiler_params=pltpu.CompilerParams(
            dimension_semantics=("parallel",),
            vmem_limit_bytes=32 * 1024 * 1024),
        cost_estimate=pl.CostEstimate(flops=flops, transcendentals=B * Cd,
                                      bytes_accessed=bytes_accessed),
    )(fp, mask, wf9_bf16, bf.reshape(1, C).astype(jnp.float32),
      wd.astype(jnp.float32), bd.reshape(1, Cd).astype(jnp.float32))
    return p.reshape(B, Cd), s.reshape(B, Cd)


# --------------------------- device forward ----------------------------------

@jax.jit
def _device_forward(params, x_nchw):
    x = jnp.transpose(x_nchw, (0, 2, 3, 1)).astype(jnp.float32)     # NCHW -> NHWC

    # layer 1: rgb1 & ir1 consume the same input -> concat along Cout (3->64)
    w1 = jnp.concatenate([params['rgb1'][0], params['ir1'][0]], axis=0)
    b1 = jnp.concatenate([params['rgb1'][1], params['ir1'][1]], axis=0)
    y1 = conv3x3_relu_pool2(x, _w_oihw_to_taps(w1).astype(jnp.bfloat16), b1)

    # layer 2: rgb2 / ir2 read disjoint channel halves -> block-diagonal 64->128.
    # Output channel order [rgb2 | ir2] == torch.cat([f1, f2], dim=1).
    w2 = _blockdiag_taps(params['rgb2'][0], params['ir2'][0]).astype(jnp.bfloat16)
    b2 = jnp.concatenate([params['rgb2'][1], params['ir2'][1]], axis=0)
    f = conv3x3_relu_pool2(y1, w2, b2)                              # (B, H/4, W/4, 128)

    # fuse conv + ReLU + global-avg-pool + det head + sigmoid, one kernel
    wf = _w_oihw_to_taps(params['fuse'][0]).astype(jnp.bfloat16)
    wd = params['det'][0][:, :, 0, 0].T                             # (128, 18)
    p18, s18 = fuse_avgpool_det(f, wf, params['fuse'][1], wd, params['det'][1])
    return p18, s18


# --------------------------- host-side NMS -----------------------------------

def _nms_numpy(boxes, scores, iou_thresh):
    x1, y1, x2, y2 = boxes[:, 0], boxes[:, 1], boxes[:, 2], boxes[:, 3]
    areas = (x2 - x1) * (y2 - y1)
    order = scores.argsort()[::-1]
    keep = []
    while order.size > 0:
        i = order[0]
        keep.append(int(i))
        if order.size == 1:
            break
        xx1 = np.maximum(x1[i], x1[order[1:]])
        yy1 = np.maximum(y1[i], y1[order[1:]])
        xx2 = np.minimum(x2[i], x2[order[1:]])
        yy2 = np.minimum(y2[i], y2[order[1:]])
        inter = np.maximum(0.0, xx2 - xx1) * np.maximum(0.0, yy2 - yy1)
        iou = inter / (areas[i] + areas[order[1:]] - inter + 1e-9)
        order = order[1:][iou <= iou_thresh]
    return np.array(keep, dtype=np.int64)


# ----------------------------- parameters ------------------------------------

def init_params(key):
    def conv_p(k, cout, cin, ks):
        k1, k2 = jax.random.split(k)
        fan_in = cin * ks * ks
        w = jax.random.normal(k1, (cout, cin, ks, ks), jnp.float32) / np.sqrt(fan_in)
        b = 0.01 * jax.random.normal(k2, (cout,), jnp.float32)
        return w, b
    ks = jax.random.split(key, 6)
    return {
        'rgb1': conv_p(ks[0], 32, 3, 3),
        'rgb2': conv_p(ks[1], 64, 32, 3),
        'ir1':  conv_p(ks[2], 32, 3, 3),
        'ir2':  conv_p(ks[3], 64, 32, 3),
        'fuse': conv_p(ks[4], 128, 128, 3),
        'det':  conv_p(ks[5], 18, 128, 1),   # na*(5+nc) = 3*6 = 18
    }


# ------------------------------ forward --------------------------------------

def multistream_forward(params, x_nchw, na=3, nc=1, conf_thresh=0.5, iou_thresh=0.5):
    B, _, H, W = x_nchw.shape
    assert H % 4 == 0 and W % 4 == 0, "two 2x2 maxpools require H, W % 4 == 0"

    p18, s18 = _device_forward(params, x_nchw)                      # (B,18), (B,18)

    p = p18.reshape(B, na, 5 + nc, 1, 1).transpose(0, 1, 3, 4, 2)   # (B,na,1,1,5+nc)
    train_out = [p]

    boxes = p[..., :4].reshape(B, -1, 4)                            # raw head output
    scores = s18.reshape(B, na, 5 + nc)[..., 4].reshape(B, -1)      # sigmoid objness

    # TODO(synk): conf filtering + NMS have data-dependent output shapes; done host-side.
    boxes_np = np.asarray(jax.device_get(boxes))
    scores_np = np.asarray(jax.device_get(scores))
    preds = []
    for b in range(B):
        keep = scores_np[b] > conf_thresh
        if keep.sum() == 0:
            preds.append(np.zeros((0, 4), np.float32))
            continue
        bb = boxes_np[b][keep]
        ss = scores_np[b][keep]
        k2 = _nms_numpy(bb, ss, iou_thresh)
        preds.append(bb[k2])
    return preds, train_out


# -------------------------------- main ----------------------------------------

if __name__ == "__main__":
    key = jax.random.PRNGKey(0)
    pkey, xkey = jax.random.split(key)
    params = init_params(pkey)
    x = jax.random.normal(xkey, (2, 3, 16, 16), jnp.float32)        # NCHW like PyTorch
    preds, train_out = multistream_forward(params, x)
    jax.block_until_ready(train_out[0])
    assert train_out[0].shape == (2, 3, 1, 1, 6)
    for pr in preds:
        assert pr.ndim == 2 and pr.shape[1] == 4
    print("KERNEL_OK")
</pallas_src>

<mosaic_0001>
module attributes {stable_mosaic.version = 11 : i64} {
  func.func @kernel(%arg0: i32, %arg1: memref<1x4x88x3xf32, #tpu.memory_space<vmem>>, %arg2: memref<9x3x64xbf16, #tpu.memory_space<vmem>>, %arg3: memref<1x64xf32, #tpu.memory_space<vmem>>, %arg4: memref<1x72x64xf32, #tpu.memory_space<vmem>>) attributes {dimension_semantics = [#tpu.dimension_semantics<parallel>], iteration_bounds = array<i64: 2>, scalar_prefetch = 0 : i64, scratch_operands = 0 : i64, tpu.core_type = #tpu.core_type<tc>, window_params = [{transform_indices = @transform_0, window_bounds = array<i64: 1, 4, 88, 3>}, {pipeline_mode = #tpu.pipeline_mode<synchronous>, transform_indices = @transform_1, window_bounds = array<i64: 9, 3, 64>}, {pipeline_mode = #tpu.pipeline_mode<synchronous>, transform_indices = @transform_2, window_bounds = array<i64: 1, 64>}, {transform_indices = @transform_3, window_bounds = array<i64: 1, 72, 64>}]} {
    %cst = arith.constant 0.000000e+00 : f32
    %0 = vector.broadcast %cst : f32 to vector<72x64xf32>
    %c0 = arith.constant 0 : index
    %c0_0 = arith.constant 0 : index
    %c0_1 = arith.constant 0 : index
    %c0_2 = arith.constant 0 : index
    %1 = vector.load %arg1[%c0, %c0_0, %c0_1, %c0_2] : memref<1x4x88x3xf32, #tpu.memory_space<vmem>>, vector<1x1x72x3xf32>
    %2 = vector.shape_cast %1 : vector<1x1x72x3xf32> to vector<72x3xf32>
    %3 = arith.truncf %2 : vector<72x3xf32> to vector<72x3xbf16>
    %c0_3 = arith.constant 0 : index
    %c0_4 = arith.constant 0 : index
    %c0_5 = arith.constant 0 : index
    %4 = vector.load %arg2[%c0_3, %c0_4, %c0_5] : memref<9x3x64xbf16, #tpu.memory_space<vmem>>, vector<1x3x64xbf16>
    %5 = vector.shape_cast %4 : vector<1x3x64xbf16> to vector<3x64xbf16>
    %cst_6 = arith.constant dense<0.000000e+00> : vector<72x64xf32>
    %6 = tpu.matmul %3, %5, %cst_6 {dimension_numbers = #tpu.dot_dimension_numbers<[1], [0], [0], [1], [0, 0, 1, 1], [], []>} : vector<72x3xbf16>, vector<3x64xbf16>, vector<72x64xf32> -> vector<72x64xf32>
    %7 = arith.addf %0, %6 : vector<72x64xf32>
    %c0_7 = arith.constant 0 : index
    %c1 = arith.constant 1 : index
    %c0_8 = arith.constant 0 : index
    %c0_9 = arith.constant 0 : index
    %8 = vector.load %arg1[%c0_7, %c1, %c0_8, %c0_9] : memref<1x4x88x3xf32, #tpu.memory_space<vmem>>, vector<1x1x72x3xf32>
    %9 = vector.shape_cast %8 : vector<1x1x72x3xf32> to vector<72x3xf32>
    %10 = arith.truncf %9 : vector<72x3xf32> to vector<72x3xbf16>
    %c1_10 = arith.constant 1 : index
    %c0_11 = arith.constant 0 : index
    %c0_12 = arith.constant 0 : index
    %11 = vector.load %arg2[%c1_10, %c0_11, %c0_12] : memref<9x3x64xbf16, #tpu.memory_space<vmem>>, vector<1x3x64xbf16>
    %12 = vector.shape_cast %11 : vector<1x3x64xbf16> to vector<3x64xbf16>
    %cst_13 = arith.constant dense<0.000000e+00> : vector<72x64xf32>
    %13 = tpu.matmul %10, %12, %cst_13 {dimension_numbers = #tpu.dot_dimension_numbers<[1], [0], [0], [1], [0, 0, 1, 1], [], []>} : vector<72x3xbf16>, vector<3x64xbf16>, vector<72x64xf32> -> vector<72x64xf32>
    %14 = arith.addf %7, %13 : vector<72x64xf32>
    %c0_14 = arith.constant 0 : index
    %c0_15 = arith.constant 0 : index
    %c1_16 = arith.constant 1 : index
    %c0_17 = arith.constant 0 : index
    %15 = vector.load %arg1[%c0_14, %c0_15, %c1_16, %c0_17] : memref<1x4x88x3xf32, #tpu.memory_space<vmem>>, vector<1x1x72x3xf32>
    %16 = vector.shape_cast %15 : vector<1x1x72x3xf32> to vector<72x3xf32>
    %17 = arith.truncf %16 : vector<72x3xf32> to vector<72x3xbf16>
    %c2 = arith.constant 2 : index
    %c0_18 = arith.constant 0 : index
    %c0_19 = arith.constant 0 : index
    %18 = vector.load %arg2[%c2, %c0_18, %c0_19] : memref<9x3x64xbf16, #tpu.memory_space<vmem>>, vector<1x3x64xbf16>
    %19 = vector.shape_cast %18 : vector<1x3x64xbf16> to vector<3x64xbf16>
    %cst_20 = arith.constant dense<0.000000e+00> : vector<72x64xf32>
    %20 = tpu.matmul %17, %19, %cst_20 {dimension_numbers = #tpu.dot_dimension_numbers<[1], [0], [0], [1], [0, 0, 1, 1], [], []>} : vector<72x3xbf16>, vector<3x64xbf16>, vector<72x64xf32> -> vector<72x64xf32>
    %21 = arith.addf %14, %20 : vector<72x64xf32>
    %c0_21 = arith.constant 0 : index
    %c2_22 = arith.constant 2 : index
    %c0_23 = arith.constant 0 : index
    %c0_24 = arith.constant 0 : index
    %22 = vector.load %arg1[%c0_21, %c2_22, %c0_23, %c0_24] : memref<1x4x88x3xf32, #tpu.memory_space<vmem>>, vector<1x1x72x3xf32>
    %23 = vector.shape_cast %22 : vector<1x1x72x3xf32> to vector<72x3xf32>
    %24 = arith.truncf %23 : vector<72x3xf32> to vector<72x3xbf16>
    %c3 = arith.constant 3 : index
    %c0_25 = arith.constant 0 : index
    %c0_26 = arith.constant 0 : index
    %25 = vector.load %arg2[%c3, %c0_25, %c0_26] : memref<9x3x64xbf16, #tpu.memory_space<vmem>>, vector<1x3x64xbf16>
    %26 = vector.shape_cast %25 : vector<1x3x64xbf16> to vector<3x64xbf16>
    %cst_27 = arith.constant dense<0.000000e+00> : vector<72x64xf32>
    %27 = tpu.matmul %24, %26, %cst_27 {dimension_numbers = #tpu.dot_dimension_numbers<[1], [0], [0], [1], [0, 0, 1, 1], [], []>} : vector<72x3xbf16>, vector<3x64xbf16>, vector<72x64xf32> -> vector<72x64xf32>
    %28 = arith.addf %21, %27 : vector<72x64xf32>
    %c0_28 = arith.constant 0 : index
    %c3_29 = arith.constant 3 : index
    %c0_30 = arith.constant 0 : index
    %c0_31 = arith.constant 0 : index
    %29 = vector.load %arg1[%c0_28, %c3_29, %c0_30, %c0_31] : memref<1x4x88x3xf32, #tpu.memory_space<vmem>>, vector<1x1x72x3xf32>
    %30 = vector.shape_cast %29 : vector<1x1x72x3xf32> to vector<72x3xf32>
    %31 = arith.truncf %30 : vector<72x3xf32> to vector<72x3xbf16>
    %c4 = arith.constant 4 : index
    %c0_32 = arith.constant 0 : index
    %c0_33 = arith.constant 0 : index
    %32 = vector.load %arg2[%c4, %c0_32, %c0_33] : memref<9x3x64xbf16, #tpu.memory_space<vmem>>, vector<1x3x64xbf16>
    %33 = vector.shape_cast %32 : vector<1x3x64xbf16> to vector<3x64xbf16>
    %cst_34 = arith.constant dense<0.000000e+00> : vector<72x64xf32>
    %34 = tpu.matmul %31, %33, %cst_34 {dimension_numbers = #tpu.dot_dimension_numbers<[1], [0], [0], [1], [0, 0, 1, 1], [], []>} : vector<72x3xbf16>, vector<3x64xbf16>, vector<72x64xf32> -> vector<72x64xf32>
    %35 = arith.addf %28, %34 : vector<72x64xf32>
    %c0_35 = arith.constant 0 : index
    %c2_36 = arith.constant 2 : index
    %c1_37 = arith.constant 1 : index
    %c0_38 = arith.constant 0 : index
    %36 = vector.load %arg1[%c0_35, %c2_36, %c1_37, %c0_38] : memref<1x4x88x3xf32, #tpu.memory_space<vmem>>, vector<1x1x72x3xf32>
    %37 = vector.shape_cast %36 : vector<1x1x72x3xf32> to vector<72x3xf32>
    %38 = arith.truncf %37 : vector<72x3xf32> to vector<72x3xbf16>
    %c5 = arith.constant 5 : index
    %c0_39 = arith.constant 0 : index
    %c0_40 = arith.constant 0 : index
    %39 = vector.load %arg2[%c5, %c0_39, %c0_40] : memref<9x3x64xbf16, #tpu.memory_space<vmem>>, vector<1x3x64xbf16>
    %40 = vector.shape_cast %39 : vector<1x3x64xbf16> to vector<3x64xbf16>
    %cst_41 = arith.constant dense<0.000000e+00> : vector<72x64xf32>
    %41 = tpu.matmul %38, %40, %cst_41 {dimension_numbers = #tpu.dot_dimension_numbers<[1], [0], [0], [1], [0, 0, 1, 1], [], []>} : vector<72x3xbf16>, vector<3x64xbf16>, vector<72x64xf32> -> vector<72x64xf32>
    %42 = arith.addf %35, %41 : vector<72x64xf32>
    %c0_42 = arith.constant 0 : index
    %c0_43 = arith.constant 0 : index
    %c9 = arith.constant 9 : index
    %c0_44 = arith.constant 0 : index
    %43 = vector.load %arg1[%c0_42, %c0_43, %c9, %c0_44] : memref<1x4x88x3xf32, #tpu.memory_space<vmem>>, vector<1x1x72x3xf32>
    %44 = vector.shape_cast %43 : vector<1x1x72x3xf32> to vector<72x3xf32>
    %45 = arith.truncf %44 : vector<72x3xf32> to vector<72x3xbf16>
    %c6 = arith.constant 6 : index
    %c0_45 = arith.constant 0 : index
    %c0_46 = arith.constant 0 : index
    %46 = vector.load %arg2[%c6, %c0_45, %c0_46] : memref<9x3x64xbf16, #tpu.memory_space<vmem>>, vector<1x3x64xbf16>
    %47 = vector.shape_cast %46 : vector<1x3x64xbf16> to vector<3x64xbf16>
    %cst_47 = arith.constant dense<0.000000e+00> : vector<72x64xf32>
    %48 = tpu.matmul %45, %47, %cst_47 {dimension_numbers = #tpu.dot_dimension_numbers<[1], [0], [0], [1], [0, 0, 1, 1], [], []>} : vector<72x3xbf16>, vector<3x64xbf16>, vector<72x64xf32> -> vector<72x64xf32>
    %49 = arith.addf %42, %48 : vector<72x64xf32>
    %c0_48 = arith.constant 0 : index
    %c1_49 = arith.constant 1 : index
    %c9_50 = arith.constant 9 : index
    %c0_51 = arith.constant 0 : index
    %50 = vector.load %arg1[%c0_48, %c1_49, %c9_50, %c0_51] : memref<1x4x88x3xf32, #tpu.memory_space<vmem>>, vector<1x1x72x3xf32>
    %51 = vector.shape_cast %50 : vector<1x1x72x3xf32> to vector<72x3xf32>
    %52 = arith.truncf %51 : vector<72x3xf32> to vector<72x3xbf16>
    %c7 = arith.constant 7 : index
    %c0_52 = arith.constant 0 : index
    %c0_53 = arith.constant 0 : index
    %53 = vector.load %arg2[%c7, %c0_52, %c0_53] : memref<9x3x64xbf16, #tpu.memory_space<vmem>>, vector<1x3x64xbf16>
    %54 = vector.shape_cast %53 : vector<1x3x64xbf16> to vector<3x64xbf16>
    %cst_54 = arith.constant dense<0.000000e+00> : vector<72x64xf32>
    %55 = tpu.matmul %52, %54, %cst_54 {dimension_numbers = #tpu.dot_dimension_numbers<[1], [0], [0], [1], [0, 0, 1, 1], [], []>} : vector<72x3xbf16>, vector<3x64xbf16>, vector<72x64xf32> -> vector<72x64xf32>
    %56 = arith.addf %49, %55 : vector<72x64xf32>
    %c0_55 = arith.constant 0 : index
    %c0_56 = arith.constant 0 : index
    %c10 = arith.constant 10 : index
    %c0_57 = arith.constant 0 : index
    %57 = vector.load %arg1[%c0_55, %c0_56, %c10, %c0_57] : memref<1x4x88x3xf32, #tpu.memory_space<vmem>>, vector<1x1x72x3xf32>
    %58 = vector.shape_cast %57 : vector<1x1x72x3xf32> to vector<72x3xf32>
    %59 = arith.truncf %58 : vector<72x3xf32> to vector<72x3xbf16>
    %c8 = arith.constant 8 : index
    %c0_58 = arith.constant 0 : index
    %c0_59 = arith.constant 0 : index
    %60 = vector.load %arg2[%c8, %c0_58, %c0_59] : memref<9x3x64xbf16, #tpu.memory_space<vmem>>, vector<1x3x64xbf16>
    %61 = vector.shape_cast %60 : vector<1x3x64xbf16> to vector<3x64xbf16>
    %cst_60 = arith.constant dense<0.000000e+00> : vector<72x64xf32>
    %62 = tpu.matmul %59, %61, %cst_60 {dimension_numbers = #tpu.dot_dimension_numbers<[1], [0], [0], [1], [0, 0, 1, 1], [], []>} : vector<72x3xbf16>, vector<3x64xbf16>, vector<72x64xf32> -> vector<72x64xf32>
    %63 = arith.addf %56, %62 : vector<72x64xf32>
    %cst_61 = arith.constant 0.000000e+00 : f32
    %64 = vector.broadcast %cst_61 : f32 to vector<72x64xf32>
    %c0_62 = arith.constant 0 : index
    %c1_63 = arith.constant 1 : index
    %c0_64 = arith.constant 0 : index
    %c0_65 = arith.constant 0 : index
    %65 = vector.load %arg1[%c0_62, %c1_63, %c0_64, %c0_65] : memref<1x4x88x3xf32, #tpu.memory_space<vmem>>, vector<1x1x72x3xf32>
    %66 = vector.shape_cast %65 : vector<1x1x72x3xf32> to vector<72x3xf32>
    %67 = arith.truncf %66 : vector<72x3xf32> to vector<72x3xbf16>
    %c0_66 = arith.constant 0 : index
    %c0_67 = arith.constant 0 : index
    %c0_68 = arith.constant 0 : index
    %68 = vector.load %arg2[%c0_66, %c0_67, %c0_68] : memref<9x3x64xbf16, #tpu.memory_space<vmem>>, vector<1x3x64xbf16>
    %69 = vector.shape_cast %68 : vector<1x3x64xbf16> to vector<3x64xbf16>
    %cst_69 = arith.constant dense<0.000000e+00> : vector<72x64xf32>
    %70 = tpu.matmul %67, %69, %cst_69 {dimension_numbers = #tpu.dot_dimension_numbers<[1], [0], [0], [1], [0, 0, 1, 1], [], []>} : vector<72x3xbf16>, vector<3x64xbf16>, vector<72x64xf32> -> vector<72x64xf32>
    %71 = arith.addf %64, %70 : vector<72x64xf32>
    %c0_70 = arith.constant 0 : index
    %c0_71 = arith.constant 0 : index
    %c1_72 = arith.constant 1 : index
    %c0_73 = arith.constant 0 : index
    %72 = vector.load %arg1[%c0_70, %c0_71, %c1_72, %c0_73] : memref<1x4x88x3xf32, #tpu.memory_space<vmem>>, vector<1x1x72x3xf32>
    %73 = vector.shape_cast %72 : vector<1x1x72x3xf32> to vector<72x3xf32>
    %74 = arith.truncf %73 : vector<72x3xf32> to vector<72x3xbf16>
    %c1_74 = arith.constant 1 : index
    %c0_75 = arith.constant 0 : index
    %c0_76 = arith.constant 0 : index
    %75 = vector.load %arg2[%c1_74, %c0_75, %c0_76] : memref<9x3x64xbf16, #tpu.memory_space<vmem>>, vector<1x3x64xbf16>
    %76 = vector.shape_cast %75 : vector<1x3x64xbf16> to vector<3x64xbf16>
    %cst_77 = arith.constant dense<0.000000e+00> : vector<72x64xf32>
    %77 = tpu.matmul %74, %76, %cst_77 {dimension_numbers = #tpu.dot_dimension_numbers<[1], [0], [0], [1], [0, 0, 1, 1], [], []>} : vector<72x3xbf16>, vector<3x64xbf16>, vector<72x64xf32> -> vector<72x64xf32>
    %78 = arith.addf %71, %77 : vector<72x64xf32>
    %c0_78 = arith.constant 0 : index
    %c1_79 = arith.constant 1 : index
    %c1_80 = arith.constant 1 : index
    %c0_81 = arith.constant 0 : index
    %79 = vector.load %arg1[%c0_78, %c1_79, %c1_80, %c0_81] : memref<1x4x88x3xf32, #tpu.memory_space<vmem>>, vector<1x1x72x3xf32>
    %80 = vector.shape_cast %79 : vector<1x1x72x3xf32> to vector<72x3xf32>
    %81 = arith.truncf %80 : vector<72x3xf32> to vector<72x3xbf16>
    %c2_82 = arith.constant 2 : index
    %c0_83 = arith.constant 0 : index
    %c0_84 = arith.constant 0 : index
    %82 = vector.load %arg2[%c2_82, %c0_83, %c0_84] : memref<9x3x64xbf16, #tpu.memory_space<vmem>>, vector<1x3x64xbf16>
    %83 = vector.shape_cast %82 : vector<1x3x64xbf16> to vector<3x64xbf16>
    %cst_85 = arith.constant dense<0.000000e+00> : vector<72x64xf32>
    %84 = tpu.matmul %81, %83, %cst_85 {dimension_numbers = #tpu.dot_dimension_numbers<[1], [0], [0], [1], [0, 0, 1, 1], [], []>} : vector<72x3xbf16>, vector<3x64xbf16>, vector<72x64xf32> -> vector<72x64xf32>
    %85 = arith.addf %78, %84 : vector<72x64xf32>
    %c0_86 = arith.constant 0 : index
    %c3_87 = arith.constant 3 : index
    %c0_88 = arith.constant 0 : index
    %c0_89 = arith.constant 0 : index
    %86 = vector.load %arg1[%c0_86, %c3_87, %c0_88, %c0_89] : memref<1x4x88x3xf32, #tpu.memory_space<vmem>>, vector<1x1x72x3xf32>
    %87 = vector.shape_cast %86 : vector<1x1x72x3xf32> to vector<72x3xf32>
    %88 = arith.truncf %87 : vector<72x3xf32> to vector<72x3xbf16>
    %c3_90 = arith.constant 3 : index
    %c0_91 = arith.constant 0 : index
    %c0_92 = arith.constant 0 : index
    %89 = vector.load %arg2[%c3_90, %c0_91, %c0_92] : memref<9x3x64xbf16, #tpu.memory_space<vmem>>, vector<1x3x64xbf16>
    %90 = vector.shape_cast %89 : vector<1x3x64xbf16> to vector<3x64xbf16>
    %cst_93 = arith.constant dense<0.000000e+00> : vector<72x64xf32>
    %91 = tpu.matmul %88, %90, %cst_93 {dimension_numbers = #tpu.dot_dimension_numbers<[1], [0], [0], [1], [0, 0, 1, 1], [], []>} : vector<72x3xbf16>, vector<3x64xbf16>, vector<72x64xf32> -> vector<72x64xf32>
    %92 = arith.addf %85, %91 : vector<72x64xf32>
    %c0_94 = arith.constant 0 : index
    %c2_95 = arith.constant 2 : index
    %c1_96 = arith.constant 1 : index
    %c0_97 = arith.constant 0 : index
    %93 = vector.load %arg1[%c0_94, %c2_95, %c1_96, %c0_97] : memref<1x4x88x3xf32, #tpu.memory_space<vmem>>, vector<1x1x72x3xf32>
    %94 = vector.shape_cast %93 : vector<1x1x72x3xf32> to vector<72x3xf32>
    %95 = arith.truncf %94 : vector<72x3xf32> to vector<72x3xbf16>
    %c4_98 = arith.constant 4 : index
    %c0_99 = arith.constant 0 : index
    %c0_100 = arith.constant 0 : index
    %96 = vector.load %arg2[%c4_98, %c0_99, %c0_100] : memref<9x3x64xbf16, #tpu.memory_space<vmem>>, vector<1x3x64xbf16>
    %97 = vector.shape_cast %96 : vector<1x3x64xbf16> to vector<3x64xbf16>
    %cst_101 = arith.constant dense<0.000000e+00> : vector<72x64xf32>
    %98 = tpu.matmul %95, %97, %cst_101 {dimension_numbers = #tpu.dot_dimension_numbers<[1], [0], [0], [1], [0, 0, 1, 1], [], []>} : vector<72x3xbf16>, vector<3x64xbf16>, vector<72x64xf32> -> vector<72x64xf32>
    %99 = arith.addf %92, %98 : vector<72x64xf32>
    %c0_102 = arith.constant 0 : index
    %c3_103 = arith.constant 3 : index
    %c1_104 = arith.constant 1 : index
    %c0_105 = arith.constant 0 : index
    %100 = vector.load %arg1[%c0_102, %c3_103, %c1_104, %c0_105] : memref<1x4x88x3xf32, #tpu.memory_space<vmem>>, vector<1x1x72x3xf32>
    %101 = vector.shape_cast %100 : vector<1x1x72x3xf32> to vector<72x3xf32>
    %102 = arith.truncf %101 : vector<72x3xf32> to vector<72x3xbf16>
    %c5_106 = arith.constant 5 : index
    %c0_107 = arith.constant 0 : index
    %c0_108 = arith.constant 0 : index
    %103 = vector.load %arg2[%c5_106, %c0_107, %c0_108] : memref<9x3x64xbf16, #tpu.memory_space<vmem>>, vector<1x3x64xbf16>
    %104 = vector.shape_cast %103 : vector<1x3x64xbf16> to vector<3x64xbf16>
    %cst_109 = arith.constant dense<0.000000e+00> : vector<72x64xf32>
    %105 = tpu.matmul %102, %104, %cst_109 {dimension_numbers = #tpu.dot_dimension_numbers<[1], [0], [0], [1], [0, 0, 1, 1], [], []>} : vector<72x3xbf16>, vector<3x64xbf16>, vector<72x64xf32> -> vector<72x64xf32>
    %106 = arith.addf %99, %105 : vector<72x64xf32>
    %c0_110 = arith.constant 0 : index
    %c1_111 = arith.constant 1 : index
    %c9_112 = arith.constant 9 : index
    %c0_113 = arith.constant 0 : index
    %107 = vector.load %arg1[%c0_110, %c1_111, %c9_112, %c0_113] : memref<1x4x88x3xf32, #tpu.memory_space<vmem>>, vector<1x1x72x3xf32>
    %108 = vector.shape_cast %107 : vector<1x1x72x3xf32> to vector<72x3xf32>
    %109 = arith.truncf %108 : vector<72x3xf32> to vector<72x3xbf16>
    %c6_114 = arith.constant 6 : index
    %c0_115 = arith.constant 0 : index
    %c0_116 = arith.constant 0 : index
    %110 = vector.load %arg2[%c6_114, %c0_115, %c0_116] : memref<9x3x64xbf16, #tpu.memory_space<vmem>>, vector<1x3x64xbf16>
    %111 = vector.shape_cast %110 : vector<1x3x64xbf16> to vector<3x64xbf16>
    %cst_117 = arith.constant dense<0.000000e+00> : vector<72x64xf32>
    %112 = tpu.matmul %109, %111, %cst_117 {dimension_numbers = #tpu.dot_dimension_numbers<[1], [0], [0], [1], [0, 0, 1, 1], [], []>} : vector<72x3xbf16>, vector<3x64xbf16>, vector<72x64xf32> -> vector<72x64xf32>
    %113 = arith.addf %106, %112 : vector<72x64xf32>
    %c0_118 = arith.constant 0 : index
    %c0_119 = arith.constant 0 : index
    %c10_120 = arith.constant 10 : index
    %c0_121 = arith.constant 0 : index
    %114 = vector.load %arg1[%c0_118, %c0_119, %c10_120, %c0_121] : memref<1x4x88x3xf32, #tpu.memory_space<vmem>>, vector<1x1x72x3xf32>
    %115 = vector.shape_cast %114 : vector<1x1x72x3xf32> to vector<72x3xf32>
    %116 = arith.truncf %115 : vector<72x3xf32> to vector<72x3xbf16>
    %c7_122 = arith.constant 7 : index
    %c0_123 = arith.constant 0 : index
    %c0_124 = arith.constant 0 : index
    %117 = vector.load %arg2[%c7_122, %c0_123, %c0_124] : memref<9x3x64xbf16, #tpu.memory_space<vmem>>, vector<1x3x64xbf16>
    %118 = vector.shape_cast %117 : vector<1x3x64xbf16> to vector<3x64xbf16>
    %cst_125 = arith.constant dense<0.000000e+00> : vector<72x64xf32>
    %119 = tpu.matmul %116, %118, %cst_125 {dimension_numbers = #tpu.dot_dimension_numbers<[1], [0], [0], [1], [0, 0, 1, 1], [], []>} : vector<72x3xbf16>, vector<3x64xbf16>, vector<72x64xf32> -> vector<72x64xf32>
    %120 = arith.addf %113, %119 : vector<72x64xf32>
    %c0_126 = arith.constant 0 : index
    %c1_127 = arith.constant 1 : index
    %c10_128 = arith.constant 10 : index
    %c0_129 = arith.constant 0 : index
    %121 = vector.load %arg1[%c0_126, %c1_127, %c10_128, %c0_129] : memref<1x4x88x3xf32, #tpu.memory_space<vmem>>, vector<1x1x72x3xf32>
    %122 = vector.shape_cast %121 : vector<1x1x72x3xf32> to vector<72x3xf32>
    %123 = arith.truncf %122 : vector<72x3xf32> to vector<72x3xbf16>
    %c8_130 = arith.constant 8 : index
    %c0_131 = arith.constant 0 : index
    %c0_132 = arith.constant 0 : index
    %124 = vector.load %arg2[%c8_130, %c0_131, %c0_132] : memref<9x3x64xbf16, #tpu.memory_space<vmem>>, vector<1x3x64xbf16>
    %125 = vector.shape_cast %124 : vector<1x3x64xbf16> to vector<3x64xbf16>
    %cst_133 = arith.constant dense<0.000000e+00> : vector<72x64xf32>
    %126 = tpu.matmul %123, %125, %cst_133 {dimension_numbers = #tpu.dot_dimension_numbers<[1], [0], [0], [1], [0, 0, 1, 1], [], []>} : vector<72x3xbf16>, vector<3x64xbf16>, vector<72x64xf32> -> vector<72x64xf32>
    %127 = arith.addf %120, %126 : vector<72x64xf32>
    %128 = arith.maximumf %63, %127 : vector<72x64xf32>
    %cst_134 = arith.constant 0.000000e+00 : f32
    %129 = vector.broadcast %cst_134 : f32 to vector<72x64xf32>
    %c0_135 = arith.constant 0 : index
    %c2_136 = arith.constant 2 : index
    %c0_137 = arith.constant 0 : index
    %c0_138 = arith.constant 0 : index
    %130 = vector.load %arg1[%c0_135, %c2_136, %c0_137, %c0_138] : memref<1x4x88x3xf32, #tpu.memory_space<vmem>>, vector<1x1x72x3xf32>
    %131 = vector.shape_cast %130 : vector<1x1x72x3xf32> to vector<72x3xf32>
    %132 = arith.truncf %131 : vector<72x3xf32> to vector<72x3xbf16>
    %c0_139 = arith.constant 0 : index
    %c0_140 = arith.constant 0 : index
    %c0_141 = arith.constant 0 : index
    %133 = vector.load %arg2[%c0_139, %c0_140, %c0_141] : memref<9x3x64xbf16, #tpu.memory_space<vmem>>, vector<1x3x64xbf16>
    %134 = vector.shape_cast %133 : vector<1x3x64xbf16> to vector<3x64xbf16>
    %cst_142 = arith.constant dense<0.000000e+00> : vector<72x64xf32>
    %135 = tpu.matmul %132, %134, %cst_142 {dimension_numbers = #tpu.dot_dimension_numbers<[1], [0], [0], [1], [0, 0, 1, 1], [], []>} : vector<72x3xbf16>, vector<3x64xbf16>, vector<72x64xf32> -> vector<72x64xf32>
    %136 = arith.addf %129, %135 : vector<72x64xf32>
    %c0_143 = arith.constant 0 : index
    %c3_144 = arith.constant 3 : index
    %c0_145 = arith.constant 0 : index
    %c0_146 = arith.constant 0 : index
    %137 = vector.load %arg1[%c0_143, %c3_144, %c0_145, %c0_146] : memref<1x4x88x3xf32, #tpu.memory_space<vmem>>, vector<1x1x72x3xf32>
    %138 = vector.shape_cast %137 : vector<1x1x72x3xf32> to vector<72x3xf32>
    %139 = arith.truncf %138 : vector<72x3xf32> to vector<72x3xbf16>
    %c1_147 = arith.constant 1 : index
    %c0_148 = arith.constant 0 : index
    %c0_149 = arith.constant 0 : index
    %140 = vector.load %arg2[%c1_147, %c0_148, %c0_149] : memref<9x3x64xbf16, #tpu.memory_space<vmem>>, vector<1x3x64xbf16>
    %141 = vector.shape_cast %140 : vector<1x3x64xbf16> to vector<3x64xbf16>
    %cst_150 = arith.constant dense<0.000000e+00> : vector<72x64xf32>
    %142 = tpu.matmul %139, %141, %cst_150 {dimension_numbers = #tpu.dot_dimension_numbers<[1], [0], [0], [1], [0, 0, 1, 1], [], []>} : vector<72x3xbf16>, vector<3x64xbf16>, vector<72x64xf32> -> vector<72x64xf32>
    %143 = arith.addf %136, %142 : vector<72x64xf32>
    %c0_151 = arith.constant 0 : index
    %c2_152 = arith.constant 2 : index
    %c1_153 = arith.constant 1 : index
    %c0_154 = arith.constant 0 : index
    %144 = vector.load %arg1[%c0_151, %c2_152, %c1_153, %c0_154] : memref<1x4x88x3xf32, #tpu.memory_space<vmem>>, vector<1x1x72x3xf32>
    %145 = vector.shape_cast %144 : vector<1x1x72x3xf32> to vector<72x3xf32>
    %146 = arith.truncf %145 : vector<72x3xf32> to vector<72x3xbf16>
    %c2_155 = arith.constant 2 : index
    %c0_156 = arith.constant 0 : index
    %c0_157 = arith.constant 0 : index
    %147 = vector.load %arg2[%c2_155, %c0_156, %c0_157] : memref<9x3x64xbf16, #tpu.memory_space<vmem>>, vector<1x3x64xbf16>
    %148 = vector.shape_cast %147 : vector<1x3x64xbf16> to vector<3x64xbf16>
    %cst_158 = arith.constant dense<0.000000e+00> : vector<72x64xf32>
    %149 = tpu.matmul %146, %148, %cst_158 {dimension_numbers = #tpu.dot_dimension_numbers<[1], [0], [0], [1], [0, 0, 1, 1], [], []>} : vector<72x3xbf16>, vector<3x64xbf16>, vector<72x64xf32> -> vector<72x64xf32>
    %150 = arith.addf %143, %149 : vector<72x64xf32>
    %c0_159 = arith.constant 0 : index
    %c0_160 = arith.constant 0 : index
    %c9_161 = arith.constant 9 : index
    %c0_162 = arith.constant 0 : index
    %151 = vector.load %arg1[%c0_159, %c0_160, %c9_161, %c0_162] : memref<1x4x88x3xf32, #tpu.memory_space<vmem>>, vector<1x1x72x3xf32>
    %152 = vector.shape_cast %151 : vector<1x1x72x3xf32> to vector<72x3xf32>
    %153 = arith.truncf %152 : vector<72x3xf32> to vector<72x3xbf16>
    %c3_163 = arith.constant 3 : index
    %c0_164 = arith.constant 0 : index
    %c0_165 = arith.constant 0 : index
    %154 = vector.load %arg2[%c3_163, %c0_164, %c0_165] : memref<9x3x64xbf16, #tpu.memory_space<vmem>>, vector<1x3x64xbf16>
    %155 = vector.shape_cast %154 : vector<1x3x64xbf16> to vector<3x64xbf16>
    %cst_166 = arith.constant dense<0.000000e+00> : vector<72x64xf32>
    %156 = tpu.matmul %153, %155, %cst_166 {dimension_numbers = #tpu.dot_dimension_numbers<[1], [0], [0], [1], [0, 0, 1, 1], [], []>} : vector<72x3xbf16>, vector<3x64xbf16>, vector<72x64xf32> -> vector<72x64xf32>
    %157 = arith.addf %150, %156 : vector<72x64xf32>
    %c0_167 = arith.constant 0 : index
    %c1_168 = arith.constant 1 : index
    %c9_169 = arith.constant 9 : index
    %c0_170 = arith.constant 0 : index
    %158 = vector.load %arg1[%c0_167, %c1_168, %c9_169, %c0_170] : memref<1x4x88x3xf32, #tpu.memory_space<vmem>>, vector<1x1x72x3xf32>
    %159 = vector.shape_cast %158 : vector<1x1x72x3xf32> to vector<72x3xf32>
    %160 = arith.truncf %159 : vector<72x3xf32> to vector<72x3xbf16>
    %c4_171 = arith.constant 4 : index
    %c0_172 = arith.constant 0 : index
    %c0_173 = arith.constant 0 : index
    %161 = vector.load %arg2[%c4_171, %c0_172, %c0_173] : memref<9x3x64xbf16, #tpu.memory_space<vmem>>, vector<1x3x64xbf16>
    %162 = vector.shape_cast %161 : vector<1x3x64xbf16> to vector<3x64xbf16>
    %cst_174 = arith.constant dense<0.000000e+00> : vector<72x64xf32>
    %163 = tpu.matmul %160, %162, %cst_174 {dimension_numbers = #tpu.dot_dimension_numbers<[1], [0], [0], [1], [0, 0, 1, 1], [], []>} : vector<72x3xbf16>, vector<3x64xbf16>, vector<72x64xf32> -> vector<72x64xf32>
    %164 = arith.addf %157, %163 : vector<72x64xf32>
    %c0_175 = arith.constant 0 : index
    %c0_176 = arith.constant 0 : index
    %c10_177 = arith.constant 10 : index
    %c0_178 = arith.constant 0 : index
    %165 = vector.load %arg1[%c0_175, %c0_176, %c10_177, %c0_178] : memref<1x4x88x3xf32, #tpu.memory_space<vmem>>, vector<1x1x72x3xf32>
    %166 = vector.shape_cast %165 : vector<1x1x72x3xf32> to vector<72x3xf32>
    %167 = arith.truncf %166 : vector<72x3xf32> to vector<72x3xbf16>
    %c5_179 = arith.constant 5 : index
    %c0_180 = arith.constant 0 : index
    %c0_181 = arith.constant 0 : index
    %168 = vector.load %arg2[%c5_179, %c0_180, %c0_181] : memref<9x3x64xbf16, #tpu.memory_space<vmem>>, vector<1x3x64xbf16>
    %169 = vector.shape_cast %168 : vector<1x3x64xbf16> to vector<3x64xbf16>
    %cst_182 = arith.constant dense<0.000000e+00> : vector<72x64xf32>
    %170 = tpu.matmul %167, %169, %cst_182 {dimension_numbers = #tpu.dot_dimension_numbers<[1], [0], [0], [1], [0, 0, 1, 1], [], []>} : vector<72x3xbf16>, vector<3x64xbf16>, vector<72x64xf32> -> vector<72x64xf32>
    %171 = arith.addf %164, %170 : vector<72x64xf32>
    %c0_183 = arith.constant 0 : index
    %c2_184 = arith.constant 2 : index
    %c9_185 = arith.constant 9 : index
    %c0_186 = arith.constant 0 : index
    %172 = vector.load %arg1[%c0_183, %c2_184, %c9_185, %c0_186] : memref<1x4x88x3xf32, #tpu.memory_space<vmem>>, vector<1x1x72x3xf32>
    %173 = vector.shape_cast %172 : vector<1x1x72x3xf32> to vector<72x3xf32>
    %174 = arith.truncf %173 : vector<72x3xf32> to vector<72x3xbf16>
    %c6_187 = arith.constant 6 : index
    %c0_188 = arith.constant 0 : index
    %c0_189 = arith.constant 0 : index
    %175 = vector.load %arg2[%c6_187, %c0_188, %c0_189] : memref<9x3x64xbf16, #tpu.memory_space<vmem>>, vector<1x3x64xbf16>
    %176 = vector.shape_cast %175 : vector<1x3x64xbf16> to vector<3x64xbf16>
    %cst_190 = arith.constant dense<0.000000e+00> : vector<72x64xf32>
    %177 = tpu.matmul %174, %176, %cst_190 {dimension_numbers = #tpu.dot_dimension_numbers<[1], [0], [0], [1], [0, 0, 1, 1], [], []>} : vector<72x3xbf16>, vector<3x64xbf16>, vector<72x64xf32> -> vector<72x64xf32>
    %178 = arith.addf %171, %177 : vector<72x64xf32>
    %c0_191 = arith.constant 0 : index
    %c3_192 = arith.constant 3 : index
    %c9_193 = arith.constant 9 : index
    %c0_194 = arith.constant 0 : index
    %179 = vector.load %arg1[%c0_191, %c3_192, %c9_193, %c0_194] : memref<1x4x88x3xf32, #tpu.memory_space<vmem>>, vector<1x1x72x3xf32>
    %180 = vector.shape_cast %179 : vector<1x1x72x3xf32> to vector<72x3xf32>
    %181 = arith.truncf %180 : vector<72x3xf32> to vector<72x3xbf16>
    %c7_195 = arith.constant 7 : index
    %c0_196 = arith.constant 0 : index
    %c0_197 = arith.constant 0 : index
    %182 = vector.load %arg2[%c7_195, %c0_196, %c0_197] : memref<9x3x64xbf16, #tpu.memory_space<vmem>>, vector<1x3x64xbf16>
    %183 = vector.shape_cast %182 : vector<1x3x64xbf16> to vector<3x64xbf16>
    %cst_198 = arith.constant dense<0.000000e+00> : vector<72x64xf32>
    %184 = tpu.matmul %181, %183, %cst_198 {dimension_numbers = #tpu.dot_dimension_numbers<[1], [0], [0], [1], [0, 0, 1, 1], [], []>} : vector<72x3xbf16>, vector<3x64xbf16>, vector<72x64xf32> -> vector<72x64xf32>
    %185 = arith.addf %178, %184 : vector<72x64xf32>
    %c0_199 = arith.constant 0 : index
    %c2_200 = arith.constant 2 : index
    %c10_201 = arith.constant 10 : index
    %c0_202 = arith.constant 0 : index
    %186 = vector.load %arg1[%c0_199, %c2_200, %c10_201, %c0_202] : memref<1x4x88x3xf32, #tpu.memory_space<vmem>>, vector<1x1x72x3xf32>
    %187 = vector.shape_cast %186 : vector<1x1x72x3xf32> to vector<72x3xf32>
    %188 = arith.truncf %187 : vector<72x3xf32> to vector<72x3xbf16>
    %c8_203 = arith.constant 8 : index
    %c0_204 = arith.constant 0 : index
    %c0_205 = arith.constant 0 : index
    %189 = vector.load %arg2[%c8_203, %c0_204, %c0_205] : memref<9x3x64xbf16, #tpu.memory_space<vmem>>, vector<1x3x64xbf16>
    %190 = vector.shape_cast %189 : vector<1x3x64xbf16> to vector<3x64xbf16>
    %cst_206 = arith.constant dense<0.000000e+00> : vector<72x64xf32>
    %191 = tpu.matmul %188, %190, %cst_206 {dimension_numbers = #tpu.dot_dimension_numbers<[1], [0], [0], [1], [0, 0, 1, 1], [], []>} : vector<72x3xbf16>, vector<3x64xbf16>, vector<72x64xf32> -> vector<72x64xf32>
    %192 = arith.addf %185, %191 : vector<72x64xf32>
    %193 = arith.maximumf %128, %192 : vector<72x64xf32>
    %cst_207 = arith.constant 0.000000e+00 : f32
    %194 = vector.broadcast %cst_207 : f32 to vector<72x64xf32>
    %c0_208 = arith.constant 0 : index
    %c3_209 = arith.constant 3 : index
    %c0_210 = arith.constant 0 : index
    %c0_211 = arith.constant 0 : index
    %195 = vector.load %arg1[%c0_208, %c3_209, %c0_210, %c0_211] : memref<1x4x88x3xf32, #tpu.memory_space<vmem>>, vector<1x1x72x3xf32>
    %196 = vector.shape_cast %195 : vector<1x1x72x3xf32> to vector<72x3xf32>
    %197 = arith.truncf %196 : vector<72x3xf32> to vector<72x3xbf16>
    %c0_212 = arith.constant 0 : index
    %c0_213 = arith.constant 0 : index
    %c0_214 = arith.constant 0 : index
    %198 = vector.load %arg2[%c0_212, %c0_213, %c0_214] : memref<9x3x64xbf16, #tpu.memory_space<vmem>>, vector<1x3x64xbf16>
    %199 = vector.shape_cast %198 : vector<1x3x64xbf16> to vector<3x64xbf16>
    %cst_215 = arith.constant dense<0.000000e+00> : vector<72x64xf32>
    %200 = tpu.matmul %197, %199, %cst_215 {dimension_numbers = #tpu.dot_dimension_numbers<[1], [0], [0], [1], [0, 0, 1, 1], [], []>} : vector<72x3xbf16>, vector<3x64xbf16>, vector<72x64xf32> -> vector<72x64xf32>
    %201 = arith.addf %194, %200 : vector<72x64xf32>
    %c0_216 = arith.constant 0 : index
    %c2_217 = arith.constant 2 : index
    %c1_218 = arith.constant 1 : index
    %c0_219 = arith.constant 0 : index
    %202 = vector.load %arg1[%c0_216, %c2_217, %c1_218, %c0_219] : memref<1x4x88x3xf32, #tpu.memory_space<vmem>>, vector<1x1x72x3xf32>
    %203 = vector.shape_cast %202 : vector<1x1x72x3xf32> to vector<72x3xf32>
    %204 = arith.truncf %203 : vector<72x3xf32> to vector<72x3xbf16>
    %c1_220 = arith.constant 1 : index
    %c0_221 = arith.constant 0 : index
    %c0_222 = arith.constant 0 : index
    %205 = vector.load %arg2[%c1_220, %c0_221, %c0_222] : memref<9x3x64xbf16, #tpu.memory_space<vmem>>, vector<1x3x64xbf16>
    %206 = vector.shape_cast %205 : vector<1x3x64xbf16> to vector<3x64xbf16>
    %cst_223 = arith.constant dense<0.000000e+00> : vector<72x64xf32>
    %207 = tpu.matmul %204, %206, %cst_223 {dimension_numbers = #tpu.dot_dimension_numbers<[1], [0], [0], [1], [0, 0, 1, 1], [], []>} : vector<72x3xbf16>, vector<3x64xbf16>, vector<72x64xf32> -> vector<72x64xf32>
    %208 = arith.addf %201, %207 : vector<72x64xf32>
    %c0_224 = arith.constant 0 : index
    %c3_225 = arith.constant 3 : index
    %c1_226 = arith.constant 1 : index
    %c0_227 = arith.constant 0 : index
    %209 = vector.load %arg1[%c0_224, %c3_225, %c1_226, %c0_227] : memref<1x4x88x3xf32, #tpu.memory_space<vmem>>, vector<1x1x72x3xf32>
    %210 = vector.shape_cast %209 : vector<1x1x72x3xf32> to vector<72x3xf32>
    %211 = arith.truncf %210 : vector<72x3xf32> to vector<72x3xbf16>
    %c2_228 = arith.constant 2 : index
    %c0_229 = arith.constant 0 : index
    %c0_230 = arith.constant 0 : index
    %212 = vector.load %arg2[%c2_228, %c0_229, %c0_230] : memref<9x3x64xbf16, #tpu.memory_space<vmem>>, vector<1x3x64xbf16>
    %213 = vector.shape_cast %212 : vector<1x3x64xbf16> to vector<3x64xbf16>
    %cst_231 = arith.constant dense<0.000000e+00> : vector<72x64xf32>
    %214 = tpu.matmul %211, %213, %cst_231 {dimension_numbers = #tpu.dot_dimension_numbers<[1], [0], [0], [1], [0, 0, 1, 1], [], []>} : vector<72x3xbf16>, vector<3x64xbf16>, vector<72x64xf32> -> vector<72x64xf32>
    %215 = arith.addf %208, %214 : vector<72x64xf32>
    %c0_232 = arith.constant 0 : index
    %c1_233 = arith.constant 1 : index
    %c9_234 = arith.constant 9 : index
    %c0_235 = arith.constant 0 : index
    %216 = vector.load %arg1[%c0_232, %c1_233, %c9_234, %c0_235] : memref<1x4x88x3xf32, #tpu.memory_space<vmem>>, vector<1x1x72x3xf32>
    %217 = vector.shape_cast %216 : vector<1x1x72x3xf32> to vector<72x3xf32>
    %218 = arith.truncf %217 : vector<72x3xf32> to vector<72x3xbf16>
    %c3_236 = arith.constant 3 : index
    %c0_237 = arith.constant 0 : index
    %c0_238 = arith.constant 0 : index
    %219 = vector.load %arg2[%c3_236, %c0_237, %c0_238] : memref<9x3x64xbf16, #tpu.memory_space<vmem>>, vector<1x3x64xbf16>
    %220 = vector.shape_cast %219 : vector<1x3x64xbf16> to vector<3x64xbf16>
    %cst_239 = arith.constant dense<0.000000e+00> : vector<72x64xf32>
    %221 = tpu.matmul %218, %220, %cst_239 {dimension_numbers = #tpu.dot_dimension_numbers<[1], [0], [0], [1], [0, 0, 1, 1], [], []>} : vector<72x3xbf16>, vector<3x64xbf16>, vector<72x64xf32> -> vector<72x64xf32>
    %222 = arith.addf %215, %221 : vector<72x64xf32>
    %c0_240 = arith.constant 0 : index
    %c0_241 = arith.constant 0 : index
    %c10_242 = arith.constant 10 : index
    %c0_243 = arith.constant 0 : index
    %223 = vector.load %arg1[%c0_240, %c0_241, %c10_242, %c0_243] : memref<1x4x88x3xf32, #tpu.memory_space<vmem>>, vector<1x1x72x3xf32>
    %224 = vector.shape_cast %223 : vector<1x1x72x3xf32> to vector<72x3xf32>
    %225 = arith.truncf %224 : vector<72x3xf32> to vector<72x3xbf16>
    %c4_244 = arith.constant 4 : index
    %c0_245 = arith.constant 0 : index
    %c0_246 = arith.constant 0 : index
    %226 = vector.load %arg2[%c4_244, %c0_245, %c0_246] : memref<9x3x64xbf16, #tpu.memory_space<vmem>>, vector<1x3x64xbf16>
    %227 = vector.shape_cast %226 : vector<1x3x64xbf16> to vector<3x64xbf16>
    %cst_247 = arith.constant dense<0.000000e+00> : vector<72x64xf32>
    %228 = tpu.matmul %225, %227, %cst_247 {dimension_numbers = #tpu.dot_dimension_numbers<[1], [0], [0], [1], [0, 0, 1, 1], [], []>} : vector<72x3xbf16>, vector<3x64xbf16>, vector<72x64xf32> -> vector<72x64xf32>
    %229 = arith.addf %222, %228 : vector<72x64xf32>
    %c0_248 = arith.constant 0 : index
    %c1_249 = arith.constant 1 : index
    %c10_250 = arith.constant 10 : index
    %c0_251 = arith.constant 0 : index
    %230 = vector.load %arg1[%c0_248, %c1_249, %c10_250, %c0_251] : memref<1x4x88x3xf32, #tpu.memory_space<vmem>>, vector<1x1x72x3xf32>
    %231 = vector.shape_cast %230 : vector<1x1x72x3xf32> to vector<72x3xf32>
    %232 = arith.truncf %231 : vector<72x3xf32> to vector<72x3xbf16>
    %c5_252 = arith.constant 5 : index
    %c0_253 = arith.constant 0 : index
    %c0_254 = arith.constant 0 : index
    %233 = vector.load %arg2[%c5_252, %c0_253, %c0_254] : memref<9x3x64xbf16, #tpu.memory_space<vmem>>, vector<1x3x64xbf16>
    %234 = vector.shape_cast %233 : vector<1x3x64xbf16> to vector<3x64xbf16>
    %cst_255 = arith.constant dense<0.000000e+00> : vector<72x64xf32>
    %235 = tpu.matmul %232, %234, %cst_255 {dimension_numbers = #tpu.dot_dimension_numbers<[1], [0], [0], [1], [0, 0, 1, 1], [], []>} : vector<72x3xbf16>, vector<3x64xbf16>, vector<72x64xf32> -> vector<72x64xf32>
    %236 = arith.addf %229, %235 : vector<72x64xf32>
    %c0_256 = arith.constant 0 : index
    %c3_257 = arith.constant 3 : index
    %c9_258 = arith.constant 9 : index
    %c0_259 = arith.constant 0 : index
    %237 = vector.load %arg1[%c0_256, %c3_257, %c9_258, %c0_259] : memref<1x4x88x3xf32, #tpu.memory_space<vmem>>, vector<1x1x72x3xf32>
    %238 = vector.shape_cast %237 : vector<1x1x72x3xf32> to vector<72x3xf32>
    %239 = arith.truncf %238 : vector<72x3xf32> to vector<72x3xbf16>
    %c6_260 = arith.constant 6 : index
    %c0_261 = arith.constant 0 : index
    %c0_262 = arith.constant 0 : index
    %240 = vector.load %arg2[%c6_260, %c0_261, %c0_262] : memref<9x3x64xbf16, #tpu.memory_space<vmem>>, vector<1x3x64xbf16>
    %241 = vector.shape_cast %240 : vector<1x3x64xbf16> to vector<3x64xbf16>
    %cst_263 = arith.constant dense<0.000000e+00> : vector<72x64xf32>
    %242 = tpu.matmul %239, %241, %cst_263 {dimension_numbers = #tpu.dot_dimension_numbers<[1], [0], [0], [1], [0, 0, 1, 1], [], []>} : vector<72x3xbf16>, vector<3x64xbf16>, vector<72x64xf32> -> vector<72x64xf32>
    %243 = arith.addf %236, %242 : vector<72x64xf32>
    %c0_264 = arith.constant 0 : index
    %c2_265 = arith.constant 2 : index
    %c10_266 = arith.constant 10 : index
    %c0_267 = arith.constant 0 : index
    %244 = vector.load %arg1[%c0_264, %c2_265, %c10_266, %c0_267] : memref<1x4x88x3xf32, #tpu.memory_space<vmem>>, vector<1x1x72x3xf32>
    %245 = vector.shape_cast %244 : vector<1x1x72x3xf32> to vector<72x3xf32>
    %246 = arith.truncf %245 : vector<72x3xf32> to vector<72x3xbf16>
    %c7_268 = arith.constant 7 : index
    %c0_269 = arith.constant 0 : index
    %c0_270 = arith.constant 0 : index
    %247 = vector.load %arg2[%c7_268, %c0_269, %c0_270] : memref<9x3x64xbf16, #tpu.memory_space<vmem>>, vector<1x3x64xbf16>
    %248 = vector.shape_cast %247 : vector<1x3x64xbf16> to vector<3x64xbf16>
    %cst_271 = arith.constant dense<0.000000e+00> : vector<72x64xf32>
    %249 = tpu.matmul %246, %248, %cst_271 {dimension_numbers = #tpu.dot_dimension_numbers<[1], [0], [0], [1], [0, 0, 1, 1], [], []>} : vector<72x3xbf16>, vector<3x64xbf16>, vector<72x64xf32> -> vector<72x64xf32>
    %250 = arith.addf %243, %249 : vector<72x64xf32>
    %c0_272 = arith.constant 0 : index
    %c3_273 = arith.constant 3 : index
    %c10_274 = arith.constant 10 : index
    %c0_275 = arith.constant 0 : index
    %251 = vector.load %arg1[%c0_272, %c3_273, %c10_274, %c0_275] : memref<1x4x88x3xf32, #tpu.memory_space<vmem>>, vector<1x1x72x3xf32>
    %252 = vector.shape_cast %251 : vector<1x1x72x3xf32> to vector<72x3xf32>
    %253 = arith.truncf %252 : vector<72x3xf32> to vector<72x3xbf16>
    %c8_276 = arith.constant 8 : index
    %c0_277 = arith.constant 0 : index
    %c0_278 = arith.constant 0 : index
    %254 = vector.load %arg2[%c8_276, %c0_277, %c0_278] : memref<9x3x64xbf16, #tpu.memory_space<vmem>>, vector<1x3x64xbf16>
    %255 = vector.shape_cast %254 : vector<1x3x64xbf16> to vector<3x64xbf16>
    %cst_279 = arith.constant dense<0.000000e+00> : vector<72x64xf32>
    %256 = tpu.matmul %253, %255, %cst_279 {dimension_numbers = #tpu.dot_dimension_numbers<[1], [0], [0], [1], [0, 0, 1, 1], [], []>} : vector<72x3xbf16>, vector<3x64xbf16>, vector<72x64xf32> -> vector<72x64xf32>
    %257 = arith.addf %250, %256 : vector<72x64xf32>
    %258 = arith.maximumf %193, %257 : vector<72x64xf32>
    %c0_280 = arith.constant 0 : index
    %c0_281 = arith.constant 0 : index
    %259 = vector.load %arg3[%c0_280, %c0_281] : memref<1x64xf32, #tpu.memory_space<vmem>>, vector<1x64xf32>
    %260 = vector.broadcast %259 : vector<1x64xf32> to vector<72x64xf32>
    %261 = arith.addf %258, %260 : vector<72x64xf32>
    %cst_282 = arith.constant 0.000000e+00 : f32
    %262 = vector.broadcast %cst_282 : f32 to vector<72x64xf32>
    %263 = arith.maximumf %261, %262 : vector<72x64xf32>
    %c0_283 = arith.constant 0 : index
    %c0_284 = arith.constant 0 : index
    %c0_285 = arith.constant 0 : index
    %264 = vector.load %arg4[%c0_283, %c0_284, %c0_285] : memref<1x72x64xf32, #tpu.memory_space<vmem>>, vector<1x72x64xf32>
    %265 = vector.shape_cast %264 : vector<1x72x64xf32> to vector<72x64xf32>
    %266 = vector.shape_cast %263 : vector<72x64xf32> to vector<1x72x64xf32>
    tpu.vector_store %arg4[%c0_283, %c0_284, %c0_285], %266 {strides = array<i32>} : memref<1x72x64xf32, #tpu.memory_space<vmem>>, vector<1x72x64xf32>,
    return
  }
  func.func @transform_0(%arg0: i32) -> (i32, i32, i32, i32) {
    %c0_i32 = arith.constant 0 : i32
    %c0_i32_0 = arith.constant 0 : i32
    %c0_i32_1 = arith.constant 0 : i32
    %c0_i32_2 = arith.constant 0 : i32
    return %arg0, %c0_i32, %c0_i32_0, %c0_i32_1 : i32, i32, i32, i32
  }
  func.func @transform_1(%arg0: i32) -> (i32, i32, i32) {
    %c0_i32 = arith.constant 0 : i32
    %c0_i32_0 = arith.constant 0 : i32
    %c0_i32_1 = arith.constant 0 : i32
    %c0_i32_2 = arith.constant 0 : i32
    return %c0_i32, %c0_i32_0, %c0_i32_1 : i32, i32, i32
  }
  func.func @transform_2(%arg0: i32) -> (i32, i32) {
    %c0_i32 = arith.constant 0 : i32
    %c0_i32_0 = arith.constant 0 : i32
    %c0_i32_1 = arith.constant 0 : i32
    return %c0_i32, %c0_i32_0 : i32, i32
  }
  func.func @transform_3(%arg0: i32) -> (i32, i32, i32) {
    %c0_i32 = arith.constant 0 : i32
    %c0_i32_0 = arith.constant 0 : i32
    %c0_i32_1 = arith.constant 0 : i32
    return %arg0, %c0_i32, %c0_i32_0 : i32, i32, i32
  }
}

module attributes {stable_mosaic.version = 11 : i64} {
  func.func @kernel(%arg0: i32, %arg1: memref<1x4x32x64xf32, #tpu.memory_space<vmem>>, %arg2: memref<9x64x128xbf16, #tpu.memory_space<vmem>>, %arg3: memref<1x128xf32, #tpu.memory_space<vmem>>, %arg4: memref<1x20x128xf32, #tpu.memory_space<vmem>>) attributes {dimension_semantics = [#tpu.dimension_semantics<parallel>], iteration_bounds = array<i64: 2>, scalar_prefetch = 0 : i64, scratch_operands = 0 : i64, tpu.core_type = #tpu.core_type<tc>, window_params = [{transform_indices = @transform_0, window_bounds = array<i64: 1, 4, 32, 64>}, {pipeline_mode = #tpu.pipeline_mode<synchronous>, transform_indices = @transform_1, window_bounds = array<i64: 9, 64, 128>}, {pipeline_mode = #tpu.pipeline_mode<synchronous>, transform_indices = @transform_2, window_bounds = array<i64: 1, 128>}, {transform_indices = @transform_3, window_bounds = array<i64: 1, 20, 128>}]} {
    %cst = arith.constant 0.000000e+00 : f32
    %0 = vector.broadcast %cst : f32 to vector<20x128xf32>
    %c0 = arith.constant 0 : index
    %c0_0 = arith.constant 0 : index
    %c0_1 = arith.constant 0 : index
    %c0_2 = arith.constant 0 : index
    %1 = vector.load %arg1[%c0, %c0_0, %c0_1, %c0_2] : memref<1x4x32x64xf32, #tpu.memory_space<vmem>>, vector<1x1x20x64xf32>
    %2 = vector.shape_cast %1 : vector<1x1x20x64xf32> to vector<20x64xf32>
    %3 = arith.truncf %2 : vector<20x64xf32> to vector<20x64xbf16>
    %c0_3 = arith.constant 0 : index
    %c0_4 = arith.constant 0 : index
    %c0_5 = arith.constant 0 : index
    %4 = vector.load %arg2[%c0_3, %c0_4, %c0_5] : memref<9x64x128xbf16, #tpu.memory_space<vmem>>, vector<1x64x128xbf16>
    %5 = vector.shape_cast %4 : vector<1x64x128xbf16> to vector<64x128xbf16>
    %cst_6 = arith.constant dense<0.000000e+00> : vector<20x128xf32>
    %6 = tpu.matmul %3, %5, %cst_6 {dimension_numbers = #tpu.dot_dimension_numbers<[1], [0], [0], [1], [0, 0, 1, 1], [], []>} : vector<20x64xbf16>, vector<64x128xbf16>, vector<20x128xf32> -> vector<20x128xf32>
    %7 = arith.addf %0, %6 : vector<20x128xf32>
    %c0_7 = arith.constant 0 : index
    %c1 = arith.constant 1 : index
    %c0_8 = arith.constant 0 : index
    %c0_9 = arith.constant 0 : index
    %8 = vector.load %arg1[%c0_7, %c1, %c0_8, %c0_9] : memref<1x4x32x64xf32, #tpu.memory_space<vmem>>, vector<1x1x20x64xf32>
    %9 = vector.shape_cast %8 : vector<1x1x20x64xf32> to vector<20x64xf32>
    %10 = arith.truncf %9 : vector<20x64xf32> to vector<20x64xbf16>
    %c1_10 = arith.constant 1 : index
    %c0_11 = arith.constant 0 : index
    %c0_12 = arith.constant 0 : index
    %11 = vector.load %arg2[%c1_10, %c0_11, %c0_12] : memref<9x64x128xbf16, #tpu.memory_space<vmem>>, vector<1x64x128xbf16>
    %12 = vector.shape_cast %11 : vector<1x64x128xbf16> to vector<64x128xbf16>
    %cst_13 = arith.constant dense<0.000000e+00> : vector<20x128xf32>
    %13 = tpu.matmul %10, %12, %cst_13 {dimension_numbers = #tpu.dot_dimension_numbers<[1], [0], [0], [1], [0, 0, 1, 1], [], []>} : vector<20x64xbf16>, vector<64x128xbf16>, vector<20x128xf32> -> vector<20x128xf32>
    %14 = arith.addf %7, %13 : vector<20x128xf32>
    %c0_14 = arith.constant 0 : index
    %c0_15 = arith.constant 0 : index
    %c1_16 = arith.constant 1 : index
    %c0_17 = arith.constant 0 : index
    %15 = vector.load %arg1[%c0_14, %c0_15, %c1_16, %c0_17] : memref<1x4x32x64xf32, #tpu.memory_space<vmem>>, vector<1x1x20x64xf32>
    %16 = vector.shape_cast %15 : vector<1x1x20x64xf32> to vector<20x64xf32>
    %17 = arith.truncf %16 : vector<20x64xf32> to vector<20x64xbf16>
    %c2 = arith.constant 2 : index
    %c0_18 = arith.constant 0 : index
    %c0_19 = arith.constant 0 : index
    %18 = vector.load %arg2[%c2, %c0_18, %c0_19] : memref<9x64x128xbf16, #tpu.memory_space<vmem>>, vector<1x64x128xbf16>
    %19 = vector.shape_cast %18 : vector<1x64x128xbf16> to vector<64x128xbf16>
    %cst_20 = arith.constant dense<0.000000e+00> : vector<20x128xf32>
    %20 = tpu.matmul %17, %19, %cst_20 {dimension_numbers = #tpu.dot_dimension_numbers<[1], [0], [0], [1], [0, 0, 1, 1], [], []>} : vector<20x64xbf16>, vector<64x128xbf16>, vector<20x128xf32> -> vector<20x128xf32>
    %21 = arith.addf %14, %20 : vector<20x128xf32>
    %c0_21 = arith.constant 0 : index
    %c2_22 = arith.constant 2 : index
    %c0_23 = arith.constant 0 : index
    %c0_24 = arith.constant 0 : index
    %22 = vector.load %arg1[%c0_21, %c2_22, %c0_23, %c0_24] : memref<1x4x32x64xf32, #tpu.memory_space<vmem>>, vector<1x1x20x64xf32>
    %23 = vector.shape_cast %22 : vector<1x1x20x64xf32> to vector<20x64xf32>
    %24 = arith.truncf %23 : vector<20x64xf32> to vector<20x64xbf16>
    %c3 = arith.constant 3 : index
    %c0_25 = arith.constant 0 : index
    %c0_26 = arith.constant 0 : index
    %25 = vector.load %arg2[%c3, %c0_25, %c0_26] : memref<9x64x128xbf16, #tpu.memory_space<vmem>>, vector<1x64x128xbf16>
    %26 = vector.shape_cast %25 : vector<1x64x128xbf16> to vector<64x128xbf16>
    %cst_27 = arith.constant dense<0.000000e+00> : vector<20x128xf32>
    %27 = tpu.matmul %24, %26, %cst_27 {dimension_numbers = #tpu.dot_dimension_numbers<[1], [0], [0], [1], [0, 0, 1, 1], [], []>} : vector<20x64xbf16>, vector<64x128xbf16>, vector<20x128xf32> -> vector<20x128xf32>
    %28 = arith.addf %21, %27 : vector<20x128xf32>
    %c0_28 = arith.constant 0 : index
    %c3_29 = arith.constant 3 : index
    %c0_30 = arith.constant 0 : index
    %c0_31 = arith.constant 0 : index
    %29 = vector.load %arg1[%c0_28, %c3_29, %c0_30, %c0_31] : memref<1x4x32x64xf32, #tpu.memory_space<vmem>>, vector<1x1x20x64xf32>
    %30 = vector.shape_cast %29 : vector<1x1x20x64xf32> to vector<20x64xf32>
    %31 = arith.truncf %30 : vector<20x64xf32> to vector<20x64xbf16>
    %c4 = arith.constant 4 : index
    %c0_32 = arith.constant 0 : index
    %c0_33 = arith.constant 0 : index
    %32 = vector.load %arg2[%c4, %c0_32, %c0_33] : memref<9x64x128xbf16, #tpu.memory_space<vmem>>, vector<1x64x128xbf16>
    %33 = vector.shape_cast %32 : vector<1x64x128xbf16> to vector<64x128xbf16>
    %cst_34 = arith.constant dense<0.000000e+00> : vector<20x128xf32>
    %34 = tpu.matmul %31, %33, %cst_34 {dimension_numbers = #tpu.dot_dimension_numbers<[1], [0], [0], [1], [0, 0, 1, 1], [], []>} : vector<20x64xbf16>, vector<64x128xbf16>, vector<20x128xf32> -> vector<20x128xf32>
    %35 = arith.addf %28, %34 : vector<20x128xf32>
    %c0_35 = arith.constant 0 : index
    %c2_36 = arith.constant 2 : index
    %c1_37 = arith.constant 1 : index
    %c0_38 = arith.constant 0 : index
    %36 = vector.load %arg1[%c0_35, %c2_36, %c1_37, %c0_38] : memref<1x4x32x64xf32, #tpu.memory_space<vmem>>, vector<1x1x20x64xf32>
    %37 = vector.shape_cast %36 : vector<1x1x20x64xf32> to vector<20x64xf32>
    %38 = arith.truncf %37 : vector<20x64xf32> to vector<20x64xbf16>
    %c5 = arith.constant 5 : index
    %c0_39 = arith.constant 0 : index
    %c0_40 = arith.constant 0 : index
    %39 = vector.load %arg2[%c5, %c0_39, %c0_40] : memref<9x64x128xbf16, #tpu.memory_space<vmem>>, vector<1x64x128xbf16>
    %40 = vector.shape_cast %39 : vector<1x64x128xbf16> to vector<64x128xbf16>
    %cst_41 = arith.constant dense<0.000000e+00> : vector<20x128xf32>
    %41 = tpu.matmul %38, %40, %cst_41 {dimension_numbers = #tpu.dot_dimension_numbers<[1], [0], [0], [1], [0, 0, 1, 1], [], []>} : vector<20x64xbf16>, vector<64x128xbf16>, vector<20x128xf32> -> vector<20x128xf32>
    %42 = arith.addf %35, %41 : vector<20x128xf32>
    %c0_42 = arith.constant 0 : index
    %c0_43 = arith.constant 0 : index
    %c5_44 = arith.constant 5 : index
    %c0_45 = arith.constant 0 : index
    %43 = vector.load %arg1[%c0_42, %c0_43, %c5_44, %c0_45] : memref<1x4x32x64xf32, #tpu.memory_space<vmem>>, vector<1x1x20x64xf32>
    %44 = vector.shape_cast %43 : vector<1x1x20x64xf32> to vector<20x64xf32>
    %45 = arith.truncf %44 : vector<20x64xf32> to vector<20x64xbf16>
    %c6 = arith.constant 6 : index
    %c0_46 = arith.constant 0 : index
    %c0_47 = arith.constant 0 : index
    %46 = vector.load %arg2[%c6, %c0_46, %c0_47] : memref<9x64x128xbf16, #tpu.memory_space<vmem>>, vector<1x64x128xbf16>
    %47 = vector.shape_cast %46 : vector<1x64x128xbf16> to vector<64x128xbf16>
    %cst_48 = arith.constant dense<0.000000e+00> : vector<20x128xf32>
    %48 = tpu.matmul %45, %47, %cst_48 {dimension_numbers = #tpu.dot_dimension_numbers<[1], [0], [0], [1], [0, 0, 1, 1], [], []>} : vector<20x64xbf16>, vector<64x128xbf16>, vector<20x128xf32> -> vector<20x128xf32>
    %49 = arith.addf %42, %48 : vector<20x128xf32>
    %c0_49 = arith.constant 0 : index
    %c1_50 = arith.constant 1 : index
    %c5_51 = arith.constant 5 : index
    %c0_52 = arith.constant 0 : index
    %50 = vector.load %arg1[%c0_49, %c1_50, %c5_51, %c0_52] : memref<1x4x32x64xf32, #tpu.memory_space<vmem>>, vector<1x1x20x64xf32>
    %51 = vector.shape_cast %50 : vector<1x1x20x64xf32> to vector<20x64xf32>
    %52 = arith.truncf %51 : vector<20x64xf32> to vector<20x64xbf16>
    %c7 = arith.constant 7 : index
    %c0_53 = arith.constant 0 : index
    %c0_54 = arith.constant 0 : index
    %53 = vector.load %arg2[%c7, %c0_53, %c0_54] : memref<9x64x128xbf16, #tpu.memory_space<vmem>>, vector<1x64x128xbf16>
    %54 = vector.shape_cast %53 : vector<1x64x128xbf16> to vector<64x128xbf16>
    %cst_55 = arith.constant dense<0.000000e+00> : vector<20x128xf32>
    %55 = tpu.matmul %52, %54, %cst_55 {dimension_numbers = #tpu.dot_dimension_numbers<[1], [0], [0], [1], [0, 0, 1, 1], [], []>} : vector<20x64xbf16>, vector<64x128xbf16>, vector<20x128xf32> -> vector<20x128xf32>
    %56 = arith.addf %49, %55 : vector<20x128xf32>
    %c0_56 = arith.constant 0 : index
    %c0_57 = arith.constant 0 : index
    %c6_58 = arith.constant 6 : index
    %c0_59 = arith.constant 0 : index
    %57 = vector.load %arg1[%c0_56, %c0_57, %c6_58, %c0_59] : memref<1x4x32x64xf32, #tpu.memory_space<vmem>>, vector<1x1x20x64xf32>
    %58 = vector.shape_cast %57 : vector<1x1x20x64xf32> to vector<20x64xf32>
    %59 = arith.truncf %58 : vector<20x64xf32> to vector<20x64xbf16>
    %c8 = arith.constant 8 : index
    %c0_60 = arith.constant 0 : index
    %c0_61 = arith.constant 0 : index
    %60 = vector.load %arg2[%c8, %c0_60, %c0_61] : memref<9x64x128xbf16, #tpu.memory_space<vmem>>, vector<1x64x128xbf16>
    %61 = vector.shape_cast %60 : vector<1x64x128xbf16> to vector<64x128xbf16>
    %cst_62 = arith.constant dense<0.000000e+00> : vector<20x128xf32>
    %62 = tpu.matmul %59, %61, %cst_62 {dimension_numbers = #tpu.dot_dimension_numbers<[1], [0], [0], [1], [0, 0, 1, 1], [], []>} : vector<20x64xbf16>, vector<64x128xbf16>, vector<20x128xf32> -> vector<20x128xf32>
    %63 = arith.addf %56, %62 : vector<20x128xf32>
    %cst_63 = arith.constant 0.000000e+00 : f32
    %64 = vector.broadcast %cst_63 : f32 to vector<20x128xf32>
    %c0_64 = arith.constant 0 : index
    %c1_65 = arith.constant 1 : index
    %c0_66 = arith.constant 0 : index
    %c0_67 = arith.constant 0 : index
    %65 = vector.load %arg1[%c0_64, %c1_65, %c0_66, %c0_67] : memref<1x4x32x64xf32, #tpu.memory_space<vmem>>, vector<1x1x20x64xf32>
    %66 = vector.shape_cast %65 : vector<1x1x20x64xf32> to vector<20x64xf32>
    %67 = arith.truncf %66 : vector<20x64xf32> to vector<20x64xbf16>
    %c0_68 = arith.constant 0 : index
    %c0_69 = arith.constant 0 : index
    %c0_70 = arith.constant 0 : index
    %68 = vector.load %arg2[%c0_68, %c0_69, %c0_70] : memref<9x64x128xbf16, #tpu.memory_space<vmem>>, vector<1x64x128xbf16>
    %69 = vector.shape_cast %68 : vector<1x64x128xbf16> to vector<64x128xbf16>
    %cst_71 = arith.constant dense<0.000000e+00> : vector<20x128xf32>
    %70 = tpu.matmul %67, %69, %cst_71 {dimension_numbers = #tpu.dot_dimension_numbers<[1], [0], [0], [1], [0, 0, 1, 1], [], []>} : vector<20x64xbf16>, vector<64x128xbf16>, vector<20x128xf32> -> vector<20x128xf32>
    %71 = arith.addf %64, %70 : vector<20x128xf32>
    %c0_72 = arith.constant 0 : index
    %c0_73 = arith.constant 0 : index
    %c1_74 = arith.constant 1 : index
    %c0_75 = arith.constant 0 : index
    %72 = vector.load %arg1[%c0_72, %c0_73, %c1_74, %c0_75] : memref<1x4x32x64xf32, #tpu.memory_space<vmem>>, vector<1x1x20x64xf32>
    %73 = vector.shape_cast %72 : vector<1x1x20x64xf32> to vector<20x64xf32>
    %74 = arith.truncf %73 : vector<20x64xf32> to vector<20x64xbf16>
    %c1_76 = arith.constant 1 : index
    %c0_77 = arith.constant 0 : index
    %c0_78 = arith.constant 0 : index
    %75 = vector.load %arg2[%c1_76, %c0_77, %c0_78] : memref<9x64x128xbf16, #tpu.memory_space<vmem>>, vector<1x64x128xbf16>
    %76 = vector.shape_cast %75 : vector<1x64x128xbf16> to vector<64x128xbf16>
    %cst_79 = arith.constant dense<0.000000e+00> : vector<20x128xf32>
    %77 = tpu.matmul %74, %76, %cst_79 {dimension_numbers = #tpu.dot_dimension_numbers<[1], [0], [0], [1], [0, 0, 1, 1], [], []>} : vector<20x64xbf16>, vector<64x128xbf16>, vector<20x128xf32> -> vector<20x128xf32>
    %78 = arith.addf %71, %77 : vector<20x128xf32>
    %c0_80 = arith.constant 0 : index
    %c1_81 = arith.constant 1 : index
    %c1_82 = arith.constant 1 : index
    %c0_83 = arith.constant 0 : index
    %79 = vector.load %arg1[%c0_80, %c1_81, %c1_82, %c0_83] : memref<1x4x32x64xf32, #tpu.memory_space<vmem>>, vector<1x1x20x64xf32>
    %80 = vector.shape_cast %79 : vector<1x1x20x64xf32> to vector<20x64xf32>
    %81 = arith.truncf %80 : vector<20x64xf32> to vector<20x64xbf16>
    %c2_84 = arith.constant 2 : index
    %c0_85 = arith.constant 0 : index
    %c0_86 = arith.constant 0 : index
    %82 = vector.load %arg2[%c2_84, %c0_85, %c0_86] : memref<9x64x128xbf16, #tpu.memory_space<vmem>>, vector<1x64x128xbf16>
    %83 = vector.shape_cast %82 : vector<1x64x128xbf16> to vector<64x128xbf16>
    %cst_87 = arith.constant dense<0.000000e+00> : vector<20x128xf32>
    %84 = tpu.matmul %81, %83, %cst_87 {dimension_numbers = #tpu.dot_dimension_numbers<[1], [0], [0], [1], [0, 0, 1, 1], [], []>} : vector<20x64xbf16>, vector<64x128xbf16>, vector<20x128xf32> -> vector<20x128xf32>
    %85 = arith.addf %78, %84 : vector<20x128xf32>
    %c0_88 = arith.constant 0 : index
    %c3_89 = arith.constant 3 : index
    %c0_90 = arith.constant 0 : index
    %c0_91 = arith.constant 0 : index
    %86 = vector.load %arg1[%c0_88, %c3_89, %c0_90, %c0_91] : memref<1x4x32x64xf32, #tpu.memory_space<vmem>>, vector<1x1x20x64xf32>
    %87 = vector.shape_cast %86 : vector<1x1x20x64xf32> to vector<20x64xf32>
    %88 = arith.truncf %87 : vector<20x64xf32> to vector<20x64xbf16>
    %c3_92 = arith.constant 3 : index
    %c0_93 = arith.constant 0 : index
    %c0_94 = arith.constant 0 : index
    %89 = vector.load %arg2[%c3_92, %c0_93, %c0_94] : memref<9x64x128xbf16, #tpu.memory_space<vmem>>, vector<1x64x128xbf16>
    %90 = vector.shape_cast %89 : vector<1x64x128xbf16> to vector<64x128xbf16>
    %cst_95 = arith.constant dense<0.000000e+00> : vector<20x128xf32>
    %91 = tpu.matmul %88, %90, %cst_95 {dimension_numbers = #tpu.dot_dimension_numbers<[1], [0], [0], [1], [0, 0, 1, 1], [], []>} : vector<20x64xbf16>, vector<64x128xbf16>, vector<20x128xf32> -> vector<20x128xf32>
    %92 = arith.addf %85, %91 : vector<20x128xf32>
    %c0_96 = arith.constant 0 : index
    %c2_97 = arith.constant 2 : index
    %c1_98 = arith.constant 1 : index
    %c0_99 = arith.constant 0 : index
    %93 = vector.load %arg1[%c0_96, %c2_97, %c1_98, %c0_99] : memref<1x4x32x64xf32, #tpu.memory_space<vmem>>, vector<1x1x20x64xf32>
    %94 = vector.shape_cast %93 : vector<1x1x20x64xf32> to vector<20x64xf32>
    %95 = arith.truncf %94 : vector<20x64xf32> to vector<20x64xbf16>
    %c4_100 = arith.constant 4 : index
    %c0_101 = arith.constant 0 : index
    %c0_102 = arith.constant 0 : index
    %96 = vector.load %arg2[%c4_100, %c0_101, %c0_102] : memref<9x64x128xbf16, #tpu.memory_space<vmem>>, vector<1x64x128xbf16>
    %97 = vector.shape_cast %96 : vector<1x64x128xbf16> to vector<64x128xbf16>
    %cst_103 = arith.constant dense<0.000000e+00> : vector<20x128xf32>
    %98 = tpu.matmul %95, %97, %cst_103 {dimension_numbers = #tpu.dot_dimension_numbers<[1], [0], [0], [1], [0, 0, 1, 1], [], []>} : vector<20x64xbf16>, vector<64x128xbf16>, vector<20x128xf32> -> vector<20x128xf32>
    %99 = arith.addf %92, %98 : vector<20x128xf32>
    %c0_104 = arith.constant 0 : index
    %c3_105 = arith.constant 3 : index
    %c1_106 = arith.constant 1 : index
    %c0_107 = arith.constant 0 : index
    %100 = vector.load %arg1[%c0_104, %c3_105, %c1_106, %c0_107] : memref<1x4x32x64xf32, #tpu.memory_space<vmem>>, vector<1x1x20x64xf32>
    %101 = vector.shape_cast %100 : vector<1x1x20x64xf32> to vector<20x64xf32>
    %102 = arith.truncf %101 : vector<20x64xf32> to vector<20x64xbf16>
    %c5_108 = arith.constant 5 : index
    %c0_109 = arith.constant 0 : index
    %c0_110 = arith.constant 0 : index
    %103 = vector.load %arg2[%c5_108, %c0_109, %c0_110] : memref<9x64x128xbf16, #tpu.memory_space<vmem>>, vector<1x64x128xbf16>
    %104 = vector.shape_cast %103 : vector<1x64x128xbf16> to vector<64x128xbf16>
    %cst_111 = arith.constant dense<0.000000e+00> : vector<20x128xf32>
    %105 = tpu.matmul %102, %104, %cst_111 {dimension_numbers = #tpu.dot_dimension_numbers<[1], [0], [0], [1], [0, 0, 1, 1], [], []>} : vector<20x64xbf16>, vector<64x128xbf16>, vector<20x128xf32> -> vector<20x128xf32>
    %106 = arith.addf %99, %105 : vector<20x128xf32>
    %c0_112 = arith.constant 0 : index
    %c1_113 = arith.constant 1 : index
    %c5_114 = arith.constant 5 : index
    %c0_115 = arith.constant 0 : index
    %107 = vector.load %arg1[%c0_112, %c1_113, %c5_114, %c0_115] : memref<1x4x32x64xf32, #tpu.memory_space<vmem>>, vector<1x1x20x64xf32>
    %108 = vector.shape_cast %107 : vector<1x1x20x64xf32> to vector<20x64xf32>
    %109 = arith.truncf %108 : vector<20x64xf32> to vector<20x64xbf16>
    %c6_116 = arith.constant 6 : index
    %c0_117 = arith.constant 0 : index
    %c0_118 = arith.constant 0 : index
    %110 = vector.load %arg2[%c6_116, %c0_117, %c0_118] : memref<9x64x128xbf16, #tpu.memory_space<vmem>>, vector<1x64x128xbf16>
    %111 = vector.shape_cast %110 : vector<1x64x128xbf16> to vector<64x128xbf16>
    %cst_119 = arith.constant dense<0.000000e+00> : vector<20x128xf32>
    %112 = tpu.matmul %109, %111, %cst_119 {dimension_numbers = #tpu.dot_dimension_numbers<[1], [0], [0], [1], [0, 0, 1, 1], [], []>} : vector<20x64xbf16>, vector<64x128xbf16>, vector<20x128xf32> -> vector<20x128xf32>
    %113 = arith.addf %106, %112 : vector<20x128xf32>
    %c0_120 = arith.constant 0 : index
    %c0_121 = arith.constant 0 : index
    %c6_122 = arith.constant 6 : index
    %c0_123 = arith.constant 0 : index
    %114 = vector.load %arg1[%c0_120, %c0_121, %c6_122, %c0_123] : memref<1x4x32x64xf32, #tpu.memory_space<vmem>>, vector<1x1x20x64xf32>
    %115 = vector.shape_cast %114 : vector<1x1x20x64xf32> to vector<20x64xf32>
    %116 = arith.truncf %115 : vector<20x64xf32> to vector<20x64xbf16>
    %c7_124 = arith.constant 7 : index
    %c0_125 = arith.constant 0 : index
    %c0_126 = arith.constant 0 : index
    %117 = vector.load %arg2[%c7_124, %c0_125, %c0_126] : memref<9x64x128xbf16, #tpu.memory_space<vmem>>, vector<1x64x128xbf16>
    %118 = vector.shape_cast %117 : vector<1x64x128xbf16> to vector<64x128xbf16>
    %cst_127 = arith.constant dense<0.000000e+00> : vector<20x128xf32>
    %119 = tpu.matmul %116, %118, %cst_127 {dimension_numbers = #tpu.dot_dimension_numbers<[1], [0], [0], [1], [0, 0, 1, 1], [], []>} : vector<20x64xbf16>, vector<64x128xbf16>, vector<20x128xf32> -> vector<20x128xf32>
    %120 = arith.addf %113, %119 : vector<20x128xf32>
    %c0_128 = arith.constant 0 : index
    %c1_129 = arith.constant 1 : index
    %c6_130 = arith.constant 6 : index
    %c0_131 = arith.constant 0 : index
    %121 = vector.load %arg1[%c0_128, %c1_129, %c6_130, %c0_131] : memref<1x4x32x64xf32, #tpu.memory_space<vmem>>, vector<1x1x20x64xf32>
    %122 = vector.shape_cast %121 : vector<1x1x20x64xf32> to vector<20x64xf32>
    %123 = arith.truncf %122 : vector<20x64xf32> to vector<20x64xbf16>
    %c8_132 = arith.constant 8 : index
    %c0_133 = arith.constant 0 : index
    %c0_134 = arith.constant 0 : index
    %124 = vector.load %arg2[%c8_132, %c0_133, %c0_134] : memref<9x64x128xbf16, #tpu.memory_space<vmem>>, vector<1x64x128xbf16>
    %125 = vector.shape_cast %124 : vector<1x64x128xbf16> to vector<64x128xbf16>
    %cst_135 = arith.constant dense<0.000000e+00> : vector<20x128xf32>
    %126 = tpu.matmul %123, %125, %cst_135 {dimension_numbers = #tpu.dot_dimension_numbers<[1], [0], [0], [1], [0, 0, 1, 1], [], []>} : vector<20x64xbf16>, vector<64x128xbf16>, vector<20x128xf32> -> vector<20x128xf32>
    %127 = arith.addf %120, %126 : vector<20x128xf32>
    %128 = arith.maximumf %63, %127 : vector<20x128xf32>
    %cst_136 = arith.constant 0.000000e+00 : f32
    %129 = vector.broadcast %cst_136 : f32 to vector<20x128xf32>
    %c0_137 = arith.constant 0 : index
    %c2_138 = arith.constant 2 : index
    %c0_139 = arith.constant 0 : index
    %c0_140 = arith.constant 0 : index
    %130 = vector.load %arg1[%c0_137, %c2_138, %c0_139, %c0_140] : memref<1x4x32x64xf32, #tpu.memory_space<vmem>>, vector<1x1x20x64xf32>
    %131 = vector.shape_cast %130 : vector<1x1x20x64xf32> to vector<20x64xf32>
    %132 = arith.truncf %131 : vector<20x64xf32> to vector<20x64xbf16>
    %c0_141 = arith.constant 0 : index
    %c0_142 = arith.constant 0 : index
    %c0_143 = arith.constant 0 : index
    %133 = vector.load %arg2[%c0_141, %c0_142, %c0_143] : memref<9x64x128xbf16, #tpu.memory_space<vmem>>, vector<1x64x128xbf16>
    %134 = vector.shape_cast %133 : vector<1x64x128xbf16> to vector<64x128xbf16>
    %cst_144 = arith.constant dense<0.000000e+00> : vector<20x128xf32>
    %135 = tpu.matmul %132, %134, %cst_144 {dimension_numbers = #tpu.dot_dimension_numbers<[1], [0], [0], [1], [0, 0, 1, 1], [], []>} : vector<20x64xbf16>, vector<64x128xbf16>, vector<20x128xf32> -> vector<20x128xf32>
    %136 = arith.addf %129, %135 : vector<20x128xf32>
    %c0_145 = arith.constant 0 : index
    %c3_146 = arith.constant 3 : index
    %c0_147 = arith.constant 0 : index
    %c0_148 = arith.constant 0 : index
    %137 = vector.load %arg1[%c0_145, %c3_146, %c0_147, %c0_148] : memref<1x4x32x64xf32, #tpu.memory_space<vmem>>, vector<1x1x20x64xf32>
    %138 = vector.shape_cast %137 : vector<1x1x20x64xf32> to vector<20x64xf32>
    %139 = arith.truncf %138 : vector<20x64xf32> to vector<20x64xbf16>
    %c1_149 = arith.constant 1 : index
    %c0_150 = arith.constant 0 : index
    %c0_151 = arith.constant 0 : index
    %140 = vector.load %arg2[%c1_149, %c0_150, %c0_151] : memref<9x64x128xbf16, #tpu.memory_space<vmem>>, vector<1x64x128xbf16>
    %141 = vector.shape_cast %140 : vector<1x64x128xbf16> to vector<64x128xbf16>
    %cst_152 = arith.constant dense<0.000000e+00> : vector<20x128xf32>
    %142 = tpu.matmul %139, %141, %cst_152 {dimension_numbers = #tpu.dot_dimension_numbers<[1], [0], [0], [1], [0, 0, 1, 1], [], []>} : vector<20x64xbf16>, vector<64x128xbf16>, vector<20x128xf32> -> vector<20x128xf32>
    %143 = arith.addf %136, %142 : vector<20x128xf32>
    %c0_153 = arith.constant 0 : index
    %c2_154 = arith.constant 2 : index
    %c1_155 = arith.constant 1 : index
    %c0_156 = arith.constant 0 : index
    %144 = vector.load %arg1[%c0_153, %c2_154, %c1_155, %c0_156] : memref<1x4x32x64xf32, #tpu.memory_space<vmem>>, vector<1x1x20x64xf32>
    %145 = vector.shape_cast %144 : vector<1x1x20x64xf32> to vector<20x64xf32>
    %146 = arith.truncf %145 : vector<20x64xf32> to vector<20x64xbf16>
    %c2_157 = arith.constant 2 : index
    %c0_158 = arith.constant 0 : index
    %c0_159 = arith.constant 0 : index
    %147 = vector.load %arg2[%c2_157, %c0_158, %c0_159] : memref<9x64x128xbf16, #tpu.memory_space<vmem>>, vector<1x64x128xbf16>
    %148 = vector.shape_cast %147 : vector<1x64x128xbf16> to vector<64x128xbf16>
    %cst_160 = arith.constant dense<0.000000e+00> : vector<20x128xf32>
    %149 = tpu.matmul %146, %148, %cst_160 {dimension_numbers = #tpu.dot_dimension_numbers<[1], [0], [0], [1], [0, 0, 1, 1], [], []>} : vector<20x64xbf16>, vector<64x128xbf16>, vector<20x128xf32> -> vector<20x128xf32>
    %150 = arith.addf %143, %149 : vector<20x128xf32>
    %c0_161 = arith.constant 0 : index
    %c0_162 = arith.constant 0 : index
    %c5_163 = arith.constant 5 : index
    %c0_164 = arith.constant 0 : index
    %151 = vector.load %arg1[%c0_161, %c0_162, %c5_163, %c0_164] : memref<1x4x32x64xf32, #tpu.memory_space<vmem>>, vector<1x1x20x64xf32>
    %152 = vector.shape_cast %151 : vector<1x1x20x64xf32> to vector<20x64xf32>
    %153 = arith.truncf %152 : vector<20x64xf32> to vector<20x64xbf16>
    %c3_165 = arith.constant 3 : index
    %c0_166 = arith.constant 0 : index
    %c0_167 = arith.constant 0 : index
    %154 = vector.load %arg2[%c3_165, %c0_166, %c0_167] : memref<9x64x128xbf16, #tpu.memory_space<vmem>>, vector<1x64x128xbf16>
    %155 = vector.shape_cast %154 : vector<1x64x128xbf16> to vector<64x128xbf16>
    %cst_168 = arith.constant dense<0.000000e+00> : vector<20x128xf32>
    %156 = tpu.matmul %153, %155, %cst_168 {dimension_numbers = #tpu.dot_dimension_numbers<[1], [0], [0], [1], [0, 0, 1, 1], [], []>} : vector<20x64xbf16>, vector<64x128xbf16>, vector<20x128xf32> -> vector<20x128xf32>
    %157 = arith.addf %150, %156 : vector<20x128xf32>
    %c0_169 = arith.constant 0 : index
    %c1_170 = arith.constant 1 : index
    %c5_171 = arith.constant 5 : index
    %c0_172 = arith.constant 0 : index
    %158 = vector.load %arg1[%c0_169, %c1_170, %c5_171, %c0_172] : memref<1x4x32x64xf32, #tpu.memory_space<vmem>>, vector<1x1x20x64xf32>
    %159 = vector.shape_cast %158 : vector<1x1x20x64xf32> to vector<20x64xf32>
    %160 = arith.truncf %159 : vector<20x64xf32> to vector<20x64xbf16>
    %c4_173 = arith.constant 4 : index
    %c0_174 = arith.constant 0 : index
    %c0_175 = arith.constant 0 : index
    %161 = vector.load %arg2[%c4_173, %c0_174, %c0_175] : memref<9x64x128xbf16, #tpu.memory_space<vmem>>, vector<1x64x128xbf16>
    %162 = vector.shape_cast %161 : vector<1x64x128xbf16> to vector<64x128xbf16>
    %cst_176 = arith.constant dense<0.000000e+00> : vector<20x128xf32>
    %163 = tpu.matmul %160, %162, %cst_176 {dimension_numbers = #tpu.dot_dimension_numbers<[1], [0], [0], [1], [0, 0, 1, 1], [], []>} : vector<20x64xbf16>, vector<64x128xbf16>, vector<20x128xf32> -> vector<20x128xf32>
    %164 = arith.addf %157, %163 : vector<20x128xf32>
    %c0_177 = arith.constant 0 : index
    %c0_178 = arith.constant 0 : index
    %c6_179 = arith.constant 6 : index
    %c0_180 = arith.constant 0 : index
    %165 = vector.load %arg1[%c0_177, %c0_178, %c6_179, %c0_180] : memref<1x4x32x64xf32, #tpu.memory_space<vmem>>, vector<1x1x20x64xf32>
    %166 = vector.shape_cast %165 : vector<1x1x20x64xf32> to vector<20x64xf32>
    %167 = arith.truncf %166 : vector<20x64xf32> to vector<20x64xbf16>
    %c5_181 = arith.constant 5 : index
    %c0_182 = arith.constant 0 : index
    %c0_183 = arith.constant 0 : index
    %168 = vector.load %arg2[%c5_181, %c0_182, %c0_183] : memref<9x64x128xbf16, #tpu.memory_space<vmem>>, vector<1x64x128xbf16>
    %169 = vector.shape_cast %168 : vector<1x64x128xbf16> to vector<64x128xbf16>
    %cst_184 = arith.constant dense<0.000000e+00> : vector<20x128xf32>
    %170 = tpu.matmul %167, %169, %cst_184 {dimension_numbers = #tpu.dot_dimension_numbers<[1], [0], [0], [1], [0, 0, 1, 1], [], []>} : vector<20x64xbf16>, vector<64x128xbf16>, vector<20x128xf32> -> vector<20x128xf32>
    %171 = arith.addf %164, %170 : vector<20x128xf32>
    %c0_185 = arith.constant 0 : index
    %c2_186 = arith.constant 2 : index
    %c5_187 = arith.constant 5 : index
    %c0_188 = arith.constant 0 : index
    %172 = vector.load %arg1[%c0_185, %c2_186, %c5_187, %c0_188] : memref<1x4x32x64xf32, #tpu.memory_space<vmem>>, vector<1x1x20x64xf32>
    %173 = vector.shape_cast %172 : vector<1x1x20x64xf32> to vector<20x64xf32>
    %174 = arith.truncf %173 : vector<20x64xf32> to vector<20x64xbf16>
    %c6_189 = arith.constant 6 : index
    %c0_190 = arith.constant 0 : index
    %c0_191 = arith.constant 0 : index
    %175 = vector.load %arg2[%c6_189, %c0_190, %c0_191] : memref<9x64x128xbf16, #tpu.memory_space<vmem>>, vector<1x64x128xbf16>
    %176 = vector.shape_cast %175 : vector<1x64x128xbf16> to vector<64x128xbf16>
    %cst_192 = arith.constant dense<0.000000e+00> : vector<20x128xf32>
    %177 = tpu.matmul %174, %176, %cst_192 {dimension_numbers = #tpu.dot_dimension_numbers<[1], [0], [0], [1], [0, 0, 1, 1], [], []>} : vector<20x64xbf16>, vector<64x128xbf16>, vector<20x128xf32> -> vector<20x128xf32>
    %178 = arith.addf %171, %177 : vector<20x128xf32>
    %c0_193 = arith.constant 0 : index
    %c3_194 = arith.constant 3 : index
    %c5_195 = arith.constant 5 : index
    %c0_196 = arith.constant 0 : index
    %179 = vector.load %arg1[%c0_193, %c3_194, %c5_195, %c0_196] : memref<1x4x32x64xf32, #tpu.memory_space<vmem>>, vector<1x1x20x64xf32>
    %180 = vector.shape_cast %179 : vector<1x1x20x64xf32> to vector<20x64xf32>
    %181 = arith.truncf %180 : vector<20x64xf32> to vector<20x64xbf16>
    %c7_197 = arith.constant 7 : index
    %c0_198 = arith.constant 0 : index
    %c0_199 = arith.constant 0 : index
    %182 = vector.load %arg2[%c7_197, %c0_198, %c0_199] : memref<9x64x128xbf16, #tpu.memory_space<vmem>>, vector<1x64x128xbf16>
    %183 = vector.shape_cast %182 : vector<1x64x128xbf16> to vector<64x128xbf16>
    %cst_200 = arith.constant dense<0.000000e+00> : vector<20x128xf32>
    %184 = tpu.matmul %181, %183, %cst_200 {dimension_numbers = #tpu.dot_dimension_numbers<[1], [0], [0], [1], [0, 0, 1, 1], [], []>} : vector<20x64xbf16>, vector<64x128xbf16>, vector<20x128xf32> -> vector<20x128xf32>
    %185 = arith.addf %178, %184 : vector<20x128xf32>
    %c0_201 = arith.constant 0 : index
    %c2_202 = arith.constant 2 : index
    %c6_203 = arith.constant 6 : index
    %c0_204 = arith.constant 0 : index
    %186 = vector.load %arg1[%c0_201, %c2_202, %c6_203, %c0_204] : memref<1x4x32x64xf32, #tpu.memory_space<vmem>>, vector<1x1x20x64xf32>
    %187 = vector.shape_cast %186 : vector<1x1x20x64xf32> to vector<20x64xf32>
    %188 = arith.truncf %187 : vector<20x64xf32> to vector<20x64xbf16>
    %c8_205 = arith.constant 8 : index
    %c0_206 = arith.constant 0 : index
    %c0_207 = arith.constant 0 : index
    %189 = vector.load %arg2[%c8_205, %c0_206, %c0_207] : memref<9x64x128xbf16, #tpu.memory_space<vmem>>, vector<1x64x128xbf16>
    %190 = vector.shape_cast %189 : vector<1x64x128xbf16> to vector<64x128xbf16>
    %cst_208 = arith.constant dense<0.000000e+00> : vector<20x128xf32>
    %191 = tpu.matmul %188, %190, %cst_208 {dimension_numbers = #tpu.dot_dimension_numbers<[1], [0], [0], [1], [0, 0, 1, 1], [], []>} : vector<20x64xbf16>, vector<64x128xbf16>, vector<20x128xf32> -> vector<20x128xf32>
    %192 = arith.addf %185, %191 : vector<20x128xf32>
    %193 = arith.maximumf %128, %192 : vector<20x128xf32>
    %cst_209 = arith.constant 0.000000e+00 : f32
    %194 = vector.broadcast %cst_209 : f32 to vector<20x128xf32>
    %c0_210 = arith.constant 0 : index
    %c3_211 = arith.constant 3 : index
    %c0_212 = arith.constant 0 : index
    %c0_213 = arith.constant 0 : index
    %195 = vector.load %arg1[%c0_210, %c3_211, %c0_212, %c0_213] : memref<1x4x32x64xf32, #tpu.memory_space<vmem>>, vector<1x1x20x64xf32>
    %196 = vector.shape_cast %195 : vector<1x1x20x64xf32> to vector<20x64xf32>
    %197 = arith.truncf %196 : vector<20x64xf32> to vector<20x64xbf16>
    %c0_214 = arith.constant 0 : index
    %c0_215 = arith.constant 0 : index
    %c0_216 = arith.constant 0 : index
    %198 = vector.load %arg2[%c0_214, %c0_215, %c0_216] : memref<9x64x128xbf16, #tpu.memory_space<vmem>>, vector<1x64x128xbf16>
    %199 = vector.shape_cast %198 : vector<1x64x128xbf16> to vector<64x128xbf16>
    %cst_217 = arith.constant dense<0.000000e+00> : vector<20x128xf32>
    %200 = tpu.matmul %197, %199, %cst_217 {dimension_numbers = #tpu.dot_dimension_numbers<[1], [0], [0], [1], [0, 0, 1, 1], [], []>} : vector<20x64xbf16>, vector<64x128xbf16>, vector<20x128xf32> -> vector<20x128xf32>
    %201 = arith.addf %194, %200 : vector<20x128xf32>
    %c0_218 = arith.constant 0 : index
    %c2_219 = arith.constant 2 : index
    %c1_220 = arith.constant 1 : index
    %c0_221 = arith.constant 0 : index
    %202 = vector.load %arg1[%c0_218, %c2_219, %c1_220, %c0_221] : memref<1x4x32x64xf32, #tpu.memory_space<vmem>>, vector<1x1x20x64xf32>
    %203 = vector.shape_cast %202 : vector<1x1x20x64xf32> to vector<20x64xf32>
    %204 = arith.truncf %203 : vector<20x64xf32> to vector<20x64xbf16>
    %c1_222 = arith.constant 1 : index
    %c0_223 = arith.constant 0 : index
    %c0_224 = arith.constant 0 : index
    %205 = vector.load %arg2[%c1_222, %c0_223, %c0_224] : memref<9x64x128xbf16, #tpu.memory_space<vmem>>, vector<1x64x128xbf16>
    %206 = vector.shape_cast %205 : vector<1x64x128xbf16> to vector<64x128xbf16>
    %cst_225 = arith.constant dense<0.000000e+00> : vector<20x128xf32>
    %207 = tpu.matmul %204, %206, %cst_225 {dimension_numbers = #tpu.dot_dimension_numbers<[1], [0], [0], [1], [0, 0, 1, 1], [], []>} : vector<20x64xbf16>, vector<64x128xbf16>, vector<20x128xf32> -> vector<20x128xf32>
    %208 = arith.addf %201, %207 : vector<20x128xf32>
    %c0_226 = arith.constant 0 : index
    %c3_227 = arith.constant 3 : index
    %c1_228 = arith.constant 1 : index
    %c0_229 = arith.constant 0 : index
    %209 = vector.load %arg1[%c0_226, %c3_227, %c1_228, %c0_229] : memref<1x4x32x64xf32, #tpu.memory_space<vmem>>, vector<1x1x20x64xf32>
    %210 = vector.shape_cast %209 : vector<1x1x20x64xf32> to vector<20x64xf32>
    %211 = arith.truncf %210 : vector<20x64xf32> to vector<20x64xbf16>
    %c2_230 = arith.constant 2 : index
    %c0_231 = arith.constant 0 : index
    %c0_232 = arith.constant 0 : index
    %212 = vector.load %arg2[%c2_230, %c0_231, %c0_232] : memref<9x64x128xbf16, #tpu.memory_space<vmem>>, vector<1x64x128xbf16>
    %213 = vector.shape_cast %212 : vector<1x64x128xbf16> to vector<64x128xbf16>
    %cst_233 = arith.constant dense<0.000000e+00> : vector<20x128xf32>
    %214 = tpu.matmul %211, %213, %cst_233 {dimension_numbers = #tpu.dot_dimension_numbers<[1], [0], [0], [1], [0, 0, 1, 1], [], []>} : vector<20x64xbf16>, vector<64x128xbf16>, vector<20x128xf32> -> vector<20x128xf32>
    %215 = arith.addf %208, %214 : vector<20x128xf32>
    %c0_234 = arith.constant 0 : index
    %c1_235 = arith.constant 1 : index
    %c5_236 = arith.constant 5 : index
    %c0_237 = arith.constant 0 : index
    %216 = vector.load %arg1[%c0_234, %c1_235, %c5_236, %c0_237] : memref<1x4x32x64xf32, #tpu.memory_space<vmem>>, vector<1x1x20x64xf32>
    %217 = vector.shape_cast %216 : vector<1x1x20x64xf32> to vector<20x64xf32>
    %218 = arith.truncf %217 : vector<20x64xf32> to vector<20x64xbf16>
    %c3_238 = arith.constant 3 : index
    %c0_239 = arith.constant 0 : index
    %c0_240 = arith.constant 0 : index
    %219 = vector.load %arg2[%c3_238, %c0_239, %c0_240] : memref<9x64x128xbf16, #tpu.memory_space<vmem>>, vector<1x64x128xbf16>
    %220 = vector.shape_cast %219 : vector<1x64x128xbf16> to vector<64x128xbf16>
    %cst_241 = arith.constant dense<0.000000e+00> : vector<20x128xf32>
    %221 = tpu.matmul %218, %220, %cst_241 {dimension_numbers = #tpu.dot_dimension_numbers<[1], [0], [0], [1], [0, 0, 1, 1], [], []>} : vector<20x64xbf16>, vector<64x128xbf16>, vector<20x128xf32> -> vector<20x128xf32>
    %222 = arith.addf %215, %221 : vector<20x128xf32>
    %c0_242 = arith.constant 0 : index
    %c0_243 = arith.constant 0 : index
    %c6_244 = arith.constant 6 : index
    %c0_245 = arith.constant 0 : index
    %223 = vector.load %arg1[%c0_242, %c0_243, %c6_244, %c0_245] : memref<1x4x32x64xf32, #tpu.memory_space<vmem>>, vector<1x1x20x64xf32>
    %224 = vector.shape_cast %223 : vector<1x1x20x64xf32> to vector<20x64xf32>
    %225 = arith.truncf %224 : vector<20x64xf32> to vector<20x64xbf16>
    %c4_246 = arith.constant 4 : index
    %c0_247 = arith.constant 0 : index
    %c0_248 = arith.constant 0 : index
    %226 = vector.load %arg2[%c4_246, %c0_247, %c0_248] : memref<9x64x128xbf16, #tpu.memory_space<vmem>>, vector<1x64x128xbf16>
    %227 = vector.shape_cast %226 : vector<1x64x128xbf16> to vector<64x128xbf16>
    %cst_249 = arith.constant dense<0.000000e+00> : vector<20x128xf32>
    %228 = tpu.matmul %225, %227, %cst_249 {dimension_numbers = #tpu.dot_dimension_numbers<[1], [0], [0], [1], [0, 0, 1, 1], [], []>} : vector<20x64xbf16>, vector<64x128xbf16>, vector<20x128xf32> -> vector<20x128xf32>
    %229 = arith.addf %222, %228 : vector<20x128xf32>
    %c0_250 = arith.constant 0 : index
    %c1_251 = arith.constant 1 : index
    %c6_252 = arith.constant 6 : index
    %c0_253 = arith.constant 0 : index
    %230 = vector.load %arg1[%c0_250, %c1_251, %c6_252, %c0_253] : memref<1x4x32x64xf32, #tpu.memory_space<vmem>>, vector<1x1x20x64xf32>
    %231 = vector.shape_cast %230 : vector<1x1x20x64xf32> to vector<20x64xf32>
    %232 = arith.truncf %231 : vector<20x64xf32> to vector<20x64xbf16>
    %c5_254 = arith.constant 5 : index
    %c0_255 = arith.constant 0 : index
    %c0_256 = arith.constant 0 : index
    %233 = vector.load %arg2[%c5_254, %c0_255, %c0_256] : memref<9x64x128xbf16, #tpu.memory_space<vmem>>, vector<1x64x128xbf16>
    %234 = vector.shape_cast %233 : vector<1x64x128xbf16> to vector<64x128xbf16>
    %cst_257 = arith.constant dense<0.000000e+00> : vector<20x128xf32>
    %235 = tpu.matmul %232, %234, %cst_257 {dimension_numbers = #tpu.dot_dimension_numbers<[1], [0], [0], [1], [0, 0, 1, 1], [], []>} : vector<20x64xbf16>, vector<64x128xbf16>, vector<20x128xf32> -> vector<20x128xf32>
    %236 = arith.addf %229, %235 : vector<20x128xf32>
    %c0_258 = arith.constant 0 : index
    %c3_259 = arith.constant 3 : index
    %c5_260 = arith.constant 5 : index
    %c0_261 = arith.constant 0 : index
    %237 = vector.load %arg1[%c0_258, %c3_259, %c5_260, %c0_261] : memref<1x4x32x64xf32, #tpu.memory_space<vmem>>, vector<1x1x20x64xf32>
    %238 = vector.shape_cast %237 : vector<1x1x20x64xf32> to vector<20x64xf32>
    %239 = arith.truncf %238 : vector<20x64xf32> to vector<20x64xbf16>
    %c6_262 = arith.constant 6 : index
    %c0_263 = arith.constant 0 : index
    %c0_264 = arith.constant 0 : index
    %240 = vector.load %arg2[%c6_262, %c0_263, %c0_264] : memref<9x64x128xbf16, #tpu.memory_space<vmem>>, vector<1x64x128xbf16>
    %241 = vector.shape_cast %240 : vector<1x64x128xbf16> to vector<64x128xbf16>
    %cst_265 = arith.constant dense<0.000000e+00> : vector<20x128xf32>
    %242 = tpu.matmul %239, %241, %cst_265 {dimension_numbers = #tpu.dot_dimension_numbers<[1], [0], [0], [1], [0, 0, 1, 1], [], []>} : vector<20x64xbf16>, vector<64x128xbf16>, vector<20x128xf32> -> vector<20x128xf32>
    %243 = arith.addf %236, %242 : vector<20x128xf32>
    %c0_266 = arith.constant 0 : index
    %c2_267 = arith.constant 2 : index
    %c6_268 = arith.constant 6 : index
    %c0_269 = arith.constant 0 : index
    %244 = vector.load %arg1[%c0_266, %c2_267, %c6_268, %c0_269] : memref<1x4x32x64xf32, #tpu.memory_space<vmem>>, vector<1x1x20x64xf32>
    %245 = vector.shape_cast %244 : vector<1x1x20x64xf32> to vector<20x64xf32>
    %246 = arith.truncf %245 : vector<20x64xf32> to vector<20x64xbf16>
    %c7_270 = arith.constant 7 : index
    %c0_271 = arith.constant 0 : index
    %c0_272 = arith.constant 0 : index
    %247 = vector.load %arg2[%c7_270, %c0_271, %c0_272] : memref<9x64x128xbf16, #tpu.memory_space<vmem>>, vector<1x64x128xbf16>
    %248 = vector.shape_cast %247 : vector<1x64x128xbf16> to vector<64x128xbf16>
    %cst_273 = arith.constant dense<0.000000e+00> : vector<20x128xf32>
    %249 = tpu.matmul %246, %248, %cst_273 {dimension_numbers = #tpu.dot_dimension_numbers<[1], [0], [0], [1], [0, 0, 1, 1], [], []>} : vector<20x64xbf16>, vector<64x128xbf16>, vector<20x128xf32> -> vector<20x128xf32>
    %250 = arith.addf %243, %249 : vector<20x128xf32>
    %c0_274 = arith.constant 0 : index
    %c3_275 = arith.constant 3 : index
    %c6_276 = arith.constant 6 : index
    %c0_277 = arith.constant 0 : index
    %251 = vector.load %arg1[%c0_274, %c3_275, %c6_276, %c0_277] : memref<1x4x32x64xf32, #tpu.memory_space<vmem>>, vector<1x1x20x64xf32>
    %252 = vector.shape_cast %251 : vector<1x1x20x64xf32> to vector<20x64xf32>
    %253 = arith.truncf %252 : vector<20x64xf32> to vector<20x64xbf16>
    %c8_278 = arith.constant 8 : index
    %c0_279 = arith.constant 0 : index
    %c0_280 = arith.constant 0 : index
    %254 = vector.load %arg2[%c8_278, %c0_279, %c0_280] : memref<9x64x128xbf16, #tpu.memory_space<vmem>>, vector<1x64x128xbf16>
    %255 = vector.shape_cast %254 : vector<1x64x128xbf16> to vector<64x128xbf16>
    %cst_281 = arith.constant dense<0.000000e+00> : vector<20x128xf32>
    %256 = tpu.matmul %253, %255, %cst_281 {dimension_numbers = #tpu.dot_dimension_numbers<[1], [0], [0], [1], [0, 0, 1, 1], [], []>} : vector<20x64xbf16>, vector<64x128xbf16>, vector<20x128xf32> -> vector<20x128xf32>
    %257 = arith.addf %250, %256 : vector<20x128xf32>
    %258 = arith.maximumf %193, %257 : vector<20x128xf32>
    %c0_282 = arith.constant 0 : index
    %c0_283 = arith.constant 0 : index
    %259 = vector.load %arg3[%c0_282, %c0_283] : memref<1x128xf32, #tpu.memory_space<vmem>>, vector<1x128xf32>
    %260 = vector.broadcast %259 : vector<1x128xf32> to vector<20x128xf32>
    %261 = arith.addf %258, %260 : vector<20x128xf32>
    %cst_284 = arith.constant 0.000000e+00 : f32
    %262 = vector.broadcast %cst_284 : f32 to vector<20x128xf32>
    %263 = arith.maximumf %261, %262 : vector<20x128xf32>
    %c0_285 = arith.constant 0 : index
    %c0_286 = arith.constant 0 : index
    %c0_287 = arith.constant 0 : index
    %264 = vector.load %arg4[%c0_285, %c0_286, %c0_287] : memref<1x20x128xf32, #tpu.memory_space<vmem>>, vector<1x20x128xf32>
    %265 = vector.shape_cast %264 : vector<1x20x128xf32> to vector<20x128xf32>
    %266 = vector.shape_cast %263 : vector<20x128xf32> to vector<1x20x128xf32>
    tpu.vector_store %arg4[%c0_285, %c0_286, %c0_287], %266 {strides = array<i32>} : memref<1x20x128xf32, #tpu.memory_space<vmem>>, vector<1x20x128xf32>,
    return
  }
  func.func @transform_0(%arg0: i32) -> (i32, i32, i32, i32) {
    %c0_i32 = arith.constant 0 : i32
    %c0_i32_0 = arith.constant 0 : i32
    %c0_i32_1 = arith.constant 0 : i32
    %c0_i32_2 = arith.constant 0 : i32
    return %arg0, %c0_i32, %c0_i32_0, %c0_i32_1 : i32, i32, i32, i32
  }
  func.func @transform_1(%arg0: i32) -> (i32, i32, i32) {
    %c0_i32 = arith.constant 0 : i32
    %c0_i32_0 = arith.constant 0 : i32
    %c0_i32_1 = arith.constant 0 : i32
    %c0_i32_2 = arith.constant 0 : i32
    return %c0_i32, %c0_i32_0, %c0_i32_1 : i32, i32, i32
  }
  func.func @transform_2(%arg0: i32) -> (i32, i32) {
    %c0_i32 = arith.constant 0 : i32
    %c0_i32_0 = arith.constant 0 : i32
    %c0_i32_1 = arith.constant 0 : i32
    return %c0_i32, %c0_i32_0 : i32, i32
  }
  func.func @transform_3(%arg0: i32) -> (i32, i32, i32) {
    %c0_i32 = arith.constant 0 : i32
    %c0_i32_0 = arith.constant 0 : i32
    %c0_i32_1 = arith.constant 0 : i32
    return %arg0, %c0_i32, %c0_i32_0 : i32, i32, i32
  }
}

module attributes {stable_mosaic.version = 11 : i64} {
  func.func @kernel(%arg0: i32, %arg1: memref<1x40x128xf32, #tpu.memory_space<vmem>>, %arg2: memref<24x1xf32, #tpu.memory_space<vmem>>, %arg3: memref<9x128x128xbf16, #tpu.memory_space<vmem>>, %arg4: memref<1x128xf32, #tpu.memory_space<vmem>>, %arg5: memref<128x18xf32, #tpu.memory_space<vmem>>, %arg6: memref<1x18xf32, #tpu.memory_space<vmem>>, %arg7: memref<1x1x18xf32, #tpu.memory_space<vmem>>, %arg8: memref<1x1x18xf32, #tpu.memory_space<vmem>>) attributes {dimension_semantics = [#tpu.dimension_semantics<parallel>], iteration_bounds = array<i64: 2>, scalar_prefetch = 0 : i64, scratch_operands = 0 : i64, tpu.core_type = #tpu.core_type<tc>, window_params = [{transform_indices = @transform_0, window_bounds = array<i64: 1, 40, 128>}, {pipeline_mode = #tpu.pipeline_mode<synchronous>, transform_indices = @transform_1, window_bounds = array<i64: 24, 1>}, {pipeline_mode = #tpu.pipeline_mode<synchronous>, transform_indices = @transform_2, window_bounds = array<i64: 9, 128, 128>}, {pipeline_mode = #tpu.pipeline_mode<synchronous>, transform_indices = @transform_3, window_bounds = array<i64: 1, 128>}, {pipeline_mode = #tpu.pipeline_mode<synchronous>, transform_indices = @transform_4, window_bounds = array<i64: 128, 18>}, {pipeline_mode = #tpu.pipeline_mode<synchronous>, transform_indices = @transform_5, window_bounds = array<i64: 1, 18>}, {transform_indices = @transform_6, window_bounds = array<i64: 1, 1, 18>}, {transform_indices = @transform_7, window_bounds = array<i64: 1, 1, 18>}]} {
    %cst = arith.constant 0.000000e+00 : f32
    %0 = vector.broadcast %cst : f32 to vector<24x128xf32>
    %c0 = arith.constant 0 : index
    %c0_0 = arith.constant 0 : index
    %c0_1 = arith.constant 0 : index
    %1 = vector.load %arg1[%c0, %c0_0, %c0_1] : memref<1x40x128xf32, #tpu.memory_space<vmem>>, vector<1x24x128xf32>
    %2 = vector.shape_cast %1 : vector<1x24x128xf32> to vector<24x128xf32>
    %3 = arith.truncf %2 : vector<24x128xf32> to vector<24x128xbf16>
    %c0_2 = arith.constant 0 : index
    %c0_3 = arith.constant 0 : index
    %c0_4 = arith.constant 0 : index
    %4 = vector.load %arg3[%c0_2, %c0_3, %c0_4] : memref<9x128x128xbf16, #tpu.memory_space<vmem>>, vector<1x128x128xbf16>
    %5 = vector.shape_cast %4 : vector<1x128x128xbf16> to vector<128x128xbf16>
    %cst_5 = arith.constant dense<0.000000e+00> : vector<24x128xf32>
    %6 = tpu.matmul %3, %5, %cst_5 {dimension_numbers = #tpu.dot_dimension_numbers<[1], [0], [0], [1], [0, 0, 1, 1], [], []>} : vector<24x128xbf16>, vector<128x128xbf16>, vector<24x128xf32> -> vector<24x128xf32>
    %7 = arith.addf %0, %6 : vector<24x128xf32>
    %c0_6 = arith.constant 0 : index
    %c1 = arith.constant 1 : index
    %c0_7 = arith.constant 0 : index
    %8 = vector.load %arg1[%c0_6, %c1, %c0_7] : memref<1x40x128xf32, #tpu.memory_space<vmem>>, vector<1x24x128xf32>
    %9 = vector.shape_cast %8 : vector<1x24x128xf32> to vector<24x128xf32>
    %10 = arith.truncf %9 : vector<24x128xf32> to vector<24x128xbf16>
    %c1_8 = arith.constant 1 : index
    %c0_9 = arith.constant 0 : index
    %c0_10 = arith.constant 0 : index
    %11 = vector.load %arg3[%c1_8, %c0_9, %c0_10] : memref<9x128x128xbf16, #tpu.memory_space<vmem>>, vector<1x128x128xbf16>
    %12 = vector.shape_cast %11 : vector<1x128x128xbf16> to vector<128x128xbf16>
    %cst_11 = arith.constant dense<0.000000e+00> : vector<24x128xf32>
    %13 = tpu.matmul %10, %12, %cst_11 {dimension_numbers = #tpu.dot_dimension_numbers<[1], [0], [0], [1], [0, 0, 1, 1], [], []>} : vector<24x128xbf16>, vector<128x128xbf16>, vector<24x128xf32> -> vector<24x128xf32>
    %14 = arith.addf %7, %13 : vector<24x128xf32>
    %c0_12 = arith.constant 0 : index
    %c2 = arith.constant 2 : index
    %c0_13 = arith.constant 0 : index
    %15 = vector.load %arg1[%c0_12, %c2, %c0_13] : memref<1x40x128xf32, #tpu.memory_space<vmem>>, vector<1x24x128xf32>
    %16 = vector.shape_cast %15 : vector<1x24x128xf32> to vector<24x128xf32>
    %17 = arith.truncf %16 : vector<24x128xf32> to vector<24x128xbf16>
    %c2_14 = arith.constant 2 : index
    %c0_15 = arith.constant 0 : index
    %c0_16 = arith.constant 0 : index
    %18 = vector.load %arg3[%c2_14, %c0_15, %c0_16] : memref<9x128x128xbf16, #tpu.memory_space<vmem>>, vector<1x128x128xbf16>
    %19 = vector.shape_cast %18 : vector<1x128x128xbf16> to vector<128x128xbf16>
    %cst_17 = arith.constant dense<0.000000e+00> : vector<24x128xf32>
    %20 = tpu.matmul %17, %19, %cst_17 {dimension_numbers = #tpu.dot_dimension_numbers<[1], [0], [0], [1], [0, 0, 1, 1], [], []>} : vector<24x128xbf16>, vector<128x128xbf16>, vector<24x128xf32> -> vector<24x128xf32>
    %21 = arith.addf %14, %20 : vector<24x128xf32>
    %c0_18 = arith.constant 0 : index
    %c6 = arith.constant 6 : index
    %c0_19 = arith.constant 0 : index
    %22 = vector.load %arg1[%c0_18, %c6, %c0_19] : memref<1x40x128xf32, #tpu.memory_space<vmem>>, vector<1x24x128xf32>
    %23 = vector.shape_cast %22 : vector<1x24x128xf32> to vector<24x128xf32>
    %24 = arith.truncf %23 : vector<24x128xf32> to vector<24x128xbf16>
    %c3 = arith.constant 3 : index
    %c0_20 = arith.constant 0 : index
    %c0_21 = arith.constant 0 : index
    %25 = vector.load %arg3[%c3, %c0_20, %c0_21] : memref<9x128x128xbf16, #tpu.memory_space<vmem>>, vector<1x128x128xbf16>
    %26 = vector.shape_cast %25 : vector<1x128x128xbf16> to vector<128x128xbf16>
    %cst_22 = arith.constant dense<0.000000e+00> : vector<24x128xf32>
    %27 = tpu.matmul %24, %26, %cst_22 {dimension_numbers = #tpu.dot_dimension_numbers<[1], [0], [0], [1], [0, 0, 1, 1], [], []>} : vector<24x128xbf16>, vector<128x128xbf16>, vector<24x128xf32> -> vector<24x128xf32>
    %28 = arith.addf %21, %27 : vector<24x128xf32>
    %c0_23 = arith.constant 0 : index
    %c7 = arith.constant 7 : index
    %c0_24 = arith.constant 0 : index
    %29 = vector.load %arg1[%c0_23, %c7, %c0_24] : memref<1x40x128xf32, #tpu.memory_space<vmem>>, vector<1x24x128xf32>
    %30 = vector.shape_cast %29 : vector<1x24x128xf32> to vector<24x128xf32>
    %31 = arith.truncf %30 : vector<24x128xf32> to vector<24x128xbf16>
    %c4 = arith.constant 4 : index
    %c0_25 = arith.constant 0 : index
    %c0_26 = arith.constant 0 : index
    %32 = vector.load %arg3[%c4, %c0_25, %c0_26] : memref<9x128x128xbf16, #tpu.memory_space<vmem>>, vector<1x128x128xbf16>
    %33 = vector.shape_cast %32 : vector<1x128x128xbf16> to vector<128x128xbf16>
    %cst_27 = arith.constant dense<0.000000e+00> : vector<24x128xf32>
    %34 = tpu.matmul %31, %33, %cst_27 {dimension_numbers = #tpu.dot_dimension_numbers<[1], [0], [0], [1], [0, 0, 1, 1], [], []>} : vector<24x128xbf16>, vector<128x128xbf16>, vector<24x128xf32> -> vector<24x128xf32>
    %35 = arith.addf %28, %34 : vector<24x128xf32>
    %c0_28 = arith.constant 0 : index
    %c8 = arith.constant 8 : index
    %c0_29 = arith.constant 0 : index
    %36 = vector.load %arg1[%c0_28, %c8, %c0_29] : memref<1x40x128xf32, #tpu.memory_space<vmem>>, vector<1x24x128xf32>
    %37 = vector.shape_cast %36 : vector<1x24x128xf32> to vector<24x128xf32>
    %38 = arith.truncf %37 : vector<24x128xf32> to vector<24x128xbf16>
    %c5 = arith.constant 5 : index
    %c0_30 = arith.constant 0 : index
    %c0_31 = arith.constant 0 : index
    %39 = vector.load %arg3[%c5, %c0_30, %c0_31] : memref<9x128x128xbf16, #tpu.memory_space<vmem>>, vector<1x128x128xbf16>
    %40 = vector.shape_cast %39 : vector<1x128x128xbf16> to vector<128x128xbf16>
    %cst_32 = arith.constant dense<0.000000e+00> : vector<24x128xf32>
    %41 = tpu.matmul %38, %40, %cst_32 {dimension_numbers = #tpu.dot_dimension_numbers<[1], [0], [0], [1], [0, 0, 1, 1], [], []>} : vector<24x128xbf16>, vector<128x128xbf16>, vector<24x128xf32> -> vector<24x128xf32>
    %42 = arith.addf %35, %41 : vector<24x128xf32>
    %c0_33 = arith.constant 0 : index
    %c12 = arith.constant 12 : index
    %c0_34 = arith.constant 0 : index
    %43 = vector.load %arg1[%c0_33, %c12, %c0_34] : memref<1x40x128xf32, #tpu.memory_space<vmem>>, vector<1x24x128xf32>
    %44 = vector.shape_cast %43 : vector<1x24x128xf32> to vector<24x128xf32>
    %45 = arith.truncf %44 : vector<24x128xf32> to vector<24x128xbf16>
    %c6_35 = arith.constant 6 : index
    %c0_36 = arith.constant 0 : index
    %c0_37 = arith.constant 0 : index
    %46 = vector.load %arg3[%c6_35, %c0_36, %c0_37] : memref<9x128x128xbf16, #tpu.memory_space<vmem>>, vector<1x128x128xbf16>
    %47 = vector.shape_cast %46 : vector<1x128x128xbf16> to vector<128x128xbf16>
    %cst_38 = arith.constant dense<0.000000e+00> : vector<24x128xf32>
    %48 = tpu.matmul %45, %47, %cst_38 {dimension_numbers = #tpu.dot_dimension_numbers<[1], [0], [0], [1], [0, 0, 1, 1], [], []>} : vector<24x128xbf16>, vector<128x128xbf16>, vector<24x128xf32> -> vector<24x128xf32>
    %49 = arith.addf %42, %48 : vector<24x128xf32>
    %c0_39 = arith.constant 0 : index
    %c13 = arith.constant 13 : index
    %c0_40 = arith.constant 0 : index
    %50 = vector.load %arg1[%c0_39, %c13, %c0_40] : memref<1x40x128xf32, #tpu.memory_space<vmem>>, vector<1x24x128xf32>
    %51 = vector.shape_cast %50 : vector<1x24x128xf32> to vector<24x128xf32>
    %52 = arith.truncf %51 : vector<24x128xf32> to vector<24x128xbf16>
    %c7_41 = arith.constant 7 : index
    %c0_42 = arith.constant 0 : index
    %c0_43 = arith.constant 0 : index
    %53 = vector.load %arg3[%c7_41, %c0_42, %c0_43] : memref<9x128x128xbf16, #tpu.memory_space<vmem>>, vector<1x128x128xbf16>
    %54 = vector.shape_cast %53 : vector<1x128x128xbf16> to vector<128x128xbf16>
    %cst_44 = arith.constant dense<0.000000e+00> : vector<24x128xf32>
    %55 = tpu.matmul %52, %54, %cst_44 {dimension_numbers = #tpu.dot_dimension_numbers<[1], [0], [0], [1], [0, 0, 1, 1], [], []>} : vector<24x128xbf16>, vector<128x128xbf16>, vector<24x128xf32> -> vector<24x128xf32>
    %56 = arith.addf %49, %55 : vector<24x128xf32>
    %c0_45 = arith.constant 0 : index
    %c14 = arith.constant 14 : index
    %c0_46 = arith.constant 0 : index
    %57 = vector.load %arg1[%c0_45, %c14, %c0_46] : memref<1x40x128xf32, #tpu.memory_space<vmem>>, vector<1x24x128xf32>
    %58 = vector.shape_cast %57 : vector<1x24x128xf32> to vector<24x128xf32>
    %59 = arith.truncf %58 : vector<24x128xf32> to vector<24x128xbf16>
    %c8_47 = arith.constant 8 : index
    %c0_48 = arith.constant 0 : index
    %c0_49 = arith.constant 0 : index
    %60 = vector.load %arg3[%c8_47, %c0_48, %c0_49] : memref<9x128x128xbf16, #tpu.memory_space<vmem>>, vector<1x128x128xbf16>
    %61 = vector.shape_cast %60 : vector<1x128x128xbf16> to vector<128x128xbf16>
    %cst_50 = arith.constant dense<0.000000e+00> : vector<24x128xf32>
    %62 = tpu.matmul %59, %61, %cst_50 {dimension_numbers = #tpu.dot_dimension_numbers<[1], [0], [0], [1], [0, 0, 1, 1], [], []>} : vector<24x128xbf16>, vector<128x128xbf16>, vector<24x128xf32> -> vector<24x128xf32>
    %63 = arith.addf %56, %62 : vector<24x128xf32>
    %c0_51 = arith.constant 0 : index
    %c0_52 = arith.constant 0 : index
    %64 = vector.load %arg4[%c0_51, %c0_52] : memref<1x128xf32, #tpu.memory_space<vmem>>, vector<1x128xf32>
    %65 = vector.broadcast %64 : vector<1x128xf32> to vector<24x128xf32>
    %66 = arith.addf %63, %65 : vector<24x128xf32>
    %cst_53 = arith.constant 0.000000e+00 : f32
    %67 = vector.broadcast %cst_53 : f32 to vector<24x128xf32>
    %68 = arith.maximumf %66, %67 : vector<24x128xf32>
    %c0_54 = arith.constant 0 : index
    %c0_55 = arith.constant 0 : index
    %69 = vector.load %arg2[%c0_54, %c0_55] : memref<24x1xf32, #tpu.memory_space<vmem>>, vector<24x1xf32>
    %70 = vector.broadcast %69 : vector<24x1xf32> to vector<24x128xf32>
    %71 = arith.mulf %68, %70 : vector<24x128xf32>
    %cst_56 = arith.constant dense<0.000000e+00> : vector<128xf32>
    %72 = vector.multi_reduction <add>, %71, %cst_56 [0] : vector<24x128xf32> to vector<128xf32>
    %73 = vector.shape_cast %72 : vector<128xf32> to vector<1x128xf32>
    %c0_57 = arith.constant 0 : index
    %c0_58 = arith.constant 0 : index
    %74 = vector.load %arg5[%c0_57, %c0_58] : memref<128x18xf32, #tpu.memory_space<vmem>>, vector<128x18xf32>
    %cst_59 = arith.constant dense<0.000000e+00> : vector<1x18xf32>
    %75 = tpu.matmul %73, %74, %cst_59 {dimension_numbers = #tpu.dot_dimension_numbers<[1], [0], [0], [1], [0, 0, 1, 1], [], []>} : vector<1x128xf32>, vector<128x18xf32>, vector<1x18xf32> -> vector<1x18xf32>
    %c0_60 = arith.constant 0 : index
    %c0_61 = arith.constant 0 : index
    %76 = vector.load %arg6[%c0_60, %c0_61] : memref<1x18xf32, #tpu.memory_space<vmem>>, vector<1x18xf32>
    %77 = arith.addf %75, %76 : vector<1x18xf32>
    %c0_62 = arith.constant 0 : index
    %c0_63 = arith.constant 0 : index
    %c0_64 = arith.constant 0 : index
    %78 = vector.load %arg7[%c0_62, %c0_63, %c0_64] : memref<1x1x18xf32, #tpu.memory_space<vmem>>, vector<1x1x18xf32>
    %79 = vector.shape_cast %78 : vector<1x1x18xf32> to vector<1x18xf32>
    %80 = vector.shape_cast %77 : vector<1x18xf32> to vector<1x1x18xf32>
    tpu.vector_store %arg7[%c0_62, %c0_63, %c0_64], %80 {strides = array<i32>} : memref<1x1x18xf32, #tpu.memory_space<vmem>>, vector<1x1x18xf32>,
    %cst_65 = arith.constant 0.000000e+00 : f32
    %81 = vector.broadcast %cst_65 : f32 to vector<1x18xf32>
    %82 = arith.subf %81, %77 : vector<1x18xf32>
    %83 = math.exp %82 : vector<1x18xf32>
    %cst_66 = arith.constant 1.000000e+00 : f32
    %84 = vector.broadcast %cst_66 : f32 to vector<1x18xf32>
    %85 = arith.addf %84, %83 : vector<1x18xf32>
    %cst_67 = arith.constant 1.000000e+00 : f32
    %86 = vector.broadcast %cst_67 : f32 to vector<1x18xf32>
    %87 = arith.divf %86, %85 : vector<1x18xf32>
    %c0_68 = arith.constant 0 : index
    %c0_69 = arith.constant 0 : index
    %c0_70 = arith.constant 0 : index
    %88 = vector.load %arg8[%c0_68, %c0_69, %c0_70] : memref<1x1x18xf32, #tpu.memory_space<vmem>>, vector<1x1x18xf32>
    %89 = vector.shape_cast %88 : vector<1x1x18xf32> to vector<1x18xf32>
    %90 = vector.shape_cast %87 : vector<1x18xf32> to vector<1x1x18xf32>
    tpu.vector_store %arg8[%c0_68, %c0_69, %c0_70], %90 {strides = array<i32>} : memref<1x1x18xf32, #tpu.memory_space<vmem>>, vector<1x1x18xf32>,
    return
  }
  func.func @transform_0(%arg0: i32) -> (i32, i32, i32) {
    %c0_i32 = arith.constant 0 : i32
    %c0_i32_0 = arith.constant 0 : i32
    %c0_i32_1 = arith.constant 0 : i32
    return %arg0, %c0_i32, %c0_i32_0 : i32, i32, i32
  }
  func.func @transform_1(%arg0: i32) -> (i32, i32) {
    %c0_i32 = arith.constant 0 : i32
    %c0_i32_0 = arith.constant 0 : i32
    %c0_i32_1 = arith.constant 0 : i32
    return %c0_i32, %c0_i32_0 : i32, i32
  }
  func.func @transform_2(%arg0: i32) -> (i32, i32, i32) {
    %c0_i32 = arith.constant 0 : i32
    %c0_i32_0 = arith.constant 0 : i32
    %c0_i32_1 = arith.constant 0 : i32
    %c0_i32_2 = arith.constant 0 : i32
    return %c0_i32, %c0_i32_0, %c0_i32_1 : i32, i32, i32
  }
  func.func @transform_3(%arg0: i32) -> (i32, i32) {
    %c0_i32 = arith.constant 0 : i32
    %c0_i32_0 = arith.constant 0 : i32
    %c0_i32_1 = arith.constant 0 : i32
    return %c0_i32, %c0_i32_0 : i32, i32
  }
  func.func @transform_4(%arg0: i32) -> (i32, i32) {
    %c0_i32 = arith.constant 0 : i32
    %c0_i32_0 = arith.constant 0 : i32
    %c0_i32_1 = arith.constant 0 : i32
    return %c0_i32, %c0_i32_0 : i32, i32
  }
  func.func @transform_5(%arg0: i32) -> (i32, i32) {
    %c0_i32 = arith.constant 0 : i32
    %c0_i32_0 = arith.constant 0 : i32
    %c0_i32_1 = arith.constant 0 : i32
    return %c0_i32, %c0_i32_0 : i32, i32
  }
  func.func @transform_6(%arg0: i32) -> (i32, i32, i32) {
    %c0_i32 = arith.constant 0 : i32
    %c0_i32_0 = arith.constant 0 : i32
    %c0_i32_1 = arith.constant 0 : i32
    return %arg0, %c0_i32, %c0_i32_0 : i32, i32, i32
  }
  func.func @transform_7(%arg0: i32) -> (i32, i32, i32) {
    %c0_i32 = arith.constant 0 : i32
    %c0_i32_0 = arith.constant 0 : i32
    %c0_i32_1 = arith.constant 0 : i32
    return %arg0, %c0_i32, %c0_i32_0 : i32, i32, i32
  }
}

</mosaic_0001>

<llo_original>
// kernel: _device_forward.4
$region0: #{_device_forward.4}
  #allocation0 [shape = 'u32[]', space=smem, size = 0x4, offset = 0x4, fixed_abs, tag = 'smem constant byte address 0x4 - core index']
  #allocation1 [shape = 'u32[144,128]{1,0:T(1,128)}', space=vmem, size = 0x12000, scoped, tag = 'internal scratch']
  %s0 = inlined_call_operand.vmem [shape: f32[2,4,32,64], index: 0, kind: input, shape index: {}]
  %s1 = inlined_call_operand.vmem [shape: bf16[9,64,128], index: 1, kind: input, shape index: {}]
  %s2 = inlined_call_operand.vmem [shape: f32[1,128], index: 2, kind: input, shape index: {}]
  %s3 = inlined_call_operand.vmem [shape: f32[2,20,128], index: 3, kind: output, shape index: {}]
  %s4 = sld [smem:[#allocation0]]
  $region45: #{_device_forward.4} parent=0
    _
  %s6 = ssub.s32 1, %s4
  %s7 = scalar_select 0, %s6, %s4
  loop: start=0, step=1, limit=4
  $region2: #{_device_forward.4} parent=0 // loop_pre_header
    _
  $region3: #{_device_forward.4} parent=0 // loop_header
    %s9 = sphi 0, %s13
    %p10 = scmp.ge.s32.totalorder %s9, 4
    %s19 = sphi 0, %s21
    %s22 = sphi 0, %s19
    %s23 = sphi 0, %s22
    %s39 = sphi 0, %s23
    %s43 = sphi 0, %s43
    %s45 = sphi 0, %s43
    %s46 = sphi 0, %s45
    %s60 = sphi 0, %s46
    %s64 = sphi 0, %s64
    %s66 = sphi 0, %s64
    %s67 = sphi 0, %s66
    %s81 = sphi 0, %s67
    %s87 = sphi 0, %s89
    %s90 = sphi 0, %s87
    %s91 = sphi 0, %s90
    %s107 = sphi 0, %s91
  $region4: #{_device_forward.4} parent=0 // loop_header_branch
    %12 = sbr.rel (%p10) target = $region8
  $region5: #{_device_forward.4} parent=0 // loop_body
    %s14 = ssub.s32 %s9, 1
    %s15 = ssub.s32 %s9, 2
    %s16 = sadd.s32 %s9, 1
    %s17 = ssub.s32 %s9, %s16
    %p18 = scmp.eq.s32.totalorder %s17, 0
    %s20 = sadd.s32 %s19, 1
    %s21 = scalar_select %p18, %s19, %s20
    %p24 = pneg %p18
    %p25 = scmp.eq.s32.totalorder %s9, 1
    %p26 = por %p24, %p25
    %p27 = scmp.ne.s32.totalorder %s19, %s22
    %p28 = scmp.eq.s32.totalorder %s9, 0
    %p29 = por %p27, %p28
    %p30 = scmp.ne.s32.totalorder %s19, %s22
    %p31 = scmp.eq.s32.totalorder %s14, 1
    %p32 = por %p30, %p31
    %p33 = scmp.ne.s32.totalorder %s22, %s23
    %p34 = scmp.eq.s32.totalorder %s14, 0
    %p35 = por %p33, %p34
    %p36 = scmp.ne.s32.totalorder %s22, %s23
    %p37 = scmp.eq.s32.totalorder %s15, 1
    %p38 = por %p36, %p37
    %p40 = scmp.ne.s32.totalorder %s23, %s39
    %p41 = scmp.eq.s32.totalorder %s15, 0
    %p42 = por %p40, %p41
    %s44 = sadd.s32 %s43, 1
    %p47 = scmp.eq.s32.totalorder %s9, 1
    %p48 = scmp.ne.s32.totalorder %s43, %s45
    %p49 = scmp.eq.s32.totalorder %s9, 0
    %p50 = por %p48, %p49
    %p51 = scmp.ne.s32.totalorder %s43, %s45
    %p52 = scmp.eq.s32.totalorder %s14, 1
    %p53 = por %p51, %p52
    %p54 = scmp.ne.s32.totalorder %s45, %s46
    %p55 = scmp.eq.s32.totalorder %s14, 0
    %p56 = por %p54, %p55
    %p57 = scmp.ne.s32.totalorder %s45, %s46
    %p58 = scmp.eq.s32.totalorder %s15, 1
    %p59 = por %p57, %p58
    %p61 = scmp.ne.s32.totalorder %s46, %s60
    %p62 = scmp.eq.s32.totalorder %s15, 0
    %p63 = por %p61, %p62
    %s65 = sadd.s32 %s64, 1
    %p68 = scmp.eq.s32.totalorder %s9, 1
    %p69 = scmp.ne.s32.totalorder %s64, %s66
    %p70 = scmp.eq.s32.totalorder %s9, 0
    %p71 = por %p69, %p70
    %p72 = scmp.ne.s32.totalorder %s64, %s66
    %p73 = scmp.eq.s32.totalorder %s14, 1
    %p74 = por %p72, %p73
    %p75 = scmp.ne.s32.totalorder %s66, %s67
    %p76 = scmp.eq.s32.totalorder %s14, 0
    %p77 = por %p75, %p76
    %p78 = scmp.ne.s32.totalorder %s66, %s67
    %p79 = scmp.eq.s32.totalorder %s15, 1
    %p80 = por %p78, %p79
    %p82 = scmp.ne.s32.totalorder %s67, %s81
    %p83 = scmp.eq.s32.totalorder %s15, 0
    %p84 = por %p82, %p83
    %s85 = ssub.s32 %s9, %s16
    %p86 = scmp.eq.s32.totalorder %s85, 0
    %s88 = sadd.s32 %s87, 1
    %s89 = scalar_select %p86, %s87, %s88
    %p92 = pneg %p86
    %p93 = scmp.eq.s32.totalorder %s9, 1
    %p94 = por %p92, %p93
    %p95 = scmp.ne.s32.totalorder %s87, %s90
    %p96 = scmp.eq.s32.totalorder %s9, 0
    %p97 = por %p95, %p96
    %p98 = scmp.ne.s32.totalorder %s87, %s90
    %p99 = scmp.eq.s32.totalorder %s14, 1
    %p100 = por %p98, %p99
    %p101 = scmp.ne.s32.totalorder %s90, %s91
    %p102 = scmp.eq.s32.totalorder %s14, 0
    %p103 = por %p101, %p102
    %p104 = scmp.ne.s32.totalorder %s90, %s91
    %p105 = scmp.eq.s32.totalorder %s15, 1
    %p106 = por %p104, %p105
    %p108 = scmp.ne.s32.totalorder %s91, %s107
    %p109 = scmp.eq.s32.totalorder %s15, 0
    %p110 = por %p108, %p109
    %p111 = scmp.le.s32.totalorder 1, %s9
    %p112 = scmp.lt.s32.totalorder %s9, 3
    %p113 = pnand %p111, %p112
    %p114 = pneg %p113
    // Predicated region
    $region9: #{_device_forward.4} parent=5 // pred_check
      _
    $region10: #{_device_forward.4} parent=5 // pred_check_branch
      %116 = sbr.rel (%p113) target = $region12
    $region11: #{_device_forward.4} parent=5 // pred_region
      %s117 = ssub.s32 %s9, 1
      // Predicated region
      $region13: #{_device_forward.4} parent=11 // pred_check
        %p118 = pneg %p56
      $region14: #{_device_forward.4} parent=11 // pred_check_branch
        %120 = sbr.rel (%p118) target = $region16
      $region15: #{_device_forward.4} parent=11 // pred_region
        _
      $region16: #{_device_forward.4} parent=11 // pred_fallthru
        _
      // Predicated region
      $region17: #{_device_forward.4} parent=11 // pred_check
        %p121 = pneg %p77
      $region18: #{_device_forward.4} parent=11 // pred_check_branch
        %123 = sbr.rel (%p121) target = $region20
      $region19: #{_device_forward.4} parent=11 // pred_region
        _
      $region20: #{_device_forward.4} parent=11 // pred_fallthru
        _
    $region12: #{_device_forward.4} parent=5 // pred_fallthru
      _
    %p124 = scmp.lt.s32.totalorder %s9, 2
    // Predicated region
    $region21: #{_device_forward.4} parent=5 // pred_check
      %p125 = pneg %p124
    $region22: #{_device_forward.4} parent=5 // pred_check_branch
      %127 = sbr.rel (%p125) target = $region24
    $region23: #{_device_forward.4} parent=5 // pred_region
      // Predicated region
      $region25: #{_device_forward.4} parent=23 // pred_check
        %p128 = pneg %p29
      $region26: #{_device_forward.4} parent=23 // pred_check_branch
        %130 = sbr.rel (%p128) target = $region28
      $region27: #{_device_forward.4} parent=23 // pred_region
        %p131 = scmp.lt.s32.totalorder %s9, 1
        %s132 = scalar_select %p131, %s9, 1
        %s133 = smul.addr %s132, 16
        %s134 = smul.addr %s133, 8
        %s135 = scalar_lea.vmem %s0, %s134
      $region28: #{_device_forward.4} parent=23 // pred_fallthru
        _
    $region24: #{_device_forward.4} parent=5 // pred_fallthru
      _
    %p136 = scmp.le.s32.totalorder 1, %s9
    %p137 = scmp.lt.s32.totalorder %s9, 3
    %p138 = pnand %p136, %p137
    %p139 = pneg %p138
    // Predicated region
    $region29: #{_device_forward.4} parent=5 // pred_check
      _
    $region30: #{_device_forward.4} parent=5 // pred_check_branch
      %141 = sbr.rel (%p138) target = $region32
    $region31: #{_device_forward.4} parent=5 // pred_region
      %s142 = ssub.s32 %s9, 1
      %p143 = scmp.lt.s32.totalorder %s14, 1
      %s144 = scalar_select %p143, %s14, 1
      %s145 = smul.addr %s144, 16
      %s146 = smul.addr %s145, 8
      %s147 = scalar_lea.vmem %s0, %s146
      %p148 = pneg %p35
      %p149 = pneg %p32
      %p150 = pneg %p56
      %p151 = pneg %p53
      %p152 = pneg %p77
      %p153 = pneg %p74
      %p154 = pneg %p103
      %p155 = pneg %p100
      %p156 = scmp.lt.s32.totalorder %s14, 1
      %s157 = scalar_select %p156, %s14, 1
      %s158 = smul.addr %s157, 3
      %s159 = smul.addr %s158, 8
      %s160 = scalar_lea.vmem %s3, %s159
      %p161 = scmp.lt.s32.totalorder %s14, 1
      %s162 = scalar_select %p161, %s14, 1
      %s163 = smul.addr %s162, 16
      %s164 = smul.addr %s163, 8
      %s165 = scalar_lea.vmem %s0, %s164
      %p166 = scmp.lt.s32.totalorder %s14, 1
      %s167 = scalar_select %p166, %s14, 1
      %s168 = smul.addr %s167, 3
      %s169 = smul.addr %s168, 8
      %s170 = scalar_lea.vmem %s3, %s169
      %v172 = vld [vmem:[%s165] sm:$0xff]
      %v173 = vld [vmem:[%s165 + $0x8] sm:$0xff]
      %v174 = vld [vmem:[%s165 + $0x10] sm:$0xf]
      %v175 = vpack.c.bf16 %v173, %v172
      %v176 = vpack.c.bf16 %v174, %v174
      %v177 = vld [vmem:[%s1] sm:$0xf]
      %v178 = vld [vmem:[%s1 + $0x4] sm:$0xf]
      %v179 = vld [vmem:[%s1 + $0x8] sm:$0xf]
      %v180 = vld [vmem:[%s1 + $0xc] sm:$0xf]
      %v181 = vld [vmem:[%s1 + $0x10] sm:$0xf]
      %v182 = vld [vmem:[%s1 + $0x14] sm:$0xf]
      %v183 = vld [vmem:[%s1 + $0x18] sm:$0xf]
      %v184 = vld [vmem:[%s1 + $0x1c] sm:$0xf]
      %s185 = scalar_lea.vmem %s165, 32
      %v186 = vld [vmem:[%s185] sm:$0xff]
      %v187 = vld [vmem:[%s185 + $0x8] sm:$0xff]
      %v188 = vld [vmem:[%s185 + $0x10] sm:$0xf]
      %v189 = vpack.c.bf16 %v187, %v186
      %v190 = vpack.c.bf16 %v188, %v188
      %s191 = scalar_lea.vmem %s1, 32
      %v192 = vld [vmem:[%s191] sm:$0xf]
      %v193 = vld [vmem:[%s191 + $0x4] sm:$0xf]
      %v194 = vld [vmem:[%s191 + $0x8] sm:$0xf]
      %v195 = vld [vmem:[%s191 + $0xc] sm:$0xf]
      %v196 = vld [vmem:[%s191 + $0x10] sm:$0xf]
      %v197 = vld [vmem:[%s191 + $0x14] sm:$0xf]
      %v198 = vld [vmem:[%s191 + $0x18] sm:$0xf]
      %v199 = vld [vmem:[%s191 + $0x1c] sm:$0xf]
      %v208 = vunpack.c.l.b16 %v192
      %v209 = vunpack.c.l.b16 %v193
      %v210 = vunpack.c.l.b16 %v194
      %v211 = vunpack.c.l.b16 %v195
      %v212 = vunpack.c.l.b16 %v196
      %v213 = vunpack.c.l.b16 %v197
      %v214 = vunpack.c.l.b16 %v198
      %v215 = vunpack.c.l.b16 %v199
      %v216 = vpack.c.b16 %v209, %v208
      %v217 = vpack.c.b16 %v211, %v210
      %v218 = vpack.c.b16 %v213, %v212
      %v219 = vpack.c.b16 %v215, %v214
      %vm224 = vcmask 523264
      %v226 = vsel %vm224, %v189, 0
      %v229 = vsel %vm224, %v190, 0
      %231 = vmatprep.subr.bf16.mxu0 0
      %232 = vmatpush1.bf16.msra.mxu0 %v216
      %233 = vmatprep.subr.bf16.mxu0 0
      %234 = vmatpush1.bf16.msra.mxu0 %v217
      %235 = vmatprep.subr.bf16.mxu0 0
      %236 = vmatpush1.bf16.msra.mxu0 %v218
      %237 = vmatprep.subr.bf16.mxu0 0
      %238 = vmatpush1.bf16.msra.mxu0 %v219
      %239 = vmatprep.subr.bf16.mxu0 0
      %240 = vmatpush1.bf16.msra.mxu0 0
      %241 = vmatprep.subr.bf16.mxu0 0
      %242 = vmatpush1.bf16.msra.mxu0 0
      %243 = vmatprep.subr.bf16.mxu0 0
      %244 = vmatpush1.bf16.msra.mxu0 0
      %245 = vmatprep.subr.bf16.mxu0 0
      %246 = vmatpush1.bf16.msra.mxu0 0
      %247 = vmatprep.subr.bf16.mxu0 0
      %248 = vmatpush1.bf16.msra.mxu0 0
      %249 = vmatprep.subr.bf16.mxu0 0
      %250 = vmatpush1.bf16.msra.mxu0 0
      %251 = vmatprep.subr.bf16.mxu0 0
      %252 = vmatpush1.bf16.msra.mxu0 0
      %253 = vmatprep.subr.bf16.mxu0 0
      %254 = vmatpush1.bf16.msra.mxu0 0
      %255 = vmatprep.subr.bf16.mxu0 0
      %256 = vmatpush1.bf16.msra.mxu0 0
      %257 = vmatprep.subr.bf16.mxu0 0
      %258 = vmatpush1.bf16.msra.mxu0 0
      %259 = vmatprep.subr.bf16.mxu0 0
      %260 = vmatpush1.bf16.msra.mxu0 0
      %261 = vmatprep.subr.bf16.mxu0 0
      %262 = vmatpush1.bf16.msra.mxu0 0
      %263 = vmatprep.mubr.bf16.mxu0 0
      %264 = vmatmul.mubr.bf16.gmra.mrb[0].mxu0 %v226
      %v265 = vpop.f32.mrb[0].mxu0
      %v266 = vadd.f32 0.0, %v265
      %v267 = vpop.f32.mrb[0].mxu0
      %v268 = vpop.f32.mrb[0].mxu0
      %v269 = vadd.f32 0.0, %v268
      %v270 = vpop.f32.mrb[0].mxu0
      %271 = vmatprep.mubr.bf16.mxu0 0
      %272 = vmatmul.mubr.bf16.gmra.mrb[0].mxu0 %v229
      %v273 = vpop.f32.mrb[0].mxu0
      %v274 = vadd.f32 0.0, %v273
      %v275 = vpop.f32.mrb[0].mxu0
      %v276 = vpop.f32.mrb[0].mxu0
      %v277 = vpop.f32.mrb[0].mxu0
      %278 = vdwg.mxu0
      %v287 = vunpack.c.l.b16 %v177
      %v288 = vunpack.c.l.b16 %v178
      %v289 = vunpack.c.l.b16 %v179
      %v290 = vunpack.c.l.b16 %v180
      %v291 = vunpack.c.l.b16 %v181
      %v292 = vunpack.c.l.b16 %v182
      %v293 = vunpack.c.l.b16 %v183
      %v294 = vunpack.c.l.b16 %v184
      %v295 = vpack.c.b16 %v288, %v287
      %v296 = vpack.c.b16 %v290, %v289
      %v297 = vpack.c.b16 %v292, %v291
      %v298 = vpack.c.b16 %v294, %v293
      %v304 = vsel %vm224, %v175, 0
      %v307 = vsel %vm224, %v176, 0
      %309 = vmatprep.subr.bf16.mxu0 0
      %310 = vmatpush1.bf16.msra.mxu0 %v295
      %311 = vmatprep.subr.bf16.mxu0 0
      %312 = vmatpush1.bf16.msra.mxu0 %v296
      %313 = vmatprep.subr.bf16.mxu0 0
      %314 = vmatpush1.bf16.msra.mxu0 %v297
      %315 = vmatprep.subr.bf16.mxu0 0
      %316 = vmatpush1.bf16.msra.mxu0 %v298
      %317 = vmatprep.subr.bf16.mxu0 0
      %318 = vmatpush1.bf16.msra.mxu0 0
      %319 = vmatprep.subr.bf16.mxu0 0
      %320 = vmatpush1.bf16.msra.mxu0 0
      %321 = vmatprep.subr.bf16.mxu0 0
      %322 = vmatpush1.bf16.msra.mxu0 0
      %323 = vmatprep.subr.bf16.mxu0 0
      %324 = vmatpush1.bf16.msra.mxu0 0
      %325 = vmatprep.subr.bf16.mxu0 0
      %326 = vmatpush1.bf16.msra.mxu0 0
      %327 = vmatprep.subr.bf16.mxu0 0
      %328 = vmatpush1.bf16.msra.mxu0 0
      %329 = vmatprep.subr.bf16.mxu0 0
      %330 = vmatpush1.bf16.msra.mxu0 0
      %331 = vmatprep.subr.bf16.mxu0 0
      %332 = vmatpush1.bf16.msra.mxu0 0
      %333 = vmatprep.subr.bf16.mxu0 0
      %334 = vmatpush1.bf16.msra.mxu0 0
      %335 = vmatprep.subr.bf16.mxu0 0
      %336 = vmatpush1.bf16.msra.mxu0 0
      %337 = vmatprep.subr.bf16.mxu0 0
      %338 = vmatpush1.bf16.msra.mxu0 0
      %339 = vmatprep.subr.bf16.mxu0 0
      %340 = vmatpush1.bf16.msra.mxu0 0
      %341 = vmatprep.mubr.bf16.mxu0 0
      %342 = vmatmul.mubr.bf16.gmra.mrb[0].mxu0 %v304
      %v343 = vpop.f32.mrb[0].mxu0
      %v344 = vadd.f32 %v266, %v343
      %v345 = vpop.f32.mrb[0].mxu0
      %v346 = vpop.f32.mrb[0].mxu0
      %v347 = vadd.f32 %v269, %v346
      %v348 = vpop.f32.mrb[0].mxu0
      %349 = vmatprep.mubr.bf16.mxu0 0
      %350 = vmatmul.mubr.bf16.gmra.mrb[0].mxu0 %v307
      %v351 = vpop.f32.mrb[0].mxu0
      %v352 = vadd.f32 %v274, %v351
      %v353 = vpop.f32.mrb[0].mxu0
      %v354 = vpop.f32.mrb[0].mxu0
      %v355 = vpop.f32.mrb[0].mxu0
      %356 = vdwg.mxu0
      %v357 = vld [vmem:[%s165 + $0x1] sm:$0xff]
      %v358 = vld [vmem:[%s165 + $0x9] sm:$0xff]
      %v359 = vld [vmem:[%s165 + $0x11] sm:$0xf]
      %v360 = vpack.c.bf16 %v358, %v357
      %v361 = vpack.c.bf16 %v359, %v359
      %s362 = scalar_lea.vmem %s1, 64
      %v363 = vld [vmem:[%s362] sm:$0xf]
      %v364 = vld [vmem:[%s362 + $0x4] sm:$0xf]
      %v365 = vld [vmem:[%s362 + $0x8] sm:$0xf]
      %v366 = vld [vmem:[%s362 + $0xc] sm:$0xf]
      %v367 = vld [vmem:[%s362 + $0x10] sm:$0xf]
      %v368 = vld [vmem:[%s362 + $0x14] sm:$0xf]
      %v369 = vld [vmem:[%s362 + $0x18] sm:$0xf]
      %v370 = vld [vmem:[%s362 + $0x1c] sm:$0xf]
      %v379 = vunpack.c.l.b16 %v363
      %v380 = vunpack.c.l.b16 %v364
      %v381 = vunpack.c.l.b16 %v365
      %v382 = vunpack.c.l.b16 %v366
      %v383 = vunpack.c.l.b16 %v367
      %v384 = vunpack.c.l.b16 %v368
      %v385 = vunpack.c.l.b16 %v369
      %v386 = vunpack.c.l.b16 %v370
      %v387 = vpack.c.b16 %v380, %v379
      %v388 = vpack.c.b16 %v382, %v381
      %v389 = vpack.c.b16 %v384, %v383
      %v390 = vpack.c.b16 %v386, %v385
      %v396 = vsel %vm224, %v360, 0
      %v399 = vsel %vm224, %v361, 0
      %401 = vmatprep.subr.bf16.mxu0 0
      %402 = vmatpush1.bf16.msra.mxu0 %v387
      %403 = vmatprep.subr.bf16.mxu0 0
      %404 = vmatpush1.bf16.msra.mxu0 %v388
      %405 = vmatprep.subr.bf16.mxu0 0
      %406 = vmatpush1.bf16.msra.mxu0 %v389
      %407 = vmatprep.subr.bf16.mxu0 0
      %408 = vmatpush1.bf16.msra.mxu0 %v390
      %409 = vmatprep.subr.bf16.mxu0 0
      %410 = vmatpush1.bf16.msra.mxu0 0
      %411 = vmatprep.subr.bf16.mxu0 0
      %412 = vmatpush1.bf16.msra.mxu0 0
      %413 = vmatprep.subr.bf16.mxu0 0
      %414 = vmatpush1.bf16.msra.mxu0 0
      %415 = vmatprep.subr.bf16.mxu0 0
      %416 = vmatpush1.bf16.msra.mxu0 0
      %417 = vmatprep.subr.bf16.mxu0 0
      %418 = vmatpush1.bf16.msra.mxu0 0
      %419 = vmatprep.subr.bf16.mxu0 0
      %420 = vmatpush1.bf16.msra.mxu0 0
      %421 = vmatprep.subr.bf16.mxu0 0
      %422 = vmatpush1.bf16.msra.mxu0 0
      %423 = vmatprep.subr.bf16.mxu0 0
      %424 = vmatpush1.bf16.msra.mxu0 0
      %425 = vmatprep.subr.bf16.mxu0 0
      %426 = vmatpush1.bf16.msra.mxu0 0
      %427 = vmatprep.subr.bf16.mxu0 0
      %428 = vmatpush1.bf16.msra.mxu0 0
      %429 = vmatprep.subr.bf16.mxu0 0
      %430 = vmatpush1.bf16.msra.mxu0 0
      %431 = vmatprep.subr.bf16.mxu0 0
      %432 = vmatpush1.bf16.msra.mxu0 0
      %433 = vmatprep.mubr.bf16.mxu0 0
      %434 = vmatmul.mubr.bf16.gmra.mrb[0].mxu0 %v396
      %v435 = vpop.f32.mrb[0].mxu0
      %v436 = vadd.f32 0.0, %v435
      %v437 = vpop.f32.mrb[0].mxu0
      %v438 = vpop.f32.mrb[0].mxu0
      %v439 = vadd.f32 0.0, %v438
      %v440 = vpop.f32.mrb[0].mxu0
      %441 = vmatprep.mubr.bf16.mxu0 0
      %442 = vmatmul.mubr.bf16.gmra.mrb[0].mxu0 %v399
      %v443 = vpop.f32.mrb[0].mxu0
      %v444 = vadd.f32 0.0, %v443
      %v445 = vpop.f32.mrb[0].mxu0
      %v446 = vpop.f32.mrb[0].mxu0
      %v447 = vpop.f32.mrb[0].mxu0
      %448 = vdwg.mxu0
      %v449 = vadd.f32 %v344, %v436
      %v450 = vadd.f32 %v347, %v439
      %v451 = vadd.f32 %v352, %v444
      %s452 = scalar_lea.vmem %s165, 64
      %v453 = vld [vmem:[%s452] sm:$0xff]
      %v454 = vld [vmem:[%s452 + $0x8] sm:$0xff]
      %v455 = vld [vmem:[%s452 + $0x10] sm:$0xf]
      %v456 = vpack.c.bf16 %v454, %v453
      %v457 = vpack.c.bf16 %v455, %v455
      %s458 = scalar_lea.vmem %s1, 96
      %v459 = vld [vmem:[%s458] sm:$0xf]
      %v460 = vld [vmem:[%s458 + $0x4] sm:$0xf]
      %v461 = vld [vmem:[%s458 + $0x8] sm:$0xf]
      %v462 = vld [vmem:[%s458 + $0xc] sm:$0xf]
      %v463 = vld [vmem:[%s458 + $0x10] sm:$0xf]
      %v464 = vld [vmem:[%s458 + $0x14] sm:$0xf]
      %v465 = vld [vmem:[%s458 + $0x18] sm:$0xf]
      %v466 = vld [vmem:[%s458 + $0x1c] sm:$0xf]
      %v475 = vunpack.c.l.b16 %v459
      %v476 = vunpack.c.l.b16 %v460
      %v477 = vunpack.c.l.b16 %v461
      %v478 = vunpack.c.l.b16 %v462
      %v479 = vunpack.c.l.b16 %v463
      %v480 = vunpack.c.l.b16 %v464
      %v481 = vunpack.c.l.b16 %v465
      %v482 = vunpack.c.l.b16 %v466
      %v483 = vpack.c.b16 %v476, %v475
      %v484 = vpack.c.b16 %v478, %v477
      %v485 = vpack.c.b16 %v480, %v479
      %v486 = vpack.c.b16 %v482, %v481
      %v492 = vsel %vm224, %v456, 0
      %v495 = vsel %vm224, %v457, 0
      %497 = vmatprep.subr.bf16.mxu0 0
      %498 = vmatpush1.bf16.msra.mxu0 %v483
      %499 = vmatprep.subr.bf16.mxu0 0
      %500 = vmatpush1.bf16.msra.mxu0 %v484
      %501 = vmatprep.subr.bf16.mxu0 0
      %502 = vmatpush1.bf16.msra.mxu0 %v485
      %503 = vmatprep.subr.bf16.mxu0 0
      %504 = vmatpush1.bf16.msra.mxu0 %v486
      %505 = vmatprep.subr.bf16.mxu0 0
      %506 = vmatpush1.bf16.msra.mxu0 0
      %507 = vmatprep.subr.bf16.mxu0 0
      %508 = vmatpush1.bf16.msra.mxu0 0
      %509 = vmatprep.subr.bf16.mxu0 0
      %510 = vmatpush1.bf16.msra.mxu0 0
      %511 = vmatprep.subr.bf16.mxu0 0
      %512 = vmatpush1.bf16.msra.mxu0 0
      %513 = vmatprep.subr.bf16.mxu0 0
      %514 = vmatpush1.bf16.msra.mxu0 0
      %515 = vmatprep.subr.bf16.mxu0 0
      %516 = vmatpush1.bf16.msra.mxu0 0
      %517 = vmatprep.subr.bf16.mxu0 0
      %518 = vmatpush1.bf16.msra.mxu0 0
      %519 = vmatprep.subr.bf16.mxu0 0
      %520 = vmatpush1.bf16.msra.mxu0 0
      %521 = vmatprep.subr.bf16.mxu0 0
      %522 = vmatpush1.bf16.msra.mxu0 0
      %523 = vmatprep.subr.bf16.mxu0 0
      %524 = vmatpush1.bf16.msra.mxu0 0
      %525 = vmatprep.subr.bf16.mxu0 0
      %526 = vmatpush1.bf16.msra.mxu0 0
      %527 = vmatprep.subr.bf16.mxu0 0
      %528 = vmatpush1.bf16.msra.mxu0 0
      %529 = vmatprep.mubr.bf16.mxu0 0
      %530 = vmatmul.mubr.bf16.gmra.mrb[0].mxu0 %v492
      %v531 = vpop.f32.mrb[0].mxu0
      %v532 = vadd.f32 0.0, %v531
      %v533 = vpop.f32.mrb[0].mxu0
      %v534 = vpop.f32.mrb[0].mxu0
      %v535 = vadd.f32 0.0, %v534
      %v536 = vpop.f32.mrb[0].mxu0
      %537 = vmatprep.mubr.bf16.mxu0 0
      %538 = vmatmul.mubr.bf16.gmra.mrb[0].mxu0 %v495
      %v539 = vpop.f32.mrb[0].mxu0
      %v540 = vadd.f32 0.0, %v539
      %v541 = vpop.f32.mrb[0].mxu0
      %v542 = vpop.f32.mrb[0].mxu0
      %v543 = vpop.f32.mrb[0].mxu0
      %544 = vdwg.mxu0
      %v545 = vadd.f32 %v449, %v532
      %v546 = vadd.f32 %v450, %v535
      %v547 = vadd.f32 %v451, %v540
      %s548 = scalar_lea.vmem %s165, 96
      %v549 = vld [vmem:[%s548] sm:$0xff]
      %v550 = vld [vmem:[%s548 + $0x8] sm:$0xff]
      %v551 = vld [vmem:[%s548 + $0x10] sm:$0xf]
      %v552 = vpack.c.bf16 %v550, %v549
      %v553 = vpack.c.bf16 %v551, %v551
      %s554 = scalar_lea.vmem %s1, 128
      %v555 = vld [vmem:[%s554] sm:$0xf]
      %v556 = vld [vmem:[%s554 + $0x4] sm:$0xf]
      %v557 = vld [vmem:[%s554 + $0x8] sm:$0xf]
      %v558 = vld [vmem:[%s554 + $0xc] sm:$0xf]
      %v559 = vld [vmem:[%s554 + $0x10] sm:$0xf]
      %v560 = vld [vmem:[%s554 + $0x14] sm:$0xf]
      %v561 = vld [vmem:[%s554 + $0x18] sm:$0xf]
      %v562 = vld [vmem:[%s554 + $0x1c] sm:$0xf]
      %v571 = vunpack.c.l.b16 %v555
      %v572 = vunpack.c.l.b16 %v556
      %v573 = vunpack.c.l.b16 %v557
      %v574 = vunpack.c.l.b16 %v558
      %v575 = vunpack.c.l.b16 %v559
      %v576 = vunpack.c.l.b16 %v560
      %v577 = vunpack.c.l.b16 %v561
      %v578 = vunpack.c.l.b16 %v562
      %v579 = vpack.c.b16 %v572, %v571
      %v580 = vpack.c.b16 %v574, %v573
      %v581 = vpack.c.b16 %v576, %v575
      %v582 = vpack.c.b16 %v578, %v577
      %v588 = vsel %vm224, %v552, 0
      %v591 = vsel %vm224, %v553, 0
      %593 = vmatprep.subr.bf16.mxu0 0
      %594 = vmatpush1.bf16.msra.mxu0 %v579
      %595 = vmatprep.subr.bf16.mxu0 0
      %596 = vmatpush1.bf16.msra.mxu0 %v580
      %597 = vmatprep.subr.bf16.mxu0 0
      %598 = vmatpush1.bf16.msra.mxu0 %v581
      %599 = vmatprep.subr.bf16.mxu0 0
      %600 = vmatpush1.bf16.msra.mxu0 %v582
      %601 = vmatprep.subr.bf16.mxu0 0
      %602 = vmatpush1.bf16.msra.mxu0 0
      %603 = vmatprep.subr.bf16.mxu0 0
      %604 = vmatpush1.bf16.msra.mxu0 0
      %605 = vmatprep.subr.bf16.mxu0 0
      %606 = vmatpush1.bf16.msra.mxu0 0
      %607 = vmatprep.subr.bf16.mxu0 0
      %608 = vmatpush1.bf16.msra.mxu0 0
      %609 = vmatprep.subr.bf16.mxu0 0
      %610 = vmatpush1.bf16.msra.mxu0 0
      %611 = vmatprep.subr.bf16.mxu0 0
      %612 = vmatpush1.bf16.msra.mxu0 0
      %613 = vmatprep.subr.bf16.mxu0 0
      %614 = vmatpush1.bf16.msra.mxu0 0
      %615 = vmatprep.subr.bf16.mxu0 0
      %616 = vmatpush1.bf16.msra.mxu0 0
      %617 = vmatprep.subr.bf16.mxu0 0
      %618 = vmatpush1.bf16.msra.mxu0 0
      %619 = vmatprep.subr.bf16.mxu0 0
      %620 = vmatpush1.bf16.msra.mxu0 0
      %621 = vmatprep.subr.bf16.mxu0 0
      %622 = vmatpush1.bf16.msra.mxu0 0
      %623 = vmatprep.subr.bf16.mxu0 0
      %624 = vmatpush1.bf16.msra.mxu0 0
      %625 = vmatprep.mubr.bf16.mxu0 0
      %626 = vmatmul.mubr.bf16.gmra.mrb[0].mxu0 %v588
      %v627 = vpop.f32.mrb[0].mxu0
      %v628 = vadd.f32 0.0, %v627
      %v629 = vpop.f32.mrb[0].mxu0
      %v630 = vpop.f32.mrb[0].mxu0
      %v631 = vadd.f32 0.0, %v630
      %v632 = vpop.f32.mrb[0].mxu0
      %633 = vmatprep.mubr.bf16.mxu0 0
      %634 = vmatmul.mubr.bf16.gmra.mrb[0].mxu0 %v591
      %v635 = vpop.f32.mrb[0].mxu0
      %v636 = vadd.f32 0.0, %v635
      %v637 = vpop.f32.mrb[0].mxu0
      %v638 = vpop.f32.mrb[0].mxu0
      %v639 = vpop.f32.mrb[0].mxu0
      %640 = vdwg.mxu0
      %v641 = vadd.f32 %v545, %v628
      %v642 = vadd.f32 %v546, %v631
      %v643 = vadd.f32 %v547, %v636
      %v644 = vld [vmem:[%s452 + $0x1] sm:$0xff]
      %v645 = vld [vmem:[%s452 + $0x9] sm:$0xff]
      %v646 = vld [vmem:[%s452 + $0x11] sm:$0xf]
      %v647 = vpack.c.bf16 %v645, %v644
      %v648 = vpack.c.bf16 %v646, %v646
      %s649 = scalar_lea.vmem %s1, 160
      %v650 = vld [vmem:[%s649] sm:$0xf]
      %v651 = vld [vmem:[%s649 + $0x4] sm:$0xf]
      %v652 = vld [vmem:[%s649 + $0x8] sm:$0xf]
      %v653 = vld [vmem:[%s649 + $0xc] sm:$0xf]
      %v654 = vld [vmem:[%s649 + $0x10] sm:$0xf]
      %v655 = vld [vmem:[%s649 + $0x14] sm:$0xf]
      %v656 = vld [vmem:[%s649 + $0x18] sm:$0xf]
      %v657 = vld [vmem:[%s649 + $0x1c] sm:$0xf]
      %v666 = vunpack.c.l.b16 %v650
      %v667 = vunpack.c.l.b16 %v651
      %v668 = vunpack.c.l.b16 %v652
      %v669 = vunpack.c.l.b16 %v653
      %v670 = vunpack.c.l.b16 %v654
      %v671 = vunpack.c.l.b16 %v655
      %v672 = vunpack.c.l.b16 %v656
      %v673 = vunpack.c.l.b16 %v657
      %v674 = vpack.c.b16 %v667, %v666
      %v675 = vpack.c.b16 %v669, %v668
      %v676 = vpack.c.b16 %v671, %v670
      %v677 = vpack.c.b16 %v673, %v672
      %v683 = vsel %vm224, %v647, 0
      %v686 = vsel %vm224, %v648, 0
      %688 = vmatprep.subr.bf16.mxu0 0
      %689 = vmatpush1.bf16.msra.mxu0 %v674
      %690 = vmatprep.subr.bf16.mxu0 0
      %691 = vmatpush1.bf16.msra.mxu0 %v675
      %692 = vmatprep.subr.bf16.mxu0 0
      %693 = vmatpush1.bf16.msra.mxu0 %v676
      %694 = vmatprep.subr.bf16.mxu0 0
      %695 = vmatpush1.bf16.msra.mxu0 %v677
      %696 = vmatprep.subr.bf16.mxu0 0
      %697 = vmatpush1.bf16.msra.mxu0 0
      %698 = vmatprep.subr.bf16.mxu0 0
      %699 = vmatpush1.bf16.msra.mxu0 0
      %700 = vmatprep.subr.bf16.mxu0 0
      %701 = vmatpush1.bf16.msra.mxu0 0
      %702 = vmatprep.subr.bf16.mxu0 0
      %703 = vmatpush1.bf16.msra.mxu0 0
      %704 = vmatprep.subr.bf16.mxu0 0
      %705 = vmatpush1.bf16.msra.mxu0 0
      %706 = vmatprep.subr.bf16.mxu0 0
      %707 = vmatpush1.bf16.msra.mxu0 0
      %708 = vmatprep.subr.bf16.mxu0 0
      %709 = vmatpush1.bf16.msra.mxu0 0
      %710 = vmatprep.subr.bf16.mxu0 0
      %711 = vmatpush1.bf16.msra.mxu0 0
      %712 = vmatprep.subr.bf16.mxu0 0
      %713 = vmatpush1.bf16.msra.mxu0 0
      %714 = vmatprep.subr.bf16.mxu0 0
      %715 = vmatpush1.bf16.msra.mxu0 0
      %716 = vmatprep.subr.bf16.mxu0 0
      %717 = vmatpush1.bf16.msra.mxu0 0
      %718 = vmatprep.subr.bf16.mxu0 0
      %719 = vmatpush1.bf16.msra.mxu0 0
      %720 = vmatprep.mubr.bf16.mxu0 0
      %721 = vmatmul.mubr.bf16.gmra.mrb[0].mxu0 %v683
      %v722 = vpop.f32.mrb[0].mxu0
      %v723 = vadd.f32 0.0, %v722
      %v724 = vpop.f32.mrb[0].mxu0
      %v725 = vpop.f32.mrb[0].mxu0
      %v726 = vadd.f32 0.0, %v725
      %v727 = vpop.f32.mrb[0].mxu0
      %728 = vmatprep.mubr.bf16.mxu0 0
      %729 = vmatmul.mubr.bf16.gmra.mrb[0].mxu0 %v686
      %v730 = vpop.f32.mrb[0].mxu0
      %v731 = vadd.f32 0.0, %v730
      %v732 = vpop.f32.mrb[0].mxu0
      %v733 = vpop.f32.mrb[0].mxu0
      %v734 = vpop.f32.mrb[0].mxu0
      %735 = vdwg.mxu0
      %v736 = vadd.f32 %v641, %v723
      %v737 = vadd.f32 %v642, %v726
      %v738 = vadd.f32 %v643, %v731
      %v739 = vld [vmem:[%s165 + $0x5] sm:$0xff]
      %v740 = vld [vmem:[%s165 + $0xd] sm:$0xff]
      %v741 = vld [vmem:[%s165 + $0x15] sm:$0xf]
      %v742 = vpack.c.bf16 %v740, %v739
      %v743 = vpack.c.bf16 %v741, %v741
      %s744 = scalar_lea.vmem %s1, 192
      %v745 = vld [vmem:[%s744] sm:$0xf]
      %v746 = vld [vmem:[%s744 + $0x4] sm:$0xf]
      %v747 = vld [vmem:[%s744 + $0x8] sm:$0xf]
      %v748 = vld [vmem:[%s744 + $0xc] sm:$0xf]
      %v749 = vld [vmem:[%s744 + $0x10] sm:$0xf]
      %v750 = vld [vmem:[%s744 + $0x14] sm:$0xf]
      %v751 = vld [vmem:[%s744 + $0x18] sm:$0xf]
      %v752 = vld [vmem:[%s744 + $0x1c] sm:$0xf]
      %v761 = vunpack.c.l.b16 %v745
      %v762 = vunpack.c.l.b16 %v746
      %v763 = vunpack.c.l.b16 %v747
      %v764 = vunpack.c.l.b16 %v748
      %v765 = vunpack.c.l.b16 %v749
      %v766 = vunpack.c.l.b16 %v750
      %v767 = vunpack.c.l.b16 %v751
      %v768 = vunpack.c.l.b16 %v752
      %v769 = vpack.c.b16 %v762, %v761
      %v770 = vpack.c.b16 %v764, %v763
      %v771 = vpack.c.b16 %v766, %v765
      %v772 = vpack.c.b16 %v768, %v767
      %v778 = vsel %vm224, %v742, 0
      %v781 = vsel %vm224, %v743, 0
      %783 = vmatprep.subr.bf16.mxu0 0
      %784 = vmatpush1.bf16.msra.mxu0 %v769
      %785 = vmatprep.subr.bf16.mxu0 0
      %786 = vmatpush1.bf16.msra.mxu0 %v770
      %787 = vmatprep.subr.bf16.mxu0 0
      %788 = vmatpush1.bf16.msra.mxu0 %v771
      %789 = vmatprep.subr.bf16.mxu0 0
      %790 = vmatpush1.bf16.msra.mxu0 %v772
      %791 = vmatprep.subr.bf16.mxu0 0
      %792 = vmatpush1.bf16.msra.mxu0 0
      %793 = vmatprep.subr.bf16.mxu0 0
      %794 = vmatpush1.bf16.msra.mxu0 0
      %795 = vmatprep.subr.bf16.mxu0 0
      %796 = vmatpush1.bf16.msra.mxu0 0
      %797 = vmatprep.subr.bf16.mxu0 0
      %798 = vmatpush1.bf16.msra.mxu0 0
      %799 = vmatprep.subr.bf16.mxu0 0
      %800 = vmatpush1.bf16.msra.mxu0 0
      %801 = vmatprep.subr.bf16.mxu0 0
      %802 = vmatpush1.bf16.msra.mxu0 0
      %803 = vmatprep.subr.bf16.mxu0 0
      %804 = vmatpush1.bf16.msra.mxu0 0
      %805 = vmatprep.subr.bf16.mxu0 0
      %806 = vmatpush1.bf16.msra.mxu0 0
      %807 = vmatprep.subr.bf16.mxu0 0
      %808 = vmatpush1.bf16.msra.mxu0 0
      %809 = vmatprep.subr.bf16.mxu0 0
      %810 = vmatpush1.bf16.msra.mxu0 0
      %811 = vmatprep.subr.bf16.mxu0 0
      %812 = vmatpush1.bf16.msra.mxu0 0
      %813 = vmatprep.subr.bf16.mxu0 0
      %814 = vmatpush1.bf16.msra.mxu0 0
      %815 = vmatprep.mubr.bf16.mxu0 0
      %816 = vmatmul.mubr.bf16.gmra.mrb[0].mxu0 %v778
      %v817 = vpop.f32.mrb[0].mxu0
      %v818 = vadd.f32 0.0, %v817
      %v819 = vpop.f32.mrb[0].mxu0
      %v820 = vpop.f32.mrb[0].mxu0
      %v821 = vadd.f32 0.0, %v820
      %v822 = vpop.f32.mrb[0].mxu0
      %823 = vmatprep.mubr.bf16.mxu0 0
      %824 = vmatmul.mubr.bf16.gmra.mrb[0].mxu0 %v781
      %v825 = vpop.f32.mrb[0].mxu0
      %v826 = vadd.f32 0.0, %v825
      %v827 = vpop.f32.mrb[0].mxu0
      %v828 = vpop.f32.mrb[0].mxu0
      %v829 = vpop.f32.mrb[0].mxu0
      %830 = vdwg.mxu0
      %v831 = vadd.f32 %v736, %v818
      %v832 = vadd.f32 %v737, %v821
      %v833 = vadd.f32 %v738, %v826
      %v834 = vld [vmem:[%s185 + $0x5] sm:$0xff]
      %v835 = vld [vmem:[%s185 + $0xd] sm:$0xff]
      %v836 = vld [vmem:[%s185 + $0x15] sm:$0xf]
      %v837 = vpack.c.bf16 %v835, %v834
      %v838 = vpack.c.bf16 %v836, %v836
      %s839 = scalar_lea.vmem %s1, 224
      %v840 = vld [vmem:[%s839] sm:$0xf]
      %v841 = vld [vmem:[%s839 + $0x4] sm:$0xf]
      %v842 = vld [vmem:[%s839 + $0x8] sm:$0xf]
      %v843 = vld [vmem:[%s839 + $0xc] sm:$0xf]
      %v844 = vld [vmem:[%s839 + $0x10] sm:$0xf]
      %v845 = vld [vmem:[%s839 + $0x14] sm:$0xf]
      %v846 = vld [vmem:[%s839 + $0x18] sm:$0xf]
      %v847 = vld [vmem:[%s839 + $0x1c] sm:$0xf]
      %v856 = vunpack.c.l.b16 %v840
      %v857 = vunpack.c.l.b16 %v841
      %v858 = vunpack.c.l.b16 %v842
      %v859 = vunpack.c.l.b16 %v843
      %v860 = vunpack.c.l.b16 %v844
      %v861 = vunpack.c.l.b16 %v845
      %v862 = vunpack.c.l.b16 %v846
      %v863 = vunpack.c.l.b16 %v847
      %v864 = vpack.c.b16 %v857, %v856
      %v865 = vpack.c.b16 %v859, %v858
      %v866 = vpack.c.b16 %v861, %v860
      %v867 = vpack.c.b16 %v863, %v862
      %v873 = vsel %vm224, %v837, 0
      %v876 = vsel %vm224, %v838, 0
      %878 = vmatprep.subr.bf16.mxu0 0
      %879 = vmatpush1.bf16.msra.mxu0 %v864
      %880 = vmatprep.subr.bf16.mxu0 0
      %881 = vmatpush1.bf16.msra.mxu0 %v865
      %882 = vmatprep.subr.bf16.mxu0 0
      %883 = vmatpush1.bf16.msra.mxu0 %v866
      %884 = vmatprep.subr.bf16.mxu0 0
      %885 = vmatpush1.bf16.msra.mxu0 %v867
      %886 = vmatprep.subr.bf16.mxu0 0
      %887 = vmatpush1.bf16.msra.mxu0 0
      %888 = vmatprep.subr.bf16.mxu0 0
      %889 = vmatpush1.bf16.msra.mxu0 0
      %890 = vmatprep.subr.bf16.mxu0 0
      %891 = vmatpush1.bf16.msra.mxu0 0
      %892 = vmatprep.subr.bf16.mxu0 0
      %893 = vmatpush1.bf16.msra.mxu0 0
      %894 = vmatprep.subr.bf16.mxu0 0
      %895 = vmatpush1.bf16.msra.mxu0 0
      %896 = vmatprep.subr.bf16.mxu0 0
      %897 = vmatpush1.bf16.msra.mxu0 0
      %898 = vmatprep.subr.bf16.mxu0 0
      %899 = vmatpush1.bf16.msra.mxu0 0
      %900 = vmatprep.subr.bf16.mxu0 0
      %901 = vmatpush1.bf16.msra.mxu0 0
      %902 = vmatprep.subr.bf16.mxu0 0
      %903 = vmatpush1.bf16.msra.mxu0 0
      %904 = vmatprep.subr.bf16.mxu0 0
      %905 = vmatpush1.bf16.msra.mxu0 0
      %906 = vmatprep.subr.bf16.mxu0 0
      %907 = vmatpush1.bf16.msra.mxu0 0
      %908 = vmatprep.subr.bf16.mxu0 0
      %909 = vmatpush1.bf16.msra.mxu0 0
      %910 = vmatprep.mubr.bf16.mxu0 0
      %911 = vmatmul.mubr.bf16.gmra.mrb[0].mxu0 %v873
      %v912 = vpop.f32.mrb[0].mxu0
      %v913 = vadd.f32 0.0, %v912
      %v914 = vpop.f32.mrb[0].mxu0
      %v915 = vpop.f32.mrb[0].mxu0
      %v916 = vadd.f32 0.0, %v915
      %v917 = vpop.f32.mrb[0].mxu0
      %918 = vmatprep.mubr.bf16.mxu0 0
      %919 = vmatmul.mubr.bf16.gmra.mrb[0].mxu0 %v876
      %v920 = vpop.f32.mrb[0].mxu0
      %v921 = vadd.f32 0.0, %v920
      %v922 = vpop.f32.mrb[0].mxu0
      %v923 = vpop.f32.mrb[0].mxu0
      %v924 = vpop.f32.mrb[0].mxu0
      %925 = vdwg.mxu0
      %v926 = vadd.f32 %v831, %v913
      %v927 = vadd.f32 %v832, %v916
      %v928 = vadd.f32 %v833, %v921
      %v929 = vld [vmem:[%s165 + $0x6] sm:$0xff]
      %v930 = vld [vmem:[%s165 + $0xe] sm:$0xff]
      %v931 = vld [vmem:[%s165 + $0x16] sm:$0xf]
      %v932 = vpack.c.bf16 %v930, %v929
      %v933 = vpack.c.bf16 %v931, %v931
      %s934 = scalar_lea.vmem %s1, 256
      %v935 = vld [vmem:[%s934] sm:$0xf]
      %v936 = vld [vmem:[%s934 + $0x4] sm:$0xf]
      %v937 = vld [vmem:[%s934 + $0x8] sm:$0xf]
      %v938 = vld [vmem:[%s934 + $0xc] sm:$0xf]
      %v939 = vld [vmem:[%s934 + $0x10] sm:$0xf]
      %v940 = vld [vmem:[%s934 + $0x14] sm:$0xf]
      %v941 = vld [vmem:[%s934 + $0x18] sm:$0xf]
      %v942 = vld [vmem:[%s934 + $0x1c] sm:$0xf]
      %v951 = vunpack.c.l.b16 %v935
      %v952 = vunpack.c.l.b16 %v936
      %v953 = vunpack.c.l.b16 %v937
      %v954 = vunpack.c.l.b16 %v938
      %v955 = vunpack.c.l.b16 %v939
      %v956 = vunpack.c.l.b16 %v940
      %v957 = vunpack.c.l.b16 %v941
      %v958 = vunpack.c.l.b16 %v942
      %v959 = vpack.c.b16 %v952, %v951
      %v960 = vpack.c.b16 %v954, %v953
      %v961 = vpack.c.b16 %v956, %v955
      %v962 = vpack.c.b16 %v958, %v957
      %v968 = vsel %vm224, %v932, 0
      %v971 = vsel %vm224, %v933, 0
      %973 = vmatprep.subr.bf16.mxu0 0
      %974 = vmatpush1.bf16.msra.mxu0 %v959
      %975 = vmatprep.subr.bf16.mxu0 0
      %976 = vmatpush1.bf16.msra.mxu0 %v960
      %977 = vmatprep.subr.bf16.mxu0 0
      %978 = vmatpush1.bf16.msra.mxu0 %v961
      %979 = vmatprep.subr.bf16.mxu0 0
      %980 = vmatpush1.bf16.msra.mxu0 %v962
      %981 = vmatprep.subr.bf16.mxu0 0
      %982 = vmatpush1.bf16.msra.mxu0 0
      %983 = vmatprep.subr.bf16.mxu0 0
      %984 = vmatpush1.bf16.msra.mxu0 0
      %985 = vmatprep.subr.bf16.mxu0 0
      %986 = vmatpush1.bf16.msra.mxu0 0
      %987 = vmatprep.subr.bf16.mxu0 0
      %988 = vmatpush1.bf16.msra.mxu0 0
      %989 = vmatprep.subr.bf16.mxu0 0
      %990 = vmatpush1.bf16.msra.mxu0 0
      %991 = vmatprep.subr.bf16.mxu0 0
      %992 = vmatpush1.bf16.msra.mxu0 0
      %993 = vmatprep.subr.bf16.mxu0 0
      %994 = vmatpush1.bf16.msra.mxu0 0
      %995 = vmatprep.subr.bf16.mxu0 0
      %996 = vmatpush1.bf16.msra.mxu0 0
      %997 = vmatprep.subr.bf16.mxu0 0
      %998 = vmatpush1.bf16.msra.mxu0 0
      %999 = vmatprep.subr.bf16.mxu0 0
      %1000 = vmatpush1.bf16.msra.mxu0 0
      %1001 = vmatprep.subr.bf16.mxu0 0
      %1002 = vmatpush1.bf16.msra.mxu0 0
      %1003 = vmatprep.subr.bf16.mxu0 0
      %1004 = vmatpush1.bf16.msra.mxu0 0
      %1005 = vmatprep.mubr.bf16.mxu0 0
      %1006 = vmatmul.mubr.bf16.gmra.mrb[0].mxu0 %v968
      %v1007 = vpop.f32.mrb[0].mxu0
      %v1008 = vadd.f32 0.0, %v1007
      %v1009 = vpop.f32.mrb[0].mxu0
      %v1010 = vpop.f32.mrb[0].mxu0
      %v1011 = vadd.f32 0.0, %v1010
      %v1012 = vpop.f32.mrb[0].mxu0
      %1013 = vmatprep.mubr.bf16.mxu0 0
      %1014 = vmatmul.mubr.bf16.gmra.mrb[0].mxu0 %v971
      %v1015 = vpop.f32.mrb[0].mxu0
      %v1016 = vadd.f32 0.0, %v1015
      %v1017 = vpop.f32.mrb[0].mxu0
      %v1018 = vpop.f32.mrb[0].mxu0
      %v1019 = vpop.f32.mrb[0].mxu0
      %1020 = vdwg.mxu0
      %v1021 = vadd.f32 %v926, %v1008
      %v1022 = vadd.f32 %v927, %v1011
      %v1023 = vadd.f32 %v928, %v1016
      %1024 = vmatprep.subr.bf16.mxu0 0
      %1025 = vmatpush1.bf16.msra.mxu0 %v216
      %1026 = vmatprep.subr.bf16.mxu0 0
      %1027 = vmatpush1.bf16.msra.mxu0 %v217
      %1028 = vmatprep.subr.bf16.mxu0 0
      %1029 = vmatpush1.bf16.msra.mxu0 %v218
      %1030 = vmatprep.subr.bf16.mxu0 0
      %1031 = vmatpush1.bf16.msra.mxu0 %v219
      %1032 = vmatprep.subr.bf16.mxu0 0
      %1033 = vmatpush1.bf16.msra.mxu0 0
      %1034 = vmatprep.subr.bf16.mxu0 0
      %1035 = vmatpush1.bf16.msra.mxu0 0
      %1036 = vmatprep.subr.bf16.mxu0 0
      %1037 = vmatpush1.bf16.msra.mxu0 0
      %1038 = vmatprep.subr.bf16.mxu0 0
      %1039 = vmatpush1.bf16.msra.mxu0 0
      %1040 = vmatprep.subr.bf16.mxu0 0
      %1041 = vmatpush1.bf16.msra.mxu0 0
      %1042 = vmatprep.subr.bf16.mxu0 0
      %1043 = vmatpush1.bf16.msra.mxu0 0
      %1044 = vmatprep.subr.bf16.mxu0 0
      %1045 = vmatpush1.bf16.msra.mxu0 0
      %1046 = vmatprep.subr.bf16.mxu0 0
      %1047 = vmatpush1.bf16.msra.mxu0 0
      %1048 = vmatprep.subr.bf16.mxu0 0
      %1049 = vmatpush1.bf16.msra.mxu0 0
      %1050 = vmatprep.subr.bf16.mxu0 0
      %1051 = vmatpush1.bf16.msra.mxu0 0
      %1052 = vmatprep.subr.bf16.mxu0 0
      %1053 = vmatpush1.bf16.msra.mxu0 0
      %1054 = vmatprep.subr.bf16.mxu0 0
      %1055 = vmatpush1.bf16.msra.mxu0 0
      %1056 = vmatprep.mubr.bf16.mxu0 0
      %1057 = vmatmul.mubr.bf16.gmra.mrb[0].mxu0 %v396
      %v1058 = vpop.f32.mrb[0].mxu0
      %v1059 = vadd.f32 0.0, %v1058
      %v1060 = vpop.f32.mrb[0].mxu0
      %v1061 = vpop.f32.mrb[0].mxu0
      %v1062 = vadd.f32 0.0, %v1061
      %v1063 = vpop.f32.mrb[0].mxu0
      %1064 = vmatprep.mubr.bf16.mxu0 0
      %1065 = vmatmul.mubr.bf16.gmra.mrb[0].mxu0 %v399
      %v1066 = vpop.f32.mrb[0].mxu0
      %v1067 = vadd.f32 0.0, %v1066
      %v1068 = vpop.f32.mrb[0].mxu0
      %v1069 = vpop.f32.mrb[0].mxu0
      %v1070 = vpop.f32.mrb[0].mxu0
      %1071 = vdwg.mxu0
      %1072 = vmatprep.subr.bf16.mxu0 0
      %1073 = vmatpush1.bf16.msra.mxu0 %v295
      %1074 = vmatprep.subr.bf16.mxu0 0
      %1075 = vmatpush1.bf16.msra.mxu0 %v296
      %1076 = vmatprep.subr.bf16.mxu0 0
      %1077 = vmatpush1.bf16.msra.mxu0 %v297
      %1078 = vmatprep.subr.bf16.mxu0 0
      %1079 = vmatpush1.bf16.msra.mxu0 %v298
      %1080 = vmatprep.subr.bf16.mxu0 0
      %1081 = vmatpush1.bf16.msra.mxu0 0
      %1082 = vmatprep.subr.bf16.mxu0 0
      %1083 = vmatpush1.bf16.msra.mxu0 0
      %1084 = vmatprep.subr.bf16.mxu0 0
      %1085 = vmatpush1.bf16.msra.mxu0 0
      %1086 = vmatprep.subr.bf16.mxu0 0
      %1087 = vmatpush1.bf16.msra.mxu0 0
      %1088 = vmatprep.subr.bf16.mxu0 0
      %1089 = vmatpush1.bf16.msra.mxu0 0
      %1090 = vmatprep.subr.bf16.mxu0 0
      %1091 = vmatpush1.bf16.msra.mxu0 0
      %1092 = vmatprep.subr.bf16.mxu0 0
      %1093 = vmatpush1.bf16.msra.mxu0 0
      %1094 = vmatprep.subr.bf16.mxu0 0
      %1095 = vmatpush1.bf16.msra.mxu0 0
      %1096 = vmatprep.subr.bf16.mxu0 0
      %1097 = vmatpush1.bf16.msra.mxu0 0
      %1098 = vmatprep.subr.bf16.mxu0 0
      %1099 = vmatpush1.bf16.msra.mxu0 0
      %1100 = vmatprep.subr.bf16.mxu0 0
      %1101 = vmatpush1.bf16.msra.mxu0 0
      %1102 = vmatprep.subr.bf16.mxu0 0
      %1103 = vmatpush1.bf16.msra.mxu0 0
      %1104 = vmatprep.mubr.bf16.mxu0 0
      %1105 = vmatmul.mubr.bf16.gmra.mrb[0].mxu0 %v226
      %v1106 = vpop.f32.mrb[0].mxu0
      %v1107 = vadd.f32 %v1059, %v1106
      %v1108 = vpop.f32.mrb[0].mxu0
      %v1109 = vpop.f32.mrb[0].mxu0
      %v1110 = vadd.f32 %v1062, %v1109
      %v1111 = vpop.f32.mrb[0].mxu0
      %1112 = vmatprep.mubr.bf16.mxu0 0
      %1113 = vmatmul.mubr.bf16.gmra.mrb[0].mxu0 %v229
      %v1114 = vpop.f32.mrb[0].mxu0
      %v1115 = vadd.f32 %v1067, %v1114
      %v1116 = vpop.f32.mrb[0].mxu0
      %v1117 = vpop.f32.mrb[0].mxu0
      %v1118 = vpop.f32.mrb[0].mxu0
      %1119 = vdwg.mxu0
      %v1120 = vld [vmem:[%s185 + $0x1] sm:$0xff]
      %v1121 = vld [vmem:[%s185 + $0x9] sm:$0xff]
      %v1122 = vld [vmem:[%s185 + $0x11] sm:$0xf]
      %v1123 = vpack.c.bf16 %v1121, %v1120
      %v1124 = vpack.c.bf16 %v1122, %v1122
      %v1126 = vsel %vm224, %v1123, 0
      %v1129 = vsel %vm224, %v1124, 0
      %1131 = vmatprep.subr.bf16.mxu0 0
      %1132 = vmatpush1.bf16.msra.mxu0 %v387
      %1133 = vmatprep.subr.bf16.mxu0 0
      %1134 = vmatpush1.bf16.msra.mxu0 %v388
      %1135 = vmatprep.subr.bf16.mxu0 0
      %1136 = vmatpush1.bf16.msra.mxu0 %v389
      %1137 = vmatprep.subr.bf16.mxu0 0
      %1138 = vmatpush1.bf16.msra.mxu0 %v390
      %1139 = vmatprep.subr.bf16.mxu0 0
      %1140 = vmatpush1.bf16.msra.mxu0 0
      %1141 = vmatprep.subr.bf16.mxu0 0
      %1142 = vmatpush1.bf16.msra.mxu0 0
      %1143 = vmatprep.subr.bf16.mxu0 0
      %1144 = vmatpush1.bf16.msra.mxu0 0
      %1145 = vmatprep.subr.bf16.mxu0 0
      %1146 = vmatpush1.bf16.msra.mxu0 0
      %1147 = vmatprep.subr.bf16.mxu0 0
      %1148 = vmatpush1.bf16.msra.mxu0 0
      %1149 = vmatprep.subr.bf16.mxu0 0
      %1150 = vmatpush1.bf16.msra.mxu0 0
      %1151 = vmatprep.subr.bf16.mxu0 0
      %1152 = vmatpush1.bf16.msra.mxu0 0
      %1153 = vmatprep.subr.bf16.mxu0 0
      %1154 = vmatpush1.bf16.msra.mxu0 0
      %1155 = vmatprep.subr.bf16.mxu0 0
      %1156 = vmatpush1.bf16.msra.mxu0 0
      %1157 = vmatprep.subr.bf16.mxu0 0
      %1158 = vmatpush1.bf16.msra.mxu0 0
      %1159 = vmatprep.subr.bf16.mxu0 0
      %1160 = vmatpush1.bf16.msra.mxu0 0
      %1161 = vmatprep.subr.bf16.mxu0 0
      %1162 = vmatpush1.bf16.msra.mxu0 0
      %1163 = vmatprep.mubr.bf16.mxu0 0
      %1164 = vmatmul.mubr.bf16.gmra.mrb[0].mxu0 %v1126
      %v1165 = vpop.f32.mrb[0].mxu0
      %v1166 = vadd.f32 0.0, %v1165
      %v1167 = vpop.f32.mrb[0].mxu0
      %v1168 = vpop.f32.mrb[0].mxu0
      %v1169 = vadd.f32 0.0, %v1168
      %v1170 = vpop.f32.mrb[0].mxu0
      %1171 = vmatprep.mubr.bf16.mxu0 0
      %1172 = vmatmul.mubr.bf16.gmra.mrb[0].mxu0 %v1129
      %v1173 = vpop.f32.mrb[0].mxu0
      %v1174 = vadd.f32 0.0, %v1173
      %v1175 = vpop.f32.mrb[0].mxu0
      %v1176 = vpop.f32.mrb[0].mxu0
      %v1177 = vpop.f32.mrb[0].mxu0
      %1178 = vdwg.mxu0
      %v1179 = vadd.f32 %v1107, %v1166
      %v1180 = vadd.f32 %v1110, %v1169
      %v1181 = vadd.f32 %v1115, %v1174
      %1182 = vmatprep.subr.bf16.mxu0 0
      %1183 = vmatpush1.bf16.msra.mxu0 %v483
      %1184 = vmatprep.subr.bf16.mxu0 0
      %1185 = vmatpush1.bf16.msra.mxu0 %v484
      %1186 = vmatprep.subr.bf16.mxu0 0
      %1187 = vmatpush1.bf16.msra.mxu0 %v485
      %1188 = vmatprep.subr.bf16.mxu0 0
      %1189 = vmatpush1.bf16.msra.mxu0 %v486
      %1190 = vmatprep.subr.bf16.mxu0 0
      %1191 = vmatpush1.bf16.msra.mxu0 0
      %1192 = vmatprep.subr.bf16.mxu0 0
      %1193 = vmatpush1.bf16.msra.mxu0 0
      %1194 = vmatprep.subr.bf16.mxu0 0
      %1195 = vmatpush1.bf16.msra.mxu0 0
      %1196 = vmatprep.subr.bf16.mxu0 0
      %1197 = vmatpush1.bf16.msra.mxu0 0
      %1198 = vmatprep.subr.bf16.mxu0 0
      %1199 = vmatpush1.bf16.msra.mxu0 0
      %1200 = vmatprep.subr.bf16.mxu0 0
      %1201 = vmatpush1.bf16.msra.mxu0 0
      %1202 = vmatprep.subr.bf16.mxu0 0
      %1203 = vmatpush1.bf16.msra.mxu0 0
      %1204 = vmatprep.subr.bf16.mxu0 0
      %1205 = vmatpush1.bf16.msra.mxu0 0
      %1206 = vmatprep.subr.bf16.mxu0 0
      %1207 = vmatpush1.bf16.msra.mxu0 0
      %1208 = vmatprep.subr.bf16.mxu0 0
      %1209 = vmatpush1.bf16.msra.mxu0 0
      %1210 = vmatprep.subr.bf16.mxu0 0
      %1211 = vmatpush1.bf16.msra.mxu0 0
      %1212 = vmatprep.subr.bf16.mxu0 0
      %1213 = vmatpush1.bf16.msra.mxu0 0
      %1214 = vmatprep.mubr.bf16.mxu0 0
      %1215 = vmatmul.mubr.bf16.gmra.mrb[0].mxu0 %v588
      %v1216 = vpop.f32.mrb[0].mxu0
      %v1217 = vadd.f32 0.0, %v1216
      %v1218 = vpop.f32.mrb[0].mxu0
      %v1219 = vpop.f32.mrb[0].mxu0
      %v1220 = vadd.f32 0.0, %v1219
      %v1221 = vpop.f32.mrb[0].mxu0
      %1222 = vmatprep.mubr.bf16.mxu0 0
      %1223 = vmatmul.mubr.bf16.gmra.mrb[0].mxu0 %v591
      %v1224 = vpop.f32.mrb[0].mxu0
      %v1225 = vadd.f32 0.0, %v1224
      %v1226 = vpop.f32.mrb[0].mxu0
      %v1227 = vpop.f32.mrb[0].mxu0
      %v1228 = vpop.f32.mrb[0].mxu0
      %1229 = vdwg.mxu0
      %v1230 = vadd.f32 %v1179, %v1217
      %v1231 = vadd.f32 %v1180, %v1220
      %v1232 = vadd.f32 %v1181, %v1225
      %1233 = vmatprep.subr.bf16.mxu0 0
      %1234 = vmatpush1.bf16.msra.mxu0 %v579
      %1235 = vmatprep.subr.bf16.mxu0 0
      %1236 = vmatpush1.bf16.msra.mxu0 %v580
      %1237 = vmatprep.subr.bf16.mxu0 0
      %1238 = vmatpush1.bf16.msra.mxu0 %v581
      %1239 = vmatprep.subr.bf16.mxu0 0
      %1240 = vmatpush1.bf16.msra.mxu0 %v582
      %1241 = vmatprep.subr.bf16.mxu0 0
      %1242 = vmatpush1.bf16.msra.mxu0 0
      %1243 = vmatprep.subr.bf16.mxu0 0
      %1244 = vmatpush1.bf16.msra.mxu0 0
      %1245 = vmatprep.subr.bf16.mxu0 0
      %1246 = vmatpush1.bf16.msra.mxu0 0
      %1247 = vmatprep.subr.bf16.mxu0 0
      %1248 = vmatpush1.bf16.msra.mxu0 0
      %1249 = vmatprep.subr.bf16.mxu0 0
      %1250 = vmatpush1.bf16.msra.mxu0 0
      %1251 = vmatprep.subr.bf16.mxu0 0
      %1252 = vmatpush1.bf16.msra.mxu0 0
      %1253 = vmatprep.subr.bf16.mxu0 0
      %1254 = vmatpush1.bf16.msra.mxu0 0
      %1255 = vmatprep.subr.bf16.mxu0 0
      %1256 = vmatpush1.bf16.msra.mxu0 0
      %1257 = vmatprep.subr.bf16.mxu0 0
      %1258 = vmatpush1.bf16.msra.mxu0 0
      %1259 = vmatprep.subr.bf16.mxu0 0
      %1260 = vmatpush1.bf16.msra.mxu0 0
      %1261 = vmatprep.subr.bf16.mxu0 0
      %1262 = vmatpush1.bf16.msra.mxu0 0
      %1263 = vmatprep.subr.bf16.mxu0 0
      %1264 = vmatpush1.bf16.msra.mxu0 0
      %1265 = vmatprep.mubr.bf16.mxu0 0
      %1266 = vmatmul.mubr.bf16.gmra.mrb[0].mxu0 %v683
      %v1267 = vpop.f32.mrb[0].mxu0
      %v1268 = vadd.f32 0.0, %v1267
      %v1269 = vpop.f32.mrb[0].mxu0
      %v1270 = vpop.f32.mrb[0].mxu0
      %v1271 = vadd.f32 0.0, %v1270
      %v1272 = vpop.f32.mrb[0].mxu0
      %1273 = vmatprep.mubr.bf16.mxu0 0
      %1274 = vmatmul.mubr.bf16.gmra.mrb[0].mxu0 %v686
      %v1275 = vpop.f32.mrb[0].mxu0
      %v1276 = vadd.f32 0.0, %v1275
      %v1277 = vpop.f32.mrb[0].mxu0
      %v1278 = vpop.f32.mrb[0].mxu0
      %v1279 = vpop.f32.mrb[0].mxu0
      %1280 = vdwg.mxu0
      %v1281 = vadd.f32 %v1230, %v1268
      %v1282 = vadd.f32 %v1231, %v1271
      %v1283 = vadd.f32 %v1232, %v1276
      %v1284 = vld [vmem:[%s548 + $0x1] sm:$0xff]
      %v1285 = vld [vmem:[%s548 + $0x9] sm:$0xff]
      %v1286 = vld [vmem:[%s548 + $0x11] sm:$0xf]
      %v1287 = vpack.c.bf16 %v1285, %v1284
      %v1288 = vpack.c.bf16 %v1286, %v1286
      %v1290 = vsel %vm224, %v1287, 0
      %v1293 = vsel %vm224, %v1288, 0
      %1295 = vmatprep.subr.bf16.mxu0 0
      %1296 = vmatpush1.bf16.msra.mxu0 %v674
      %1297 = vmatprep.subr.bf16.mxu0 0
      %1298 = vmatpush1.bf16.msra.mxu0 %v675
      %1299 = vmatprep.subr.bf16.mxu0 0
      %1300 = vmatpush1.bf16.msra.mxu0 %v676
      %1301 = vmatprep.subr.bf16.mxu0 0
      %1302 = vmatpush1.bf16.msra.mxu0 %v677
      %1303 = vmatprep.subr.bf16.mxu0 0
      %1304 = vmatpush1.bf16.msra.mxu0 0
      %1305 = vmatprep.subr.bf16.mxu0 0
      %1306 = vmatpush1.bf16.msra.mxu0 0
      %1307 = vmatprep.subr.bf16.mxu0 0
      %1308 = vmatpush1.bf16.msra.mxu0 0
      %1309 = vmatprep.subr.bf16.mxu0 0
      %1310 = vmatpush1.bf16.msra.mxu0 0
      %1311 = vmatprep.subr.bf16.mxu0 0
      %1312 = vmatpush1.bf16.msra.mxu0 0
      %1313 = vmatprep.subr.bf16.mxu0 0
      %1314 = vmatpush1.bf16.msra.mxu0 0
      %1315 = vmatprep.subr.bf16.mxu0 0
      %1316 = vmatpush1.bf16.msra.mxu0 0
      %1317 = vmatprep.subr.bf16.mxu0 0
      %1318 = vmatpush1.bf16.msra.mxu0 0
      %1319 = vmatprep.subr.bf16.mxu0 0
      %1320 = vmatpush1.bf16.msra.mxu0 0
      %1321 = vmatprep.subr.bf16.mxu0 0
      %1322 = vmatpush1.bf16.msra.mxu0 0
      %1323 = vmatprep.subr.bf16.mxu0 0
      %1324 = vmatpush1.bf16.msra.mxu0 0
      %1325 = vmatprep.subr.bf16.mxu0 0
      %1326 = vmatpush1.bf16.msra.mxu0 0
      %1327 = vmatprep.mubr.bf16.mxu0 0
      %1328 = vmatmul.mubr.bf16.gmra.mrb[0].mxu0 %v1290
      %v1329 = vpop.f32.mrb[0].mxu0
      %v1330 = vadd.f32 0.0, %v1329
      %v1331 = vpop.f32.mrb[0].mxu0
      %v1332 = vpop.f32.mrb[0].mxu0
      %v1333 = vadd.f32 0.0, %v1332
      %v1334 = vpop.f32.mrb[0].mxu0
      %1335 = vmatprep.mubr.bf16.mxu0 0
      %1336 = vmatmul.mubr.bf16.gmra.mrb[0].mxu0 %v1293
      %v1337 = vpop.f32.mrb[0].mxu0
      %v1338 = vadd.f32 0.0, %v1337
      %v1339 = vpop.f32.mrb[0].mxu0
      %v1340 = vpop.f32.mrb[0].mxu0
      %v1341 = vpop.f32.mrb[0].mxu0
      %1342 = vdwg.mxu0
      %v1343 = vadd.f32 %v1281, %v1330
      %v1344 = vadd.f32 %v1282, %v1333
      %v1345 = vadd.f32 %v1283, %v1338
      %1346 = vmatprep.subr.bf16.mxu0 0
      %1347 = vmatpush1.bf16.msra.mxu0 %v769
      %1348 = vmatprep.subr.bf16.mxu0 0
      %1349 = vmatpush1.bf16.msra.mxu0 %v770
      %1350 = vmatprep.subr.bf16.mxu0 0
      %1351 = vmatpush1.bf16.msra.mxu0 %v771
      %1352 = vmatprep.subr.bf16.mxu0 0
      %1353 = vmatpush1.bf16.msra.mxu0 %v772
      %1354 = vmatprep.subr.bf16.mxu0 0
      %1355 = vmatpush1.bf16.msra.mxu0 0
      %1356 = vmatprep.subr.bf16.mxu0 0
      %1357 = vmatpush1.bf16.msra.mxu0 0
      %1358 = vmatprep.subr.bf16.mxu0 0
      %1359 = vmatpush1.bf16.msra.mxu0 0
      %1360 = vmatprep.subr.bf16.mxu0 0
      %1361 = vmatpush1.bf16.msra.mxu0 0
      %1362 = vmatprep.subr.bf16.mxu0 0
      %1363 = vmatpush1.bf16.msra.mxu0 0
      %1364 = vmatprep.subr.bf16.mxu0 0
      %1365 = vmatpush1.bf16.msra.mxu0 0
      %1366 = vmatprep.subr.bf16.mxu0 0
      %1367 = vmatpush1.bf16.msra.mxu0 0
      %1368 = vmatprep.subr.bf16.mxu0 0
      %1369 = vmatpush1.bf16.msra.mxu0 0
      %1370 = vmatprep.subr.bf16.mxu0 0
      %1371 = vmatpush1.bf16.msra.mxu0 0
      %1372 = vmatprep.subr.bf16.mxu0 0
      %1373 = vmatpush1.bf16.msra.mxu0 0
      %1374 = vmatprep.subr.bf16.mxu0 0
      %1375 = vmatpush1.bf16.msra.mxu0 0
      %1376 = vmatprep.subr.bf16.mxu0 0
      %1377 = vmatpush1.bf16.msra.mxu0 0
      %1378 = vmatprep.mubr.bf16.mxu0 0
      %1379 = vmatmul.mubr.bf16.gmra.mrb[0].mxu0 %v873
      %v1380 = vpop.f32.mrb[0].mxu0
      %v1381 = vadd.f32 0.0, %v1380
      %v1382 = vpop.f32.mrb[0].mxu0
      %v1383 = vpop.f32.mrb[0].mxu0
      %v1384 = vadd.f32 0.0, %v1383
      %v1385 = vpop.f32.mrb[0].mxu0
      %1386 = vmatprep.mubr.bf16.mxu0 0
      %1387 = vmatmul.mubr.bf16.gmra.mrb[0].mxu0 %v876
      %v1388 = vpop.f32.mrb[0].mxu0
      %v1389 = vadd.f32 0.0, %v1388
      %v1390 = vpop.f32.mrb[0].mxu0
      %v1391 = vpop.f32.mrb[0].mxu0
      %v1392 = vpop.f32.mrb[0].mxu0
      %1393 = vdwg.mxu0
      %v1394 = vadd.f32 %v1343, %v1381
      %v1395 = vadd.f32 %v1344, %v1384
      %v1396 = vadd.f32 %v1345, %v1389
      %1397 = vmatprep.subr.bf16.mxu0 0
      %1398 = vmatpush1.bf16.msra.mxu0 %v864
      %1399 = vmatprep.subr.bf16.mxu0 0
      %1400 = vmatpush1.bf16.msra.mxu0 %v865
      %1401 = vmatprep.subr.bf16.mxu0 0
      %1402 = vmatpush1.bf16.msra.mxu0 %v866
      %1403 = vmatprep.subr.bf16.mxu0 0
      %1404 = vmatpush1.bf16.msra.mxu0 %v867
      %1405 = vmatprep.subr.bf16.mxu0 0
      %1406 = vmatpush1.bf16.msra.mxu0 0
      %1407 = vmatprep.subr.bf16.mxu0 0
      %1408 = vmatpush1.bf16.msra.mxu0 0
      %1409 = vmatprep.subr.bf16.mxu0 0
      %1410 = vmatpush1.bf16.msra.mxu0 0
      %1411 = vmatprep.subr.bf16.mxu0 0
      %1412 = vmatpush1.bf16.msra.mxu0 0
      %1413 = vmatprep.subr.bf16.mxu0 0
      %1414 = vmatpush1.bf16.msra.mxu0 0
      %1415 = vmatprep.subr.bf16.mxu0 0
      %1416 = vmatpush1.bf16.msra.mxu0 0
      %1417 = vmatprep.subr.bf16.mxu0 0
      %1418 = vmatpush1.bf16.msra.mxu0 0
      %1419 = vmatprep.subr.bf16.mxu0 0
      %1420 = vmatpush1.bf16.msra.mxu0 0
      %1421 = vmatprep.subr.bf16.mxu0 0
      %1422 = vmatpush1.bf16.msra.mxu0 0
      %1423 = vmatprep.subr.bf16.mxu0 0
      %1424 = vmatpush1.bf16.msra.mxu0 0
      %1425 = vmatprep.subr.bf16.mxu0 0
      %1426 = vmatpush1.bf16.msra.mxu0 0
      %1427 = vmatprep.subr.bf16.mxu0 0
      %1428 = vmatpush1.bf16.msra.mxu0 0
      %1429 = vmatprep.mubr.bf16.mxu0 0
      %1430 = vmatmul.mubr.bf16.gmra.mrb[0].mxu0 %v968
      %v1431 = vpop.f32.mrb[0].mxu0
      %v1432 = vadd.f32 0.0, %v1431
      %v1433 = vpop.f32.mrb[0].mxu0
      %v1434 = vpop.f32.mrb[0].mxu0
      %v1435 = vadd.f32 0.0, %v1434
      %v1436 = vpop.f32.mrb[0].mxu0
      %1437 = vmatprep.mubr.bf16.mxu0 0
      %1438 = vmatmul.mubr.bf16.gmra.mrb[0].mxu0 %v971
      %v1439 = vpop.f32.mrb[0].mxu0
      %v1440 = vadd.f32 0.0, %v1439
      %v1441 = vpop.f32.mrb[0].mxu0
      %v1442 = vpop.f32.mrb[0].mxu0
      %v1443 = vpop.f32.mrb[0].mxu0
      %1444 = vdwg.mxu0
      %v1445 = vadd.f32 %v1394, %v1432
      %v1446 = vadd.f32 %v1395, %v1435
      %v1447 = vadd.f32 %v1396, %v1440
      %v1448 = vld [vmem:[%s185 + $0x6] sm:$0xff]
      %v1449 = vld [vmem:[%s185 + $0xe] sm:$0xff]
      %v1450 = vld [vmem:[%s185 + $0x16] sm:$0xf]
      %v1451 = vpack.c.bf16 %v1449, %v1448
      %v1452 = vpack.c.bf16 %v1450, %v1450
      %v1454 = vsel %vm224, %v1451, 0
      %v1457 = vsel %vm224, %v1452, 0
      %1459 = vmatprep.subr.bf16.mxu0 0
      %1460 = vmatpush1.bf16.msra.mxu0 %v959
      %1461 = vmatprep.subr.bf16.mxu0 0
      %1462 = vmatpush1.bf16.msra.mxu0 %v960
      %1463 = vmatprep.subr.bf16.mxu0 0
      %1464 = vmatpush1.bf16.msra.mxu0 %v961
      %1465 = vmatprep.subr.bf16.mxu0 0
      %1466 = vmatpush1.bf16.msra.mxu0 %v962
      %1467 = vmatprep.subr.bf16.mxu0 0
      %1468 = vmatpush1.bf16.msra.mxu0 0
      %1469 = vmatprep.subr.bf16.mxu0 0
      %1470 = vmatpush1.bf16.msra.mxu0 0
      %1471 = vmatprep.subr.bf16.mxu0 0
      %1472 = vmatpush1.bf16.msra.mxu0 0
      %1473 = vmatprep.subr.bf16.mxu0 0
      %1474 = vmatpush1.bf16.msra.mxu0 0
      %1475 = vmatprep.subr.bf16.mxu0 0
      %1476 = vmatpush1.bf16.msra.mxu0 0
      %1477 = vmatprep.subr.bf16.mxu0 0
      %1478 = vmatpush1.bf16.msra.mxu0 0
      %1479 = vmatprep.subr.bf16.mxu0 0
      %1480 = vmatpush1.bf16.msra.mxu0 0
      %1481 = vmatprep.subr.bf16.mxu0 0
      %1482 = vmatpush1.bf16.msra.mxu0 0
      %1483 = vmatprep.subr.bf16.mxu0 0
      %1484 = vmatpush1.bf16.msra.mxu0 0
      %1485 = vmatprep.subr.bf16.mxu0 0
      %1486 = vmatpush1.bf16.msra.mxu0 0
      %1487 = vmatprep.subr.bf16.mxu0 0
      %1488 = vmatpush1.bf16.msra.mxu0 0
      %1489 = vmatprep.subr.bf16.mxu0 0
      %1490 = vmatpush1.bf16.msra.mxu0 0
      %1491 = vmatprep.mubr.bf16.mxu0 0
      %1492 = vmatmul.mubr.bf16.gmra.mrb[0].mxu0 %v1454
      %v1493 = vpop.f32.mrb[0].mxu0
      %v1494 = vadd.f32 0.0, %v1493
      %v1495 = vpop.f32.mrb[0].mxu0
      %v1496 = vpop.f32.mrb[0].mxu0
      %v1497 = vadd.f32 0.0, %v1496
      %v1498 = vpop.f32.mrb[0].mxu0
      %1499 = vmatprep.mubr.bf16.mxu0 0
      %1500 = vmatmul.mubr.bf16.gmra.mrb[0].mxu0 %v1457
      %v1501 = vpop.f32.mrb[0].mxu0
      %v1502 = vadd.f32 0.0, %v1501
      %v1503 = vpop.f32.mrb[0].mxu0
      %v1504 = vpop.f32.mrb[0].mxu0
      %v1505 = vpop.f32.mrb[0].mxu0
      %1506 = vdwg.mxu0
      %v1507 = vadd.f32 %v1445, %v1494
      %v1508 = vadd.f32 %v1446, %v1497
      %v1509 = vadd.f32 %v1447, %v1502
      %v1510 = vmax.f32 %v1021, %v1507
      %v1511 = vmax.f32 %v1022, %v1508
      %v1512 = vmax.f32 %v1023, %v1509
      %1513 = vmatprep.subr.bf16.mxu0 0
      %1514 = vmatpush1.bf16.msra.mxu0 %v216
      %1515 = vmatprep.subr.bf16.mxu0 0
      %1516 = vmatpush1.bf16.msra.mxu0 %v217
      %1517 = vmatprep.subr.bf16.mxu0 0
      %1518 = vmatpush1.bf16.msra.mxu0 %v218
      %1519 = vmatprep.subr.bf16.mxu0 0
      %1520 = vmatpush1.bf16.msra.mxu0 %v219
      %1521 = vmatprep.subr.bf16.mxu0 0
      %1522 = vmatpush1.bf16.msra.mxu0 0
      %1523 = vmatprep.subr.bf16.mxu0 0
      %1524 = vmatpush1.bf16.msra.mxu0 0
      %1525 = vmatprep.subr.bf16.mxu0 0
      %1526 = vmatpush1.bf16.msra.mxu0 0
      %1527 = vmatprep.subr.bf16.mxu0 0
      %1528 = vmatpush1.bf16.msra.mxu0 0
      %1529 = vmatprep.subr.bf16.mxu0 0
      %1530 = vmatpush1.bf16.msra.mxu0 0
      %1531 = vmatprep.subr.bf16.mxu0 0
      %1532 = vmatpush1.bf16.msra.mxu0 0
      %1533 = vmatprep.subr.bf16.mxu0 0
      %1534 = vmatpush1.bf16.msra.mxu0 0
      %1535 = vmatprep.subr.bf16.mxu0 0
      %1536 = vmatpush1.bf16.msra.mxu0 0
      %1537 = vmatprep.subr.bf16.mxu0 0
      %1538 = vmatpush1.bf16.msra.mxu0 0
      %1539 = vmatprep.subr.bf16.mxu0 0
      %1540 = vmatpush1.bf16.msra.mxu0 0
      %1541 = vmatprep.subr.bf16.mxu0 0
      %1542 = vmatpush1.bf16.msra.mxu0 0
      %1543 = vmatprep.subr.bf16.mxu0 0
      %1544 = vmatpush1.bf16.msra.mxu0 0
      %1545 = vmatprep.mubr.bf16.mxu0 0
      %1546 = vmatmul.mubr.bf16.gmra.mrb[0].mxu0 %v588
      %v1547 = vpop.f32.mrb[0].mxu0
      %v1548 = vadd.f32 0.0, %v1547
      %v1549 = vpop.f32.mrb[0].mxu0
      %v1550 = vpop.f32.mrb[0].mxu0
      %v1551 = vadd.f32 0.0, %v1550
      %v1552 = vpop.f32.mrb[0].mxu0
      %1553 = vmatprep.mubr.bf16.mxu0 0
      %1554 = vmatmul.mubr.bf16.gmra.mrb[0].mxu0 %v591
      %v1555 = vpop.f32.mrb[0].mxu0
      %v1556 = vadd.f32 0.0, %v1555
      %v1557 = vpop.f32.mrb[0].mxu0
      %v1558 = vpop.f32.mrb[0].mxu0
      %v1559 = vpop.f32.mrb[0].mxu0
      %1560 = vdwg.mxu0
      %1561 = vmatprep.subr.bf16.mxu0 0
      %1562 = vmatpush1.bf16.msra.mxu0 %v295
      %1563 = vmatprep.subr.bf16.mxu0 0
      %1564 = vmatpush1.bf16.msra.mxu0 %v296
      %1565 = vmatprep.subr.bf16.mxu0 0
      %1566 = vmatpush1.bf16.msra.mxu0 %v297
      %1567 = vmatprep.subr.bf16.mxu0 0
      %1568 = vmatpush1.bf16.msra.mxu0 %v298
      %1569 = vmatprep.subr.bf16.mxu0 0
      %1570 = vmatpush1.bf16.msra.mxu0 0
      %1571 = vmatprep.subr.bf16.mxu0 0
      %1572 = vmatpush1.bf16.msra.mxu0 0
      %1573 = vmatprep.subr.bf16.mxu0 0
      %1574 = vmatpush1.bf16.msra.mxu0 0
      %1575 = vmatprep.subr.bf16.mxu0 0
      %1576 = vmatpush1.bf16.msra.mxu0 0
      %1577 = vmatprep.subr.bf16.mxu0 0
      %1578 = vmatpush1.bf16.msra.mxu0 0
      %1579 = vmatprep.subr.bf16.mxu0 0
      %1580 = vmatpush1.bf16.msra.mxu0 0
      %1581 = vmatprep.subr.bf16.mxu0 0
      %1582 = vmatpush1.bf16.msra.mxu0 0
      %1583 = vmatprep.subr.bf16.mxu0 0
      %1584 = vmatpush1.bf16.msra.mxu0 0
      %1585 = vmatprep.subr.bf16.mxu0 0
      %1586 = vmatpush1.bf16.msra.mxu0 0
      %1587 = vmatprep.subr.bf16.mxu0 0
      %1588 = vmatpush1.bf16.msra.mxu0 0
      %1589 = vmatprep.subr.bf16.mxu0 0
      %1590 = vmatpush1.bf16.msra.mxu0 0
      %1591 = vmatprep.subr.bf16.mxu0 0
      %1592 = vmatpush1.bf16.msra.mxu0 0
      %1593 = vmatprep.mubr.bf16.mxu0 0
      %1594 = vmatmul.mubr.bf16.gmra.mrb[0].mxu0 %v492
      %v1595 = vpop.f32.mrb[0].mxu0
      %v1596 = vadd.f32 %v1548, %v1595
      %v1597 = vpop.f32.mrb[0].mxu0
      %v1598 = vpop.f32.mrb[0].mxu0
      %v1599 = vadd.f32 %v1551, %v1598
      %v1600 = vpop.f32.mrb[0].mxu0
      %1601 = vmatprep.mubr.bf16.mxu0 0
      %1602 = vmatmul.mubr.bf16.gmra.mrb[0].mxu0 %v495
      %v1603 = vpop.f32.mrb[0].mxu0
      %v1604 = vadd.f32 %v1556, %v1603
      %v1605 = vpop.f32.mrb[0].mxu0
      %v1606 = vpop.f32.mrb[0].mxu0
      %v1607 = vpop.f32.mrb[0].mxu0
      %1608 = vdwg.mxu0
      %1609 = vmatprep.subr.bf16.mxu0 0
      %1610 = vmatpush1.bf16.msra.mxu0 %v387
      %1611 = vmatprep.subr.bf16.mxu0 0
      %1612 = vmatpush1.bf16.msra.mxu0 %v388
      %1613 = vmatprep.subr.bf16.mxu0 0
      %1614 = vmatpush1.bf16.msra.mxu0 %v389
      %1615 = vmatprep.subr.bf16.mxu0 0
      %1616 = vmatpush1.bf16.msra.mxu0 %v390
      %1617 = vmatprep.subr.bf16.mxu0 0
      %1618 = vmatpush1.bf16.msra.mxu0 0
      %1619 = vmatprep.subr.bf16.mxu0 0
      %1620 = vmatpush1.bf16.msra.mxu0 0
      %1621 = vmatprep.subr.bf16.mxu0 0
      %1622 = vmatpush1.bf16.msra.mxu0 0
      %1623 = vmatprep.subr.bf16.mxu0 0
      %1624 = vmatpush1.bf16.msra.mxu0 0
      %1625 = vmatprep.subr.bf16.mxu0 0
      %1626 = vmatpush1.bf16.msra.mxu0 0
      %1627 = vmatprep.subr.bf16.mxu0 0
      %1628 = vmatpush1.bf16.msra.mxu0 0
      %1629 = vmatprep.subr.bf16.mxu0 0
      %1630 = vmatpush1.bf16.msra.mxu0 0
      %1631 = vmatprep.subr.bf16.mxu0 0
      %1632 = vmatpush1.bf16.msra.mxu0 0
      %1633 = vmatprep.subr.bf16.mxu0 0
      %1634 = vmatpush1.bf16.msra.mxu0 0
      %1635 = vmatprep.subr.bf16.mxu0 0
      %1636 = vmatpush1.bf16.msra.mxu0 0
      %1637 = vmatprep.subr.bf16.mxu0 0
      %1638 = vmatpush1.bf16.msra.mxu0 0
      %1639 = vmatprep.subr.bf16.mxu0 0
      %1640 = vmatpush1.bf16.msra.mxu0 0
      %1641 = vmatprep.mubr.bf16.mxu0 0
      %1642 = vmatmul.mubr.bf16.gmra.mrb[0].mxu0 %v683
      %v1643 = vpop.f32.mrb[0].mxu0
      %v1644 = vadd.f32 0.0, %v1643
      %v1645 = vpop.f32.mrb[0].mxu0
      %v1646 = vpop.f32.mrb[0].mxu0
      %v1647 = vadd.f32 0.0, %v1646
      %v1648 = vpop.f32.mrb[0].mxu0
      %1649 = vmatprep.mubr.bf16.mxu0 0
      %1650 = vmatmul.mubr.bf16.gmra.mrb[0].mxu0 %v686
      %v1651 = vpop.f32.mrb[0].mxu0
      %v1652 = vadd.f32 0.0, %v1651
      %v1653 = vpop.f32.mrb[0].mxu0
      %v1654 = vpop.f32.mrb[0].mxu0
      %v1655 = vpop.f32.mrb[0].mxu0
      %1656 = vdwg.mxu0
      %v1657 = vadd.f32 %v1596, %v1644
      %v1658 = vadd.f32 %v1599, %v1647
      %v1659 = vadd.f32 %v1604, %v1652
      %1660 = vmatprep.subr.bf16.mxu0 0
      %1661 = vmatpush1.bf16.msra.mxu0 %v483
      %1662 = vmatprep.subr.bf16.mxu0 0
      %1663 = vmatpush1.bf16.msra.mxu0 %v484
      %1664 = vmatprep.subr.bf16.mxu0 0
      %1665 = vmatpush1.bf16.msra.mxu0 %v485
      %1666 = vmatprep.subr.bf16.mxu0 0
      %1667 = vmatpush1.bf16.msra.mxu0 %v486
      %1668 = vmatprep.subr.bf16.mxu0 0
      %1669 = vmatpush1.bf16.msra.mxu0 0
      %1670 = vmatprep.subr.bf16.mxu0 0
      %1671 = vmatpush1.bf16.msra.mxu0 0
      %1672 = vmatprep.subr.bf16.mxu0 0
      %1673 = vmatpush1.bf16.msra.mxu0 0
      %1674 = vmatprep.subr.bf16.mxu0 0
      %1675 = vmatpush1.bf16.msra.mxu0 0
      %1676 = vmatprep.subr.bf16.mxu0 0
      %1677 = vmatpush1.bf16.msra.mxu0 0
      %1678 = vmatprep.subr.bf16.mxu0 0
      %1679 = vmatpush1.bf16.msra.mxu0 0
      %1680 = vmatprep.subr.bf16.mxu0 0
      %1681 = vmatpush1.bf16.msra.mxu0 0
      %1682 = vmatprep.subr.bf16.mxu0 0
      %1683 = vmatpush1.bf16.msra.mxu0 0
      %1684 = vmatprep.subr.bf16.mxu0 0
      %1685 = vmatpush1.bf16.msra.mxu0 0
      %1686 = vmatprep.subr.bf16.mxu0 0
      %1687 = vmatpush1.bf16.msra.mxu0 0
      %1688 = vmatprep.subr.bf16.mxu0 0
      %1689 = vmatpush1.bf16.msra.mxu0 0
      %1690 = vmatprep.subr.bf16.mxu0 0
      %1691 = vmatpush1.bf16.msra.mxu0 0
      %1692 = vmatprep.mubr.bf16.mxu0 0
      %1693 = vmatmul.mubr.bf16.gmra.mrb[0].mxu0 %v778
      %v1694 = vpop.f32.mrb[0].mxu0
      %v1695 = vadd.f32 0.0, %v1694
      %v1696 = vpop.f32.mrb[0].mxu0
      %v1697 = vpop.f32.mrb[0].mxu0
      %v1698 = vadd.f32 0.0, %v1697
      %v1699 = vpop.f32.mrb[0].mxu0
      %1700 = vmatprep.mubr.bf16.mxu0 0
      %1701 = vmatmul.mubr.bf16.gmra.mrb[0].mxu0 %v781
      %v1702 = vpop.f32.mrb[0].mxu0
      %v1703 = vadd.f32 0.0, %v1702
      %v1704 = vpop.f32.mrb[0].mxu0
      %v1705 = vpop.f32.mrb[0].mxu0
      %v1706 = vpop.f32.mrb[0].mxu0
      %1707 = vdwg.mxu0
      %v1708 = vadd.f32 %v1657, %v1695
      %v1709 = vadd.f32 %v1658, %v1698
      %v1710 = vadd.f32 %v1659, %v1703
      %1711 = vmatprep.subr.bf16.mxu0 0
      %1712 = vmatpush1.bf16.msra.mxu0 %v579
      %1713 = vmatprep.subr.bf16.mxu0 0
      %1714 = vmatpush1.bf16.msra.mxu0 %v580
      %1715 = vmatprep.subr.bf16.mxu0 0
      %1716 = vmatpush1.bf16.msra.mxu0 %v581
      %1717 = vmatprep.subr.bf16.mxu0 0
      %1718 = vmatpush1.bf16.msra.mxu0 %v582
      %1719 = vmatprep.subr.bf16.mxu0 0
      %1720 = vmatpush1.bf16.msra.mxu0 0
      %1721 = vmatprep.subr.bf16.mxu0 0
      %1722 = vmatpush1.bf16.msra.mxu0 0
      %1723 = vmatprep.subr.bf16.mxu0 0
      %1724 = vmatpush1.bf16.msra.mxu0 0
      %1725 = vmatprep.subr.bf16.mxu0 0
      %1726 = vmatpush1.bf16.msra.mxu0 0
      %1727 = vmatprep.subr.bf16.mxu0 0
      %1728 = vmatpush1.bf16.msra.mxu0 0
      %1729 = vmatprep.subr.bf16.mxu0 0
      %1730 = vmatpush1.bf16.msra.mxu0 0
      %1731 = vmatprep.subr.bf16.mxu0 0
      %1732 = vmatpush1.bf16.msra.mxu0 0
      %1733 = vmatprep.subr.bf16.mxu0 0
      %1734 = vmatpush1.bf16.msra.mxu0 0
      %1735 = vmatprep.subr.bf16.mxu0 0
      %1736 = vmatpush1.bf16.msra.mxu0 0
      %1737 = vmatprep.subr.bf16.mxu0 0
      %1738 = vmatpush1.bf16.msra.mxu0 0
      %1739 = vmatprep.subr.bf16.mxu0 0
      %1740 = vmatpush1.bf16.msra.mxu0 0
      %1741 = vmatprep.subr.bf16.mxu0 0
      %1742 = vmatpush1.bf16.msra.mxu0 0
      %1743 = vmatprep.mubr.bf16.mxu0 0
      %1744 = vmatmul.mubr.bf16.gmra.mrb[0].mxu0 %v873
      %v1745 = vpop.f32.mrb[0].mxu0
      %v1746 = vadd.f32 0.0, %v1745
      %v1747 = vpop.f32.mrb[0].mxu0
      %v1748 = vpop.f32.mrb[0].mxu0
      %v1749 = vadd.f32 0.0, %v1748
      %v1750 = vpop.f32.mrb[0].mxu0
      %1751 = vmatprep.mubr.bf16.mxu0 0
      %1752 = vmatmul.mubr.bf16.gmra.mrb[0].mxu0 %v876
      %v1753 = vpop.f32.mrb[0].mxu0
      %v1754 = vadd.f32 0.0, %v1753
      %v1755 = vpop.f32.mrb[0].mxu0
      %v1756 = vpop.f32.mrb[0].mxu0
      %v1757 = vpop.f32.mrb[0].mxu0
      %1758 = vdwg.mxu0
      %v1759 = vadd.f32 %v1708, %v1746
      %v1760 = vadd.f32 %v1709, %v1749
      %v1761 = vadd.f32 %v1710, %v1754
      %1762 = vmatprep.subr.bf16.mxu0 0
      %1763 = vmatpush1.bf16.msra.mxu0 %v674
      %1764 = vmatprep.subr.bf16.mxu0 0
      %1765 = vmatpush1.bf16.msra.mxu0 %v675
      %1766 = vmatprep.subr.bf16.mxu0 0
      %1767 = vmatpush1.bf16.msra.mxu0 %v676
      %1768 = vmatprep.subr.bf16.mxu0 0
      %1769 = vmatpush1.bf16.msra.mxu0 %v677
      %1770 = vmatprep.subr.bf16.mxu0 0
      %1771 = vmatpush1.bf16.msra.mxu0 0
      %1772 = vmatprep.subr.bf16.mxu0 0
      %1773 = vmatpush1.bf16.msra.mxu0 0
      %1774 = vmatprep.subr.bf16.mxu0 0
      %1775 = vmatpush1.bf16.msra.mxu0 0
      %1776 = vmatprep.subr.bf16.mxu0 0
      %1777 = vmatpush1.bf16.msra.mxu0 0
      %1778 = vmatprep.subr.bf16.mxu0 0
      %1779 = vmatpush1.bf16.msra.mxu0 0
      %1780 = vmatprep.subr.bf16.mxu0 0
      %1781 = vmatpush1.bf16.msra.mxu0 0
      %1782 = vmatprep.subr.bf16.mxu0 0
      %1783 = vmatpush1.bf16.msra.mxu0 0
      %1784 = vmatprep.subr.bf16.mxu0 0
      %1785 = vmatpush1.bf16.msra.mxu0 0
      %1786 = vmatprep.subr.bf16.mxu0 0
      %1787 = vmatpush1.bf16.msra.mxu0 0
      %1788 = vmatprep.subr.bf16.mxu0 0
      %1789 = vmatpush1.bf16.msra.mxu0 0
      %1790 = vmatprep.subr.bf16.mxu0 0
      %1791 = vmatpush1.bf16.msra.mxu0 0
      %1792 = vmatprep.subr.bf16.mxu0 0
      %1793 = vmatpush1.bf16.msra.mxu0 0
      %1794 = vmatprep.mubr.bf16.mxu0 0
      %1795 = vmatmul.mubr.bf16.gmra.mrb[0].mxu0 %v968
      %v1796 = vpop.f32.mrb[0].mxu0
      %v1797 = vadd.f32 0.0, %v1796
      %v1798 = vpop.f32.mrb[0].mxu0
      %v1799 = vpop.f32.mrb[0].mxu0
      %v1800 = vadd.f32 0.0, %v1799
      %v1801 = vpop.f32.mrb[0].mxu0
      %1802 = vmatprep.mubr.bf16.mxu0 0
      %1803 = vmatmul.mubr.bf16.gmra.mrb[0].mxu0 %v971
      %v1804 = vpop.f32.mrb[0].mxu0
      %v1805 = vadd.f32 0.0, %v1804
      %v1806 = vpop.f32.mrb[0].mxu0
      %v1807 = vpop.f32.mrb[0].mxu0
      %v1808 = vpop.f32.mrb[0].mxu0
      %1809 = vdwg.mxu0
      %v1810 = vadd.f32 %v1759, %v1797
      %v1811 = vadd.f32 %v1760, %v1800
      %v1812 = vadd.f32 %v1761, %v1805
      %v1813 = vld [vmem:[%s452 + $0x5] sm:$0xff]
      %v1814 = vld [vmem:[%s452 + $0xd] sm:$0xff]
      %v1815 = vld [vmem:[%s452 + $0x15] sm:$0xf]
      %v1816 = vpack.c.bf16 %v1814, %v1813
      %v1817 = vpack.c.bf16 %v1815, %v1815
      %v1819 = vsel %vm224, %v1816, 0
      %v1822 = vsel %vm224, %v1817, 0
      %1824 = vmatprep.subr.bf16.mxu0 0
      %1825 = vmatpush1.bf16.msra.mxu0 %v769
      %1826 = vmatprep.subr.bf16.mxu0 0
      %1827 = vmatpush1.bf16.msra.mxu0 %v770
      %1828 = vmatprep.subr.bf16.mxu0 0
      %1829 = vmatpush1.bf16.msra.mxu0 %v771
      %1830 = vmatprep.subr.bf16.mxu0 0
      %1831 = vmatpush1.bf16.msra.mxu0 %v772
      %1832 = vmatprep.subr.bf16.mxu0 0
      %1833 = vmatpush1.bf16.msra.mxu0 0
      %1834 = vmatprep.subr.bf16.mxu0 0
      %1835 = vmatpush1.bf16.msra.mxu0 0
      %1836 = vmatprep.subr.bf16.mxu0 0
      %1837 = vmatpush1.bf16.msra.mxu0 0
      %1838 = vmatprep.subr.bf16.mxu0 0
      %1839 = vmatpush1.bf16.msra.mxu0 0
      %1840 = vmatprep.subr.bf16.mxu0 0
      %1841 = vmatpush1.bf16.msra.mxu0 0
      %1842 = vmatprep.subr.bf16.mxu0 0
      %1843 = vmatpush1.bf16.msra.mxu0 0
      %1844 = vmatprep.subr.bf16.mxu0 0
      %1845 = vmatpush1.bf16.msra.mxu0 0
      %1846 = vmatprep.subr.bf16.mxu0 0
      %1847 = vmatpush1.bf16.msra.mxu0 0
      %1848 = vmatprep.subr.bf16.mxu0 0
      %1849 = vmatpush1.bf16.msra.mxu0 0
      %1850 = vmatprep.subr.bf16.mxu0 0
      %1851 = vmatpush1.bf16.msra.mxu0 0
      %1852 = vmatprep.subr.bf16.mxu0 0
      %1853 = vmatpush1.bf16.msra.mxu0 0
      %1854 = vmatprep.subr.bf16.mxu0 0
      %1855 = vmatpush1.bf16.msra.mxu0 0
      %1856 = vmatprep.mubr.bf16.mxu0 0
      %1857 = vmatmul.mubr.bf16.gmra.mrb[0].mxu0 %v1819
      %v1858 = vpop.f32.mrb[0].mxu0
      %v1859 = vadd.f32 0.0, %v1858
      %v1860 = vpop.f32.mrb[0].mxu0
      %v1861 = vpop.f32.mrb[0].mxu0
      %v1862 = vadd.f32 0.0, %v1861
      %v1863 = vpop.f32.mrb[0].mxu0
      %1864 = vmatprep.mubr.bf16.mxu0 0
      %1865 = vmatmul.mubr.bf16.gmra.mrb[0].mxu0 %v1822
      %v1866 = vpop.f32.mrb[0].mxu0
      %v1867 = vadd.f32 0.0, %v1866
      %v1868 = vpop.f32.mrb[0].mxu0
      %v1869 = vpop.f32.mrb[0].mxu0
      %v1870 = vpop.f32.mrb[0].mxu0
      %1871 = vdwg.mxu0
      %v1872 = vadd.f32 %v1810, %v1859
      %v1873 = vadd.f32 %v1811, %v1862
      %v1874 = vadd.f32 %v1812, %v1867
      %v1875 = vld [vmem:[%s548 + $0x5] sm:$0xff]
      %v1876 = vld [vmem:[%s548 + $0xd] sm:$0xff]
      %v1877 = vld [vmem:[%s548 + $0x15] sm:$0xf]
      %v1878 = vpack.c.bf16 %v1876, %v1875
      %v1879 = vpack.c.bf16 %v1877, %v1877
      %v1881 = vsel %vm224, %v1878, 0
      %v1884 = vsel %vm224, %v1879, 0
      %1886 = vmatprep.subr.bf16.mxu0 0
      %1887 = vmatpush1.bf16.msra.mxu0 %v864
      %1888 = vmatprep.subr.bf16.mxu0 0
      %1889 = vmatpush1.bf16.msra.mxu0 %v865
      %1890 = vmatprep.subr.bf16.mxu0 0
      %1891 = vmatpush1.bf16.msra.mxu0 %v866
      %1892 = vmatprep.subr.bf16.mxu0 0
      %1893 = vmatpush1.bf16.msra.mxu0 %v867
      %1894 = vmatprep.subr.bf16.mxu0 0
      %1895 = vmatpush1.bf16.msra.mxu0 0
      %1896 = vmatprep.subr.bf16.mxu0 0
      %1897 = vmatpush1.bf16.msra.mxu0 0
      %1898 = vmatprep.subr.bf16.mxu0 0
      %1899 = vmatpush1.bf16.msra.mxu0 0
      %1900 = vmatprep.subr.bf16.mxu0 0
      %1901 = vmatpush1.bf16.msra.mxu0 0
      %1902 = vmatprep.subr.bf16.mxu0 0
      %1903 = vmatpush1.bf16.msra.mxu0 0
      %1904 = vmatprep.subr.bf16.mxu0 0
      %1905 = vmatpush1.bf16.msra.mxu0 0
      %1906 = vmatprep.subr.bf16.mxu0 0
      %1907 = vmatpush1.bf16.msra.mxu0 0
      %1908 = vmatprep.subr.bf16.mxu0 0
      %1909 = vmatpush1.bf16.msra.mxu0 0
      %1910 = vmatprep.subr.bf16.mxu0 0
      %1911 = vmatpush1.bf16.msra.mxu0 0
      %1912 = vmatprep.subr.bf16.mxu0 0
      %1913 = vmatpush1.bf16.msra.mxu0 0
      %1914 = vmatprep.subr.bf16.mxu0 0
      %1915 = vmatpush1.bf16.msra.mxu0 0
      %1916 = vmatprep.subr.bf16.mxu0 0
      %1917 = vmatpush1.bf16.msra.mxu0 0
      %1918 = vmatprep.mubr.bf16.mxu0 0
      %1919 = vmatmul.mubr.bf16.gmra.mrb[0].mxu0 %v1881
      %v1920 = vpop.f32.mrb[0].mxu0
      %v1921 = vadd.f32 0.0, %v1920
      %v1922 = vpop.f32.mrb[0].mxu0
      %v1923 = vpop.f32.mrb[0].mxu0
      %v1924 = vadd.f32 0.0, %v1923
      %v1925 = vpop.f32.mrb[0].mxu0
      %1926 = vmatprep.mubr.bf16.mxu0 0
      %1927 = vmatmul.mubr.bf16.gmra.mrb[0].mxu0 %v1884
      %v1928 = vpop.f32.mrb[0].mxu0
      %v1929 = vadd.f32 0.0, %v1928
      %v1930 = vpop.f32.mrb[0].mxu0
      %v1931 = vpop.f32.mrb[0].mxu0
      %v1932 = vpop.f32.mrb[0].mxu0
      %1933 = vdwg.mxu0
      %v1934 = vadd.f32 %v1872, %v1921
      %v1935 = vadd.f32 %v1873, %v1924
      %v1936 = vadd.f32 %v1874, %v1929
      %v1937 = vld [vmem:[%s452 + $0x6] sm:$0xff]
      %v1938 = vld [vmem:[%s452 + $0xe] sm:$0xff]
      %v1939 = vld [vmem:[%s452 + $0x16] sm:$0xf]
      %v1940 = vpack.c.bf16 %v1938, %v1937
      %v1941 = vpack.c.bf16 %v1939, %v1939
      %v1943 = vsel %vm224, %v1940, 0
      %v1946 = vsel %vm224, %v1941, 0
      %1948 = vmatprep.subr.bf16.mxu0 0
      %1949 = vmatpush1.bf16.msra.mxu0 %v959
      %1950 = vmatprep.subr.bf16.mxu0 0
      %1951 = vmatpush1.bf16.msra.mxu0 %v960
      %1952 = vmatprep.subr.bf16.mxu0 0
      %1953 = vmatpush1.bf16.msra.mxu0 %v961
      %1954 = vmatprep.subr.bf16.mxu0 0
      %1955 = vmatpush1.bf16.msra.mxu0 %v962
      %1956 = vmatprep.subr.bf16.mxu0 0
      %1957 = vmatpush1.bf16.msra.mxu0 0
      %1958 = vmatprep.subr.bf16.mxu0 0
      %1959 = vmatpush1.bf16.msra.mxu0 0
      %1960 = vmatprep.subr.bf16.mxu0 0
      %1961 = vmatpush1.bf16.msra.mxu0 0
      %1962 = vmatprep.subr.bf16.mxu0 0
      %1963 = vmatpush1.bf16.msra.mxu0 0
      %1964 = vmatprep.subr.bf16.mxu0 0
      %1965 = vmatpush1.bf16.msra.mxu0 0
      %1966 = vmatprep.subr.bf16.mxu0 0
      %1967 = vmatpush1.bf16.msra.mxu0 0
      %1968 = vmatprep.subr.bf16.mxu0 0
      %1969 = vmatpush1.bf16.msra.mxu0 0
      %1970 = vmatprep.subr.bf16.mxu0 0
      %1971 = vmatpush1.bf16.msra.mxu0 0
      %1972 = vmatprep.subr.bf16.mxu0 0
      %1973 = vmatpush1.bf16.msra.mxu0 0
      %1974 = vmatprep.subr.bf16.mxu0 0
      %1975 = vmatpush1.bf16.msra.mxu0 0
      %1976 = vmatprep.subr.bf16.mxu0 0
      %1977 = vmatpush1.bf16.msra.mxu0 0
      %1978 = vmatprep.subr.bf16.mxu0 0
      %1979 = vmatpush1.bf16.msra.mxu0 0
      %1980 = vmatprep.mubr.bf16.mxu0 0
      %1981 = vmatmul.mubr.bf16.gmra.mrb[0].mxu0 %v1943
      %v1982 = vpop.f32.mrb[0].mxu0
      %v1983 = vadd.f32 0.0, %v1982
      %v1984 = vpop.f32.mrb[0].mxu0
      %v1985 = vpop.f32.mrb[0].mxu0
      %v1986 = vadd.f32 0.0, %v1985
      %v1987 = vpop.f32.mrb[0].mxu0
      %1988 = vmatprep.mubr.bf16.mxu0 0
      %1989 = vmatmul.mubr.bf16.gmra.mrb[0].mxu0 %v1946
      %v1990 = vpop.f32.mrb[0].mxu0
      %v1991 = vadd.f32 0.0, %v1990
      %v1992 = vpop.f32.mrb[0].mxu0
      %v1993 = vpop.f32.mrb[0].mxu0
      %v1994 = vpop.f32.mrb[0].mxu0
      %1995 = vdwg.mxu0
      %v1996 = vadd.f32 %v1934, %v1983
      %v1997 = vadd.f32 %v1935, %v1986
      %v1998 = vadd.f32 %v1936, %v1991
      %v1999 = vmax.f32 %v1510, %v1996
      %v2000 = vmax.f32 %v1511, %v1997
      %v2001 = vmax.f32 %v1512, %v1998
      %2002 = vmatprep.subr.bf16.mxu0 0
      %2003 = vmatpush1.bf16.msra.mxu0 %v216
      %2004 = vmatprep.subr.bf16.mxu0 0
      %2005 = vmatpush1.bf16.msra.mxu0 %v217
      %2006 = vmatprep.subr.bf16.mxu0 0
      %2007 = vmatpush1.bf16.msra.mxu0 %v218
      %2008 = vmatprep.subr.bf16.mxu0 0
      %2009 = vmatpush1.bf16.msra.mxu0 %v219
      %2010 = vmatprep.subr.bf16.mxu0 0
      %2011 = vmatpush1.bf16.msra.mxu0 0
      %2012 = vmatprep.subr.bf16.mxu0 0
      %2013 = vmatpush1.bf16.msra.mxu0 0
      %2014 = vmatprep.subr.bf16.mxu0 0
      %2015 = vmatpush1.bf16.msra.mxu0 0
      %2016 = vmatprep.subr.bf16.mxu0 0
      %2017 = vmatpush1.bf16.msra.mxu0 0
      %2018 = vmatprep.subr.bf16.mxu0 0
      %2019 = vmatpush1.bf16.msra.mxu0 0
      %2020 = vmatprep.subr.bf16.mxu0 0
      %2021 = vmatpush1.bf16.msra.mxu0 0
      %2022 = vmatprep.subr.bf16.mxu0 0
      %2023 = vmatpush1.bf16.msra.mxu0 0
      %2024 = vmatprep.subr.bf16.mxu0 0
      %2025 = vmatpush1.bf16.msra.mxu0 0
      %2026 = vmatprep.subr.bf16.mxu0 0
      %2027 = vmatpush1.bf16.msra.mxu0 0
      %2028 = vmatprep.subr.bf16.mxu0 0
      %2029 = vmatpush1.bf16.msra.mxu0 0
      %2030 = vmatprep.subr.bf16.mxu0 0
      %2031 = vmatpush1.bf16.msra.mxu0 0
      %2032 = vmatprep.subr.bf16.mxu0 0
      %2033 = vmatpush1.bf16.msra.mxu0 0
      %2034 = vmatprep.mubr.bf16.mxu0 0
      %2035 = vmatmul.mubr.bf16.gmra.mrb[0].mxu0 %v683
      %v2036 = vpop.f32.mrb[0].mxu0
      %v2037 = vadd.f32 0.0, %v2036
      %v2038 = vpop.f32.mrb[0].mxu0
      %v2039 = vpop.f32.mrb[0].mxu0
      %v2040 = vadd.f32 0.0, %v2039
      %v2041 = vpop.f32.mrb[0].mxu0
      %2042 = vmatprep.mubr.bf16.mxu0 0
      %2043 = vmatmul.mubr.bf16.gmra.mrb[0].mxu0 %v686
      %v2044 = vpop.f32.mrb[0].mxu0
      %v2045 = vadd.f32 0.0, %v2044
      %v2046 = vpop.f32.mrb[0].mxu0
      %v2047 = vpop.f32.mrb[0].mxu0
      %v2048 = vpop.f32.mrb[0].mxu0
      %2049 = vdwg.mxu0
      %2050 = vmatprep.subr.bf16.mxu0 0
      %2051 = vmatpush1.bf16.msra.mxu0 %v295
      %2052 = vmatprep.subr.bf16.mxu0 0
      %2053 = vmatpush1.bf16.msra.mxu0 %v296
      %2054 = vmatprep.subr.bf16.mxu0 0
      %2055 = vmatpush1.bf16.msra.mxu0 %v297
      %2056 = vmatprep.subr.bf16.mxu0 0
      %2057 = vmatpush1.bf16.msra.mxu0 %v298
      %2058 = vmatprep.subr.bf16.mxu0 0
      %2059 = vmatpush1.bf16.msra.mxu0 0
      %2060 = vmatprep.subr.bf16.mxu0 0
      %2061 = vmatpush1.bf16.msra.mxu0 0
      %2062 = vmatprep.subr.bf16.mxu0 0
      %2063 = vmatpush1.bf16.msra.mxu0 0
      %2064 = vmatprep.subr.bf16.mxu0 0
      %2065 = vmatpush1.bf16.msra.mxu0 0
      %2066 = vmatprep.subr.bf16.mxu0 0
      %2067 = vmatpush1.bf16.msra.mxu0 0
      %2068 = vmatprep.subr.bf16.mxu0 0
      %2069 = vmatpush1.bf16.msra.mxu0 0
      %2070 = vmatprep.subr.bf16.mxu0 0
      %2071 = vmatpush1.bf16.msra.mxu0 0
      %2072 = vmatprep.subr.bf16.mxu0 0
      %2073 = vmatpush1.bf16.msra.mxu0 0
      %2074 = vmatprep.subr.bf16.mxu0 0
      %2075 = vmatpush1.bf16.msra.mxu0 0
      %2076 = vmatprep.subr.bf16.mxu0 0
      %2077 = vmatpush1.bf16.msra.mxu0 0
      %2078 = vmatprep.subr.bf16.mxu0 0
      %2079 = vmatpush1.bf16.msra.mxu0 0
      %2080 = vmatprep.subr.bf16.mxu0 0
      %2081 = vmatpush1.bf16.msra.mxu0 0
      %2082 = vmatprep.mubr.bf16.mxu0 0
      %2083 = vmatmul.mubr.bf16.gmra.mrb[0].mxu0 %v588
      %v2084 = vpop.f32.mrb[0].mxu0
      %v2085 = vadd.f32 %v2037, %v2084
      %v2086 = vpop.f32.mrb[0].mxu0
      %v2087 = vpop.f32.mrb[0].mxu0
      %v2088 = vadd.f32 %v2040, %v2087
      %v2089 = vpop.f32.mrb[0].mxu0
      %2090 = vmatprep.mubr.bf16.mxu0 0
      %2091 = vmatmul.mubr.bf16.gmra.mrb[0].mxu0 %v591
      %v2092 = vpop.f32.mrb[0].mxu0
      %v2093 = vadd.f32 %v2045, %v2092
      %v2094 = vpop.f32.mrb[0].mxu0
      %v2095 = vpop.f32.mrb[0].mxu0
      %v2096 = vpop.f32.mrb[0].mxu0
      %2097 = vdwg.mxu0
      %2098 = vmatprep.subr.bf16.mxu0 0
      %2099 = vmatpush1.bf16.msra.mxu0 %v387
      %2100 = vmatprep.subr.bf16.mxu0 0
      %2101 = vmatpush1.bf16.msra.mxu0 %v388
      %2102 = vmatprep.subr.bf16.mxu0 0
      %2103 = vmatpush1.bf16.msra.mxu0 %v389
      %2104 = vmatprep.subr.bf16.mxu0 0
      %2105 = vmatpush1.bf16.msra.mxu0 %v390
      %2106 = vmatprep.subr.bf16.mxu0 0
      %2107 = vmatpush1.bf16.msra.mxu0 0
      %2108 = vmatprep.subr.bf16.mxu0 0
      %2109 = vmatpush1.bf16.msra.mxu0 0
      %2110 = vmatprep.subr.bf16.mxu0 0
      %2111 = vmatpush1.bf16.msra.mxu0 0
      %2112 = vmatprep.subr.bf16.mxu0 0
      %2113 = vmatpush1.bf16.msra.mxu0 0
      %2114 = vmatprep.subr.bf16.mxu0 0
      %2115 = vmatpush1.bf16.msra.mxu0 0
      %2116 = vmatprep.subr.bf16.mxu0 0
      %2117 = vmatpush1.bf16.msra.mxu0 0
      %2118 = vmatprep.subr.bf16.mxu0 0
      %2119 = vmatpush1.bf16.msra.mxu0 0
      %2120 = vmatprep.subr.bf16.mxu0 0
      %2121 = vmatpush1.bf16.msra.mxu0 0
      %2122 = vmatprep.subr.bf16.mxu0 0
      %2123 = vmatpush1.bf16.msra.mxu0 0
      %2124 = vmatprep.subr.bf16.mxu0 0
      %2125 = vmatpush1.bf16.msra.mxu0 0
      %2126 = vmatprep.subr.bf16.mxu0 0
      %2127 = vmatpush1.bf16.msra.mxu0 0
      %2128 = vmatprep.subr.bf16.mxu0 0
      %2129 = vmatpush1.bf16.msra.mxu0 0
      %2130 = vmatprep.mubr.bf16.mxu0 0
      %2131 = vmatmul.mubr.bf16.gmra.mrb[0].mxu0 %v1290
      %v2132 = vpop.f32.mrb[0].mxu0
      %v2133 = vadd.f32 0.0, %v2132
      %v2134 = vpop.f32.mrb[0].mxu0
      %v2135 = vpop.f32.mrb[0].mxu0
      %v2136 = vadd.f32 0.0, %v2135
      %v2137 = vpop.f32.mrb[0].mxu0
      %2138 = vmatprep.mubr.bf16.mxu0 0
      %2139 = vmatmul.mubr.bf16.gmra.mrb[0].mxu0 %v1293
      %v2140 = vpop.f32.mrb[0].mxu0
      %v2141 = vadd.f32 0.0, %v2140
      %v2142 = vpop.f32.mrb[0].mxu0
      %v2143 = vpop.f32.mrb[0].mxu0
      %v2144 = vpop.f32.mrb[0].mxu0
      %2145 = vdwg.mxu0
      %v2146 = vadd.f32 %v2085, %v2133
      %v2147 = vadd.f32 %v2088, %v2136
      %v2148 = vadd.f32 %v2093, %v2141
      %2149 = vmatprep.subr.bf16.mxu0 0
      %2150 = vmatpush1.bf16.msra.mxu0 %v483
      %2151 = vmatprep.subr.bf16.mxu0 0
      %2152 = vmatpush1.bf16.msra.mxu0 %v484
      %2153 = vmatprep.subr.bf16.mxu0 0
      %2154 = vmatpush1.bf16.msra.mxu0 %v485
      %2155 = vmatprep.subr.bf16.mxu0 0
      %2156 = vmatpush1.bf16.msra.mxu0 %v486
      %2157 = vmatprep.subr.bf16.mxu0 0
      %2158 = vmatpush1.bf16.msra.mxu0 0
      %2159 = vmatprep.subr.bf16.mxu0 0
      %2160 = vmatpush1.bf16.msra.mxu0 0
      %2161 = vmatprep.subr.bf16.mxu0 0
      %2162 = vmatpush1.bf16.msra.mxu0 0
      %2163 = vmatprep.subr.bf16.mxu0 0
      %2164 = vmatpush1.bf16.msra.mxu0 0
      %2165 = vmatprep.subr.bf16.mxu0 0
      %2166 = vmatpush1.bf16.msra.mxu0 0
      %2167 = vmatprep.subr.bf16.mxu0 0
      %2168 = vmatpush1.bf16.msra.mxu0 0
      %2169 = vmatprep.subr.bf16.mxu0 0
      %2170 = vmatpush1.bf16.msra.mxu0 0
      %2171 = vmatprep.subr.bf16.mxu0 0
      %2172 = vmatpush1.bf16.msra.mxu0 0
      %2173 = vmatprep.subr.bf16.mxu0 0
      %2174 = vmatpush1.bf16.msra.mxu0 0
      %2175 = vmatprep.subr.bf16.mxu0 0
      %2176 = vmatpush1.bf16.msra.mxu0 0
      %2177 = vmatprep.subr.bf16.mxu0 0
      %2178 = vmatpush1.bf16.msra.mxu0 0
      %2179 = vmatprep.subr.bf16.mxu0 0
      %2180 = vmatpush1.bf16.msra.mxu0 0
      %2181 = vmatprep.mubr.bf16.mxu0 0
      %2182 = vmatmul.mubr.bf16.gmra.mrb[0].mxu0 %v873
      %v2183 = vpop.f32.mrb[0].mxu0
      %v2184 = vadd.f32 0.0, %v2183
      %v2185 = vpop.f32.mrb[0].mxu0
      %v2186 = vpop.f32.mrb[0].mxu0
      %v2187 = vadd.f32 0.0, %v2186
      %v2188 = vpop.f32.mrb[0].mxu0
      %2189 = vmatprep.mubr.bf16.mxu0 0
      %2190 = vmatmul.mubr.bf16.gmra.mrb[0].mxu0 %v876
      %v2191 = vpop.f32.mrb[0].mxu0
      %v2192 = vadd.f32 0.0, %v2191
      %v2193 = vpop.f32.mrb[0].mxu0
      %v2194 = vpop.f32.mrb[0].mxu0
      %v2195 = vpop.f32.mrb[0].mxu0
      %2196 = vdwg.mxu0
      %v2197 = vadd.f32 %v2146, %v2184
      %v2198 = vadd.f32 %v2147, %v2187
      %v2199 = vadd.f32 %v2148, %v2192
      %2200 = vmatprep.subr.bf16.mxu0 0
      %2201 = vmatpush1.bf16.msra.mxu0 %v579
      %2202 = vmatprep.subr.bf16.mxu0 0
      %2203 = vmatpush1.bf16.msra.mxu0 %v580
      %2204 = vmatprep.subr.bf16.mxu0 0
      %2205 = vmatpush1.bf16.msra.mxu0 %v581
      %2206 = vmatprep.subr.bf16.mxu0 0
      %2207 = vmatpush1.bf16.msra.mxu0 %v582
      %2208 = vmatprep.subr.bf16.mxu0 0
      %2209 = vmatpush1.bf16.msra.mxu0 0
      %2210 = vmatprep.subr.bf16.mxu0 0
      %2211 = vmatpush1.bf16.msra.mxu0 0
      %2212 = vmatprep.subr.bf16.mxu0 0
      %2213 = vmatpush1.bf16.msra.mxu0 0
      %2214 = vmatprep.subr.bf16.mxu0 0
      %2215 = vmatpush1.bf16.msra.mxu0 0
      %2216 = vmatprep.subr.bf16.mxu0 0
      %2217 = vmatpush1.bf16.msra.mxu0 0
      %2218 = vmatprep.subr.bf16.mxu0 0
      %2219 = vmatpush1.bf16.msra.mxu0 0
      %2220 = vmatprep.subr.bf16.mxu0 0
      %2221 = vmatpush1.bf16.msra.mxu0 0
      %2222 = vmatprep.subr.bf16.mxu0 0
      %2223 = vmatpush1.bf16.msra.mxu0 0
      %2224 = vmatprep.subr.bf16.mxu0 0
      %2225 = vmatpush1.bf16.msra.mxu0 0
      %2226 = vmatprep.subr.bf16.mxu0 0
      %2227 = vmatpush1.bf16.msra.mxu0 0
      %2228 = vmatprep.subr.bf16.mxu0 0
      %2229 = vmatpush1.bf16.msra.mxu0 0
      %2230 = vmatprep.subr.bf16.mxu0 0
      %2231 = vmatpush1.bf16.msra.mxu0 0
      %2232 = vmatprep.mubr.bf16.mxu0 0
      %2233 = vmatmul.mubr.bf16.gmra.mrb[0].mxu0 %v968
      %v2234 = vpop.f32.mrb[0].mxu0
      %v2235 = vadd.f32 0.0, %v2234
      %v2236 = vpop.f32.mrb[0].mxu0
      %v2237 = vpop.f32.mrb[0].mxu0
      %v2238 = vadd.f32 0.0, %v2237
      %v2239 = vpop.f32.mrb[0].mxu0
      %2240 = vmatprep.mubr.bf16.mxu0 0
      %2241 = vmatmul.mubr.bf16.gmra.mrb[0].mxu0 %v971
      %v2242 = vpop.f32.mrb[0].mxu0
      %v2243 = vadd.f32 0.0, %v2242
      %v2244 = vpop.f32.mrb[0].mxu0
      %v2245 = vpop.f32.mrb[0].mxu0
      %v2246 = vpop.f32.mrb[0].mxu0
      %2247 = vdwg.mxu0
      %v2248 = vadd.f32 %v2197, %v2235
      %v2249 = vadd.f32 %v2198, %v2238
      %v2250 = vadd.f32 %v2199, %v2243
      %2251 = vmatprep.subr.bf16.mxu0 0
      %2252 = vmatpush1.bf16.msra.mxu0 %v674
      %2253 = vmatprep.subr.bf16.mxu0 0
      %2254 = vmatpush1.bf16.msra.mxu0 %v675
      %2255 = vmatprep.subr.bf16.mxu0 0
      %2256 = vmatpush1.bf16.msra.mxu0 %v676
      %2257 = vmatprep.subr.bf16.mxu0 0
      %2258 = vmatpush1.bf16.msra.mxu0 %v677
      %2259 = vmatprep.subr.bf16.mxu0 0
      %2260 = vmatpush1.bf16.msra.mxu0 0
      %2261 = vmatprep.subr.bf16.mxu0 0
      %2262 = vmatpush1.bf16.msra.mxu0 0
      %2263 = vmatprep.subr.bf16.mxu0 0
      %2264 = vmatpush1.bf16.msra.mxu0 0
      %2265 = vmatprep.subr.bf16.mxu0 0
      %2266 = vmatpush1.bf16.msra.mxu0 0
      %2267 = vmatprep.subr.bf16.mxu0 0
      %2268 = vmatpush1.bf16.msra.mxu0 0
      %2269 = vmatprep.subr.bf16.mxu0 0
      %2270 = vmatpush1.bf16.msra.mxu0 0
      %2271 = vmatprep.subr.bf16.mxu0 0
      %2272 = vmatpush1.bf16.msra.mxu0 0
      %2273 = vmatprep.subr.bf16.mxu0 0
      %2274 = vmatpush1.bf16.msra.mxu0 0
      %2275 = vmatprep.subr.bf16.mxu0 0
      %2276 = vmatpush1.bf16.msra.mxu0 0
      %2277 = vmatprep.subr.bf16.mxu0 0
      %2278 = vmatpush1.bf16.msra.mxu0 0
      %2279 = vmatprep.subr.bf16.mxu0 0
      %2280 = vmatpush1.bf16.msra.mxu0 0
      %2281 = vmatprep.subr.bf16.mxu0 0
      %2282 = vmatpush1.bf16.msra.mxu0 0
      %2283 = vmatprep.mubr.bf16.mxu0 0
      %2284 = vmatmul.mubr.bf16.gmra.mrb[0].mxu0 %v1454
      %v2285 = vpop.f32.mrb[0].mxu0
      %v2286 = vadd.f32 0.0, %v2285
      %v2287 = vpop.f32.mrb[0].mxu0
      %v2288 = vpop.f32.mrb[0].mxu0
      %v2289 = vadd.f32 0.0, %v2288
      %v2290 = vpop.f32.mrb[0].mxu0
      %2291 = vmatprep.mubr.bf16.mxu0 0
      %2292 = vmatmul.mubr.bf16.gmra.mrb[0].mxu0 %v1457
      %v2293 = vpop.f32.mrb[0].mxu0
      %v2294 = vadd.f32 0.0, %v2293
      %v2295 = vpop.f32.mrb[0].mxu0
      %v2296 = vpop.f32.mrb[0].mxu0
      %v2297 = vpop.f32.mrb[0].mxu0
      %2298 = vdwg.mxu0
      %v2299 = vadd.f32 %v2248, %v2286
      %v2300 = vadd.f32 %v2249, %v2289
      %v2301 = vadd.f32 %v2250, %v2294
      %2302 = vmatprep.subr.bf16.mxu0 0
      %2303 = vmatpush1.bf16.msra.mxu0 %v769
      %2304 = vmatprep.subr.bf16.mxu0 0
      %2305 = vmatpush1.bf16.msra.mxu0 %v770
      %2306 = vmatprep.subr.bf16.mxu0 0
      %2307 = vmatpush1.bf16.msra.mxu0 %v771
      %2308 = vmatprep.subr.bf16.mxu0 0
      %2309 = vmatpush1.bf16.msra.mxu0 %v772
      %2310 = vmatprep.subr.bf16.mxu0 0
      %2311 = vmatpush1.bf16.msra.mxu0 0
      %2312 = vmatprep.subr.bf16.mxu0 0
      %2313 = vmatpush1.bf16.msra.mxu0 0
      %2314 = vmatprep.subr.bf16.mxu0 0
      %2315 = vmatpush1.bf16.msra.mxu0 0
      %2316 = vmatprep.subr.bf16.mxu0 0
      %2317 = vmatpush1.bf16.msra.mxu0 0
      %2318 = vmatprep.subr.bf16.mxu0 0
      %2319 = vmatpush1.bf16.msra.mxu0 0
      %2320 = vmatprep.subr.bf16.mxu0 0
      %2321 = vmatpush1.bf16.msra.mxu0 0
      %2322 = vmatprep.subr.bf16.mxu0 0
      %2323 = vmatpush1.bf16.msra.mxu0 0
      %2324 = vmatprep.subr.bf16.mxu0 0
      %2325 = vmatpush1.bf16.msra.mxu0 0
      %2326 = vmatprep.subr.bf16.mxu0 0
      %2327 = vmatpush1.bf16.msra.mxu0 0
      %2328 = vmatprep.subr.bf16.mxu0 0
      %2329 = vmatpush1.bf16.msra.mxu0 0
      %2330 = vmatprep.subr.bf16.mxu0 0
      %2331 = vmatpush1.bf16.msra.mxu0 0
      %2332 = vmatprep.subr.bf16.mxu0 0
      %2333 = vmatpush1.bf16.msra.mxu0 0
      %2334 = vmatprep.mubr.bf16.mxu0 0
      %2335 = vmatmul.mubr.bf16.gmra.mrb[0].mxu0 %v1881
      %v2336 = vpop.f32.mrb[0].mxu0
      %v2337 = vadd.f32 0.0, %v2336
      %v2338 = vpop.f32.mrb[0].mxu0
      %v2339 = vpop.f32.mrb[0].mxu0
      %v2340 = vadd.f32 0.0, %v2339
      %v2341 = vpop.f32.mrb[0].mxu0
      %2342 = vmatprep.mubr.bf16.mxu0 0
      %2343 = vmatmul.mubr.bf16.gmra.mrb[0].mxu0 %v1884
      %v2344 = vpop.f32.mrb[0].mxu0
      %v2345 = vadd.f32 0.0, %v2344
      %v2346 = vpop.f32.mrb[0].mxu0
      %v2347 = vpop.f32.mrb[0].mxu0
      %v2348 = vpop.f32.mrb[0].mxu0
      %2349 = vdwg.mxu0
      %v2350 = vadd.f32 %v2299, %v2337
      %v2351 = vadd.f32 %v2300, %v2340
      %v2352 = vadd.f32 %v2301, %v2345
      %2353 = vmatprep.subr.bf16.mxu0 0
      %2354 = vmatpush1.bf16.msra.mxu0 %v864
      %2355 = vmatprep.subr.bf16.mxu0 0
      %2356 = vmatpush1.bf16.msra.mxu0 %v865
      %2357 = vmatprep.subr.bf16.mxu0 0
      %2358 = vmatpush1.bf16.msra.mxu0 %v866
      %2359 = vmatprep.subr.bf16.mxu0 0
      %2360 = vmatpush1.bf16.msra.mxu0 %v867
      %2361 = vmatprep.subr.bf16.mxu0 0
      %2362 = vmatpush1.bf16.msra.mxu0 0
      %2363 = vmatprep.subr.bf16.mxu0 0
      %2364 = vmatpush1.bf16.msra.mxu0 0
      %2365 = vmatprep.subr.bf16.mxu0 0
      %2366 = vmatpush1.bf16.msra.mxu0 0
      %2367 = vmatprep.subr.bf16.mxu0 0
      %2368 = vmatpush1.bf16.msra.mxu0 0
      %2369 = vmatprep.subr.bf16.mxu0 0
      %2370 = vmatpush1.bf16.msra.mxu0 0
      %2371 = vmatprep.subr.bf16.mxu0 0
      %2372 = vmatpush1.bf16.msra.mxu0 0
      %2373 = vmatprep.subr.bf16.mxu0 0
      %2374 = vmatpush1.bf16.msra.mxu0 0
      %2375 = vmatprep.subr.bf16.mxu0 0
      %2376 = vmatpush1.bf16.msra.mxu0 0
      %2377 = vmatprep.subr.bf16.mxu0 0
      %2378 = vmatpush1.bf16.msra.mxu0 0
      %2379 = vmatprep.subr.bf16.mxu0 0
      %2380 = vmatpush1.bf16.msra.mxu0 0
      %2381 = vmatprep.subr.bf16.mxu0 0
      %2382 = vmatpush1.bf16.msra.mxu0 0
      %2383 = vmatprep.subr.bf16.mxu0 0
      %2384 = vmatpush1.bf16.msra.mxu0 0
      %2385 = vmatprep.mubr.bf16.mxu0 0
      %2386 = vmatmul.mubr.bf16.gmra.mrb[0].mxu0 %v1943
      %v2387 = vpop.f32.mrb[0].mxu0
      %v2388 = vadd.f32 0.0, %v2387
      %v2389 = vpop.f32.mrb[0].mxu0
      %v2390 = vpop.f32.mrb[0].mxu0
      %v2391 = vadd.f32 0.0, %v2390
      %v2392 = vpop.f32.mrb[0].mxu0
      %2393 = vmatprep.mubr.bf16.mxu0 0
      %2394 = vmatmul.mubr.bf16.gmra.mrb[0].mxu0 %v1946
      %v2395 = vpop.f32.mrb[0].mxu0
      %v2396 = vadd.f32 0.0, %v2395
      %v2397 = vpop.f32.mrb[0].mxu0
      %v2398 = vpop.f32.mrb[0].mxu0
      %v2399 = vpop.f32.mrb[0].mxu0
      %2400 = vdwg.mxu0
      %v2401 = vadd.f32 %v2350, %v2388
      %v2402 = vadd.f32 %v2351, %v2391
      %v2403 = vadd.f32 %v2352, %v2396
      %v2404 = vld [vmem:[%s548 + $0x6] sm:$0xff]
      %v2405 = vld [vmem:[%s548 + $0xe] sm:$0xff]
      %v2406 = vld [vmem:[%s548 + $0x16] sm:$0xf]
      %v2407 = vpack.c.bf16 %v2405, %v2404
      %v2408 = vpack.c.bf16 %v2406, %v2406
      %v2410 = vsel %vm224, %v2407, 0
      %v2413 = vsel %vm224, %v2408, 0
      %2415 = vmatprep.subr.bf16.mxu0 0
      %2416 = vmatpush1.bf16.msra.mxu0 %v959
      %2417 = vmatprep.subr.bf16.mxu0 0
      %2418 = vmatpush1.bf16.msra.mxu0 %v960
      %2419 = vmatprep.subr.bf16.mxu0 0
      %2420 = vmatpush1.bf16.msra.mxu0 %v961
      %2421 = vmatprep.subr.bf16.mxu0 0
      %2422 = vmatpush1.bf16.msra.mxu0 %v962
      %2423 = vmatprep.subr.bf16.mxu0 0
      %2424 = vmatpush1.bf16.msra.mxu0 0
      %2425 = vmatprep.subr.bf16.mxu0 0
      %2426 = vmatpush1.bf16.msra.mxu0 0
      %2427 = vmatprep.subr.bf16.mxu0 0
      %2428 = vmatpush1.bf16.msra.mxu0 0
      %2429 = vmatprep.subr.bf16.mxu0 0
      %2430 = vmatpush1.bf16.msra.mxu0 0
      %2431 = vmatprep.subr.bf16.mxu0 0
      %2432 = vmatpush1.bf16.msra.mxu0 0
      %2433 = vmatprep.subr.bf16.mxu0 0
      %2434 = vmatpush1.bf16.msra.mxu0 0
      %2435 = vmatprep.subr.bf16.mxu0 0
      %2436 = vmatpush1.bf16.msra.mxu0 0
      %2437 = vmatprep.subr.bf16.mxu0 0
      %2438 = vmatpush1.bf16.msra.mxu0 0
      %2439 = vmatprep.subr.bf16.mxu0 0
      %2440 = vmatpush1.bf16.msra.mxu0 0
      %2441 = vmatprep.subr.bf16.mxu0 0
      %2442 = vmatpush1.bf16.msra.mxu0 0
      %2443 = vmatprep.subr.bf16.mxu0 0
      %2444 = vmatpush1.bf16.msra.mxu0 0
      %2445 = vmatprep.subr.bf16.mxu0 0
      %2446 = vmatpush1.bf16.msra.mxu0 0
      %2447 = vmatprep.mubr.bf16.mxu0 0
      %2448 = vmatmul.mubr.bf16.gmra.mrb[0].mxu0 %v2410
      %v2449 = vpop.f32.mrb[0].mxu0
      %v2450 = vadd.f32 0.0, %v2449
      %v2451 = vpop.f32.mrb[0].mxu0
      %v2452 = vpop.f32.mrb[0].mxu0
      %v2453 = vadd.f32 0.0, %v2452
      %v2454 = vpop.f32.mrb[0].mxu0
      %2455 = vmatprep.mubr.bf16.mxu0 0
      %2456 = vmatmul.mubr.bf16.gmra.mrb[0].mxu0 %v2413
      %v2457 = vpop.f32.mrb[0].mxu0
      %v2458 = vadd.f32 0.0, %v2457
      %v2459 = vpop.f32.mrb[0].mxu0
      %v2460 = vpop.f32.mrb[0].mxu0
      %v2461 = vpop.f32.mrb[0].mxu0
      %2462 = vdwg.mxu0
      %v2463 = vadd.f32 %v2401, %v2450
      %v2464 = vadd.f32 %v2402, %v2453
      %v2465 = vadd.f32 %v2403, %v2458
      %v2466 = vmax.f32 %v1999, %v2463
      %v2467 = vmax.f32 %v2000, %v2464
      %v2468 = vmax.f32 %v2001, %v2465
      %v2469 = vld [vmem:[%s2] sm:$0x1]
      %v2471 = vlaneseq
      %v2472 = vshrl.u32 %v2471, 7
      %v2473 = vsub.s32 0, %v2472
      %v2474 = vrot.slane %v2469, %v2473
      %v2476 = vadd.f32 %v2466, %v2474
      %v2477 = vadd.f32 %v2467, %v2474
      %v2478 = vadd.f32 %v2468, %v2474
      %v2479 = vmax.f32 %v2476, 0.0
      %v2480 = vmax.f32 %v2477, 0.0
      %v2481 = vmax.f32 %v2478, 0.0
      %2482 = vst [vmem:[%s170] sm:$0xff] %v2479
      %2483 = vst [vmem:[%s170 + $0x8] sm:$0xff] %v2480
      %2484 = vst [vmem:[%s170 + $0x10] sm:$0xf] %v2481
      %p2485 = scmp.lt.s32.totalorder %s14, 1
      %s2486 = scalar_select %p2485, %s14, 1
      %s2487 = smul.addr %s2486, 3
      %s2488 = smul.addr %s2487, 8
      %s2489 = scalar_lea.vmem %s3, %s2488
      // Predicated region
      $region33: #{_device_forward.4} parent=31 // pred_check
        %p2490 = pneg %p100
      $region34: #{_device_forward.4} parent=31 // pred_check_branch
        %2492 = sbr.rel (%p2490) target = $region36
      $region35: #{_device_forward.4} parent=31 // pred_region
        _
      $region36: #{_device_forward.4} parent=31 // pred_fallthru
        _
    $region32: #{_device_forward.4} parent=5 // pred_fallthru
      _
    %p2493 = scmp.le.s32.totalorder 2, %s9
    // Predicated region
    $region37: #{_device_forward.4} parent=5 // pred_check
      %p2494 = pneg %p2493
    $region38: #{_device_forward.4} parent=5 // pred_check_branch
      %2496 = sbr.rel (%p2494) target = $region40
    $region39: #{_device_forward.4} parent=5 // pred_region
      %s2497 = ssub.s32 %s9, 2
      // Predicated region
      $region41: #{_device_forward.4} parent=39 // pred_check
        %p2498 = pneg %p106
      $region42: #{_device_forward.4} parent=39 // pred_check_branch
        %2500 = sbr.rel (%p2498) target = $region44
      $region43: #{_device_forward.4} parent=39 // pred_region
        %p2501 = scmp.lt.s32.totalorder %s15, 1
        %s2502 = scalar_select %p2501, %s15, 1
        %s2503 = smul.addr %s2502, 3
        %s2504 = smul.addr %s2503, 8
        %s2505 = scalar_lea.vmem %s3, %s2504
      $region44: #{_device_forward.4} parent=39 // pred_fallthru
        _
    $region40: #{_device_forward.4} parent=5 // pred_fallthru
      _
  $region6: #{_device_forward.4} parent=0 // loop_footer
    %s13 = sadd.s32 1, %s9
  $region7: #{_device_forward.4} parent=0 // loop_footer_branch
    %8 = sbr.rel target = $region3
  $region8: #{_device_forward.4} parent=0 // loop_exit
    _

// kernel: _device_forward.3
$region0: #{_device_forward.3}
  #allocation0 [shape = 'u32[]', space=smem, size = 0x4, offset = 0x4, fixed_abs, tag = 'smem constant byte address 0x4 - core index']
  #allocation1 [shape = 'u32[144,128]{1,0:T(1,128)}', space=vmem, size = 0x12000, scoped, tag = 'internal scratch']
  %s0 = inlined_call_operand.vmem [shape: f32[2,4,88,3], index: 0, kind: input, shape index: {}]
  %s1 = inlined_call_operand.vmem [shape: bf16[9,3,64], index: 1, kind: input, shape index: {}]
  %s2 = inlined_call_operand.vmem [shape: f32[1,64], index: 2, kind: input, shape index: {}]
  %s3 = inlined_call_operand.vmem [shape: f32[2,72,64], index: 3, kind: output, shape index: {}]
  %s4 = sld [smem:[#allocation0]]
  $region45: #{_device_forward.3} parent=0
    _
  %s6 = ssub.s32 1, %s4
  %s7 = scalar_select 0, %s6, %s4
  loop: start=0, step=1, limit=4
  $region2: #{_device_forward.3} parent=0 // loop_pre_header
    _
  $region3: #{_device_forward.3} parent=0 // loop_header
    %s9 = sphi 0, %s13
    %p10 = scmp.ge.s32.totalorder %s9, 4
    %s19 = sphi 0, %s21
    %s22 = sphi 0, %s19
    %s23 = sphi 0, %s22
    %s39 = sphi 0, %s23
    %s43 = sphi 0, %s43
    %s45 = sphi 0, %s43
    %s46 = sphi 0, %s45
    %s60 = sphi 0, %s46
    %s64 = sphi 0, %s64
    %s66 = sphi 0, %s64
    %s67 = sphi 0, %s66
    %s81 = sphi 0, %s67
    %s87 = sphi 0, %s89
    %s90 = sphi 0, %s87
    %s91 = sphi 0, %s90
    %s107 = sphi 0, %s91
  $region4: #{_device_forward.3} parent=0 // loop_header_branch
    %12 = sbr.rel (%p10) target = $region8
  $region5: #{_device_forward.3} parent=0 // loop_body
    %s14 = ssub.s32 %s9, 1
    %s15 = ssub.s32 %s9, 2
    %s16 = sadd.s32 %s9, 1
    %s17 = ssub.s32 %s9, %s16
    %p18 = scmp.eq.s32.totalorder %s17, 0
    %s20 = sadd.s32 %s19, 1
    %s21 = scalar_select %p18, %s19, %s20
    %p24 = pneg %p18
    %p25 = scmp.eq.s32.totalorder %s9, 1
    %p26 = por %p24, %p25
    %p27 = scmp.ne.s32.totalorder %s19, %s22
    %p28 = scmp.eq.s32.totalorder %s9, 0
    %p29 = por %p27, %p28
    %p30 = scmp.ne.s32.totalorder %s19, %s22
    %p31 = scmp.eq.s32.totalorder %s14, 1
    %p32 = por %p30, %p31
    %p33 = scmp.ne.s32.totalorder %s22, %s23
    %p34 = scmp.eq.s32.totalorder %s14, 0
    %p35 = por %p33, %p34
    %p36 = scmp.ne.s32.totalorder %s22, %s23
    %p37 = scmp.eq.s32.totalorder %s15, 1
    %p38 = por %p36, %p37
    %p40 = scmp.ne.s32.totalorder %s23, %s39
    %p41 = scmp.eq.s32.totalorder %s15, 0
    %p42 = por %p40, %p41
    %s44 = sadd.s32 %s43, 1
    %p47 = scmp.eq.s32.totalorder %s9, 1
    %p48 = scmp.ne.s32.totalorder %s43, %s45
    %p49 = scmp.eq.s32.totalorder %s9, 0
    %p50 = por %p48, %p49
    %p51 = scmp.ne.s32.totalorder %s43, %s45
    %p52 = scmp.eq.s32.totalorder %s14, 1
    %p53 = por %p51, %p52
    %p54 = scmp.ne.s32.totalorder %s45, %s46
    %p55 = scmp.eq.s32.totalorder %s14, 0
    %p56 = por %p54, %p55
    %p57 = scmp.ne.s32.totalorder %s45, %s46
    %p58 = scmp.eq.s32.totalorder %s15, 1
    %p59 = por %p57, %p58
    %p61 = scmp.ne.s32.totalorder %s46, %s60
    %p62 = scmp.eq.s32.totalorder %s15, 0
    %p63 = por %p61, %p62
    %s65 = sadd.s32 %s64, 1
    %p68 = scmp.eq.s32.totalorder %s9, 1
    %p69 = scmp.ne.s32.totalorder %s64, %s66
    %p70 = scmp.eq.s32.totalorder %s9, 0
    %p71 = por %p69, %p70
    %p72 = scmp.ne.s32.totalorder %s64, %s66
    %p73 = scmp.eq.s32.totalorder %s14, 1
    %p74 = por %p72, %p73
    %p75 = scmp.ne.s32.totalorder %s66, %s67
    %p76 = scmp.eq.s32.totalorder %s14, 0
    %p77 = por %p75, %p76
    %p78 = scmp.ne.s32.totalorder %s66, %s67
    %p79 = scmp.eq.s32.totalorder %s15, 1
    %p80 = por %p78, %p79
    %p82 = scmp.ne.s32.totalorder %s67, %s81
    %p83 = scmp.eq.s32.totalorder %s15, 0
    %p84 = por %p82, %p83
    %s85 = ssub.s32 %s9, %s16
    %p86 = scmp.eq.s32.totalorder %s85, 0
    %s88 = sadd.s32 %s87, 1
    %s89 = scalar_select %p86, %s87, %s88
    %p92 = pneg %p86
    %p93 = scmp.eq.s32.totalorder %s9, 1
    %p94 = por %p92, %p93
    %p95 = scmp.ne.s32.totalorder %s87, %s90
    %p96 = scmp.eq.s32.totalorder %s9, 0
    %p97 = por %p95, %p96
    %p98 = scmp.ne.s32.totalorder %s87, %s90
    %p99 = scmp.eq.s32.totalorder %s14, 1
    %p100 = por %p98, %p99
    %p101 = scmp.ne.s32.totalorder %s90, %s91
    %p102 = scmp.eq.s32.totalorder %s14, 0
    %p103 = por %p101, %p102
    %p104 = scmp.ne.s32.totalorder %s90, %s91
    %p105 = scmp.eq.s32.totalorder %s15, 1
    %p106 = por %p104, %p105
    %p108 = scmp.ne.s32.totalorder %s91, %s107
    %p109 = scmp.eq.s32.totalorder %s15, 0
    %p110 = por %p108, %p109
    %p111 = scmp.le.s32.totalorder 1, %s9
    %p112 = scmp.lt.s32.totalorder %s9, 3
    %p113 = pnand %p111, %p112
    %p114 = pneg %p113
    // Predicated region
    $region9: #{_device_forward.3} parent=5 // pred_check
      _
    $region10: #{_device_forward.3} parent=5 // pred_check_branch
      %116 = sbr.rel (%p113) target = $region12
    $region11: #{_device_forward.3} parent=5 // pred_region
      %s117 = ssub.s32 %s9, 1
      // Predicated region
      $region13: #{_device_forward.3} parent=11 // pred_check
        %p118 = pneg %p56
      $region14: #{_device_forward.3} parent=11 // pred_check_branch
        %120 = sbr.rel (%p118) target = $region16
      $region15: #{_device_forward.3} parent=11 // pred_region
        _
      $region16: #{_device_forward.3} parent=11 // pred_fallthru
        _
      // Predicated region
      $region17: #{_device_forward.3} parent=11 // pred_check
        %p121 = pneg %p77
      $region18: #{_device_forward.3} parent=11 // pred_check_branch
        %123 = sbr.rel (%p121) target = $region20
      $region19: #{_device_forward.3} parent=11 // pred_region
        _
      $region20: #{_device_forward.3} parent=11 // pred_fallthru
        _
    $region12: #{_device_forward.3} parent=5 // pred_fallthru
      _
    %p124 = scmp.lt.s32.totalorder %s9, 2
    // Predicated region
    $region21: #{_device_forward.3} parent=5 // pred_check
      %p125 = pneg %p124
    $region22: #{_device_forward.3} parent=5 // pred_check_branch
      %127 = sbr.rel (%p125) target = $region24
    $region23: #{_device_forward.3} parent=5 // pred_region
      // Predicated region
      $region25: #{_device_forward.3} parent=23 // pred_check
        %p128 = pneg %p29
      $region26: #{_device_forward.3} parent=23 // pred_check_branch
        %130 = sbr.rel (%p128) target = $region28
      $region27: #{_device_forward.3} parent=23 // pred_region
        %p131 = scmp.lt.s32.totalorder %s9, 1
        %s132 = scalar_select %p131, %s9, 1
        %s133 = smul.addr %s132, 44
        %s134 = smul.addr %s133, 8
        %s135 = scalar_lea.vmem %s0, %s134
      $region28: #{_device_forward.3} parent=23 // pred_fallthru
        _
    $region24: #{_device_forward.3} parent=5 // pred_fallthru
      _
    %p136 = scmp.le.s32.totalorder 1, %s9
    %p137 = scmp.lt.s32.totalorder %s9, 3
    %p138 = pnand %p136, %p137
    %p139 = pneg %p138
    // Predicated region
    $region29: #{_device_forward.3} parent=5 // pred_check
      _
    $region30: #{_device_forward.3} parent=5 // pred_check_branch
      %141 = sbr.rel (%p138) target = $region32
    $region31: #{_device_forward.3} parent=5 // pred_region
      %s142 = ssub.s32 %s9, 1
      %p143 = scmp.lt.s32.totalorder %s14, 1
      %s144 = scalar_select %p143, %s14, 1
      %s145 = smul.addr %s144, 44
      %s146 = smul.addr %s145, 8
      %s147 = scalar_lea.vmem %s0, %s146
      %p148 = pneg %p35
      %p149 = pneg %p32
      %p150 = pneg %p56
      %p151 = pneg %p53
      %p152 = pneg %p77
      %p153 = pneg %p74
      %p154 = pneg %p103
      %p155 = pneg %p100
      %p156 = scmp.lt.s32.totalorder %s14, 1
      %s157 = scalar_select %p156, %s14, 1
      %s158 = smul.addr %s157, 9
      %s159 = smul.addr %s158, 8
      %s160 = scalar_lea.vmem %s3, %s159
      %p161 = scmp.lt.s32.totalorder %s14, 1
      %s162 = scalar_select %p161, %s14, 1
      %s163 = smul.addr %s162, 44
      %s164 = smul.addr %s163, 8
      %s165 = scalar_lea.vmem %s0, %s164
      %p166 = scmp.lt.s32.totalorder %s14, 1
      %s167 = scalar_select %p166, %s14, 1
      %s168 = smul.addr %s167, 9
      %s169 = smul.addr %s168, 8
      %s170 = scalar_lea.vmem %s3, %s169
      %v172 = vld [vmem:[%s165] sm:$0xff]
      %v173 = vld [vmem:[%s165 + $0x8] sm:$0xff]
      %v174 = vld [vmem:[%s165 + $0x10] sm:$0xff]
      %v175 = vld [vmem:[%s165 + $0x18] sm:$0xff]
      %v176 = vld [vmem:[%s165 + $0x20] sm:$0xff]
      %v177 = vld [vmem:[%s165 + $0x28] sm:$0xff]
      %v178 = vld [vmem:[%s165 + $0x30] sm:$0xff]
      %v179 = vld [vmem:[%s165 + $0x38] sm:$0xff]
      %v180 = vld [vmem:[%s165 + $0x40] sm:$0xff]
      %v181 = vpack.c.bf16 %v173, %v172
      %v182 = vpack.c.bf16 %v175, %v174
      %v183 = vpack.c.bf16 %v177, %v176
      %v184 = vpack.c.bf16 %v179, %v178
      %v185 = vpack.c.bf16 %v180, %v180
      %v186 = vld [vmem:[%s1] sm:$0x3]
      %s187 = scalar_lea.vmem %s165, 88
      %v188 = vld [vmem:[%s187] sm:$0xff]
      %v189 = vld [vmem:[%s187 + $0x8] sm:$0xff]
      %v190 = vld [vmem:[%s187 + $0x10] sm:$0xff]
      %v191 = vld [vmem:[%s187 + $0x18] sm:$0xff]
      %v192 = vld [vmem:[%s187 + $0x20] sm:$0xff]
      %v193 = vld [vmem:[%s187 + $0x28] sm:$0xff]
      %v194 = vld [vmem:[%s187 + $0x30] sm:$0xff]
      %v195 = vld [vmem:[%s187 + $0x38] sm:$0xff]
      %v196 = vld [vmem:[%s187 + $0x40] sm:$0xff]
      %v197 = vpack.c.bf16 %v189, %v188
      %v198 = vpack.c.bf16 %v191, %v190
      %v199 = vpack.c.bf16 %v193, %v192
      %v200 = vpack.c.bf16 %v195, %v194
      %v201 = vpack.c.bf16 %v196, %v196
      %s202 = scalar_lea.vmem %s1, 2
      %v203 = vld [vmem:[%s202] sm:$0x3]
      %vm204 = vcmask 23552
      %v206 = vsel %vm204, %v197, 0
      %v209 = vsel %vm204, %v198, 0
      %v212 = vsel %vm204, %v199, 0
      %v215 = vsel %vm204, %v200, 0
      %v218 = vsel %vm204, %v201, 0
      %vm220 = vcmask 1040384
      %vm221 = vcmask 1041408
      %v222 = vsel %vm220, 4294967295, 65535
      %v223 = vsel %vm221, %v222, 0
      %v225 = vand.u32 %v203, %v223
      %227 = vmatprep.subr.bf16.mxu0 0
      %228 = vmatpush1.bf16.msra.mxu0 %v225
      %229 = vmatprep.subr.bf16.mxu0 0
      %230 = vmatpush1.bf16.msra.mxu0 0
      %231 = vmatprep.subr.bf16.mxu0 0
      %232 = vmatpush1.bf16.msra.mxu0 0
      %233 = vmatprep.subr.bf16.mxu0 0
      %234 = vmatpush1.bf16.msra.mxu0 0
      %235 = vmatprep.subr.bf16.mxu0 0
      %236 = vmatpush1.bf16.msra.mxu0 0
      %237 = vmatprep.subr.bf16.mxu0 0
      %238 = vmatpush1.bf16.msra.mxu0 0
      %239 = vmatprep.subr.bf16.mxu0 0
      %240 = vmatpush1.bf16.msra.mxu0 0
      %241 = vmatprep.subr.bf16.mxu0 0
      %242 = vmatpush1.bf16.msra.mxu0 0
      %243 = vmatprep.subr.bf16.mxu0 0
      %244 = vmatpush1.bf16.msra.mxu0 0
      %245 = vmatprep.subr.bf16.mxu0 0
      %246 = vmatpush1.bf16.msra.mxu0 0
      %247 = vmatprep.subr.bf16.mxu0 0
      %248 = vmatpush1.bf16.msra.mxu0 0
      %249 = vmatprep.subr.bf16.mxu0 0
      %250 = vmatpush1.bf16.msra.mxu0 0
      %251 = vmatprep.subr.bf16.mxu0 0
      %252 = vmatpush1.bf16.msra.mxu0 0
      %253 = vmatprep.subr.bf16.mxu0 0
      %254 = vmatpush1.bf16.msra.mxu0 0
      %255 = vmatprep.subr.bf16.mxu0 0
      %256 = vmatpush1.bf16.msra.mxu0 0
      %257 = vmatprep.subr.bf16.mxu0 0
      %258 = vmatpush1.bf16.msra.mxu0 0
      %259 = vmatprep.mubr.bf16.mxu0 0
      %260 = vmatmul.mubr.bf16.gmra.mrb[0].mxu0 %v206
      %v261 = vpop.f32.mrb[0].mxu0
      %v262 = vadd.f32 0.0, %v261
      %v263 = vpop.f32.mrb[0].mxu0
      %v264 = vpop.f32.mrb[0].mxu0
      %v265 = vadd.f32 0.0, %v264
      %v266 = vpop.f32.mrb[0].mxu0
      %267 = vmatprep.mubr.bf16.mxu0 0
      %268 = vmatmul.mubr.bf16.gmra.mrb[0].mxu0 %v209
      %v269 = vpop.f32.mrb[0].mxu0
      %v270 = vadd.f32 0.0, %v269
      %v271 = vpop.f32.mrb[0].mxu0
      %v272 = vpop.f32.mrb[0].mxu0
      %v273 = vadd.f32 0.0, %v272
      %v274 = vpop.f32.mrb[0].mxu0
      %275 = vmatprep.mubr.bf16.mxu0 0
      %276 = vmatmul.mubr.bf16.gmra.mrb[0].mxu0 %v212
      %v277 = vpop.f32.mrb[0].mxu0
      %v278 = vadd.f32 0.0, %v277
      %v279 = vpop.f32.mrb[0].mxu0
      %v280 = vpop.f32.mrb[0].mxu0
      %v281 = vadd.f32 0.0, %v280
      %v282 = vpop.f32.mrb[0].mxu0
      %283 = vmatprep.mubr.bf16.mxu0 0
      %284 = vmatmul.mubr.bf16.gmra.mrb[0].mxu0 %v215
      %v285 = vpop.f32.mrb[0].mxu0
      %v286 = vadd.f32 0.0, %v285
      %v287 = vpop.f32.mrb[0].mxu0
      %v288 = vpop.f32.mrb[0].mxu0
      %v289 = vadd.f32 0.0, %v288
      %v290 = vpop.f32.mrb[0].mxu0
      %291 = vmatprep.mubr.bf16.mxu0 0
      %292 = vmatmul.mubr.bf16.gmra.mrb[0].mxu0 %v218
      %v293 = vpop.f32.mrb[0].mxu0
      %v294 = vadd.f32 0.0, %v293
      %v295 = vpop.f32.mrb[0].mxu0
      %v296 = vpop.f32.mrb[0].mxu0
      %v297 = vpop.f32.mrb[0].mxu0
      %298 = vdwg.mxu0
      %v300 = vsel %vm204, %v181, 0
      %v303 = vsel %vm204, %v182, 0
      %v306 = vsel %vm204, %v183, 0
      %v309 = vsel %vm204, %v184, 0
      %v312 = vsel %vm204, %v185, 0
      %v315 = vand.u32 %v186, %v223
      %317 = vmatprep.subr.bf16.mxu0 0
      %318 = vmatpush1.bf16.msra.mxu0 %v315
      %319 = vmatprep.subr.bf16.mxu0 0
      %320 = vmatpush1.bf16.msra.mxu0 0
      %321 = vmatprep.subr.bf16.mxu0 0
      %322 = vmatpush1.bf16.msra.mxu0 0
      %323 = vmatprep.subr.bf16.mxu0 0
      %324 = vmatpush1.bf16.msra.mxu0 0
      %325 = vmatprep.subr.bf16.mxu0 0
      %326 = vmatpush1.bf16.msra.mxu0 0
      %327 = vmatprep.subr.bf16.mxu0 0
      %328 = vmatpush1.bf16.msra.mxu0 0
      %329 = vmatprep.subr.bf16.mxu0 0
      %330 = vmatpush1.bf16.msra.mxu0 0
      %331 = vmatprep.subr.bf16.mxu0 0
      %332 = vmatpush1.bf16.msra.mxu0 0
      %333 = vmatprep.subr.bf16.mxu0 0
      %334 = vmatpush1.bf16.msra.mxu0 0
      %335 = vmatprep.subr.bf16.mxu0 0
      %336 = vmatpush1.bf16.msra.mxu0 0
      %337 = vmatprep.subr.bf16.mxu0 0
      %338 = vmatpush1.bf16.msra.mxu0 0
      %339 = vmatprep.subr.bf16.mxu0 0
      %340 = vmatpush1.bf16.msra.mxu0 0
      %341 = vmatprep.subr.bf16.mxu0 0
      %342 = vmatpush1.bf16.msra.mxu0 0
      %343 = vmatprep.subr.bf16.mxu0 0
      %344 = vmatpush1.bf16.msra.mxu0 0
      %345 = vmatprep.subr.bf16.mxu0 0
      %346 = vmatpush1.bf16.msra.mxu0 0
      %347 = vmatprep.subr.bf16.mxu0 0
      %348 = vmatpush1.bf16.msra.mxu0 0
      %349 = vmatprep.mubr.bf16.mxu0 0
      %350 = vmatmul.mubr.bf16.gmra.mrb[0].mxu0 %v300
      %v351 = vpop.f32.mrb[0].mxu0
      %v352 = vadd.f32 %v262, %v351
      %v353 = vpop.f32.mrb[0].mxu0
      %v354 = vpop.f32.mrb[0].mxu0
      %v355 = vadd.f32 %v265, %v354
      %v356 = vpop.f32.mrb[0].mxu0
      %357 = vmatprep.mubr.bf16.mxu0 0
      %358 = vmatmul.mubr.bf16.gmra.mrb[0].mxu0 %v303
      %v359 = vpop.f32.mrb[0].mxu0
      %v360 = vadd.f32 %v270, %v359
      %v361 = vpop.f32.mrb[0].mxu0
      %v362 = vpop.f32.mrb[0].mxu0
      %v363 = vadd.f32 %v273, %v362
      %v364 = vpop.f32.mrb[0].mxu0
      %365 = vmatprep.mubr.bf16.mxu0 0
      %366 = vmatmul.mubr.bf16.gmra.mrb[0].mxu0 %v306
      %v367 = vpop.f32.mrb[0].mxu0
      %v368 = vadd.f32 %v278, %v367
      %v369 = vpop.f32.mrb[0].mxu0
      %v370 = vpop.f32.mrb[0].mxu0
      %v371 = vadd.f32 %v281, %v370
      %v372 = vpop.f32.mrb[0].mxu0
      %373 = vmatprep.mubr.bf16.mxu0 0
      %374 = vmatmul.mubr.bf16.gmra.mrb[0].mxu0 %v309
      %v375 = vpop.f32.mrb[0].mxu0
      %v376 = vadd.f32 %v286, %v375
      %v377 = vpop.f32.mrb[0].mxu0
      %v378 = vpop.f32.mrb[0].mxu0
      %v379 = vadd.f32 %v289, %v378
      %v380 = vpop.f32.mrb[0].mxu0
      %381 = vmatprep.mubr.bf16.mxu0 0
      %382 = vmatmul.mubr.bf16.gmra.mrb[0].mxu0 %v312
      %v383 = vpop.f32.mrb[0].mxu0
      %v384 = vadd.f32 %v294, %v383
      %v385 = vpop.f32.mrb[0].mxu0
      %v386 = vpop.f32.mrb[0].mxu0
      %v387 = vpop.f32.mrb[0].mxu0
      %388 = vdwg.mxu0
      %v389 = vld [vmem:[%s165 + $0x1] sm:$0xff]
      %v390 = vld [vmem:[%s165 + $0x9] sm:$0xff]
      %v391 = vld [vmem:[%s165 + $0x11] sm:$0xff]
      %v392 = vld [vmem:[%s165 + $0x19] sm:$0xff]
      %v393 = vld [vmem:[%s165 + $0x21] sm:$0xff]
      %v394 = vld [vmem:[%s165 + $0x29] sm:$0xff]
      %v395 = vld [vmem:[%s165 + $0x31] sm:$0xff]
      %v396 = vld [vmem:[%s165 + $0x39] sm:$0xff]
      %v397 = vld [vmem:[%s165 + $0x41] sm:$0xff]
      %v398 = vpack.c.bf16 %v390, %v389
      %v399 = vpack.c.bf16 %v392, %v391
      %v400 = vpack.c.bf16 %v394, %v393
      %v401 = vpack.c.bf16 %v396, %v395
      %v402 = vpack.c.bf16 %v397, %v397
      %s403 = scalar_lea.vmem %s1, 4
      %v404 = vld [vmem:[%s403] sm:$0x3]
      %v406 = vsel %vm204, %v398, 0
      %v409 = vsel %vm204, %v399, 0
      %v412 = vsel %vm204, %v400, 0
      %v415 = vsel %vm204, %v401, 0
      %v418 = vsel %vm204, %v402, 0
      %v421 = vand.u32 %v404, %v223
      %423 = vmatprep.subr.bf16.mxu0 0
      %424 = vmatpush1.bf16.msra.mxu0 %v421
      %425 = vmatprep.subr.bf16.mxu0 0
      %426 = vmatpush1.bf16.msra.mxu0 0
      %427 = vmatprep.subr.bf16.mxu0 0
      %428 = vmatpush1.bf16.msra.mxu0 0
      %429 = vmatprep.subr.bf16.mxu0 0
      %430 = vmatpush1.bf16.msra.mxu0 0
      %431 = vmatprep.subr.bf16.mxu0 0
      %432 = vmatpush1.bf16.msra.mxu0 0
      %433 = vmatprep.subr.bf16.mxu0 0
      %434 = vmatpush1.bf16.msra.mxu0 0
      %435 = vmatprep.subr.bf16.mxu0 0
      %436 = vmatpush1.bf16.msra.mxu0 0
      %437 = vmatprep.subr.bf16.mxu0 0
      %438 = vmatpush1.bf16.msra.mxu0 0
      %439 = vmatprep.subr.bf16.mxu0 0
      %440 = vmatpush1.bf16.msra.mxu0 0
      %441 = vmatprep.subr.bf16.mxu0 0
      %442 = vmatpush1.bf16.msra.mxu0 0
      %443 = vmatprep.subr.bf16.mxu0 0
      %444 = vmatpush1.bf16.msra.mxu0 0
      %445 = vmatprep.subr.bf16.mxu0 0
      %446 = vmatpush1.bf16.msra.mxu0 0
      %447 = vmatprep.subr.bf16.mxu0 0
      %448 = vmatpush1.bf16.msra.mxu0 0
      %449 = vmatprep.subr.bf16.mxu0 0
      %450 = vmatpush1.bf16.msra.mxu0 0
      %451 = vmatprep.subr.bf16.mxu0 0
      %452 = vmatpush1.bf16.msra.mxu0 0
      %453 = vmatprep.subr.bf16.mxu0 0
      %454 = vmatpush1.bf16.msra.mxu0 0
      %455 = vmatprep.mubr.bf16.mxu0 0
      %456 = vmatmul.mubr.bf16.gmra.mrb[0].mxu0 %v406
      %v457 = vpop.f32.mrb[0].mxu0
      %v458 = vadd.f32 0.0, %v457
      %v459 = vpop.f32.mrb[0].mxu0
      %v460 = vpop.f32.mrb[0].mxu0
      %v461 = vadd.f32 0.0, %v460
      %v462 = vpop.f32.mrb[0].mxu0
      %463 = vmatprep.mubr.bf16.mxu0 0
      %464 = vmatmul.mubr.bf16.gmra.mrb[0].mxu0 %v409
      %v465 = vpop.f32.mrb[0].mxu0
      %v466 = vadd.f32 0.0, %v465
      %v467 = vpop.f32.mrb[0].mxu0
      %v468 = vpop.f32.mrb[0].mxu0
      %v469 = vadd.f32 0.0, %v468
      %v470 = vpop.f32.mrb[0].mxu0
      %471 = vmatprep.mubr.bf16.mxu0 0
      %472 = vmatmul.mubr.bf16.gmra.mrb[0].mxu0 %v412
      %v473 = vpop.f32.mrb[0].mxu0
      %v474 = vadd.f32 0.0, %v473
      %v475 = vpop.f32.mrb[0].mxu0
      %v476 = vpop.f32.mrb[0].mxu0
      %v477 = vadd.f32 0.0, %v476
      %v478 = vpop.f32.mrb[0].mxu0
      %479 = vmatprep.mubr.bf16.mxu0 0
      %480 = vmatmul.mubr.bf16.gmra.mrb[0].mxu0 %v415
      %v481 = vpop.f32.mrb[0].mxu0
      %v482 = vadd.f32 0.0, %v481
      %v483 = vpop.f32.mrb[0].mxu0
      %v484 = vpop.f32.mrb[0].mxu0
      %v485 = vadd.f32 0.0, %v484
      %v486 = vpop.f32.mrb[0].mxu0
      %487 = vmatprep.mubr.bf16.mxu0 0
      %488 = vmatmul.mubr.bf16.gmra.mrb[0].mxu0 %v418
      %v489 = vpop.f32.mrb[0].mxu0
      %v490 = vadd.f32 0.0, %v489
      %v491 = vpop.f32.mrb[0].mxu0
      %v492 = vpop.f32.mrb[0].mxu0
      %v493 = vpop.f32.mrb[0].mxu0
      %494 = vdwg.mxu0
      %v495 = vadd.f32 %v352, %v458
      %v496 = vadd.f32 %v355, %v461
      %v497 = vadd.f32 %v360, %v466
      %v498 = vadd.f32 %v363, %v469
      %v499 = vadd.f32 %v368, %v474
      %v500 = vadd.f32 %v371, %v477
      %v501 = vadd.f32 %v376, %v482
      %v502 = vadd.f32 %v379, %v485
      %v503 = vadd.f32 %v384, %v490
      %s504 = scalar_lea.vmem %s165, 176
      %v505 = vld [vmem:[%s504] sm:$0xff]
      %v506 = vld [vmem:[%s504 + $0x8] sm:$0xff]
      %v507 = vld [vmem:[%s504 + $0x10] sm:$0xff]
      %v508 = vld [vmem:[%s504 + $0x18] sm:$0xff]
      %v509 = vld [vmem:[%s504 + $0x20] sm:$0xff]
      %v510 = vld [vmem:[%s504 + $0x28] sm:$0xff]
      %v511 = vld [vmem:[%s504 + $0x30] sm:$0xff]
      %v512 = vld [vmem:[%s504 + $0x38] sm:$0xff]
      %v513 = vld [vmem:[%s504 + $0x40] sm:$0xff]
      %v514 = vpack.c.bf16 %v506, %v505
      %v515 = vpack.c.bf16 %v508, %v507
      %v516 = vpack.c.bf16 %v510, %v509
      %v517 = vpack.c.bf16 %v512, %v511
      %v518 = vpack.c.bf16 %v513, %v513
      %s519 = scalar_lea.vmem %s1, 6
      %v520 = vld [vmem:[%s519] sm:$0x3]
      %v522 = vsel %vm204, %v514, 0
      %v525 = vsel %vm204, %v515, 0
      %v528 = vsel %vm204, %v516, 0
      %v531 = vsel %vm204, %v517, 0
      %v534 = vsel %vm204, %v518, 0
      %v537 = vand.u32 %v520, %v223
      %539 = vmatprep.subr.bf16.mxu0 0
      %540 = vmatpush1.bf16.msra.mxu0 %v537
      %541 = vmatprep.subr.bf16.mxu0 0
      %542 = vmatpush1.bf16.msra.mxu0 0
      %543 = vmatprep.subr.bf16.mxu0 0
      %544 = vmatpush1.bf16.msra.mxu0 0
      %545 = vmatprep.subr.bf16.mxu0 0
      %546 = vmatpush1.bf16.msra.mxu0 0
      %547 = vmatprep.subr.bf16.mxu0 0
      %548 = vmatpush1.bf16.msra.mxu0 0
      %549 = vmatprep.subr.bf16.mxu0 0
      %550 = vmatpush1.bf16.msra.mxu0 0
      %551 = vmatprep.subr.bf16.mxu0 0
      %552 = vmatpush1.bf16.msra.mxu0 0
      %553 = vmatprep.subr.bf16.mxu0 0
      %554 = vmatpush1.bf16.msra.mxu0 0
      %555 = vmatprep.subr.bf16.mxu0 0
      %556 = vmatpush1.bf16.msra.mxu0 0
      %557 = vmatprep.subr.bf16.mxu0 0
      %558 = vmatpush1.bf16.msra.mxu0 0
      %559 = vmatprep.subr.bf16.mxu0 0
      %560 = vmatpush1.bf16.msra.mxu0 0
      %561 = vmatprep.subr.bf16.mxu0 0
      %562 = vmatpush1.bf16.msra.mxu0 0
      %563 = vmatprep.subr.bf16.mxu0 0
      %564 = vmatpush1.bf16.msra.mxu0 0
      %565 = vmatprep.subr.bf16.mxu0 0
      %566 = vmatpush1.bf16.msra.mxu0 0
      %567 = vmatprep.subr.bf16.mxu0 0
      %568 = vmatpush1.bf16.msra.mxu0 0
      %569 = vmatprep.subr.bf16.mxu0 0
      %570 = vmatpush1.bf16.msra.mxu0 0
      %571 = vmatprep.mubr.bf16.mxu0 0
      %572 = vmatmul.mubr.bf16.gmra.mrb[0].mxu0 %v522
      %v573 = vpop.f32.mrb[0].mxu0
      %v574 = vadd.f32 0.0, %v573
      %v575 = vpop.f32.mrb[0].mxu0
      %v576 = vpop.f32.mrb[0].mxu0
      %v577 = vadd.f32 0.0, %v576
      %v578 = vpop.f32.mrb[0].mxu0
      %579 = vmatprep.mubr.bf16.mxu0 0
      %580 = vmatmul.mubr.bf16.gmra.mrb[0].mxu0 %v525
      %v581 = vpop.f32.mrb[0].mxu0
      %v582 = vadd.f32 0.0, %v581
      %v583 = vpop.f32.mrb[0].mxu0
      %v584 = vpop.f32.mrb[0].mxu0
      %v585 = vadd.f32 0.0, %v584
      %v586 = vpop.f32.mrb[0].mxu0
      %587 = vmatprep.mubr.bf16.mxu0 0
      %588 = vmatmul.mubr.bf16.gmra.mrb[0].mxu0 %v528
      %v589 = vpop.f32.mrb[0].mxu0
      %v590 = vadd.f32 0.0, %v589
      %v591 = vpop.f32.mrb[0].mxu0
      %v592 = vpop.f32.mrb[0].mxu0
      %v593 = vadd.f32 0.0, %v592
      %v594 = vpop.f32.mrb[0].mxu0
      %595 = vmatprep.mubr.bf16.mxu0 0
      %596 = vmatmul.mubr.bf16.gmra.mrb[0].mxu0 %v531
      %v597 = vpop.f32.mrb[0].mxu0
      %v598 = vadd.f32 0.0, %v597
      %v599 = vpop.f32.mrb[0].mxu0
      %v600 = vpop.f32.mrb[0].mxu0
      %v601 = vadd.f32 0.0, %v600
      %v602 = vpop.f32.mrb[0].mxu0
      %603 = vmatprep.mubr.bf16.mxu0 0
      %604 = vmatmul.mubr.bf16.gmra.mrb[0].mxu0 %v534
      %v605 = vpop.f32.mrb[0].mxu0
      %v606 = vadd.f32 0.0, %v605
      %v607 = vpop.f32.mrb[0].mxu0
      %v608 = vpop.f32.mrb[0].mxu0
      %v609 = vpop.f32.mrb[0].mxu0
      %610 = vdwg.mxu0
      %v611 = vadd.f32 %v495, %v574
      %v612 = vadd.f32 %v496, %v577
      %v613 = vadd.f32 %v497, %v582
      %v614 = vadd.f32 %v498, %v585
      %v615 = vadd.f32 %v499, %v590
      %v616 = vadd.f32 %v500, %v593
      %v617 = vadd.f32 %v501, %v598
      %v618 = vadd.f32 %v502, %v601
      %v619 = vadd.f32 %v503, %v606
      %s620 = scalar_lea.vmem %s165, 264
      %v621 = vld [vmem:[%s620] sm:$0xff]
      %v622 = vld [vmem:[%s620 + $0x8] sm:$0xff]
      %v623 = vld [vmem:[%s620 + $0x10] sm:$0xff]
      %v624 = vld [vmem:[%s620 + $0x18] sm:$0xff]
      %v625 = vld [vmem:[%s620 + $0x20] sm:$0xff]
      %v626 = vld [vmem:[%s620 + $0x28] sm:$0xff]
      %v627 = vld [vmem:[%s620 + $0x30] sm:$0xff]
      %v628 = vld [vmem:[%s620 + $0x38] sm:$0xff]
      %v629 = vld [vmem:[%s620 + $0x40] sm:$0xff]
      %v630 = vpack.c.bf16 %v622, %v621
      %v631 = vpack.c.bf16 %v624, %v623
      %v632 = vpack.c.bf16 %v626, %v625
      %v633 = vpack.c.bf16 %v628, %v627
      %v634 = vpack.c.bf16 %v629, %v629
      %s635 = scalar_lea.vmem %s1, 8
      %v636 = vld [vmem:[%s635] sm:$0x3]
      %v638 = vsel %vm204, %v630, 0
      %v641 = vsel %vm204, %v631, 0
      %v644 = vsel %vm204, %v632, 0
      %v647 = vsel %vm204, %v633, 0
      %v650 = vsel %vm204, %v634, 0
      %v653 = vand.u32 %v636, %v223
      %655 = vmatprep.subr.bf16.mxu0 0
      %656 = vmatpush1.bf16.msra.mxu0 %v653
      %657 = vmatprep.subr.bf16.mxu0 0
      %658 = vmatpush1.bf16.msra.mxu0 0
      %659 = vmatprep.subr.bf16.mxu0 0
      %660 = vmatpush1.bf16.msra.mxu0 0
      %661 = vmatprep.subr.bf16.mxu0 0
      %662 = vmatpush1.bf16.msra.mxu0 0
      %663 = vmatprep.subr.bf16.mxu0 0
      %664 = vmatpush1.bf16.msra.mxu0 0
      %665 = vmatprep.subr.bf16.mxu0 0
      %666 = vmatpush1.bf16.msra.mxu0 0
      %667 = vmatprep.subr.bf16.mxu0 0
      %668 = vmatpush1.bf16.msra.mxu0 0
      %669 = vmatprep.subr.bf16.mxu0 0
      %670 = vmatpush1.bf16.msra.mxu0 0
      %671 = vmatprep.subr.bf16.mxu0 0
      %672 = vmatpush1.bf16.msra.mxu0 0
      %673 = vmatprep.subr.bf16.mxu0 0
      %674 = vmatpush1.bf16.msra.mxu0 0
      %675 = vmatprep.subr.bf16.mxu0 0
      %676 = vmatpush1.bf16.msra.mxu0 0
      %677 = vmatprep.subr.bf16.mxu0 0
      %678 = vmatpush1.bf16.msra.mxu0 0
      %679 = vmatprep.subr.bf16.mxu0 0
      %680 = vmatpush1.bf16.msra.mxu0 0
      %681 = vmatprep.subr.bf16.mxu0 0
      %682 = vmatpush1.bf16.msra.mxu0 0
      %683 = vmatprep.subr.bf16.mxu0 0
      %684 = vmatpush1.bf16.msra.mxu0 0
      %685 = vmatprep.subr.bf16.mxu0 0
      %686 = vmatpush1.bf16.msra.mxu0 0
      %687 = vmatprep.mubr.bf16.mxu0 0
      %688 = vmatmul.mubr.bf16.gmra.mrb[0].mxu0 %v638
      %v689 = vpop.f32.mrb[0].mxu0
      %v690 = vadd.f32 0.0, %v689
      %v691 = vpop.f32.mrb[0].mxu0
      %v692 = vpop.f32.mrb[0].mxu0
      %v693 = vadd.f32 0.0, %v692
      %v694 = vpop.f32.mrb[0].mxu0
      %695 = vmatprep.mubr.bf16.mxu0 0
      %696 = vmatmul.mubr.bf16.gmra.mrb[0].mxu0 %v641
      %v697 = vpop.f32.mrb[0].mxu0
      %v698 = vadd.f32 0.0, %v697
      %v699 = vpop.f32.mrb[0].mxu0
      %v700 = vpop.f32.mrb[0].mxu0
      %v701 = vadd.f32 0.0, %v700
      %v702 = vpop.f32.mrb[0].mxu0
      %703 = vmatprep.mubr.bf16.mxu0 0
      %704 = vmatmul.mubr.bf16.gmra.mrb[0].mxu0 %v644
      %v705 = vpop.f32.mrb[0].mxu0
      %v706 = vadd.f32 0.0, %v705
      %v707 = vpop.f32.mrb[0].mxu0
      %v708 = vpop.f32.mrb[0].mxu0
      %v709 = vadd.f32 0.0, %v708
      %v710 = vpop.f32.mrb[0].mxu0
      %711 = vmatprep.mubr.bf16.mxu0 0
      %712 = vmatmul.mubr.bf16.gmra.mrb[0].mxu0 %v647
      %v713 = vpop.f32.mrb[0].mxu0
      %v714 = vadd.f32 0.0, %v713
      %v715 = vpop.f32.mrb[0].mxu0
      %v716 = vpop.f32.mrb[0].mxu0
      %v717 = vadd.f32 0.0, %v716
      %v718 = vpop.f32.mrb[0].mxu0
      %719 = vmatprep.mubr.bf16.mxu0 0
      %720 = vmatmul.mubr.bf16.gmra.mrb[0].mxu0 %v650
      %v721 = vpop.f32.mrb[0].mxu0
      %v722 = vadd.f32 0.0, %v721
      %v723 = vpop.f32.mrb[0].mxu0
      %v724 = vpop.f32.mrb[0].mxu0
      %v725 = vpop.f32.mrb[0].mxu0
      %726 = vdwg.mxu0
      %v727 = vadd.f32 %v611, %v690
      %v728 = vadd.f32 %v612, %v693
      %v729 = vadd.f32 %v613, %v698
      %v730 = vadd.f32 %v614, %v701
      %v731 = vadd.f32 %v615, %v706
      %v732 = vadd.f32 %v616, %v709
      %v733 = vadd.f32 %v617, %v714
      %v734 = vadd.f32 %v618, %v717
      %v735 = vadd.f32 %v619, %v722
      %v736 = vld [vmem:[%s504 + $0x1] sm:$0xff]
      %v737 = vld [vmem:[%s504 + $0x9] sm:$0xff]
      %v738 = vld [vmem:[%s504 + $0x11] sm:$0xff]
      %v739 = vld [vmem:[%s504 + $0x19] sm:$0xff]
      %v740 = vld [vmem:[%s504 + $0x21] sm:$0xff]
      %v741 = vld [vmem:[%s504 + $0x29] sm:$0xff]
      %v742 = vld [vmem:[%s504 + $0x31] sm:$0xff]
      %v743 = vld [vmem:[%s504 + $0x39] sm:$0xff]
      %v744 = vld [vmem:[%s504 + $0x41] sm:$0xff]
      %v745 = vpack.c.bf16 %v737, %v736
      %v746 = vpack.c.bf16 %v739, %v738
      %v747 = vpack.c.bf16 %v741, %v740
      %v748 = vpack.c.bf16 %v743, %v742
      %v749 = vpack.c.bf16 %v744, %v744
      %s750 = scalar_lea.vmem %s1, 10
      %v751 = vld [vmem:[%s750] sm:$0x3]
      %v753 = vsel %vm204, %v745, 0
      %v756 = vsel %vm204, %v746, 0
      %v759 = vsel %vm204, %v747, 0
      %v762 = vsel %vm204, %v748, 0
      %v765 = vsel %vm204, %v749, 0
      %v768 = vand.u32 %v751, %v223
      %770 = vmatprep.subr.bf16.mxu0 0
      %771 = vmatpush1.bf16.msra.mxu0 %v768
      %772 = vmatprep.subr.bf16.mxu0 0
      %773 = vmatpush1.bf16.msra.mxu0 0
      %774 = vmatprep.subr.bf16.mxu0 0
      %775 = vmatpush1.bf16.msra.mxu0 0
      %776 = vmatprep.subr.bf16.mxu0 0
      %777 = vmatpush1.bf16.msra.mxu0 0
      %778 = vmatprep.subr.bf16.mxu0 0
      %779 = vmatpush1.bf16.msra.mxu0 0
      %780 = vmatprep.subr.bf16.mxu0 0
      %781 = vmatpush1.bf16.msra.mxu0 0
      %782 = vmatprep.subr.bf16.mxu0 0
      %783 = vmatpush1.bf16.msra.mxu0 0
      %784 = vmatprep.subr.bf16.mxu0 0
      %785 = vmatpush1.bf16.msra.mxu0 0
      %786 = vmatprep.subr.bf16.mxu0 0
      %787 = vmatpush1.bf16.msra.mxu0 0
      %788 = vmatprep.subr.bf16.mxu0 0
      %789 = vmatpush1.bf16.msra.mxu0 0
      %790 = vmatprep.subr.bf16.mxu0 0
      %791 = vmatpush1.bf16.msra.mxu0 0
      %792 = vmatprep.subr.bf16.mxu0 0
      %793 = vmatpush1.bf16.msra.mxu0 0
      %794 = vmatprep.subr.bf16.mxu0 0
      %795 = vmatpush1.bf16.msra.mxu0 0
      %796 = vmatprep.subr.bf16.mxu0 0
      %797 = vmatpush1.bf16.msra.mxu0 0
      %798 = vmatprep.subr.bf16.mxu0 0
      %799 = vmatpush1.bf16.msra.mxu0 0
      %800 = vmatprep.subr.bf16.mxu0 0
      %801 = vmatpush1.bf16.msra.mxu0 0
      %802 = vmatprep.mubr.bf16.mxu0 0
      %803 = vmatmul.mubr.bf16.gmra.mrb[0].mxu0 %v753
      %v804 = vpop.f32.mrb[0].mxu0
      %v805 = vadd.f32 0.0, %v804
      %v806 = vpop.f32.mrb[0].mxu0
      %v807 = vpop.f32.mrb[0].mxu0
      %v808 = vadd.f32 0.0, %v807
      %v809 = vpop.f32.mrb[0].mxu0
      %810 = vmatprep.mubr.bf16.mxu0 0
      %811 = vmatmul.mubr.bf16.gmra.mrb[0].mxu0 %v756
      %v812 = vpop.f32.mrb[0].mxu0
      %v813 = vadd.f32 0.0, %v812
      %v814 = vpop.f32.mrb[0].mxu0
      %v815 = vpop.f32.mrb[0].mxu0
      %v816 = vadd.f32 0.0, %v815
      %v817 = vpop.f32.mrb[0].mxu0
      %818 = vmatprep.mubr.bf16.mxu0 0
      %819 = vmatmul.mubr.bf16.gmra.mrb[0].mxu0 %v759
      %v820 = vpop.f32.mrb[0].mxu0
      %v821 = vadd.f32 0.0, %v820
      %v822 = vpop.f32.mrb[0].mxu0
      %v823 = vpop.f32.mrb[0].mxu0
      %v824 = vadd.f32 0.0, %v823
      %v825 = vpop.f32.mrb[0].mxu0
      %826 = vmatprep.mubr.bf16.mxu0 0
      %827 = vmatmul.mubr.bf16.gmra.mrb[0].mxu0 %v762
      %v828 = vpop.f32.mrb[0].mxu0
      %v829 = vadd.f32 0.0, %v828
      %v830 = vpop.f32.mrb[0].mxu0
      %v831 = vpop.f32.mrb[0].mxu0
      %v832 = vadd.f32 0.0, %v831
      %v833 = vpop.f32.mrb[0].mxu0
      %834 = vmatprep.mubr.bf16.mxu0 0
      %835 = vmatmul.mubr.bf16.gmra.mrb[0].mxu0 %v765
      %v836 = vpop.f32.mrb[0].mxu0
      %v837 = vadd.f32 0.0, %v836
      %v838 = vpop.f32.mrb[0].mxu0
      %v839 = vpop.f32.mrb[0].mxu0
      %v840 = vpop.f32.mrb[0].mxu0
      %841 = vdwg.mxu0
      %v842 = vadd.f32 %v727, %v805
      %v843 = vadd.f32 %v728, %v808
      %v844 = vadd.f32 %v729, %v813
      %v845 = vadd.f32 %v730, %v816
      %v846 = vadd.f32 %v731, %v821
      %v847 = vadd.f32 %v732, %v824
      %v848 = vadd.f32 %v733, %v829
      %v849 = vadd.f32 %v734, %v832
      %v850 = vadd.f32 %v735, %v837
      %v851 = vld [vmem:[%s165 + $0x9] sm:$0xff]
      %v852 = vld [vmem:[%s165 + $0x11] sm:$0xff]
      %v853 = vld [vmem:[%s165 + $0x19] sm:$0xff]
      %v854 = vld [vmem:[%s165 + $0x21] sm:$0xff]
      %v855 = vld [vmem:[%s165 + $0x29] sm:$0xff]
      %v856 = vld [vmem:[%s165 + $0x31] sm:$0xff]
      %v857 = vld [vmem:[%s165 + $0x39] sm:$0xff]
      %v858 = vld [vmem:[%s165 + $0x41] sm:$0xff]
      %v859 = vld [vmem:[%s165 + $0x49] sm:$0xff]
      %v860 = vpack.c.bf16 %v852, %v851
      %v861 = vpack.c.bf16 %v854, %v853
      %v862 = vpack.c.bf16 %v856, %v855
      %v863 = vpack.c.bf16 %v858, %v857
      %v864 = vpack.c.bf16 %v859, %v859
      %s865 = scalar_lea.vmem %s1, 12
      %v866 = vld [vmem:[%s865] sm:$0x3]
      %v868 = vsel %vm204, %v860, 0
      %v871 = vsel %vm204, %v861, 0
      %v874 = vsel %vm204, %v862, 0
      %v877 = vsel %vm204, %v863, 0
      %v880 = vsel %vm204, %v864, 0
      %v883 = vand.u32 %v866, %v223
      %885 = vmatprep.subr.bf16.mxu0 0
      %886 = vmatpush1.bf16.msra.mxu0 %v883
      %887 = vmatprep.subr.bf16.mxu0 0
      %888 = vmatpush1.bf16.msra.mxu0 0
      %889 = vmatprep.subr.bf16.mxu0 0
      %890 = vmatpush1.bf16.msra.mxu0 0
      %891 = vmatprep.subr.bf16.mxu0 0
      %892 = vmatpush1.bf16.msra.mxu0 0
      %893 = vmatprep.subr.bf16.mxu0 0
      %894 = vmatpush1.bf16.msra.mxu0 0
      %895 = vmatprep.subr.bf16.mxu0 0
      %896 = vmatpush1.bf16.msra.mxu0 0
      %897 = vmatprep.subr.bf16.mxu0 0
      %898 = vmatpush1.bf16.msra.mxu0 0
      %899 = vmatprep.subr.bf16.mxu0 0
      %900 = vmatpush1.bf16.msra.mxu0 0
      %901 = vmatprep.subr.bf16.mxu0 0
      %902 = vmatpush1.bf16.msra.mxu0 0
      %903 = vmatprep.subr.bf16.mxu0 0
      %904 = vmatpush1.bf16.msra.mxu0 0
      %905 = vmatprep.subr.bf16.mxu0 0
      %906 = vmatpush1.bf16.msra.mxu0 0
      %907 = vmatprep.subr.bf16.mxu0 0
      %908 = vmatpush1.bf16.msra.mxu0 0
      %909 = vmatprep.subr.bf16.mxu0 0
      %910 = vmatpush1.bf16.msra.mxu0 0
      %911 = vmatprep.subr.bf16.mxu0 0
      %912 = vmatpush1.bf16.msra.mxu0 0
      %913 = vmatprep.subr.bf16.mxu0 0
      %914 = vmatpush1.bf16.msra.mxu0 0
      %915 = vmatprep.subr.bf16.mxu0 0
      %916 = vmatpush1.bf16.msra.mxu0 0
      %917 = vmatprep.mubr.bf16.mxu0 0
      %918 = vmatmul.mubr.bf16.gmra.mrb[0].mxu0 %v868
      %v919 = vpop.f32.mrb[0].mxu0
      %v920 = vadd.f32 0.0, %v919
      %v921 = vpop.f32.mrb[0].mxu0
      %v922 = vpop.f32.mrb[0].mxu0
      %v923 = vadd.f32 0.0, %v922
      %v924 = vpop.f32.mrb[0].mxu0
      %925 = vmatprep.mubr.bf16.mxu0 0
      %926 = vmatmul.mubr.bf16.gmra.mrb[0].mxu0 %v871
      %v927 = vpop.f32.mrb[0].mxu0
      %v928 = vadd.f32 0.0, %v927
      %v929 = vpop.f32.mrb[0].mxu0
      %v930 = vpop.f32.mrb[0].mxu0
      %v931 = vadd.f32 0.0, %v930
      %v932 = vpop.f32.mrb[0].mxu0
      %933 = vmatprep.mubr.bf16.mxu0 0
      %934 = vmatmul.mubr.bf16.gmra.mrb[0].mxu0 %v874
      %v935 = vpop.f32.mrb[0].mxu0
      %v936 = vadd.f32 0.0, %v935
      %v937 = vpop.f32.mrb[0].mxu0
      %v938 = vpop.f32.mrb[0].mxu0
      %v939 = vadd.f32 0.0, %v938
      %v940 = vpop.f32.mrb[0].mxu0
      %941 = vmatprep.mubr.bf16.mxu0 0
      %942 = vmatmul.mubr.bf16.gmra.mrb[0].mxu0 %v877
      %v943 = vpop.f32.mrb[0].mxu0
      %v944 = vadd.f32 0.0, %v943
      %v945 = vpop.f32.mrb[0].mxu0
      %v946 = vpop.f32.mrb[0].mxu0
      %v947 = vadd.f32 0.0, %v946
      %v948 = vpop.f32.mrb[0].mxu0
      %949 = vmatprep.mubr.bf16.mxu0 0
      %950 = vmatmul.mubr.bf16.gmra.mrb[0].mxu0 %v880
      %v951 = vpop.f32.mrb[0].mxu0
      %v952 = vadd.f32 0.0, %v951
      %v953 = vpop.f32.mrb[0].mxu0
      %v954 = vpop.f32.mrb[0].mxu0
      %v955 = vpop.f32.mrb[0].mxu0
      %956 = vdwg.mxu0
      %v957 = vadd.f32 %v842, %v920
      %v958 = vadd.f32 %v843, %v923
      %v959 = vadd.f32 %v844, %v928
      %v960 = vadd.f32 %v845, %v931
      %v961 = vadd.f32 %v846, %v936
      %v962 = vadd.f32 %v847, %v939
      %v963 = vadd.f32 %v848, %v944
      %v964 = vadd.f32 %v849, %v947
      %v965 = vadd.f32 %v850, %v952
      %v966 = vld [vmem:[%s187 + $0x9] sm:$0xff]
      %v967 = vld [vmem:[%s187 + $0x11] sm:$0xff]
      %v968 = vld [vmem:[%s187 + $0x19] sm:$0xff]
      %v969 = vld [vmem:[%s187 + $0x21] sm:$0xff]
      %v970 = vld [vmem:[%s187 + $0x29] sm:$0xff]
      %v971 = vld [vmem:[%s187 + $0x31] sm:$0xff]
      %v972 = vld [vmem:[%s187 + $0x39] sm:$0xff]
      %v973 = vld [vmem:[%s187 + $0x41] sm:$0xff]
      %v974 = vld [vmem:[%s187 + $0x49] sm:$0xff]
      %v975 = vpack.c.bf16 %v967, %v966
      %v976 = vpack.c.bf16 %v969, %v968
      %v977 = vpack.c.bf16 %v971, %v970
      %v978 = vpack.c.bf16 %v973, %v972
      %v979 = vpack.c.bf16 %v974, %v974
      %s980 = scalar_lea.vmem %s1, 14
      %v981 = vld [vmem:[%s980] sm:$0x3]
      %v983 = vsel %vm204, %v975, 0
      %v986 = vsel %vm204, %v976, 0
      %v989 = vsel %vm204, %v977, 0
      %v992 = vsel %vm204, %v978, 0
      %v995 = vsel %vm204, %v979, 0
      %v998 = vand.u32 %v981, %v223
      %1000 = vmatprep.subr.bf16.mxu0 0
      %1001 = vmatpush1.bf16.msra.mxu0 %v998
      %1002 = vmatprep.subr.bf16.mxu0 0
      %1003 = vmatpush1.bf16.msra.mxu0 0
      %1004 = vmatprep.subr.bf16.mxu0 0
      %1005 = vmatpush1.bf16.msra.mxu0 0
      %1006 = vmatprep.subr.bf16.mxu0 0
      %1007 = vmatpush1.bf16.msra.mxu0 0
      %1008 = vmatprep.subr.bf16.mxu0 0
      %1009 = vmatpush1.bf16.msra.mxu0 0
      %1010 = vmatprep.subr.bf16.mxu0 0
      %1011 = vmatpush1.bf16.msra.mxu0 0
      %1012 = vmatprep.subr.bf16.mxu0 0
      %1013 = vmatpush1.bf16.msra.mxu0 0
      %1014 = vmatprep.subr.bf16.mxu0 0
      %1015 = vmatpush1.bf16.msra.mxu0 0
      %1016 = vmatprep.subr.bf16.mxu0 0
      %1017 = vmatpush1.bf16.msra.mxu0 0
      %1018 = vmatprep.subr.bf16.mxu0 0
      %1019 = vmatpush1.bf16.msra.mxu0 0
      %1020 = vmatprep.subr.bf16.mxu0 0
      %1021 = vmatpush1.bf16.msra.mxu0 0
      %1022 = vmatprep.subr.bf16.mxu0 0
      %1023 = vmatpush1.bf16.msra.mxu0 0
      %1024 = vmatprep.subr.bf16.mxu0 0
      %1025 = vmatpush1.bf16.msra.mxu0 0
      %1026 = vmatprep.subr.bf16.mxu0 0
      %1027 = vmatpush1.bf16.msra.mxu0 0
      %1028 = vmatprep.subr.bf16.mxu0 0
      %1029 = vmatpush1.bf16.msra.mxu0 0
      %1030 = vmatprep.subr.bf16.mxu0 0
      %1031 = vmatpush1.bf16.msra.mxu0 0
      %1032 = vmatprep.mubr.bf16.mxu0 0
      %1033 = vmatmul.mubr.bf16.gmra.mrb[0].mxu0 %v983
      %v1034 = vpop.f32.mrb[0].mxu0
      %v1035 = vadd.f32 0.0, %v1034
      %v1036 = vpop.f32.mrb[0].mxu0
      %v1037 = vpop.f32.mrb[0].mxu0
      %v1038 = vadd.f32 0.0, %v1037
      %v1039 = vpop.f32.mrb[0].mxu0
      %1040 = vmatprep.mubr.bf16.mxu0 0
      %1041 = vmatmul.mubr.bf16.gmra.mrb[0].mxu0 %v986
      %v1042 = vpop.f32.mrb[0].mxu0
      %v1043 = vadd.f32 0.0, %v1042
      %v1044 = vpop.f32.mrb[0].mxu0
      %v1045 = vpop.f32.mrb[0].mxu0
      %v1046 = vadd.f32 0.0, %v1045
      %v1047 = vpop.f32.mrb[0].mxu0
      %1048 = vmatprep.mubr.bf16.mxu0 0
      %1049 = vmatmul.mubr.bf16.gmra.mrb[0].mxu0 %v989
      %v1050 = vpop.f32.mrb[0].mxu0
      %v1051 = vadd.f32 0.0, %v1050
      %v1052 = vpop.f32.mrb[0].mxu0
      %v1053 = vpop.f32.mrb[0].mxu0
      %v1054 = vadd.f32 0.0, %v1053
      %v1055 = vpop.f32.mrb[0].mxu0
      %1056 = vmatprep.mubr.bf16.mxu0 0
      %1057 = vmatmul.mubr.bf16.gmra.mrb[0].mxu0 %v992
      %v1058 = vpop.f32.mrb[0].mxu0
      %v1059 = vadd.f32 0.0, %v1058
      %v1060 = vpop.f32.mrb[0].mxu0
      %v1061 = vpop.f32.mrb[0].mxu0
      %v1062 = vadd.f32 0.0, %v1061
      %v1063 = vpop.f32.mrb[0].mxu0
      %1064 = vmatprep.mubr.bf16.mxu0 0
      %1065 = vmatmul.mubr.bf16.gmra.mrb[0].mxu0 %v995
      %v1066 = vpop.f32.mrb[0].mxu0
      %v1067 = vadd.f32 0.0, %v1066
      %v1068 = vpop.f32.mrb[0].mxu0
      %v1069 = vpop.f32.mrb[0].mxu0
      %v1070 = vpop.f32.mrb[0].mxu0
      %1071 = vdwg.mxu0
      %v1072 = vadd.f32 %v957, %v1035
      %v1073 = vadd.f32 %v958, %v1038
      %v1074 = vadd.f32 %v959, %v1043
      %v1075 = vadd.f32 %v960, %v1046
      %v1076 = vadd.f32 %v961, %v1051
      %v1077 = vadd.f32 %v962, %v1054
      %v1078 = vadd.f32 %v963, %v1059
      %v1079 = vadd.f32 %v964, %v1062
      %v1080 = vadd.f32 %v965, %v1067
      %v1081 = vld [vmem:[%s165 + $0xa] sm:$0xff]
      %v1082 = vld [vmem:[%s165 + $0x12] sm:$0xff]
      %v1083 = vld [vmem:[%s165 + $0x1a] sm:$0xff]
      %v1084 = vld [vmem:[%s165 + $0x22] sm:$0xff]
      %v1085 = vld [vmem:[%s165 + $0x2a] sm:$0xff]
      %v1086 = vld [vmem:[%s165 + $0x32] sm:$0xff]
      %v1087 = vld [vmem:[%s165 + $0x3a] sm:$0xff]
      %v1088 = vld [vmem:[%s165 + $0x42] sm:$0xff]
      %v1089 = vld [vmem:[%s165 + $0x4a] sm:$0xff]
      %v1090 = vpack.c.bf16 %v1082, %v1081
      %v1091 = vpack.c.bf16 %v1084, %v1083
      %v1092 = vpack.c.bf16 %v1086, %v1085
      %v1093 = vpack.c.bf16 %v1088, %v1087
      %v1094 = vpack.c.bf16 %v1089, %v1089
      %s1095 = scalar_lea.vmem %s1, 16
      %v1096 = vld [vmem:[%s1095] sm:$0x3]
      %v1098 = vsel %vm204, %v1090, 0
      %v1101 = vsel %vm204, %v1091, 0
      %v1104 = vsel %vm204, %v1092, 0
      %v1107 = vsel %vm204, %v1093, 0
      %v1110 = vsel %vm204, %v1094, 0
      %v1113 = vand.u32 %v1096, %v223
      %1115 = vmatprep.subr.bf16.mxu0 0
      %1116 = vmatpush1.bf16.msra.mxu0 %v1113
      %1117 = vmatprep.subr.bf16.mxu0 0
      %1118 = vmatpush1.bf16.msra.mxu0 0
      %1119 = vmatprep.subr.bf16.mxu0 0
      %1120 = vmatpush1.bf16.msra.mxu0 0
      %1121 = vmatprep.subr.bf16.mxu0 0
      %1122 = vmatpush1.bf16.msra.mxu0 0
      %1123 = vmatprep.subr.bf16.mxu0 0
      %1124 = vmatpush1.bf16.msra.mxu0 0
      %1125 = vmatprep.subr.bf16.mxu0 0
      %1126 = vmatpush1.bf16.msra.mxu0 0
      %1127 = vmatprep.subr.bf16.mxu0 0
      %1128 = vmatpush1.bf16.msra.mxu0 0
      %1129 = vmatprep.subr.bf16.mxu0 0
      %1130 = vmatpush1.bf16.msra.mxu0 0
      %1131 = vmatprep.subr.bf16.mxu0 0
      %1132 = vmatpush1.bf16.msra.mxu0 0
      %1133 = vmatprep.subr.bf16.mxu0 0
      %1134 = vmatpush1.bf16.msra.mxu0 0
      %1135 = vmatprep.subr.bf16.mxu0 0
      %1136 = vmatpush1.bf16.msra.mxu0 0
      %1137 = vmatprep.subr.bf16.mxu0 0
      %1138 = vmatpush1.bf16.msra.mxu0 0
      %1139 = vmatprep.subr.bf16.mxu0 0
      %1140 = vmatpush1.bf16.msra.mxu0 0
      %1141 = vmatprep.subr.bf16.mxu0 0
      %1142 = vmatpush1.bf16.msra.mxu0 0
      %1143 = vmatprep.subr.bf16.mxu0 0
      %1144 = vmatpush1.bf16.msra.mxu0 0
      %1145 = vmatprep.subr.bf16.mxu0 0
      %1146 = vmatpush1.bf16.msra.mxu0 0
      %1147 = vmatprep.mubr.bf16.mxu0 0
      %1148 = vmatmul.mubr.bf16.gmra.mrb[0].mxu0 %v1098
      %v1149 = vpop.f32.mrb[0].mxu0
      %v1150 = vadd.f32 0.0, %v1149
      %v1151 = vpop.f32.mrb[0].mxu0
      %v1152 = vpop.f32.mrb[0].mxu0
      %v1153 = vadd.f32 0.0, %v1152
      %v1154 = vpop.f32.mrb[0].mxu0
      %1155 = vmatprep.mubr.bf16.mxu0 0
      %1156 = vmatmul.mubr.bf16.gmra.mrb[0].mxu0 %v1101
      %v1157 = vpop.f32.mrb[0].mxu0
      %v1158 = vadd.f32 0.0, %v1157
      %v1159 = vpop.f32.mrb[0].mxu0
      %v1160 = vpop.f32.mrb[0].mxu0
      %v1161 = vadd.f32 0.0, %v1160
      %v1162 = vpop.f32.mrb[0].mxu0
      %1163 = vmatprep.mubr.bf16.mxu0 0
      %1164 = vmatmul.mubr.bf16.gmra.mrb[0].mxu0 %v1104
      %v1165 = vpop.f32.mrb[0].mxu0
      %v1166 = vadd.f32 0.0, %v1165
      %v1167 = vpop.f32.mrb[0].mxu0
      %v1168 = vpop.f32.mrb[0].mxu0
      %v1169 = vadd.f32 0.0, %v1168
      %v1170 = vpop.f32.mrb[0].mxu0
      %1171 = vmatprep.mubr.bf16.mxu0 0
      %1172 = vmatmul.mubr.bf16.gmra.mrb[0].mxu0 %v1107
      %v1173 = vpop.f32.mrb[0].mxu0
      %v1174 = vadd.f32 0.0, %v1173
      %v1175 = vpop.f32.mrb[0].mxu0
      %v1176 = vpop.f32.mrb[0].mxu0
      %v1177 = vadd.f32 0.0, %v1176
      %v1178 = vpop.f32.mrb[0].mxu0
      %1179 = vmatprep.mubr.bf16.mxu0 0
      %1180 = vmatmul.mubr.bf16.gmra.mrb[0].mxu0 %v1110
      %v1181 = vpop.f32.mrb[0].mxu0
      %v1182 = vadd.f32 0.0, %v1181
      %v1183 = vpop.f32.mrb[0].mxu0
      %v1184 = vpop.f32.mrb[0].mxu0
      %v1185 = vpop.f32.mrb[0].mxu0
      %1186 = vdwg.mxu0
      %v1187 = vadd.f32 %v1072, %v1150
      %v1188 = vadd.f32 %v1073, %v1153
      %v1189 = vadd.f32 %v1074, %v1158
      %v1190 = vadd.f32 %v1075, %v1161
      %v1191 = vadd.f32 %v1076, %v1166
      %v1192 = vadd.f32 %v1077, %v1169
      %v1193 = vadd.f32 %v1078, %v1174
      %v1194 = vadd.f32 %v1079, %v1177
      %v1195 = vadd.f32 %v1080, %v1182
      %1196 = vmatprep.subr.bf16.mxu0 0
      %1197 = vmatpush1.bf16.msra.mxu0 %v225
      %1198 = vmatprep.subr.bf16.mxu0 0
      %1199 = vmatpush1.bf16.msra.mxu0 0
      %1200 = vmatprep.subr.bf16.mxu0 0
      %1201 = vmatpush1.bf16.msra.mxu0 0
      %1202 = vmatprep.subr.bf16.mxu0 0
      %1203 = vmatpush1.bf16.msra.mxu0 0
      %1204 = vmatprep.subr.bf16.mxu0 0
      %1205 = vmatpush1.bf16.msra.mxu0 0
      %1206 = vmatprep.subr.bf16.mxu0 0
      %1207 = vmatpush1.bf16.msra.mxu0 0
      %1208 = vmatprep.subr.bf16.mxu0 0
      %1209 = vmatpush1.bf16.msra.mxu0 0
      %1210 = vmatprep.subr.bf16.mxu0 0
      %1211 = vmatpush1.bf16.msra.mxu0 0
      %1212 = vmatprep.subr.bf16.mxu0 0
      %1213 = vmatpush1.bf16.msra.mxu0 0
      %1214 = vmatprep.subr.bf16.mxu0 0
      %1215 = vmatpush1.bf16.msra.mxu0 0
      %1216 = vmatprep.subr.bf16.mxu0 0
      %1217 = vmatpush1.bf16.msra.mxu0 0
      %1218 = vmatprep.subr.bf16.mxu0 0
      %1219 = vmatpush1.bf16.msra.mxu0 0
      %1220 = vmatprep.subr.bf16.mxu0 0
      %1221 = vmatpush1.bf16.msra.mxu0 0
      %1222 = vmatprep.subr.bf16.mxu0 0
      %1223 = vmatpush1.bf16.msra.mxu0 0
      %1224 = vmatprep.subr.bf16.mxu0 0
      %1225 = vmatpush1.bf16.msra.mxu0 0
      %1226 = vmatprep.subr.bf16.mxu0 0
      %1227 = vmatpush1.bf16.msra.mxu0 0
      %1228 = vmatprep.mubr.bf16.mxu0 0
      %1229 = vmatmul.mubr.bf16.gmra.mrb[0].mxu0 %v406
      %v1230 = vpop.f32.mrb[0].mxu0
      %v1231 = vadd.f32 0.0, %v1230
      %v1232 = vpop.f32.mrb[0].mxu0
      %v1233 = vpop.f32.mrb[0].mxu0
      %v1234 = vadd.f32 0.0, %v1233
      %v1235 = vpop.f32.mrb[0].mxu0
      %1236 = vmatprep.mubr.bf16.mxu0 0
      %1237 = vmatmul.mubr.bf16.gmra.mrb[0].mxu0 %v409
      %v1238 = vpop.f32.mrb[0].mxu0
      %v1239 = vadd.f32 0.0, %v1238
      %v1240 = vpop.f32.mrb[0].mxu0
      %v1241 = vpop.f32.mrb[0].mxu0
      %v1242 = vadd.f32 0.0, %v1241
      %v1243 = vpop.f32.mrb[0].mxu0
      %1244 = vmatprep.mubr.bf16.mxu0 0
      %1245 = vmatmul.mubr.bf16.gmra.mrb[0].mxu0 %v412
      %v1246 = vpop.f32.mrb[0].mxu0
      %v1247 = vadd.f32 0.0, %v1246
      %v1248 = vpop.f32.mrb[0].mxu0
      %v1249 = vpop.f32.mrb[0].mxu0
      %v1250 = vadd.f32 0.0, %v1249
      %v1251 = vpop.f32.mrb[0].mxu0
      %1252 = vmatprep.mubr.bf16.mxu0 0
      %1253 = vmatmul.mubr.bf16.gmra.mrb[0].mxu0 %v415
      %v1254 = vpop.f32.mrb[0].mxu0
      %v1255 = vadd.f32 0.0, %v1254
      %v1256 = vpop.f32.mrb[0].mxu0
      %v1257 = vpop.f32.mrb[0].mxu0
      %v1258 = vadd.f32 0.0, %v1257
      %v1259 = vpop.f32.mrb[0].mxu0
      %1260 = vmatprep.mubr.bf16.mxu0 0
      %1261 = vmatmul.mubr.bf16.gmra.mrb[0].mxu0 %v418
      %v1262 = vpop.f32.mrb[0].mxu0
      %v1263 = vadd.f32 0.0, %v1262
      %v1264 = vpop.f32.mrb[0].mxu0
      %v1265 = vpop.f32.mrb[0].mxu0
      %v1266 = vpop.f32.mrb[0].mxu0
      %1267 = vdwg.mxu0
      %1268 = vmatprep.subr.bf16.mxu0 0
      %1269 = vmatpush1.bf16.msra.mxu0 %v315
      %1270 = vmatprep.subr.bf16.mxu0 0
      %1271 = vmatpush1.bf16.msra.mxu0 0
      %1272 = vmatprep.subr.bf16.mxu0 0
      %1273 = vmatpush1.bf16.msra.mxu0 0
      %1274 = vmatprep.subr.bf16.mxu0 0
      %1275 = vmatpush1.bf16.msra.mxu0 0
      %1276 = vmatprep.subr.bf16.mxu0 0
      %1277 = vmatpush1.bf16.msra.mxu0 0
      %1278 = vmatprep.subr.bf16.mxu0 0
      %1279 = vmatpush1.bf16.msra.mxu0 0
      %1280 = vmatprep.subr.bf16.mxu0 0
      %1281 = vmatpush1.bf16.msra.mxu0 0
      %1282 = vmatprep.subr.bf16.mxu0 0
      %1283 = vmatpush1.bf16.msra.mxu0 0
      %1284 = vmatprep.subr.bf16.mxu0 0
      %1285 = vmatpush1.bf16.msra.mxu0 0
      %1286 = vmatprep.subr.bf16.mxu0 0
      %1287 = vmatpush1.bf16.msra.mxu0 0
      %1288 = vmatprep.subr.bf16.mxu0 0
      %1289 = vmatpush1.bf16.msra.mxu0 0
      %1290 = vmatprep.subr.bf16.mxu0 0
      %1291 = vmatpush1.bf16.msra.mxu0 0
      %1292 = vmatprep.subr.bf16.mxu0 0
      %1293 = vmatpush1.bf16.msra.mxu0 0
      %1294 = vmatprep.subr.bf16.mxu0 0
      %1295 = vmatpush1.bf16.msra.mxu0 0
      %1296 = vmatprep.subr.bf16.mxu0 0
      %1297 = vmatpush1.bf16.msra.mxu0 0
      %1298 = vmatprep.subr.bf16.mxu0 0
      %1299 = vmatpush1.bf16.msra.mxu0 0
      %1300 = vmatprep.mubr.bf16.mxu0 0
      %1301 = vmatmul.mubr.bf16.gmra.mrb[0].mxu0 %v206
      %v1302 = vpop.f32.mrb[0].mxu0
      %v1303 = vadd.f32 %v1231, %v1302
      %v1304 = vpop.f32.mrb[0].mxu0
      %v1305 = vpop.f32.mrb[0].mxu0
      %v1306 = vadd.f32 %v1234, %v1305
      %v1307 = vpop.f32.mrb[0].mxu0
      %1308 = vmatprep.mubr.bf16.mxu0 0
      %1309 = vmatmul.mubr.bf16.gmra.mrb[0].mxu0 %v209
      %v1310 = vpop.f32.mrb[0].mxu0
      %v1311 = vadd.f32 %v1239, %v1310
      %v1312 = vpop.f32.mrb[0].mxu0
      %v1313 = vpop.f32.mrb[0].mxu0
      %v1314 = vadd.f32 %v1242, %v1313
      %v1315 = vpop.f32.mrb[0].mxu0
      %1316 = vmatprep.mubr.bf16.mxu0 0
      %1317 = vmatmul.mubr.bf16.gmra.mrb[0].mxu0 %v212
      %v1318 = vpop.f32.mrb[0].mxu0
      %v1319 = vadd.f32 %v1247, %v1318
      %v1320 = vpop.f32.mrb[0].mxu0
      %v1321 = vpop.f32.mrb[0].mxu0
      %v1322 = vadd.f32 %v1250, %v1321
      %v1323 = vpop.f32.mrb[0].mxu0
      %1324 = vmatprep.mubr.bf16.mxu0 0
      %1325 = vmatmul.mubr.bf16.gmra.mrb[0].mxu0 %v215
      %v1326 = vpop.f32.mrb[0].mxu0
      %v1327 = vadd.f32 %v1255, %v1326
      %v1328 = vpop.f32.mrb[0].mxu0
      %v1329 = vpop.f32.mrb[0].mxu0
      %v1330 = vadd.f32 %v1258, %v1329
      %v1331 = vpop.f32.mrb[0].mxu0
      %1332 = vmatprep.mubr.bf16.mxu0 0
      %1333 = vmatmul.mubr.bf16.gmra.mrb[0].mxu0 %v218
      %v1334 = vpop.f32.mrb[0].mxu0
      %v1335 = vadd.f32 %v1263, %v1334
      %v1336 = vpop.f32.mrb[0].mxu0
      %v1337 = vpop.f32.mrb[0].mxu0
      %v1338 = vpop.f32.mrb[0].mxu0
      %1339 = vdwg.mxu0
      %v1340 = vld [vmem:[%s187 + $0x1] sm:$0xff]
      %v1341 = vld [vmem:[%s187 + $0x9] sm:$0xff]
      %v1342 = vld [vmem:[%s187 + $0x11] sm:$0xff]
      %v1343 = vld [vmem:[%s187 + $0x19] sm:$0xff]
      %v1344 = vld [vmem:[%s187 + $0x21] sm:$0xff]
      %v1345 = vld [vmem:[%s187 + $0x29] sm:$0xff]
      %v1346 = vld [vmem:[%s187 + $0x31] sm:$0xff]
      %v1347 = vld [vmem:[%s187 + $0x39] sm:$0xff]
      %v1348 = vld [vmem:[%s187 + $0x41] sm:$0xff]
      %v1349 = vpack.c.bf16 %v1341, %v1340
      %v1350 = vpack.c.bf16 %v1343, %v1342
      %v1351 = vpack.c.bf16 %v1345, %v1344
      %v1352 = vpack.c.bf16 %v1347, %v1346
      %v1353 = vpack.c.bf16 %v1348, %v1348
      %v1355 = vsel %vm204, %v1349, 0
      %v1358 = vsel %vm204, %v1350, 0
      %v1361 = vsel %vm204, %v1351, 0
      %v1364 = vsel %vm204, %v1352, 0
      %v1367 = vsel %vm204, %v1353, 0
      %1369 = vmatprep.subr.bf16.mxu0 0
      %1370 = vmatpush1.bf16.msra.mxu0 %v421
      %1371 = vmatprep.subr.bf16.mxu0 0
      %1372 = vmatpush1.bf16.msra.mxu0 0
      %1373 = vmatprep.subr.bf16.mxu0 0
      %1374 = vmatpush1.bf16.msra.mxu0 0
      %1375 = vmatprep.subr.bf16.mxu0 0
      %1376 = vmatpush1.bf16.msra.mxu0 0
      %1377 = vmatprep.subr.bf16.mxu0 0
      %1378 = vmatpush1.bf16.msra.mxu0 0
      %1379 = vmatprep.subr.bf16.mxu0 0
      %1380 = vmatpush1.bf16.msra.mxu0 0
      %1381 = vmatprep.subr.bf16.mxu0 0
      %1382 = vmatpush1.bf16.msra.mxu0 0
      %1383 = vmatprep.subr.bf16.mxu0 0
      %1384 = vmatpush1.bf16.msra.mxu0 0
      %1385 = vmatprep.subr.bf16.mxu0 0
      %1386 = vmatpush1.bf16.msra.mxu0 0
      %1387 = vmatprep.subr.bf16.mxu0 0
      %1388 = vmatpush1.bf16.msra.mxu0 0
      %1389 = vmatprep.subr.bf16.mxu0 0
      %1390 = vmatpush1.bf16.msra.mxu0 0
      %1391 = vmatprep.subr.bf16.mxu0 0
      %1392 = vmatpush1.bf16.msra.mxu0 0
      %1393 = vmatprep.subr.bf16.mxu0 0
      %1394 = vmatpush1.bf16.msra.mxu0 0
      %1395 = vmatprep.subr.bf16.mxu0 0
      %1396 = vmatpush1.bf16.msra.mxu0 0
      %1397 = vmatprep.subr.bf16.mxu0 0
      %1398 = vmatpush1.bf16.msra.mxu0 0
      %1399 = vmatprep.subr.bf16.mxu0 0
      %1400 = vmatpush1.bf16.msra.mxu0 0
      %1401 = vmatprep.mubr.bf16.mxu0 0
      %1402 = vmatmul.mubr.bf16.gmra.mrb[0].mxu0 %v1355
      %v1403 = vpop.f32.mrb[0].mxu0
      %v1404 = vadd.f32 0.0, %v1403
      %v1405 = vpop.f32.mrb[0].mxu0
      %v1406 = vpop.f32.mrb[0].mxu0
      %v1407 = vadd.f32 0.0, %v1406
      %v1408 = vpop.f32.mrb[0].mxu0
      %1409 = vmatprep.mubr.bf16.mxu0 0
      %1410 = vmatmul.mubr.bf16.gmra.mrb[0].mxu0 %v1358
      %v1411 = vpop.f32.mrb[0].mxu0
      %v1412 = vadd.f32 0.0, %v1411
      %v1413 = vpop.f32.mrb[0].mxu0
      %v1414 = vpop.f32.mrb[0].mxu0
      %v1415 = vadd.f32 0.0, %v1414
      %v1416 = vpop.f32.mrb[0].mxu0
      %1417 = vmatprep.mubr.bf16.mxu0 0
      %1418 = vmatmul.mubr.bf16.gmra.mrb[0].mxu0 %v1361
      %v1419 = vpop.f32.mrb[0].mxu0
      %v1420 = vadd.f32 0.0, %v1419
      %v1421 = vpop.f32.mrb[0].mxu0
      %v1422 = vpop.f32.mrb[0].mxu0
      %v1423 = vadd.f32 0.0, %v1422
      %v1424 = vpop.f32.mrb[0].mxu0
      %1425 = vmatprep.mubr.bf16.mxu0 0
      %1426 = vmatmul.mubr.bf16.gmra.mrb[0].mxu0 %v1364
      %v1427 = vpop.f32.mrb[0].mxu0
      %v1428 = vadd.f32 0.0, %v1427
      %v1429 = vpop.f32.mrb[0].mxu0
      %v1430 = vpop.f32.mrb[0].mxu0
      %v1431 = vadd.f32 0.0, %v1430
      %v1432 = vpop.f32.mrb[0].mxu0
      %1433 = vmatprep.mubr.bf16.mxu0 0
      %1434 = vmatmul.mubr.bf16.gmra.mrb[0].mxu0 %v1367
      %v1435 = vpop.f32.mrb[0].mxu0
      %v1436 = vadd.f32 0.0, %v1435
      %v1437 = vpop.f32.mrb[0].mxu0
      %v1438 = vpop.f32.mrb[0].mxu0
      %v1439 = vpop.f32.mrb[0].mxu0
      %1440 = vdwg.mxu0
      %v1441 = vadd.f32 %v1303, %v1404
      %v1442 = vadd.f32 %v1306, %v1407
      %v1443 = vadd.f32 %v1311, %v1412
      %v1444 = vadd.f32 %v1314, %v1415
      %v1445 = vadd.f32 %v1319, %v1420
      %v1446 = vadd.f32 %v1322, %v1423
      %v1447 = vadd.f32 %v1327, %v1428
      %v1448 = vadd.f32 %v1330, %v1431
      %v1449 = vadd.f32 %v1335, %v1436
      %1450 = vmatprep.subr.bf16.mxu0 0
      %1451 = vmatpush1.bf16.msra.mxu0 %v537
      %1452 = vmatprep.subr.bf16.mxu0 0
      %1453 = vmatpush1.bf16.msra.mxu0 0
      %1454 = vmatprep.subr.bf16.mxu0 0
      %1455 = vmatpush1.bf16.msra.mxu0 0
      %1456 = vmatprep.subr.bf16.mxu0 0
      %1457 = vmatpush1.bf16.msra.mxu0 0
      %1458 = vmatprep.subr.bf16.mxu0 0
      %1459 = vmatpush1.bf16.msra.mxu0 0
      %1460 = vmatprep.subr.bf16.mxu0 0
      %1461 = vmatpush1.bf16.msra.mxu0 0
      %1462 = vmatprep.subr.bf16.mxu0 0
      %1463 = vmatpush1.bf16.msra.mxu0 0
      %1464 = vmatprep.subr.bf16.mxu0 0
      %1465 = vmatpush1.bf16.msra.mxu0 0
      %1466 = vmatprep.subr.bf16.mxu0 0
      %1467 = vmatpush1.bf16.msra.mxu0 0
      %1468 = vmatprep.subr.bf16.mxu0 0
      %1469 = vmatpush1.bf16.msra.mxu0 0
      %1470 = vmatprep.subr.bf16.mxu0 0
      %1471 = vmatpush1.bf16.msra.mxu0 0
      %1472 = vmatprep.subr.bf16.mxu0 0
      %1473 = vmatpush1.bf16.msra.mxu0 0
      %1474 = vmatprep.subr.bf16.mxu0 0
      %1475 = vmatpush1.bf16.msra.mxu0 0
      %1476 = vmatprep.subr.bf16.mxu0 0
      %1477 = vmatpush1.bf16.msra.mxu0 0
      %1478 = vmatprep.subr.bf16.mxu0 0
      %1479 = vmatpush1.bf16.msra.mxu0 0
      %1480 = vmatprep.subr.bf16.mxu0 0
      %1481 = vmatpush1.bf16.msra.mxu0 0
      %1482 = vmatprep.mubr.bf16.mxu0 0
      %1483 = vmatmul.mubr.bf16.gmra.mrb[0].mxu0 %v638
      %v1484 = vpop.f32.mrb[0].mxu0
      %v1485 = vadd.f32 0.0, %v1484
      %v1486 = vpop.f32.mrb[0].mxu0
      %v1487 = vpop.f32.mrb[0].mxu0
      %v1488 = vadd.f32 0.0, %v1487
      %v1489 = vpop.f32.mrb[0].mxu0
      %1490 = vmatprep.mubr.bf16.mxu0 0
      %1491 = vmatmul.mubr.bf16.gmra.mrb[0].mxu0 %v641
      %v1492 = vpop.f32.mrb[0].mxu0
      %v1493 = vadd.f32 0.0, %v1492
      %v1494 = vpop.f32.mrb[0].mxu0
      %v1495 = vpop.f32.mrb[0].mxu0
      %v1496 = vadd.f32 0.0, %v1495
      %v1497 = vpop.f32.mrb[0].mxu0
      %1498 = vmatprep.mubr.bf16.mxu0 0
      %1499 = vmatmul.mubr.bf16.gmra.mrb[0].mxu0 %v644
      %v1500 = vpop.f32.mrb[0].mxu0
      %v1501 = vadd.f32 0.0, %v1500
      %v1502 = vpop.f32.mrb[0].mxu0
      %v1503 = vpop.f32.mrb[0].mxu0
      %v1504 = vadd.f32 0.0, %v1503
      %v1505 = vpop.f32.mrb[0].mxu0
      %1506 = vmatprep.mubr.bf16.mxu0 0
      %1507 = vmatmul.mubr.bf16.gmra.mrb[0].mxu0 %v647
      %v1508 = vpop.f32.mrb[0].mxu0
      %v1509 = vadd.f32 0.0, %v1508
      %v1510 = vpop.f32.mrb[0].mxu0
      %v1511 = vpop.f32.mrb[0].mxu0
      %v1512 = vadd.f32 0.0, %v1511
      %v1513 = vpop.f32.mrb[0].mxu0
      %1514 = vmatprep.mubr.bf16.mxu0 0
      %1515 = vmatmul.mubr.bf16.gmra.mrb[0].mxu0 %v650
      %v1516 = vpop.f32.mrb[0].mxu0
      %v1517 = vadd.f32 0.0, %v1516
      %v1518 = vpop.f32.mrb[0].mxu0
      %v1519 = vpop.f32.mrb[0].mxu0
      %v1520 = vpop.f32.mrb[0].mxu0
      %1521 = vdwg.mxu0
      %v1522 = vadd.f32 %v1441, %v1485
      %v1523 = vadd.f32 %v1442, %v1488
      %v1524 = vadd.f32 %v1443, %v1493
      %v1525 = vadd.f32 %v1444, %v1496
      %v1526 = vadd.f32 %v1445, %v1501
      %v1527 = vadd.f32 %v1446, %v1504
      %v1528 = vadd.f32 %v1447, %v1509
      %v1529 = vadd.f32 %v1448, %v1512
      %v1530 = vadd.f32 %v1449, %v1517
      %1531 = vmatprep.subr.bf16.mxu0 0
      %1532 = vmatpush1.bf16.msra.mxu0 %v653
      %1533 = vmatprep.subr.bf16.mxu0 0
      %1534 = vmatpush1.bf16.msra.mxu0 0
      %1535 = vmatprep.subr.bf16.mxu0 0
      %1536 = vmatpush1.bf16.msra.mxu0 0
      %1537 = vmatprep.subr.bf16.mxu0 0
      %1538 = vmatpush1.bf16.msra.mxu0 0
      %1539 = vmatprep.subr.bf16.mxu0 0
      %1540 = vmatpush1.bf16.msra.mxu0 0
      %1541 = vmatprep.subr.bf16.mxu0 0
      %1542 = vmatpush1.bf16.msra.mxu0 0
      %1543 = vmatprep.subr.bf16.mxu0 0
      %1544 = vmatpush1.bf16.msra.mxu0 0
      %1545 = vmatprep.subr.bf16.mxu0 0
      %1546 = vmatpush1.bf16.msra.mxu0 0
      %1547 = vmatprep.subr.bf16.mxu0 0
      %1548 = vmatpush1.bf16.msra.mxu0 0
      %1549 = vmatprep.subr.bf16.mxu0 0
      %1550 = vmatpush1.bf16.msra.mxu0 0
      %1551 = vmatprep.subr.bf16.mxu0 0
      %1552 = vmatpush1.bf16.msra.mxu0 0
      %1553 = vmatprep.subr.bf16.mxu0 0
      %1554 = vmatpush1.bf16.msra.mxu0 0
      %1555 = vmatprep.subr.bf16.mxu0 0
      %1556 = vmatpush1.bf16.msra.mxu0 0
      %1557 = vmatprep.subr.bf16.mxu0 0
      %1558 = vmatpush1.bf16.msra.mxu0 0
      %1559 = vmatprep.subr.bf16.mxu0 0
      %1560 = vmatpush1.bf16.msra.mxu0 0
      %1561 = vmatprep.subr.bf16.mxu0 0
      %1562 = vmatpush1.bf16.msra.mxu0 0
      %1563 = vmatprep.mubr.bf16.mxu0 0
      %1564 = vmatmul.mubr.bf16.gmra.mrb[0].mxu0 %v753
      %v1565 = vpop.f32.mrb[0].mxu0
      %v1566 = vadd.f32 0.0, %v1565
      %v1567 = vpop.f32.mrb[0].mxu0
      %v1568 = vpop.f32.mrb[0].mxu0
      %v1569 = vadd.f32 0.0, %v1568
      %v1570 = vpop.f32.mrb[0].mxu0
      %1571 = vmatprep.mubr.bf16.mxu0 0
      %1572 = vmatmul.mubr.bf16.gmra.mrb[0].mxu0 %v756
      %v1573 = vpop.f32.mrb[0].mxu0
      %v1574 = vadd.f32 0.0, %v1573
      %v1575 = vpop.f32.mrb[0].mxu0
      %v1576 = vpop.f32.mrb[0].mxu0
      %v1577 = vadd.f32 0.0, %v1576
      %v1578 = vpop.f32.mrb[0].mxu0
      %1579 = vmatprep.mubr.bf16.mxu0 0
      %1580 = vmatmul.mubr.bf16.gmra.mrb[0].mxu0 %v759
      %v1581 = vpop.f32.mrb[0].mxu0
      %v1582 = vadd.f32 0.0, %v1581
      %v1583 = vpop.f32.mrb[0].mxu0
      %v1584 = vpop.f32.mrb[0].mxu0
      %v1585 = vadd.f32 0.0, %v1584
      %v1586 = vpop.f32.mrb[0].mxu0
      %1587 = vmatprep.mubr.bf16.mxu0 0
      %1588 = vmatmul.mubr.bf16.gmra.mrb[0].mxu0 %v762
      %v1589 = vpop.f32.mrb[0].mxu0
      %v1590 = vadd.f32 0.0, %v1589
      %v1591 = vpop.f32.mrb[0].mxu0
      %v1592 = vpop.f32.mrb[0].mxu0
      %v1593 = vadd.f32 0.0, %v1592
      %v1594 = vpop.f32.mrb[0].mxu0
      %1595 = vmatprep.mubr.bf16.mxu0 0
      %1596 = vmatmul.mubr.bf16.gmra.mrb[0].mxu0 %v765
      %v1597 = vpop.f32.mrb[0].mxu0
      %v1598 = vadd.f32 0.0, %v1597
      %v1599 = vpop.f32.mrb[0].mxu0
      %v1600 = vpop.f32.mrb[0].mxu0
      %v1601 = vpop.f32.mrb[0].mxu0
      %1602 = vdwg.mxu0
      %v1603 = vadd.f32 %v1522, %v1566
      %v1604 = vadd.f32 %v1523, %v1569
      %v1605 = vadd.f32 %v1524, %v1574
      %v1606 = vadd.f32 %v1525, %v1577
      %v1607 = vadd.f32 %v1526, %v1582
      %v1608 = vadd.f32 %v1527, %v1585
      %v1609 = vadd.f32 %v1528, %v1590
      %v1610 = vadd.f32 %v1529, %v1593
      %v1611 = vadd.f32 %v1530, %v1598
      %v1612 = vld [vmem:[%s620 + $0x1] sm:$0xff]
      %v1613 = vld [vmem:[%s620 + $0x9] sm:$0xff]
      %v1614 = vld [vmem:[%s620 + $0x11] sm:$0xff]
      %v1615 = vld [vmem:[%s620 + $0x19] sm:$0xff]
      %v1616 = vld [vmem:[%s620 + $0x21] sm:$0xff]
      %v1617 = vld [vmem:[%s620 + $0x29] sm:$0xff]
      %v1618 = vld [vmem:[%s620 + $0x31] sm:$0xff]
      %v1619 = vld [vmem:[%s620 + $0x39] sm:$0xff]
      %v1620 = vld [vmem:[%s620 + $0x41] sm:$0xff]
      %v1621 = vpack.c.bf16 %v1613, %v1612
      %v1622 = vpack.c.bf16 %v1615, %v1614
      %v1623 = vpack.c.bf16 %v1617, %v1616
      %v1624 = vpack.c.bf16 %v1619, %v1618
      %v1625 = vpack.c.bf16 %v1620, %v1620
      %v1627 = vsel %vm204, %v1621, 0
      %v1630 = vsel %vm204, %v1622, 0
      %v1633 = vsel %vm204, %v1623, 0
      %v1636 = vsel %vm204, %v1624, 0
      %v1639 = vsel %vm204, %v1625, 0
      %1641 = vmatprep.subr.bf16.mxu0 0
      %1642 = vmatpush1.bf16.msra.mxu0 %v768
      %1643 = vmatprep.subr.bf16.mxu0 0
      %1644 = vmatpush1.bf16.msra.mxu0 0
      %1645 = vmatprep.subr.bf16.mxu0 0
      %1646 = vmatpush1.bf16.msra.mxu0 0
      %1647 = vmatprep.subr.bf16.mxu0 0
      %1648 = vmatpush1.bf16.msra.mxu0 0
      %1649 = vmatprep.subr.bf16.mxu0 0
      %1650 = vmatpush1.bf16.msra.mxu0 0
      %1651 = vmatprep.subr.bf16.mxu0 0
      %1652 = vmatpush1.bf16.msra.mxu0 0
      %1653 = vmatprep.subr.bf16.mxu0 0
      %1654 = vmatpush1.bf16.msra.mxu0 0
      %1655 = vmatprep.subr.bf16.mxu0 0
      %1656 = vmatpush1.bf16.msra.mxu0 0
      %1657 = vmatprep.subr.bf16.mxu0 0
      %1658 = vmatpush1.bf16.msra.mxu0 0
      %1659 = vmatprep.subr.bf16.mxu0 0
      %1660 = vmatpush1.bf16.msra.mxu0 0
      %1661 = vmatprep.subr.bf16.mxu0 0
      %1662 = vmatpush1.bf16.msra.mxu0 0
      %1663 = vmatprep.subr.bf16.mxu0 0
      %1664 = vmatpush1.bf16.msra.mxu0 0
      %1665 = vmatprep.subr.bf16.mxu0 0
      %1666 = vmatpush1.bf16.msra.mxu0 0
      %1667 = vmatprep.subr.bf16.mxu0 0
      %1668 = vmatpush1.bf16.msra.mxu0 0
      %1669 = vmatprep.subr.bf16.mxu0 0
      %1670 = vmatpush1.bf16.msra.mxu0 0
      %1671 = vmatprep.subr.bf16.mxu0 0
      %1672 = vmatpush1.bf16.msra.mxu0 0
      %1673 = vmatprep.mubr.bf16.mxu0 0
      %1674 = vmatmul.mubr.bf16.gmra.mrb[0].mxu0 %v1627
      %v1675 = vpop.f32.mrb[0].mxu0
      %v1676 = vadd.f32 0.0, %v1675
      %v1677 = vpop.f32.mrb[0].mxu0
      %v1678 = vpop.f32.mrb[0].mxu0
      %v1679 = vadd.f32 0.0, %v1678
      %v1680 = vpop.f32.mrb[0].mxu0
      %1681 = vmatprep.mubr.bf16.mxu0 0
      %1682 = vmatmul.mubr.bf16.gmra.mrb[0].mxu0 %v1630
      %v1683 = vpop.f32.mrb[0].mxu0
      %v1684 = vadd.f32 0.0, %v1683
      %v1685 = vpop.f32.mrb[0].mxu0
      %v1686 = vpop.f32.mrb[0].mxu0
      %v1687 = vadd.f32 0.0, %v1686
      %v1688 = vpop.f32.mrb[0].mxu0
      %1689 = vmatprep.mubr.bf16.mxu0 0
      %1690 = vmatmul.mubr.bf16.gmra.mrb[0].mxu0 %v1633
      %v1691 = vpop.f32.mrb[0].mxu0
      %v1692 = vadd.f32 0.0, %v1691
      %v1693 = vpop.f32.mrb[0].mxu0
      %v1694 = vpop.f32.mrb[0].mxu0
      %v1695 = vadd.f32 0.0, %v1694
      %v1696 = vpop.f32.mrb[0].mxu0
      %1697 = vmatprep.mubr.bf16.mxu0 0
      %1698 = vmatmul.mubr.bf16.gmra.mrb[0].mxu0 %v1636
      %v1699 = vpop.f32.mrb[0].mxu0
      %v1700 = vadd.f32 0.0, %v1699
      %v1701 = vpop.f32.mrb[0].mxu0
      %v1702 = vpop.f32.mrb[0].mxu0
      %v1703 = vadd.f32 0.0, %v1702
      %v1704 = vpop.f32.mrb[0].mxu0
      %1705 = vmatprep.mubr.bf16.mxu0 0
      %1706 = vmatmul.mubr.bf16.gmra.mrb[0].mxu0 %v1639
      %v1707 = vpop.f32.mrb[0].mxu0
      %v1708 = vadd.f32 0.0, %v1707
      %v1709 = vpop.f32.mrb[0].mxu0
      %v1710 = vpop.f32.mrb[0].mxu0
      %v1711 = vpop.f32.mrb[0].mxu0
      %1712 = vdwg.mxu0
      %v1713 = vadd.f32 %v1603, %v1676
      %v1714 = vadd.f32 %v1604, %v1679
      %v1715 = vadd.f32 %v1605, %v1684
      %v1716 = vadd.f32 %v1606, %v1687
      %v1717 = vadd.f32 %v1607, %v1692
      %v1718 = vadd.f32 %v1608, %v1695
      %v1719 = vadd.f32 %v1609, %v1700
      %v1720 = vadd.f32 %v1610, %v1703
      %v1721 = vadd.f32 %v1611, %v1708
      %1722 = vmatprep.subr.bf16.mxu0 0
      %1723 = vmatpush1.bf16.msra.mxu0 %v883
      %1724 = vmatprep.subr.bf16.mxu0 0
      %1725 = vmatpush1.bf16.msra.mxu0 0
      %1726 = vmatprep.subr.bf16.mxu0 0
      %1727 = vmatpush1.bf16.msra.mxu0 0
      %1728 = vmatprep.subr.bf16.mxu0 0
      %1729 = vmatpush1.bf16.msra.mxu0 0
      %1730 = vmatprep.subr.bf16.mxu0 0
      %1731 = vmatpush1.bf16.msra.mxu0 0
      %1732 = vmatprep.subr.bf16.mxu0 0
      %1733 = vmatpush1.bf16.msra.mxu0 0
      %1734 = vmatprep.subr.bf16.mxu0 0
      %1735 = vmatpush1.bf16.msra.mxu0 0
      %1736 = vmatprep.subr.bf16.mxu0 0
      %1737 = vmatpush1.bf16.msra.mxu0 0
      %1738 = vmatprep.subr.bf16.mxu0 0
      %1739 = vmatpush1.bf16.msra.mxu0 0
      %1740 = vmatprep.subr.bf16.mxu0 0
      %1741 = vmatpush1.bf16.msra.mxu0 0
      %1742 = vmatprep.subr.bf16.mxu0 0
      %1743 = vmatpush1.bf16.msra.mxu0 0
      %1744 = vmatprep.subr.bf16.mxu0 0
      %1745 = vmatpush1.bf16.msra.mxu0 0
      %1746 = vmatprep.subr.bf16.mxu0 0
      %1747 = vmatpush1.bf16.msra.mxu0 0
      %1748 = vmatprep.subr.bf16.mxu0 0
      %1749 = vmatpush1.bf16.msra.mxu0 0
      %1750 = vmatprep.subr.bf16.mxu0 0
      %1751 = vmatpush1.bf16.msra.mxu0 0
      %1752 = vmatprep.subr.bf16.mxu0 0
      %1753 = vmatpush1.bf16.msra.mxu0 0
      %1754 = vmatprep.mubr.bf16.mxu0 0
      %1755 = vmatmul.mubr.bf16.gmra.mrb[0].mxu0 %v983
      %v1756 = vpop.f32.mrb[0].mxu0
      %v1757 = vadd.f32 0.0, %v1756
      %v1758 = vpop.f32.mrb[0].mxu0
      %v1759 = vpop.f32.mrb[0].mxu0
      %v1760 = vadd.f32 0.0, %v1759
      %v1761 = vpop.f32.mrb[0].mxu0
      %1762 = vmatprep.mubr.bf16.mxu0 0
      %1763 = vmatmul.mubr.bf16.gmra.mrb[0].mxu0 %v986
      %v1764 = vpop.f32.mrb[0].mxu0
      %v1765 = vadd.f32 0.0, %v1764
      %v1766 = vpop.f32.mrb[0].mxu0
      %v1767 = vpop.f32.mrb[0].mxu0
      %v1768 = vadd.f32 0.0, %v1767
      %v1769 = vpop.f32.mrb[0].mxu0
      %1770 = vmatprep.mubr.bf16.mxu0 0
      %1771 = vmatmul.mubr.bf16.gmra.mrb[0].mxu0 %v989
      %v1772 = vpop.f32.mrb[0].mxu0
      %v1773 = vadd.f32 0.0, %v1772
      %v1774 = vpop.f32.mrb[0].mxu0
      %v1775 = vpop.f32.mrb[0].mxu0
      %v1776 = vadd.f32 0.0, %v1775
      %v1777 = vpop.f32.mrb[0].mxu0
      %1778 = vmatprep.mubr.bf16.mxu0 0
      %1779 = vmatmul.mubr.bf16.gmra.mrb[0].mxu0 %v992
      %v1780 = vpop.f32.mrb[0].mxu0
      %v1781 = vadd.f32 0.0, %v1780
      %v1782 = vpop.f32.mrb[0].mxu0
      %v1783 = vpop.f32.mrb[0].mxu0
      %v1784 = vadd.f32 0.0, %v1783
      %v1785 = vpop.f32.mrb[0].mxu0
      %1786 = vmatprep.mubr.bf16.mxu0 0
      %1787 = vmatmul.mubr.bf16.gmra.mrb[0].mxu0 %v995
      %v1788 = vpop.f32.mrb[0].mxu0
      %v1789 = vadd.f32 0.0, %v1788
      %v1790 = vpop.f32.mrb[0].mxu0
      %v1791 = vpop.f32.mrb[0].mxu0
      %v1792 = vpop.f32.mrb[0].mxu0
      %1793 = vdwg.mxu0
      %v1794 = vadd.f32 %v1713, %v1757
      %v1795 = vadd.f32 %v1714, %v1760
      %v1796 = vadd.f32 %v1715, %v1765
      %v1797 = vadd.f32 %v1716, %v1768
      %v1798 = vadd.f32 %v1717, %v1773
      %v1799 = vadd.f32 %v1718, %v1776
      %v1800 = vadd.f32 %v1719, %v1781
      %v1801 = vadd.f32 %v1720, %v1784
      %v1802 = vadd.f32 %v1721, %v1789
      %1803 = vmatprep.subr.bf16.mxu0 0
      %1804 = vmatpush1.bf16.msra.mxu0 %v998
      %1805 = vmatprep.subr.bf16.mxu0 0
      %1806 = vmatpush1.bf16.msra.mxu0 0
      %1807 = vmatprep.subr.bf16.mxu0 0
      %1808 = vmatpush1.bf16.msra.mxu0 0
      %1809 = vmatprep.subr.bf16.mxu0 0
      %1810 = vmatpush1.bf16.msra.mxu0 0
      %1811 = vmatprep.subr.bf16.mxu0 0
      %1812 = vmatpush1.bf16.msra.mxu0 0
      %1813 = vmatprep.subr.bf16.mxu0 0
      %1814 = vmatpush1.bf16.msra.mxu0 0
      %1815 = vmatprep.subr.bf16.mxu0 0
      %1816 = vmatpush1.bf16.msra.mxu0 0
      %1817 = vmatprep.subr.bf16.mxu0 0
      %1818 = vmatpush1.bf16.msra.mxu0 0
      %1819 = vmatprep.subr.bf16.mxu0 0
      %1820 = vmatpush1.bf16.msra.mxu0 0
      %1821 = vmatprep.subr.bf16.mxu0 0
      %1822 = vmatpush1.bf16.msra.mxu0 0
      %1823 = vmatprep.subr.bf16.mxu0 0
      %1824 = vmatpush1.bf16.msra.mxu0 0
      %1825 = vmatprep.subr.bf16.mxu0 0
      %1826 = vmatpush1.bf16.msra.mxu0 0
      %1827 = vmatprep.subr.bf16.mxu0 0
      %1828 = vmatpush1.bf16.msra.mxu0 0
      %1829 = vmatprep.subr.bf16.mxu0 0
      %1830 = vmatpush1.bf16.msra.mxu0 0
      %1831 = vmatprep.subr.bf16.mxu0 0
      %1832 = vmatpush1.bf16.msra.mxu0 0
      %1833 = vmatprep.subr.bf16.mxu0 0
      %1834 = vmatpush1.bf16.msra.mxu0 0
      %1835 = vmatprep.mubr.bf16.mxu0 0
      %1836 = vmatmul.mubr.bf16.gmra.mrb[0].mxu0 %v1098
      %v1837 = vpop.f32.mrb[0].mxu0
      %v1838 = vadd.f32 0.0, %v1837
      %v1839 = vpop.f32.mrb[0].mxu0
      %v1840 = vpop.f32.mrb[0].mxu0
      %v1841 = vadd.f32 0.0, %v1840
      %v1842 = vpop.f32.mrb[0].mxu0
      %1843 = vmatprep.mubr.bf16.mxu0 0
      %1844 = vmatmul.mubr.bf16.gmra.mrb[0].mxu0 %v1101
      %v1845 = vpop.f32.mrb[0].mxu0
      %v1846 = vadd.f32 0.0, %v1845
      %v1847 = vpop.f32.mrb[0].mxu0
      %v1848 = vpop.f32.mrb[0].mxu0
      %v1849 = vadd.f32 0.0, %v1848
      %v1850 = vpop.f32.mrb[0].mxu0
      %1851 = vmatprep.mubr.bf16.mxu0 0
      %1852 = vmatmul.mubr.bf16.gmra.mrb[0].mxu0 %v1104
      %v1853 = vpop.f32.mrb[0].mxu0
      %v1854 = vadd.f32 0.0, %v1853
      %v1855 = vpop.f32.mrb[0].mxu0
      %v1856 = vpop.f32.mrb[0].mxu0
      %v1857 = vadd.f32 0.0, %v1856
      %v1858 = vpop.f32.mrb[0].mxu0
      %1859 = vmatprep.mubr.bf16.mxu0 0
      %1860 = vmatmul.mubr.bf16.gmra.mrb[0].mxu0 %v1107
      %v1861 = vpop.f32.mrb[0].mxu0
      %v1862 = vadd.f32 0.0, %v1861
      %v1863 = vpop.f32.mrb[0].mxu0
      %v1864 = vpop.f32.mrb[0].mxu0
      %v1865 = vadd.f32 0.0, %v1864
      %v1866 = vpop.f32.mrb[0].mxu0
      %1867 = vmatprep.mubr.bf16.mxu0 0
      %1868 = vmatmul.mubr.bf16.gmra.mrb[0].mxu0 %v1110
      %v1869 = vpop.f32.mrb[0].mxu0
      %v1870 = vadd.f32 0.0, %v1869
      %v1871 = vpop.f32.mrb[0].mxu0
      %v1872 = vpop.f32.mrb[0].mxu0
      %v1873 = vpop.f32.mrb[0].mxu0
      %1874 = vdwg.mxu0
      %v1875 = vadd.f32 %v1794, %v1838
      %v1876 = vadd.f32 %v1795, %v1841
      %v1877 = vadd.f32 %v1796, %v1846
      %v1878 = vadd.f32 %v1797, %v1849
      %v1879 = vadd.f32 %v1798, %v1854
      %v1880 = vadd.f32 %v1799, %v1857
      %v1881 = vadd.f32 %v1800, %v1862
      %v1882 = vadd.f32 %v1801, %v1865
      %v1883 = vadd.f32 %v1802, %v1870
      %v1884 = vld [vmem:[%s187 + $0xa] sm:$0xff]
      %v1885 = vld [vmem:[%s187 + $0x12] sm:$0xff]
      %v1886 = vld [vmem:[%s187 + $0x1a] sm:$0xff]
      %v1887 = vld [vmem:[%s187 + $0x22] sm:$0xff]
      %v1888 = vld [vmem:[%s187 + $0x2a] sm:$0xff]
      %v1889 = vld [vmem:[%s187 + $0x32] sm:$0xff]
      %v1890 = vld [vmem:[%s187 + $0x3a] sm:$0xff]
      %v1891 = vld [vmem:[%s187 + $0x42] sm:$0xff]
      %v1892 = vld [vmem:[%s187 + $0x4a] sm:$0xff]
      %v1893 = vpack.c.bf16 %v1885, %v1884
      %v1894 = vpack.c.bf16 %v1887, %v1886
      %v1895 = vpack.c.bf16 %v1889, %v1888
      %v1896 = vpack.c.bf16 %v1891, %v1890
      %v1897 = vpack.c.bf16 %v1892, %v1892
      %v1899 = vsel %vm204, %v1893, 0
      %v1902 = vsel %vm204, %v1894, 0
      %v1905 = vsel %vm204, %v1895, 0
      %v1908 = vsel %vm204, %v1896, 0
      %v1911 = vsel %vm204, %v1897, 0
      %1913 = vmatprep.subr.bf16.mxu0 0
      %1914 = vmatpush1.bf16.msra.mxu0 %v1113
      %1915 = vmatprep.subr.bf16.mxu0 0
      %1916 = vmatpush1.bf16.msra.mxu0 0
      %1917 = vmatprep.subr.bf16.mxu0 0
      %1918 = vmatpush1.bf16.msra.mxu0 0
      %1919 = vmatprep.subr.bf16.mxu0 0
      %1920 = vmatpush1.bf16.msra.mxu0 0
      %1921 = vmatprep.subr.bf16.mxu0 0
      %1922 = vmatpush1.bf16.msra.mxu0 0
      %1923 = vmatprep.subr.bf16.mxu0 0
      %1924 = vmatpush1.bf16.msra.mxu0 0
      %1925 = vmatprep.subr.bf16.mxu0 0
      %1926 = vmatpush1.bf16.msra.mxu0 0
      %1927 = vmatprep.subr.bf16.mxu0 0
      %1928 = vmatpush1.bf16.msra.mxu0 0
      %1929 = vmatprep.subr.bf16.mxu0 0
      %1930 = vmatpush1.bf16.msra.mxu0 0
      %1931 = vmatprep.subr.bf16.mxu0 0
      %1932 = vmatpush1.bf16.msra.mxu0 0
      %1933 = vmatprep.subr.bf16.mxu0 0
      %1934 = vmatpush1.bf16.msra.mxu0 0
      %1935 = vmatprep.subr.bf16.mxu0 0
      %1936 = vmatpush1.bf16.msra.mxu0 0
      %1937 = vmatprep.subr.bf16.mxu0 0
      %1938 = vmatpush1.bf16.msra.mxu0 0
      %1939 = vmatprep.subr.bf16.mxu0 0
      %1940 = vmatpush1.bf16.msra.mxu0 0
      %1941 = vmatprep.subr.bf16.mxu0 0
      %1942 = vmatpush1.bf16.msra.mxu0 0
      %1943 = vmatprep.subr.bf16.mxu0 0
      %1944 = vmatpush1.bf16.msra.mxu0 0
      %1945 = vmatprep.mubr.bf16.mxu0 0
      %1946 = vmatmul.mubr.bf16.gmra.mrb[0].mxu0 %v1899
      %v1947 = vpop.f32.mrb[0].mxu0
      %v1948 = vadd.f32 0.0, %v1947
      %v1949 = vpop.f32.mrb[0].mxu0
      %v1950 = vpop.f32.mrb[0].mxu0
      %v1951 = vadd.f32 0.0, %v1950
      %v1952 = vpop.f32.mrb[0].mxu0
      %1953 = vmatprep.mubr.bf16.mxu0 0
      %1954 = vmatmul.mubr.bf16.gmra.mrb[0].mxu0 %v1902
      %v1955 = vpop.f32.mrb[0].mxu0
      %v1956 = vadd.f32 0.0, %v1955
      %v1957 = vpop.f32.mrb[0].mxu0
      %v1958 = vpop.f32.mrb[0].mxu0
      %v1959 = vadd.f32 0.0, %v1958
      %v1960 = vpop.f32.mrb[0].mxu0
      %1961 = vmatprep.mubr.bf16.mxu0 0
      %1962 = vmatmul.mubr.bf16.gmra.mrb[0].mxu0 %v1905
      %v1963 = vpop.f32.mrb[0].mxu0
      %v1964 = vadd.f32 0.0, %v1963
      %v1965 = vpop.f32.mrb[0].mxu0
      %v1966 = vpop.f32.mrb[0].mxu0
      %v1967 = vadd.f32 0.0, %v1966
      %v1968 = vpop.f32.mrb[0].mxu0
      %1969 = vmatprep.mubr.bf16.mxu0 0
      %1970 = vmatmul.mubr.bf16.gmra.mrb[0].mxu0 %v1908
      %v1971 = vpop.f32.mrb[0].mxu0
      %v1972 = vadd.f32 0.0, %v1971
      %v1973 = vpop.f32.mrb[0].mxu0
      %v1974 = vpop.f32.mrb[0].mxu0
      %v1975 = vadd.f32 0.0, %v1974
      %v1976 = vpop.f32.mrb[0].mxu0
      %1977 = vmatprep.mubr.bf16.mxu0 0
      %1978 = vmatmul.mubr.bf16.gmra.mrb[0].mxu0 %v1911
      %v1979 = vpop.f32.mrb[0].mxu0
      %v1980 = vadd.f32 0.0, %v1979
      %v1981 = vpop.f32.mrb[0].mxu0
      %v1982 = vpop.f32.mrb[0].mxu0
      %v1983 = vpop.f32.mrb[0].mxu0
      %1984 = vdwg.mxu0
      %v1985 = vadd.f32 %v1875, %v1948
      %v1986 = vadd.f32 %v1876, %v1951
      %v1987 = vadd.f32 %v1877, %v1956
      %v1988 = vadd.f32 %v1878, %v1959
      %v1989 = vadd.f32 %v1879, %v1964
      %v1990 = vadd.f32 %v1880, %v1967
      %v1991 = vadd.f32 %v1881, %v1972
      %v1992 = vadd.f32 %v1882, %v1975
      %v1993 = vadd.f32 %v1883, %v1980
      %v1994 = vmax.f32 %v1187, %v1985
      %v1995 = vmax.f32 %v1188, %v1986
      %v1996 = vmax.f32 %v1189, %v1987
      %v1997 = vmax.f32 %v1190, %v1988
      %v1998 = vmax.f32 %v1191, %v1989
      %v1999 = vmax.f32 %v1192, %v1990
      %v2000 = vmax.f32 %v1193, %v1991
      %v2001 = vmax.f32 %v1194, %v1992
      %v2002 = vmax.f32 %v1195, %v1993
      %2003 = vmatprep.subr.bf16.mxu0 0
      %2004 = vmatpush1.bf16.msra.mxu0 %v225
      %2005 = vmatprep.subr.bf16.mxu0 0
      %2006 = vmatpush1.bf16.msra.mxu0 0
      %2007 = vmatprep.subr.bf16.mxu0 0
      %2008 = vmatpush1.bf16.msra.mxu0 0
      %2009 = vmatprep.subr.bf16.mxu0 0
      %2010 = vmatpush1.bf16.msra.mxu0 0
      %2011 = vmatprep.subr.bf16.mxu0 0
      %2012 = vmatpush1.bf16.msra.mxu0 0
      %2013 = vmatprep.subr.bf16.mxu0 0
      %2014 = vmatpush1.bf16.msra.mxu0 0
      %2015 = vmatprep.subr.bf16.mxu0 0
      %2016 = vmatpush1.bf16.msra.mxu0 0
      %2017 = vmatprep.subr.bf16.mxu0 0
      %2018 = vmatpush1.bf16.msra.mxu0 0
      %2019 = vmatprep.subr.bf16.mxu0 0
      %2020 = vmatpush1.bf16.msra.mxu0 0
      %2021 = vmatprep.subr.bf16.mxu0 0
      %2022 = vmatpush1.bf16.msra.mxu0 0
      %2023 = vmatprep.subr.bf16.mxu0 0
      %2024 = vmatpush1.bf16.msra.mxu0 0
      %2025 = vmatprep.subr.bf16.mxu0 0
      %2026 = vmatpush1.bf16.msra.mxu0 0
      %2027 = vmatprep.subr.bf16.mxu0 0
      %2028 = vmatpush1.bf16.msra.mxu0 0
      %2029 = vmatprep.subr.bf16.mxu0 0
      %2030 = vmatpush1.bf16.msra.mxu0 0
      %2031 = vmatprep.subr.bf16.mxu0 0
      %2032 = vmatpush1.bf16.msra.mxu0 0
      %2033 = vmatprep.subr.bf16.mxu0 0
      %2034 = vmatpush1.bf16.msra.mxu0 0
      %2035 = vmatprep.mubr.bf16.mxu0 0
      %2036 = vmatmul.mubr.bf16.gmra.mrb[0].mxu0 %v638
      %v2037 = vpop.f32.mrb[0].mxu0
      %v2038 = vadd.f32 0.0, %v2037
      %v2039 = vpop.f32.mrb[0].mxu0
      %v2040 = vpop.f32.mrb[0].mxu0
      %v2041 = vadd.f32 0.0, %v2040
      %v2042 = vpop.f32.mrb[0].mxu0
      %2043 = vmatprep.mubr.bf16.mxu0 0
      %2044 = vmatmul.mubr.bf16.gmra.mrb[0].mxu0 %v641
      %v2045 = vpop.f32.mrb[0].mxu0
      %v2046 = vadd.f32 0.0, %v2045
      %v2047 = vpop.f32.mrb[0].mxu0
      %v2048 = vpop.f32.mrb[0].mxu0
      %v2049 = vadd.f32 0.0, %v2048
      %v2050 = vpop.f32.mrb[0].mxu0
      %2051 = vmatprep.mubr.bf16.mxu0 0
      %2052 = vmatmul.mubr.bf16.gmra.mrb[0].mxu0 %v644
      %v2053 = vpop.f32.mrb[0].mxu0
      %v2054 = vadd.f32 0.0, %v2053
      %v2055 = vpop.f32.mrb[0].mxu0
      %v2056 = vpop.f32.mrb[0].mxu0
      %v2057 = vadd.f32 0.0, %v2056
      %v2058 = vpop.f32.mrb[0].mxu0
      %2059 = vmatprep.mubr.bf16.mxu0 0
      %2060 = vmatmul.mubr.bf16.gmra.mrb[0].mxu0 %v647
      %v2061 = vpop.f32.mrb[0].mxu0
      %v2062 = vadd.f32 0.0, %v2061
      %v2063 = vpop.f32.mrb[0].mxu0
      %v2064 = vpop.f32.mrb[0].mxu0
      %v2065 = vadd.f32 0.0, %v2064
      %v2066 = vpop.f32.mrb[0].mxu0
      %2067 = vmatprep.mubr.bf16.mxu0 0
      %2068 = vmatmul.mubr.bf16.gmra.mrb[0].mxu0 %v650
      %v2069 = vpop.f32.mrb[0].mxu0
      %v2070 = vadd.f32 0.0, %v2069
      %v2071 = vpop.f32.mrb[0].mxu0
      %v2072 = vpop.f32.mrb[0].mxu0
      %v2073 = vpop.f32.mrb[0].mxu0
      %2074 = vdwg.mxu0
      %2075 = vmatprep.subr.bf16.mxu0 0
      %2076 = vmatpush1.bf16.msra.mxu0 %v315
      %2077 = vmatprep.subr.bf16.mxu0 0
      %2078 = vmatpush1.bf16.msra.mxu0 0
      %2079 = vmatprep.subr.bf16.mxu0 0
      %2080 = vmatpush1.bf16.msra.mxu0 0
      %2081 = vmatprep.subr.bf16.mxu0 0
      %2082 = vmatpush1.bf16.msra.mxu0 0
      %2083 = vmatprep.subr.bf16.mxu0 0
      %2084 = vmatpush1.bf16.msra.mxu0 0
      %2085 = vmatprep.subr.bf16.mxu0 0
      %2086 = vmatpush1.bf16.msra.mxu0 0
      %2087 = vmatprep.subr.bf16.mxu0 0
      %2088 = vmatpush1.bf16.msra.mxu0 0
      %2089 = vmatprep.subr.bf16.mxu0 0
      %2090 = vmatpush1.bf16.msra.mxu0 0
      %2091 = vmatprep.subr.bf16.mxu0 0
      %2092 = vmatpush1.bf16.msra.mxu0 0
      %2093 = vmatprep.subr.bf16.mxu0 0
      %2094 = vmatpush1.bf16.msra.mxu0 0
      %2095 = vmatprep.subr.bf16.mxu0 0
      %2096 = vmatpush1.bf16.msra.mxu0 0
      %2097 = vmatprep.subr.bf16.mxu0 0
      %2098 = vmatpush1.bf16.msra.mxu0 0
      %2099 = vmatprep.subr.bf16.mxu0 0
      %2100 = vmatpush1.bf16.msra.mxu0 0
      %2101 = vmatprep.subr.bf16.mxu0 0
      %2102 = vmatpush1.bf16.msra.mxu0 0
      %2103 = vmatprep.subr.bf16.mxu0 0
      %2104 = vmatpush1.bf16.msra.mxu0 0
      %2105 = vmatprep.subr.bf16.mxu0 0
      %2106 = vmatpush1.bf16.msra.mxu0 0
      %2107 = vmatprep.mubr.bf16.mxu0 0
      %2108 = vmatmul.mubr.bf16.gmra.mrb[0].mxu0 %v522
      %v2109 = vpop.f32.mrb[0].mxu0
      %v2110 = vadd.f32 %v2038, %v2109
      %v2111 = vpop.f32.mrb[0].mxu0
      %v2112 = vpop.f32.mrb[0].mxu0
      %v2113 = vadd.f32 %v2041, %v2112
      %v2114 = vpop.f32.mrb[0].mxu0
      %2115 = vmatprep.mubr.bf16.mxu0 0
      %2116 = vmatmul.mubr.bf16.gmra.mrb[0].mxu0 %v525
      %v2117 = vpop.f32.mrb[0].mxu0
      %v2118 = vadd.f32 %v2046, %v2117
      %v2119 = vpop.f32.mrb[0].mxu0
      %v2120 = vpop.f32.mrb[0].mxu0
      %v2121 = vadd.f32 %v2049, %v2120
      %v2122 = vpop.f32.mrb[0].mxu0
      %2123 = vmatprep.mubr.bf16.mxu0 0
      %2124 = vmatmul.mubr.bf16.gmra.mrb[0].mxu0 %v528
      %v2125 = vpop.f32.mrb[0].mxu0
      %v2126 = vadd.f32 %v2054, %v2125
      %v2127 = vpop.f32.mrb[0].mxu0
      %v2128 = vpop.f32.mrb[0].mxu0
      %v2129 = vadd.f32 %v2057, %v2128
      %v2130 = vpop.f32.mrb[0].mxu0
      %2131 = vmatprep.mubr.bf16.mxu0 0
      %2132 = vmatmul.mubr.bf16.gmra.mrb[0].mxu0 %v531
      %v2133 = vpop.f32.mrb[0].mxu0
      %v2134 = vadd.f32 %v2062, %v2133
      %v2135 = vpop.f32.mrb[0].mxu0
      %v2136 = vpop.f32.mrb[0].mxu0
      %v2137 = vadd.f32 %v2065, %v2136
      %v2138 = vpop.f32.mrb[0].mxu0
      %2139 = vmatprep.mubr.bf16.mxu0 0
      %2140 = vmatmul.mubr.bf16.gmra.mrb[0].mxu0 %v534
      %v2141 = vpop.f32.mrb[0].mxu0
      %v2142 = vadd.f32 %v2070, %v2141
      %v2143 = vpop.f32.mrb[0].mxu0
      %v2144 = vpop.f32.mrb[0].mxu0
      %v2145 = vpop.f32.mrb[0].mxu0
      %2146 = vdwg.mxu0
      %2147 = vmatprep.subr.bf16.mxu0 0
      %2148 = vmatpush1.bf16.msra.mxu0 %v421
      %2149 = vmatprep.subr.bf16.mxu0 0
      %2150 = vmatpush1.bf16.msra.mxu0 0
      %2151 = vmatprep.subr.bf16.mxu0 0
      %2152 = vmatpush1.bf16.msra.mxu0 0
      %2153 = vmatprep.subr.bf16.mxu0 0
      %2154 = vmatpush1.bf16.msra.mxu0 0
      %2155 = vmatprep.subr.bf16.mxu0 0
      %2156 = vmatpush1.bf16.msra.mxu0 0
      %2157 = vmatprep.subr.bf16.mxu0 0
      %2158 = vmatpush1.bf16.msra.mxu0 0
      %2159 = vmatprep.subr.bf16.mxu0 0
      %2160 = vmatpush1.bf16.msra.mxu0 0
      %2161 = vmatprep.subr.bf16.mxu0 0
      %2162 = vmatpush1.bf16.msra.mxu0 0
      %2163 = vmatprep.subr.bf16.mxu0 0
      %2164 = vmatpush1.bf16.msra.mxu0 0
      %2165 = vmatprep.subr.bf16.mxu0 0
      %2166 = vmatpush1.bf16.msra.mxu0 0
      %2167 = vmatprep.subr.bf16.mxu0 0
      %2168 = vmatpush1.bf16.msra.mxu0 0
      %2169 = vmatprep.subr.bf16.mxu0 0
      %2170 = vmatpush1.bf16.msra.mxu0 0
      %2171 = vmatprep.subr.bf16.mxu0 0
      %2172 = vmatpush1.bf16.msra.mxu0 0
      %2173 = vmatprep.subr.bf16.mxu0 0
      %2174 = vmatpush1.bf16.msra.mxu0 0
      %2175 = vmatprep.subr.bf16.mxu0 0
      %2176 = vmatpush1.bf16.msra.mxu0 0
      %2177 = vmatprep.subr.bf16.mxu0 0
      %2178 = vmatpush1.bf16.msra.mxu0 0
      %2179 = vmatprep.mubr.bf16.mxu0 0
      %2180 = vmatmul.mubr.bf16.gmra.mrb[0].mxu0 %v753
      %v2181 = vpop.f32.mrb[0].mxu0
      %v2182 = vadd.f32 0.0, %v2181
      %v2183 = vpop.f32.mrb[0].mxu0
      %v2184 = vpop.f32.mrb[0].mxu0
      %v2185 = vadd.f32 0.0, %v2184
      %v2186 = vpop.f32.mrb[0].mxu0
      %2187 = vmatprep.mubr.bf16.mxu0 0
      %2188 = vmatmul.mubr.bf16.gmra.mrb[0].mxu0 %v756
      %v2189 = vpop.f32.mrb[0].mxu0
      %v2190 = vadd.f32 0.0, %v2189
      %v2191 = vpop.f32.mrb[0].mxu0
      %v2192 = vpop.f32.mrb[0].mxu0
      %v2193 = vadd.f32 0.0, %v2192
      %v2194 = vpop.f32.mrb[0].mxu0
      %2195 = vmatprep.mubr.bf16.mxu0 0
      %2196 = vmatmul.mubr.bf16.gmra.mrb[0].mxu0 %v759
      %v2197 = vpop.f32.mrb[0].mxu0
      %v2198 = vadd.f32 0.0, %v2197
      %v2199 = vpop.f32.mrb[0].mxu0
      %v2200 = vpop.f32.mrb[0].mxu0
      %v2201 = vadd.f32 0.0, %v2200
      %v2202 = vpop.f32.mrb[0].mxu0
      %2203 = vmatprep.mubr.bf16.mxu0 0
      %2204 = vmatmul.mubr.bf16.gmra.mrb[0].mxu0 %v762
      %v2205 = vpop.f32.mrb[0].mxu0
      %v2206 = vadd.f32 0.0, %v2205
      %v2207 = vpop.f32.mrb[0].mxu0
      %v2208 = vpop.f32.mrb[0].mxu0
      %v2209 = vadd.f32 0.0, %v2208
      %v2210 = vpop.f32.mrb[0].mxu0
      %2211 = vmatprep.mubr.bf16.mxu0 0
      %2212 = vmatmul.mubr.bf16.gmra.mrb[0].mxu0 %v765
      %v2213 = vpop.f32.mrb[0].mxu0
      %v2214 = vadd.f32 0.0, %v2213
      %v2215 = vpop.f32.mrb[0].mxu0
      %v2216 = vpop.f32.mrb[0].mxu0
      %v2217 = vpop.f32.mrb[0].mxu0
      %2218 = vdwg.mxu0
      %v2219 = vadd.f32 %v2110, %v2182
      %v2220 = vadd.f32 %v2113, %v2185
      %v2221 = vadd.f32 %v2118, %v2190
      %v2222 = vadd.f32 %v2121, %v2193
      %v2223 = vadd.f32 %v2126, %v2198
      %v2224 = vadd.f32 %v2129, %v2201
      %v2225 = vadd.f32 %v2134, %v2206
      %v2226 = vadd.f32 %v2137, %v2209
      %v2227 = vadd.f32 %v2142, %v2214
      %2228 = vmatprep.subr.bf16.mxu0 0
      %2229 = vmatpush1.bf16.msra.mxu0 %v537
      %2230 = vmatprep.subr.bf16.mxu0 0
      %2231 = vmatpush1.bf16.msra.mxu0 0
      %2232 = vmatprep.subr.bf16.mxu0 0
      %2233 = vmatpush1.bf16.msra.mxu0 0
      %2234 = vmatprep.subr.bf16.mxu0 0
      %2235 = vmatpush1.bf16.msra.mxu0 0
      %2236 = vmatprep.subr.bf16.mxu0 0
      %2237 = vmatpush1.bf16.msra.mxu0 0
      %2238 = vmatprep.subr.bf16.mxu0 0
      %2239 = vmatpush1.bf16.msra.mxu0 0
      %2240 = vmatprep.subr.bf16.mxu0 0
      %2241 = vmatpush1.bf16.msra.mxu0 0
      %2242 = vmatprep.subr.bf16.mxu0 0
      %2243 = vmatpush1.bf16.msra.mxu0 0
      %2244 = vmatprep.subr.bf16.mxu0 0
      %2245 = vmatpush1.bf16.msra.mxu0 0
      %2246 = vmatprep.subr.bf16.mxu0 0
      %2247 = vmatpush1.bf16.msra.mxu0 0
      %2248 = vmatprep.subr.bf16.mxu0 0
      %2249 = vmatpush1.bf16.msra.mxu0 0
      %2250 = vmatprep.subr.bf16.mxu0 0
      %2251 = vmatpush1.bf16.msra.mxu0 0
      %2252 = vmatprep.subr.bf16.mxu0 0
      %2253 = vmatpush1.bf16.msra.mxu0 0
      %2254 = vmatprep.subr.bf16.mxu0 0
      %2255 = vmatpush1.bf16.msra.mxu0 0
      %2256 = vmatprep.subr.bf16.mxu0 0
      %2257 = vmatpush1.bf16.msra.mxu0 0
      %2258 = vmatprep.subr.bf16.mxu0 0
      %2259 = vmatpush1.bf16.msra.mxu0 0
      %2260 = vmatprep.mubr.bf16.mxu0 0
      %2261 = vmatmul.mubr.bf16.gmra.mrb[0].mxu0 %v868
      %v2262 = vpop.f32.mrb[0].mxu0
      %v2263 = vadd.f32 0.0, %v2262
      %v2264 = vpop.f32.mrb[0].mxu0
      %v2265 = vpop.f32.mrb[0].mxu0
      %v2266 = vadd.f32 0.0, %v2265
      %v2267 = vpop.f32.mrb[0].mxu0
      %2268 = vmatprep.mubr.bf16.mxu0 0
      %2269 = vmatmul.mubr.bf16.gmra.mrb[0].mxu0 %v871
      %v2270 = vpop.f32.mrb[0].mxu0
      %v2271 = vadd.f32 0.0, %v2270
      %v2272 = vpop.f32.mrb[0].mxu0
      %v2273 = vpop.f32.mrb[0].mxu0
      %v2274 = vadd.f32 0.0, %v2273
      %v2275 = vpop.f32.mrb[0].mxu0
      %2276 = vmatprep.mubr.bf16.mxu0 0
      %2277 = vmatmul.mubr.bf16.gmra.mrb[0].mxu0 %v874
      %v2278 = vpop.f32.mrb[0].mxu0
      %v2279 = vadd.f32 0.0, %v2278
      %v2280 = vpop.f32.mrb[0].mxu0
      %v2281 = vpop.f32.mrb[0].mxu0
      %v2282 = vadd.f32 0.0, %v2281
      %v2283 = vpop.f32.mrb[0].mxu0
      %2284 = vmatprep.mubr.bf16.mxu0 0
      %2285 = vmatmul.mubr.bf16.gmra.mrb[0].mxu0 %v877
      %v2286 = vpop.f32.mrb[0].mxu0
      %v2287 = vadd.f32 0.0, %v2286
      %v2288 = vpop.f32.mrb[0].mxu0
      %v2289 = vpop.f32.mrb[0].mxu0
      %v2290 = vadd.f32 0.0, %v2289
      %v2291 = vpop.f32.mrb[0].mxu0
      %2292 = vmatprep.mubr.bf16.mxu0 0
      %2293 = vmatmul.mubr.bf16.gmra.mrb[0].mxu0 %v880
      %v2294 = vpop.f32.mrb[0].mxu0
      %v2295 = vadd.f32 0.0, %v2294
      %v2296 = vpop.f32.mrb[0].mxu0
      %v2297 = vpop.f32.mrb[0].mxu0
      %v2298 = vpop.f32.mrb[0].mxu0
      %2299 = vdwg.mxu0
      %v2300 = vadd.f32 %v2219, %v2263
      %v2301 = vadd.f32 %v2220, %v2266
      %v2302 = vadd.f32 %v2221, %v2271
      %v2303 = vadd.f32 %v2222, %v2274
      %v2304 = vadd.f32 %v2223, %v2279
      %v2305 = vadd.f32 %v2224, %v2282
      %v2306 = vadd.f32 %v2225, %v2287
      %v2307 = vadd.f32 %v2226, %v2290
      %v2308 = vadd.f32 %v2227, %v2295
      %2309 = vmatprep.subr.bf16.mxu0 0
      %2310 = vmatpush1.bf16.msra.mxu0 %v653
      %2311 = vmatprep.subr.bf16.mxu0 0
      %2312 = vmatpush1.bf16.msra.mxu0 0
      %2313 = vmatprep.subr.bf16.mxu0 0
      %2314 = vmatpush1.bf16.msra.mxu0 0
      %2315 = vmatprep.subr.bf16.mxu0 0
      %2316 = vmatpush1.bf16.msra.mxu0 0
      %2317 = vmatprep.subr.bf16.mxu0 0
      %2318 = vmatpush1.bf16.msra.mxu0 0
      %2319 = vmatprep.subr.bf16.mxu0 0
      %2320 = vmatpush1.bf16.msra.mxu0 0
      %2321 = vmatprep.subr.bf16.mxu0 0
      %2322 = vmatpush1.bf16.msra.mxu0 0
      %2323 = vmatprep.subr.bf16.mxu0 0
      %2324 = vmatpush1.bf16.msra.mxu0 0
      %2325 = vmatprep.subr.bf16.mxu0 0
      %2326 = vmatpush1.bf16.msra.mxu0 0
      %2327 = vmatprep.subr.bf16.mxu0 0
      %2328 = vmatpush1.bf16.msra.mxu0 0
      %2329 = vmatprep.subr.bf16.mxu0 0
      %2330 = vmatpush1.bf16.msra.mxu0 0
      %2331 = vmatprep.subr.bf16.mxu0 0
      %2332 = vmatpush1.bf16.msra.mxu0 0
      %2333 = vmatprep.subr.bf16.mxu0 0
      %2334 = vmatpush1.bf16.msra.mxu0 0
      %2335 = vmatprep.subr.bf16.mxu0 0
      %2336 = vmatpush1.bf16.msra.mxu0 0
      %2337 = vmatprep.subr.bf16.mxu0 0
      %2338 = vmatpush1.bf16.msra.mxu0 0
      %2339 = vmatprep.subr.bf16.mxu0 0
      %2340 = vmatpush1.bf16.msra.mxu0 0
      %2341 = vmatprep.mubr.bf16.mxu0 0
      %2342 = vmatmul.mubr.bf16.gmra.mrb[0].mxu0 %v983
      %v2343 = vpop.f32.mrb[0].mxu0
      %v2344 = vadd.f32 0.0, %v2343
      %v2345 = vpop.f32.mrb[0].mxu0
      %v2346 = vpop.f32.mrb[0].mxu0
      %v2347 = vadd.f32 0.0, %v2346
      %v2348 = vpop.f32.mrb[0].mxu0
      %2349 = vmatprep.mubr.bf16.mxu0 0
      %2350 = vmatmul.mubr.bf16.gmra.mrb[0].mxu0 %v986
      %v2351 = vpop.f32.mrb[0].mxu0
      %v2352 = vadd.f32 0.0, %v2351
      %v2353 = vpop.f32.mrb[0].mxu0
      %v2354 = vpop.f32.mrb[0].mxu0
      %v2355 = vadd.f32 0.0, %v2354
      %v2356 = vpop.f32.mrb[0].mxu0
      %2357 = vmatprep.mubr.bf16.mxu0 0
      %2358 = vmatmul.mubr.bf16.gmra.mrb[0].mxu0 %v989
      %v2359 = vpop.f32.mrb[0].mxu0
      %v2360 = vadd.f32 0.0, %v2359
      %v2361 = vpop.f32.mrb[0].mxu0
      %v2362 = vpop.f32.mrb[0].mxu0
      %v2363 = vadd.f32 0.0, %v2362
      %v2364 = vpop.f32.mrb[0].mxu0
      %2365 = vmatprep.mubr.bf16.mxu0 0
      %2366 = vmatmul.mubr.bf16.gmra.mrb[0].mxu0 %v992
      %v2367 = vpop.f32.mrb[0].mxu0
      %v2368 = vadd.f32 0.0, %v2367
      %v2369 = vpop.f32.mrb[0].mxu0
      %v2370 = vpop.f32.mrb[0].mxu0
      %v2371 = vadd.f32 0.0, %v2370
      %v2372 = vpop.f32.mrb[0].mxu0
      %2373 = vmatprep.mubr.bf16.mxu0 0
      %2374 = vmatmul.mubr.bf16.gmra.mrb[0].mxu0 %v995
      %v2375 = vpop.f32.mrb[0].mxu0
      %v2376 = vadd.f32 0.0, %v2375
      %v2377 = vpop.f32.mrb[0].mxu0
      %v2378 = vpop.f32.mrb[0].mxu0
      %v2379 = vpop.f32.mrb[0].mxu0
      %2380 = vdwg.mxu0
      %v2381 = vadd.f32 %v2300, %v2344
      %v2382 = vadd.f32 %v2301, %v2347
      %v2383 = vadd.f32 %v2302, %v2352
      %v2384 = vadd.f32 %v2303, %v2355
      %v2385 = vadd.f32 %v2304, %v2360
      %v2386 = vadd.f32 %v2305, %v2363
      %v2387 = vadd.f32 %v2306, %v2368
      %v2388 = vadd.f32 %v2307, %v2371
      %v2389 = vadd.f32 %v2308, %v2376
      %2390 = vmatprep.subr.bf16.mxu0 0
      %2391 = vmatpush1.bf16.msra.mxu0 %v768
      %2392 = vmatprep.subr.bf16.mxu0 0
      %2393 = vmatpush1.bf16.msra.mxu0 0
      %2394 = vmatprep.subr.bf16.mxu0 0
      %2395 = vmatpush1.bf16.msra.mxu0 0
      %2396 = vmatprep.subr.bf16.mxu0 0
      %2397 = vmatpush1.bf16.msra.mxu0 0
      %2398 = vmatprep.subr.bf16.mxu0 0
      %2399 = vmatpush1.bf16.msra.mxu0 0
      %2400 = vmatprep.subr.bf16.mxu0 0
      %2401 = vmatpush1.bf16.msra.mxu0 0
      %2402 = vmatprep.subr.bf16.mxu0 0
      %2403 = vmatpush1.bf16.msra.mxu0 0
      %2404 = vmatprep.subr.bf16.mxu0 0
      %2405 = vmatpush1.bf16.msra.mxu0 0
      %2406 = vmatprep.subr.bf16.mxu0 0
      %2407 = vmatpush1.bf16.msra.mxu0 0
      %2408 = vmatprep.subr.bf16.mxu0 0
      %2409 = vmatpush1.bf16.msra.mxu0 0
      %2410 = vmatprep.subr.bf16.mxu0 0
      %2411 = vmatpush1.bf16.msra.mxu0 0
      %2412 = vmatprep.subr.bf16.mxu0 0
      %2413 = vmatpush1.bf16.msra.mxu0 0
      %2414 = vmatprep.subr.bf16.mxu0 0
      %2415 = vmatpush1.bf16.msra.mxu0 0
      %2416 = vmatprep.subr.bf16.mxu0 0
      %2417 = vmatpush1.bf16.msra.mxu0 0
      %2418 = vmatprep.subr.bf16.mxu0 0
      %2419 = vmatpush1.bf16.msra.mxu0 0
      %2420 = vmatprep.subr.bf16.mxu0 0
      %2421 = vmatpush1.bf16.msra.mxu0 0
      %2422 = vmatprep.mubr.bf16.mxu0 0
      %2423 = vmatmul.mubr.bf16.gmra.mrb[0].mxu0 %v1098
      %v2424 = vpop.f32.mrb[0].mxu0
      %v2425 = vadd.f32 0.0, %v2424
      %v2426 = vpop.f32.mrb[0].mxu0
      %v2427 = vpop.f32.mrb[0].mxu0
      %v2428 = vadd.f32 0.0, %v2427
      %v2429 = vpop.f32.mrb[0].mxu0
      %2430 = vmatprep.mubr.bf16.mxu0 0
      %2431 = vmatmul.mubr.bf16.gmra.mrb[0].mxu0 %v1101
      %v2432 = vpop.f32.mrb[0].mxu0
      %v2433 = vadd.f32 0.0, %v2432
      %v2434 = vpop.f32.mrb[0].mxu0
      %v2435 = vpop.f32.mrb[0].mxu0
      %v2436 = vadd.f32 0.0, %v2435
      %v2437 = vpop.f32.mrb[0].mxu0
      %2438 = vmatprep.mubr.bf16.mxu0 0
      %2439 = vmatmul.mubr.bf16.gmra.mrb[0].mxu0 %v1104
      %v2440 = vpop.f32.mrb[0].mxu0
      %v2441 = vadd.f32 0.0, %v2440
      %v2442 = vpop.f32.mrb[0].mxu0
      %v2443 = vpop.f32.mrb[0].mxu0
      %v2444 = vadd.f32 0.0, %v2443
      %v2445 = vpop.f32.mrb[0].mxu0
      %2446 = vmatprep.mubr.bf16.mxu0 0
      %2447 = vmatmul.mubr.bf16.gmra.mrb[0].mxu0 %v1107
      %v2448 = vpop.f32.mrb[0].mxu0
      %v2449 = vadd.f32 0.0, %v2448
      %v2450 = vpop.f32.mrb[0].mxu0
      %v2451 = vpop.f32.mrb[0].mxu0
      %v2452 = vadd.f32 0.0, %v2451
      %v2453 = vpop.f32.mrb[0].mxu0
      %2454 = vmatprep.mubr.bf16.mxu0 0
      %2455 = vmatmul.mubr.bf16.gmra.mrb[0].mxu0 %v1110
      %v2456 = vpop.f32.mrb[0].mxu0
      %v2457 = vadd.f32 0.0, %v2456
      %v2458 = vpop.f32.mrb[0].mxu0
      %v2459 = vpop.f32.mrb[0].mxu0
      %v2460 = vpop.f32.mrb[0].mxu0
      %2461 = vdwg.mxu0
      %v2462 = vadd.f32 %v2381, %v2425
      %v2463 = vadd.f32 %v2382, %v2428
      %v2464 = vadd.f32 %v2383, %v2433
      %v2465 = vadd.f32 %v2384, %v2436
      %v2466 = vadd.f32 %v2385, %v2441
      %v2467 = vadd.f32 %v2386, %v2444
      %v2468 = vadd.f32 %v2387, %v2449
      %v2469 = vadd.f32 %v2388, %v2452
      %v2470 = vadd.f32 %v2389, %v2457
      %v2471 = vld [vmem:[%s504 + $0x9] sm:$0xff]
      %v2472 = vld [vmem:[%s504 + $0x11] sm:$0xff]
      %v2473 = vld [vmem:[%s504 + $0x19] sm:$0xff]
      %v2474 = vld [vmem:[%s504 + $0x21] sm:$0xff]
      %v2475 = vld [vmem:[%s504 + $0x29] sm:$0xff]
      %v2476 = vld [vmem:[%s504 + $0x31] sm:$0xff]
      %v2477 = vld [vmem:[%s504 + $0x39] sm:$0xff]
      %v2478 = vld [vmem:[%s504 + $0x41] sm:$0xff]
      %v2479 = vld [vmem:[%s504 + $0x49] sm:$0xff]
      %v2480 = vpack.c.bf16 %v2472, %v2471
      %v2481 = vpack.c.bf16 %v2474, %v2473
      %v2482 = vpack.c.bf16 %v2476, %v2475
      %v2483 = vpack.c.bf16 %v2478, %v2477
      %v2484 = vpack.c.bf16 %v2479, %v2479
      %v2486 = vsel %vm204, %v2480, 0
      %v2489 = vsel %vm204, %v2481, 0
      %v2492 = vsel %vm204, %v2482, 0
      %v2495 = vsel %vm204, %v2483, 0
      %v2498 = vsel %vm204, %v2484, 0
      %2500 = vmatprep.subr.bf16.mxu0 0
      %2501 = vmatpush1.bf16.msra.mxu0 %v883
      %2502 = vmatprep.subr.bf16.mxu0 0
      %2503 = vmatpush1.bf16.msra.mxu0 0
      %2504 = vmatprep.subr.bf16.mxu0 0
      %2505 = vmatpush1.bf16.msra.mxu0 0
      %2506 = vmatprep.subr.bf16.mxu0 0
      %2507 = vmatpush1.bf16.msra.mxu0 0
      %2508 = vmatprep.subr.bf16.mxu0 0
      %2509 = vmatpush1.bf16.msra.mxu0 0
      %2510 = vmatprep.subr.bf16.mxu0 0
      %2511 = vmatpush1.bf16.msra.mxu0 0
      %2512 = vmatprep.subr.bf16.mxu0 0
      %2513 = vmatpush1.bf16.msra.mxu0 0
      %2514 = vmatprep.subr.bf16.mxu0 0
      %2515 = vmatpush1.bf16.msra.mxu0 0
      %2516 = vmatprep.subr.bf16.mxu0 0
      %2517 = vmatpush1.bf16.msra.mxu0 0
      %2518 = vmatprep.subr.bf16.mxu0 0
      %2519 = vmatpush1.bf16.msra.mxu0 0
      %2520 = vmatprep.subr.bf16.mxu0 0
      %2521 = vmatpush1.bf16.msra.mxu0 0
      %2522 = vmatprep.subr.bf16.mxu0 0
      %2523 = vmatpush1.bf16.msra.mxu0 0
      %2524 = vmatprep.subr.bf16.mxu0 0
      %2525 = vmatpush1.bf16.msra.mxu0 0
      %2526 = vmatprep.subr.bf16.mxu0 0
      %2527 = vmatpush1.bf16.msra.mxu0 0
      %2528 = vmatprep.subr.bf16.mxu0 0
      %2529 = vmatpush1.bf16.msra.mxu0 0
      %2530 = vmatprep.subr.bf16.mxu0 0
      %2531 = vmatpush1.bf16.msra.mxu0 0
      %2532 = vmatprep.mubr.bf16.mxu0 0
      %2533 = vmatmul.mubr.bf16.gmra.mrb[0].mxu0 %v2486
      %v2534 = vpop.f32.mrb[0].mxu0
      %v2535 = vadd.f32 0.0, %v2534
      %v2536 = vpop.f32.mrb[0].mxu0
      %v2537 = vpop.f32.mrb[0].mxu0
      %v2538 = vadd.f32 0.0, %v2537
      %v2539 = vpop.f32.mrb[0].mxu0
      %2540 = vmatprep.mubr.bf16.mxu0 0
      %2541 = vmatmul.mubr.bf16.gmra.mrb[0].mxu0 %v2489
      %v2542 = vpop.f32.mrb[0].mxu0
      %v2543 = vadd.f32 0.0, %v2542
      %v2544 = vpop.f32.mrb[0].mxu0
      %v2545 = vpop.f32.mrb[0].mxu0
      %v2546 = vadd.f32 0.0, %v2545
      %v2547 = vpop.f32.mrb[0].mxu0
      %2548 = vmatprep.mubr.bf16.mxu0 0
      %2549 = vmatmul.mubr.bf16.gmra.mrb[0].mxu0 %v2492
      %v2550 = vpop.f32.mrb[0].mxu0
      %v2551 = vadd.f32 0.0, %v2550
      %v2552 = vpop.f32.mrb[0].mxu0
      %v2553 = vpop.f32.mrb[0].mxu0
      %v2554 = vadd.f32 0.0, %v2553
      %v2555 = vpop.f32.mrb[0].mxu0
      %2556 = vmatprep.mubr.bf16.mxu0 0
      %2557 = vmatmul.mubr.bf16.gmra.mrb[0].mxu0 %v2495
      %v2558 = vpop.f32.mrb[0].mxu0
      %v2559 = vadd.f32 0.0, %v2558
      %v2560 = vpop.f32.mrb[0].mxu0
      %v2561 = vpop.f32.mrb[0].mxu0
      %v2562 = vadd.f32 0.0, %v2561
      %v2563 = vpop.f32.mrb[0].mxu0
      %2564 = vmatprep.mubr.bf16.mxu0 0
      %2565 = vmatmul.mubr.bf16.gmra.mrb[0].mxu0 %v2498
      %v2566 = vpop.f32.mrb[0].mxu0
      %v2567 = vadd.f32 0.0, %v2566
      %v2568 = vpop.f32.mrb[0].mxu0
      %v2569 = vpop.f32.mrb[0].mxu0
      %v2570 = vpop.f32.mrb[0].mxu0
      %2571 = vdwg.mxu0
      %v2572 = vadd.f32 %v2462, %v2535
      %v2573 = vadd.f32 %v2463, %v2538
      %v2574 = vadd.f32 %v2464, %v2543
      %v2575 = vadd.f32 %v2465, %v2546
      %v2576 = vadd.f32 %v2466, %v2551
      %v2577 = vadd.f32 %v2467, %v2554
      %v2578 = vadd.f32 %v2468, %v2559
      %v2579 = vadd.f32 %v2469, %v2562
      %v2580 = vadd.f32 %v2470, %v2567
      %v2581 = vld [vmem:[%s620 + $0x9] sm:$0xff]
      %v2582 = vld [vmem:[%s620 + $0x11] sm:$0xff]
      %v2583 = vld [vmem:[%s620 + $0x19] sm:$0xff]
      %v2584 = vld [vmem:[%s620 + $0x21] sm:$0xff]
      %v2585 = vld [vmem:[%s620 + $0x29] sm:$0xff]
      %v2586 = vld [vmem:[%s620 + $0x31] sm:$0xff]
      %v2587 = vld [vmem:[%s620 + $0x39] sm:$0xff]
      %v2588 = vld [vmem:[%s620 + $0x41] sm:$0xff]
      %v2589 = vld [vmem:[%s620 + $0x49] sm:$0xff]
      %v2590 = vpack.c.bf16 %v2582, %v2581
      %v2591 = vpack.c.bf16 %v2584, %v2583
      %v2592 = vpack.c.bf16 %v2586, %v2585
      %v2593 = vpack.c.bf16 %v2588, %v2587
      %v2594 = vpack.c.bf16 %v2589, %v2589
      %v2596 = vsel %vm204, %v2590, 0
      %v2599 = vsel %vm204, %v2591, 0
      %v2602 = vsel %vm204, %v2592, 0
      %v2605 = vsel %vm204, %v2593, 0
      %v2608 = vsel %vm204, %v2594, 0
      %2610 = vmatprep.subr.bf16.mxu0 0
      %2611 = vmatpush1.bf16.msra.mxu0 %v998
      %2612 = vmatprep.subr.bf16.mxu0 0
      %2613 = vmatpush1.bf16.msra.mxu0 0
      %2614 = vmatprep.subr.bf16.mxu0 0
      %2615 = vmatpush1.bf16.msra.mxu0 0
      %2616 = vmatprep.subr.bf16.mxu0 0
      %2617 = vmatpush1.bf16.msra.mxu0 0
      %2618 = vmatprep.subr.bf16.mxu0 0
      %2619 = vmatpush1.bf16.msra.mxu0 0
      %2620 = vmatprep.subr.bf16.mxu0 0
      %2621 = vmatpush1.bf16.msra.mxu0 0
      %2622 = vmatprep.subr.bf16.mxu0 0
      %2623 = vmatpush1.bf16.msra.mxu0 0
      %2624 = vmatprep.subr.bf16.mxu0 0
      %2625 = vmatpush1.bf16.msra.mxu0 0
      %2626 = vmatprep.subr.bf16.mxu0 0
      %2627 = vmatpush1.bf16.msra.mxu0 0
      %2628 = vmatprep.subr.bf16.mxu0 0
      %2629 = vmatpush1.bf16.msra.mxu0 0
      %2630 = vmatprep.subr.bf16.mxu0 0
      %2631 = vmatpush1.bf16.msra.mxu0 0
      %2632 = vmatprep.subr.bf16.mxu0 0
      %2633 = vmatpush1.bf16.msra.mxu0 0
      %2634 = vmatprep.subr.bf16.mxu0 0
      %2635 = vmatpush1.bf16.msra.mxu0 0
      %2636 = vmatprep.subr.bf16.mxu0 0
      %2637 = vmatpush1.bf16.msra.mxu0 0
      %2638 = vmatprep.subr.bf16.mxu0 0
      %2639 = vmatpush1.bf16.msra.mxu0 0
      %2640 = vmatprep.subr.bf16.mxu0 0
      %2641 = vmatpush1.bf16.msra.mxu0 0
      %2642 = vmatprep.mubr.bf16.mxu0 0
      %2643 = vmatmul.mubr.bf16.gmra.mrb[0].mxu0 %v2596
      %v2644 = vpop.f32.mrb[0].mxu0
      %v2645 = vadd.f32 0.0, %v2644
      %v2646 = vpop.f32.mrb[0].mxu0
      %v2647 = vpop.f32.mrb[0].mxu0
      %v2648 = vadd.f32 0.0, %v2647
      %v2649 = vpop.f32.mrb[0].mxu0
      %2650 = vmatprep.mubr.bf16.mxu0 0
      %2651 = vmatmul.mubr.bf16.gmra.mrb[0].mxu0 %v2599
      %v2652 = vpop.f32.mrb[0].mxu0
      %v2653 = vadd.f32 0.0, %v2652
      %v2654 = vpop.f32.mrb[0].mxu0
      %v2655 = vpop.f32.mrb[0].mxu0
      %v2656 = vadd.f32 0.0, %v2655
      %v2657 = vpop.f32.mrb[0].mxu0
      %2658 = vmatprep.mubr.bf16.mxu0 0
      %2659 = vmatmul.mubr.bf16.gmra.mrb[0].mxu0 %v2602
      %v2660 = vpop.f32.mrb[0].mxu0
      %v2661 = vadd.f32 0.0, %v2660
      %v2662 = vpop.f32.mrb[0].mxu0
      %v2663 = vpop.f32.mrb[0].mxu0
      %v2664 = vadd.f32 0.0, %v2663
      %v2665 = vpop.f32.mrb[0].mxu0
      %2666 = vmatprep.mubr.bf16.mxu0 0
      %2667 = vmatmul.mubr.bf16.gmra.mrb[0].mxu0 %v2605
      %v2668 = vpop.f32.mrb[0].mxu0
      %v2669 = vadd.f32 0.0, %v2668
      %v2670 = vpop.f32.mrb[0].mxu0
      %v2671 = vpop.f32.mrb[0].mxu0
      %v2672 = vadd.f32 0.0, %v2671
      %v2673 = vpop.f32.mrb[0].mxu0
      %2674 = vmatprep.mubr.bf16.mxu0 0
      %2675 = vmatmul.mubr.bf16.gmra.mrb[0].mxu0 %v2608
      %v2676 = vpop.f32.mrb[0].mxu0
      %v2677 = vadd.f32 0.0, %v2676
      %v2678 = vpop.f32.mrb[0].mxu0
      %v2679 = vpop.f32.mrb[0].mxu0
      %v2680 = vpop.f32.mrb[0].mxu0
      %2681 = vdwg.mxu0
      %v2682 = vadd.f32 %v2572, %v2645
      %v2683 = vadd.f32 %v2573, %v2648
      %v2684 = vadd.f32 %v2574, %v2653
      %v2685 = vadd.f32 %v2575, %v2656
      %v2686 = vadd.f32 %v2576, %v2661
      %v2687 = vadd.f32 %v2577, %v2664
      %v2688 = vadd.f32 %v2578, %v2669
      %v2689 = vadd.f32 %v2579, %v2672
      %v2690 = vadd.f32 %v2580, %v2677
      %v2691 = vld [vmem:[%s504 + $0xa] sm:$0xff]
      %v2692 = vld [vmem:[%s504 + $0x12] sm:$0xff]
      %v2693 = vld [vmem:[%s504 + $0x1a] sm:$0xff]
      %v2694 = vld [vmem:[%s504 + $0x22] sm:$0xff]
      %v2695 = vld [vmem:[%s504 + $0x2a] sm:$0xff]
      %v2696 = vld [vmem:[%s504 + $0x32] sm:$0xff]
      %v2697 = vld [vmem:[%s504 + $0x3a] sm:$0xff]
      %v2698 = vld [vmem:[%s504 + $0x42] sm:$0xff]
      %v2699 = vld [vmem:[%s504 + $0x4a] sm:$0xff]
      %v2700 = vpack.c.bf16 %v2692, %v2691
      %v2701 = vpack.c.bf16 %v2694, %v2693
      %v2702 = vpack.c.bf16 %v2696, %v2695
      %v2703 = vpack.c.bf16 %v2698, %v2697
      %v2704 = vpack.c.bf16 %v2699, %v2699
      %v2706 = vsel %vm204, %v2700, 0
      %v2709 = vsel %vm204, %v2701, 0
      %v2712 = vsel %vm204, %v2702, 0
      %v2715 = vsel %vm204, %v2703, 0
      %v2718 = vsel %vm204, %v2704, 0
      %2720 = vmatprep.subr.bf16.mxu0 0
      %2721 = vmatpush1.bf16.msra.mxu0 %v1113
      %2722 = vmatprep.subr.bf16.mxu0 0
      %2723 = vmatpush1.bf16.msra.mxu0 0
      %2724 = vmatprep.subr.bf16.mxu0 0
      %2725 = vmatpush1.bf16.msra.mxu0 0
      %2726 = vmatprep.subr.bf16.mxu0 0
      %2727 = vmatpush1.bf16.msra.mxu0 0
      %2728 = vmatprep.subr.bf16.mxu0 0
      %2729 = vmatpush1.bf16.msra.mxu0 0
      %2730 = vmatprep.subr.bf16.mxu0 0
      %2731 = vmatpush1.bf16.msra.mxu0 0
      %2732 = vmatprep.subr.bf16.mxu0 0
      %2733 = vmatpush1.bf16.msra.mxu0 0
      %2734 = vmatprep.subr.bf16.mxu0 0
      %2735 = vmatpush1.bf16.msra.mxu0 0
      %2736 = vmatprep.subr.bf16.mxu0 0
      %2737 = vmatpush1.bf16.msra.mxu0 0
      %2738 = vmatprep.subr.bf16.mxu0 0
      %2739 = vmatpush1.bf16.msra.mxu0 0
      %2740 = vmatprep.subr.bf16.mxu0 0
      %2741 = vmatpush1.bf16.msra.mxu0 0
      %2742 = vmatprep.subr.bf16.mxu0 0
      %2743 = vmatpush1.bf16.msra.mxu0 0
      %2744 = vmatprep.subr.bf16.mxu0 0
      %2745 = vmatpush1.bf16.msra.mxu0 0
      %2746 = vmatprep.subr.bf16.mxu0 0
      %2747 = vmatpush1.bf16.msra.mxu0 0
      %2748 = vmatprep.subr.bf16.mxu0 0
      %2749 = vmatpush1.bf16.msra.mxu0 0
      %2750 = vmatprep.subr.bf16.mxu0 0
      %2751 = vmatpush1.bf16.msra.mxu0 0
      %2752 = vmatprep.mubr.bf16.mxu0 0
      %2753 = vmatmul.mubr.bf16.gmra.mrb[0].mxu0 %v2706
      %v2754 = vpop.f32.mrb[0].mxu0
      %v2755 = vadd.f32 0.0, %v2754
      %v2756 = vpop.f32.mrb[0].mxu0
      %v2757 = vpop.f32.mrb[0].mxu0
      %v2758 = vadd.f32 0.0, %v2757
      %v2759 = vpop.f32.mrb[0].mxu0
      %2760 = vmatprep.mubr.bf16.mxu0 0
      %2761 = vmatmul.mubr.bf16.gmra.mrb[0].mxu0 %v2709
      %v2762 = vpop.f32.mrb[0].mxu0
      %v2763 = vadd.f32 0.0, %v2762
      %v2764 = vpop.f32.mrb[0].mxu0
      %v2765 = vpop.f32.mrb[0].mxu0
      %v2766 = vadd.f32 0.0, %v2765
      %v2767 = vpop.f32.mrb[0].mxu0
      %2768 = vmatprep.mubr.bf16.mxu0 0
      %2769 = vmatmul.mubr.bf16.gmra.mrb[0].mxu0 %v2712
      %v2770 = vpop.f32.mrb[0].mxu0
      %v2771 = vadd.f32 0.0, %v2770
      %v2772 = vpop.f32.mrb[0].mxu0
      %v2773 = vpop.f32.mrb[0].mxu0
      %v2774 = vadd.f32 0.0, %v2773
      %v2775 = vpop.f32.mrb[0].mxu0
      %2776 = vmatprep.mubr.bf16.mxu0 0
      %2777 = vmatmul.mubr.bf16.gmra.mrb[0].mxu0 %v2715
      %v2778 = vpop.f32.mrb[0].mxu0
      %v2779 = vadd.f32 0.0, %v2778
      %v2780 = vpop.f32.mrb[0].mxu0
      %v2781 = vpop.f32.mrb[0].mxu0
      %v2782 = vadd.f32 0.0, %v2781
      %v2783 = vpop.f32.mrb[0].mxu0
      %2784 = vmatprep.mubr.bf16.mxu0 0
      %2785 = vmatmul.mubr.bf16.gmra.mrb[0].mxu0 %v2718
      %v2786 = vpop.f32.mrb[0].mxu0
      %v2787 = vadd.f32 0.0, %v2786
      %v2788 = vpop.f32.mrb[0].mxu0
      %v2789 = vpop.f32.mrb[0].mxu0
      %v2790 = vpop.f32.mrb[0].mxu0
      %2791 = vdwg.mxu0
      %v2792 = vadd.f32 %v2682, %v2755
      %v2793 = vadd.f32 %v2683, %v2758
      %v2794 = vadd.f32 %v2684, %v2763
      %v2795 = vadd.f32 %v2685, %v2766
      %v2796 = vadd.f32 %v2686, %v2771
      %v2797 = vadd.f32 %v2687, %v2774
      %v2798 = vadd.f32 %v2688, %v2779
      %v2799 = vadd.f32 %v2689, %v2782
      %v2800 = vadd.f32 %v2690, %v2787
      %v2801 = vmax.f32 %v1994, %v2792
      %v2802 = vmax.f32 %v1995, %v2793
      %v2803 = vmax.f32 %v1996, %v2794
      %v2804 = vmax.f32 %v1997, %v2795
      %v2805 = vmax.f32 %v1998, %v2796
      %v2806 = vmax.f32 %v1999, %v2797
      %v2807 = vmax.f32 %v2000, %v2798
      %v2808 = vmax.f32 %v2001, %v2799
      %v2809 = vmax.f32 %v2002, %v2800
      %2810 = vmatprep.subr.bf16.mxu0 0
      %2811 = vmatpush1.bf16.msra.mxu0 %v225
      %2812 = vmatprep.subr.bf16.mxu0 0
      %2813 = vmatpush1.bf16.msra.mxu0 0
      %2814 = vmatprep.subr.bf16.mxu0 0
      %2815 = vmatpush1.bf16.msra.mxu0 0
      %2816 = vmatprep.subr.bf16.mxu0 0
      %2817 = vmatpush1.bf16.msra.mxu0 0
      %2818 = vmatprep.subr.bf16.mxu0 0
      %2819 = vmatpush1.bf16.msra.mxu0 0
      %2820 = vmatprep.subr.bf16.mxu0 0
      %2821 = vmatpush1.bf16.msra.mxu0 0
      %2822 = vmatprep.subr.bf16.mxu0 0
      %2823 = vmatpush1.bf16.msra.mxu0 0
      %2824 = vmatprep.subr.bf16.mxu0 0
      %2825 = vmatpush1.bf16.msra.mxu0 0
      %2826 = vmatprep.subr.bf16.mxu0 0
      %2827 = vmatpush1.bf16.msra.mxu0 0
      %2828 = vmatprep.subr.bf16.mxu0 0
      %2829 = vmatpush1.bf16.msra.mxu0 0
      %2830 = vmatprep.subr.bf16.mxu0 0
      %2831 = vmatpush1.bf16.msra.mxu0 0
      %2832 = vmatprep.subr.bf16.mxu0 0
      %2833 = vmatpush1.bf16.msra.mxu0 0
      %2834 = vmatprep.subr.bf16.mxu0 0
      %2835 = vmatpush1.bf16.msra.mxu0 0
      %2836 = vmatprep.subr.bf16.mxu0 0
      %2837 = vmatpush1.bf16.msra.mxu0 0
      %2838 = vmatprep.subr.bf16.mxu0 0
      %2839 = vmatpush1.bf16.msra.mxu0 0
      %2840 = vmatprep.subr.bf16.mxu0 0
      %2841 = vmatpush1.bf16.msra.mxu0 0
      %2842 = vmatprep.mubr.bf16.mxu0 0
      %2843 = vmatmul.mubr.bf16.gmra.mrb[0].mxu0 %v753
      %v2844 = vpop.f32.mrb[0].mxu0
      %v2845 = vadd.f32 0.0, %v2844
      %v2846 = vpop.f32.mrb[0].mxu0
      %v2847 = vpop.f32.mrb[0].mxu0
      %v2848 = vadd.f32 0.0, %v2847
      %v2849 = vpop.f32.mrb[0].mxu0
      %2850 = vmatprep.mubr.bf16.mxu0 0
      %2851 = vmatmul.mubr.bf16.gmra.mrb[0].mxu0 %v756
      %v2852 = vpop.f32.mrb[0].mxu0
      %v2853 = vadd.f32 0.0, %v2852
      %v2854 = vpop.f32.mrb[0].mxu0
      %v2855 = vpop.f32.mrb[0].mxu0
      %v2856 = vadd.f32 0.0, %v2855
      %v2857 = vpop.f32.mrb[0].mxu0
      %2858 = vmatprep.mubr.bf16.mxu0 0
      %2859 = vmatmul.mubr.bf16.gmra.mrb[0].mxu0 %v759
      %v2860 = vpop.f32.mrb[0].mxu0
      %v2861 = vadd.f32 0.0, %v2860
      %v2862 = vpop.f32.mrb[0].mxu0
      %v2863 = vpop.f32.mrb[0].mxu0
      %v2864 = vadd.f32 0.0, %v2863
      %v2865 = vpop.f32.mrb[0].mxu0
      %2866 = vmatprep.mubr.bf16.mxu0 0
      %2867 = vmatmul.mubr.bf16.gmra.mrb[0].mxu0 %v762
      %v2868 = vpop.f32.mrb[0].mxu0
      %v2869 = vadd.f32 0.0, %v2868
      %v2870 = vpop.f32.mrb[0].mxu0
      %v2871 = vpop.f32.mrb[0].mxu0
      %v2872 = vadd.f32 0.0, %v2871
      %v2873 = vpop.f32.mrb[0].mxu0
      %2874 = vmatprep.mubr.bf16.mxu0 0
      %2875 = vmatmul.mubr.bf16.gmra.mrb[0].mxu0 %v765
      %v2876 = vpop.f32.mrb[0].mxu0
      %v2877 = vadd.f32 0.0, %v2876
      %v2878 = vpop.f32.mrb[0].mxu0
      %v2879 = vpop.f32.mrb[0].mxu0
      %v2880 = vpop.f32.mrb[0].mxu0
      %2881 = vdwg.mxu0
      %2882 = vmatprep.subr.bf16.mxu0 0
      %2883 = vmatpush1.bf16.msra.mxu0 %v315
      %2884 = vmatprep.subr.bf16.mxu0 0
      %2885 = vmatpush1.bf16.msra.mxu0 0
      %2886 = vmatprep.subr.bf16.mxu0 0
      %2887 = vmatpush1.bf16.msra.mxu0 0
      %2888 = vmatprep.subr.bf16.mxu0 0
      %2889 = vmatpush1.bf16.msra.mxu0 0
      %2890 = vmatprep.subr.bf16.mxu0 0
      %2891 = vmatpush1.bf16.msra.mxu0 0
      %2892 = vmatprep.subr.bf16.mxu0 0
      %2893 = vmatpush1.bf16.msra.mxu0 0
      %2894 = vmatprep.subr.bf16.mxu0 0
      %2895 = vmatpush1.bf16.msra.mxu0 0
      %2896 = vmatprep.subr.bf16.mxu0 0
      %2897 = vmatpush1.bf16.msra.mxu0 0
      %2898 = vmatprep.subr.bf16.mxu0 0
      %2899 = vmatpush1.bf16.msra.mxu0 0
      %2900 = vmatprep.subr.bf16.mxu0 0
      %2901 = vmatpush1.bf16.msra.mxu0 0
      %2902 = vmatprep.subr.bf16.mxu0 0
      %2903 = vmatpush1.bf16.msra.mxu0 0
      %2904 = vmatprep.subr.bf16.mxu0 0
      %2905 = vmatpush1.bf16.msra.mxu0 0
      %2906 = vmatprep.subr.bf16.mxu0 0
      %2907 = vmatpush1.bf16.msra.mxu0 0
      %2908 = vmatprep.subr.bf16.mxu0 0
      %2909 = vmatpush1.bf16.msra.mxu0 0
      %2910 = vmatprep.subr.bf16.mxu0 0
      %2911 = vmatpush1.bf16.msra.mxu0 0
      %2912 = vmatprep.subr.bf16.mxu0 0
      %2913 = vmatpush1.bf16.msra.mxu0 0
      %2914 = vmatprep.mubr.bf16.mxu0 0
      %2915 = vmatmul.mubr.bf16.gmra.mrb[0].mxu0 %v638
      %v2916 = vpop.f32.mrb[0].mxu0
      %v2917 = vadd.f32 %v2845, %v2916
      %v2918 = vpop.f32.mrb[0].mxu0
      %v2919 = vpop.f32.mrb[0].mxu0
      %v2920 = vadd.f32 %v2848, %v2919
      %v2921 = vpop.f32.mrb[0].mxu0
      %2922 = vmatprep.mubr.bf16.mxu0 0
      %2923 = vmatmul.mubr.bf16.gmra.mrb[0].mxu0 %v641
      %v2924 = vpop.f32.mrb[0].mxu0
      %v2925 = vadd.f32 %v2853, %v2924
      %v2926 = vpop.f32.mrb[0].mxu0
      %v2927 = vpop.f32.mrb[0].mxu0
      %v2928 = vadd.f32 %v2856, %v2927
      %v2929 = vpop.f32.mrb[0].mxu0
      %2930 = vmatprep.mubr.bf16.mxu0 0
      %2931 = vmatmul.mubr.bf16.gmra.mrb[0].mxu0 %v644
      %v2932 = vpop.f32.mrb[0].mxu0
      %v2933 = vadd.f32 %v2861, %v2932
      %v2934 = vpop.f32.mrb[0].mxu0
      %v2935 = vpop.f32.mrb[0].mxu0
      %v2936 = vadd.f32 %v2864, %v2935
      %v2937 = vpop.f32.mrb[0].mxu0
      %2938 = vmatprep.mubr.bf16.mxu0 0
      %2939 = vmatmul.mubr.bf16.gmra.mrb[0].mxu0 %v647
      %v2940 = vpop.f32.mrb[0].mxu0
      %v2941 = vadd.f32 %v2869, %v2940
      %v2942 = vpop.f32.mrb[0].mxu0
      %v2943 = vpop.f32.mrb[0].mxu0
      %v2944 = vadd.f32 %v2872, %v2943
      %v2945 = vpop.f32.mrb[0].mxu0
      %2946 = vmatprep.mubr.bf16.mxu0 0
      %2947 = vmatmul.mubr.bf16.gmra.mrb[0].mxu0 %v650
      %v2948 = vpop.f32.mrb[0].mxu0
      %v2949 = vadd.f32 %v2877, %v2948
      %v2950 = vpop.f32.mrb[0].mxu0
      %v2951 = vpop.f32.mrb[0].mxu0
      %v2952 = vpop.f32.mrb[0].mxu0
      %2953 = vdwg.mxu0
      %2954 = vmatprep.subr.bf16.mxu0 0
      %2955 = vmatpush1.bf16.msra.mxu0 %v421
      %2956 = vmatprep.subr.bf16.mxu0 0
      %2957 = vmatpush1.bf16.msra.mxu0 0
      %2958 = vmatprep.subr.bf16.mxu0 0
      %2959 = vmatpush1.bf16.msra.mxu0 0
      %2960 = vmatprep.subr.bf16.mxu0 0
      %2961 = vmatpush1.bf16.msra.mxu0 0
      %2962 = vmatprep.subr.bf16.mxu0 0
      %2963 = vmatpush1.bf16.msra.mxu0 0
      %2964 = vmatprep.subr.bf16.mxu0 0
      %2965 = vmatpush1.bf16.msra.mxu0 0
      %2966 = vmatprep.subr.bf16.mxu0 0
      %2967 = vmatpush1.bf16.msra.mxu0 0
      %2968 = vmatprep.subr.bf16.mxu0 0
      %2969 = vmatpush1.bf16.msra.mxu0 0
      %2970 = vmatprep.subr.bf16.mxu0 0
      %2971 = vmatpush1.bf16.msra.mxu0 0
      %2972 = vmatprep.subr.bf16.mxu0 0
      %2973 = vmatpush1.bf16.msra.mxu0 0
      %2974 = vmatprep.subr.bf16.mxu0 0
      %2975 = vmatpush1.bf16.msra.mxu0 0
      %2976 = vmatprep.subr.bf16.mxu0 0
      %2977 = vmatpush1.bf16.msra.mxu0 0
      %2978 = vmatprep.subr.bf16.mxu0 0
      %2979 = vmatpush1.bf16.msra.mxu0 0
      %2980 = vmatprep.subr.bf16.mxu0 0
      %2981 = vmatpush1.bf16.msra.mxu0 0
      %2982 = vmatprep.subr.bf16.mxu0 0
      %2983 = vmatpush1.bf16.msra.mxu0 0
      %2984 = vmatprep.subr.bf16.mxu0 0
      %2985 = vmatpush1.bf16.msra.mxu0 0
      %2986 = vmatprep.mubr.bf16.mxu0 0
      %2987 = vmatmul.mubr.bf16.gmra.mrb[0].mxu0 %v1627
      %v2988 = vpop.f32.mrb[0].mxu0
      %v2989 = vadd.f32 0.0, %v2988
      %v2990 = vpop.f32.mrb[0].mxu0
      %v2991 = vpop.f32.mrb[0].mxu0
      %v2992 = vadd.f32 0.0, %v2991
      %v2993 = vpop.f32.mrb[0].mxu0
      %2994 = vmatprep.mubr.bf16.mxu0 0
      %2995 = vmatmul.mubr.bf16.gmra.mrb[0].mxu0 %v1630
      %v2996 = vpop.f32.mrb[0].mxu0
      %v2997 = vadd.f32 0.0, %v2996
      %v2998 = vpop.f32.mrb[0].mxu0
      %v2999 = vpop.f32.mrb[0].mxu0
      %v3000 = vadd.f32 0.0, %v2999
      %v3001 = vpop.f32.mrb[0].mxu0
      %3002 = vmatprep.mubr.bf16.mxu0 0
      %3003 = vmatmul.mubr.bf16.gmra.mrb[0].mxu0 %v1633
      %v3004 = vpop.f32.mrb[0].mxu0
      %v3005 = vadd.f32 0.0, %v3004
      %v3006 = vpop.f32.mrb[0].mxu0
      %v3007 = vpop.f32.mrb[0].mxu0
      %v3008 = vadd.f32 0.0, %v3007
      %v3009 = vpop.f32.mrb[0].mxu0
      %3010 = vmatprep.mubr.bf16.mxu0 0
      %3011 = vmatmul.mubr.bf16.gmra.mrb[0].mxu0 %v1636
      %v3012 = vpop.f32.mrb[0].mxu0
      %v3013 = vadd.f32 0.0, %v3012
      %v3014 = vpop.f32.mrb[0].mxu0
      %v3015 = vpop.f32.mrb[0].mxu0
      %v3016 = vadd.f32 0.0, %v3015
      %v3017 = vpop.f32.mrb[0].mxu0
      %3018 = vmatprep.mubr.bf16.mxu0 0
      %3019 = vmatmul.mubr.bf16.gmra.mrb[0].mxu0 %v1639
      %v3020 = vpop.f32.mrb[0].mxu0
      %v3021 = vadd.f32 0.0, %v3020
      %v3022 = vpop.f32.mrb[0].mxu0
      %v3023 = vpop.f32.mrb[0].mxu0
      %v3024 = vpop.f32.mrb[0].mxu0
      %3025 = vdwg.mxu0
      %v3026 = vadd.f32 %v2917, %v2989
      %v3027 = vadd.f32 %v2920, %v2992
      %v3028 = vadd.f32 %v2925, %v2997
      %v3029 = vadd.f32 %v2928, %v3000
      %v3030 = vadd.f32 %v2933, %v3005
      %v3031 = vadd.f32 %v2936, %v3008
      %v3032 = vadd.f32 %v2941, %v3013
      %v3033 = vadd.f32 %v2944, %v3016
      %v3034 = vadd.f32 %v2949, %v3021
      %3035 = vmatprep.subr.bf16.mxu0 0
      %3036 = vmatpush1.bf16.msra.mxu0 %v537
      %3037 = vmatprep.subr.bf16.mxu0 0
      %3038 = vmatpush1.bf16.msra.mxu0 0
      %3039 = vmatprep.subr.bf16.mxu0 0
      %3040 = vmatpush1.bf16.msra.mxu0 0
      %3041 = vmatprep.subr.bf16.mxu0 0
      %3042 = vmatpush1.bf16.msra.mxu0 0
      %3043 = vmatprep.subr.bf16.mxu0 0
      %3044 = vmatpush1.bf16.msra.mxu0 0
      %3045 = vmatprep.subr.bf16.mxu0 0
      %3046 = vmatpush1.bf16.msra.mxu0 0
      %3047 = vmatprep.subr.bf16.mxu0 0
      %3048 = vmatpush1.bf16.msra.mxu0 0
      %3049 = vmatprep.subr.bf16.mxu0 0
      %3050 = vmatpush1.bf16.msra.mxu0 0
      %3051 = vmatprep.subr.bf16.mxu0 0
      %3052 = vmatpush1.bf16.msra.mxu0 0
      %3053 = vmatprep.subr.bf16.mxu0 0
      %3054 = vmatpush1.bf16.msra.mxu0 0
      %3055 = vmatprep.subr.bf16.mxu0 0
      %3056 = vmatpush1.bf16.msra.mxu0 0
      %3057 = vmatprep.subr.bf16.mxu0 0
      %3058 = vmatpush1.bf16.msra.mxu0 0
      %3059 = vmatprep.subr.bf16.mxu0 0
      %3060 = vmatpush1.bf16.msra.mxu0 0
      %3061 = vmatprep.subr.bf16.mxu0 0
      %3062 = vmatpush1.bf16.msra.mxu0 0
      %3063 = vmatprep.subr.bf16.mxu0 0
      %3064 = vmatpush1.bf16.msra.mxu0 0
      %3065 = vmatprep.subr.bf16.mxu0 0
      %3066 = vmatpush1.bf16.msra.mxu0 0
      %3067 = vmatprep.mubr.bf16.mxu0 0
      %3068 = vmatmul.mubr.bf16.gmra.mrb[0].mxu0 %v983
      %v3069 = vpop.f32.mrb[0].mxu0
      %v3070 = vadd.f32 0.0, %v3069
      %v3071 = vpop.f32.mrb[0].mxu0
      %v3072 = vpop.f32.mrb[0].mxu0
      %v3073 = vadd.f32 0.0, %v3072
      %v3074 = vpop.f32.mrb[0].mxu0
      %3075 = vmatprep.mubr.bf16.mxu0 0
      %3076 = vmatmul.mubr.bf16.gmra.mrb[0].mxu0 %v986
      %v3077 = vpop.f32.mrb[0].mxu0
      %v3078 = vadd.f32 0.0, %v3077
      %v3079 = vpop.f32.mrb[0].mxu0
      %v3080 = vpop.f32.mrb[0].mxu0
      %v3081 = vadd.f32 0.0, %v3080
      %v3082 = vpop.f32.mrb[0].mxu0
      %3083 = vmatprep.mubr.bf16.mxu0 0
      %3084 = vmatmul.mubr.bf16.gmra.mrb[0].mxu0 %v989
      %v3085 = vpop.f32.mrb[0].mxu0
      %v3086 = vadd.f32 0.0, %v3085
      %v3087 = vpop.f32.mrb[0].mxu0
      %v3088 = vpop.f32.mrb[0].mxu0
      %v3089 = vadd.f32 0.0, %v3088
      %v3090 = vpop.f32.mrb[0].mxu0
      %3091 = vmatprep.mubr.bf16.mxu0 0
      %3092 = vmatmul.mubr.bf16.gmra.mrb[0].mxu0 %v992
      %v3093 = vpop.f32.mrb[0].mxu0
      %v3094 = vadd.f32 0.0, %v3093
      %v3095 = vpop.f32.mrb[0].mxu0
      %v3096 = vpop.f32.mrb[0].mxu0
      %v3097 = vadd.f32 0.0, %v3096
      %v3098 = vpop.f32.mrb[0].mxu0
      %3099 = vmatprep.mubr.bf16.mxu0 0
      %3100 = vmatmul.mubr.bf16.gmra.mrb[0].mxu0 %v995
      %v3101 = vpop.f32.mrb[0].mxu0
      %v3102 = vadd.f32 0.0, %v3101
      %v3103 = vpop.f32.mrb[0].mxu0
      %v3104 = vpop.f32.mrb[0].mxu0
      %v3105 = vpop.f32.mrb[0].mxu0
      %3106 = vdwg.mxu0
      %v3107 = vadd.f32 %v3026, %v3070
      %v3108 = vadd.f32 %v3027, %v3073
      %v3109 = vadd.f32 %v3028, %v3078
      %v3110 = vadd.f32 %v3029, %v3081
      %v3111 = vadd.f32 %v3030, %v3086
      %v3112 = vadd.f32 %v3031, %v3089
      %v3113 = vadd.f32 %v3032, %v3094
      %v3114 = vadd.f32 %v3033, %v3097
      %v3115 = vadd.f32 %v3034, %v3102
      %3116 = vmatprep.subr.bf16.mxu0 0
      %3117 = vmatpush1.bf16.msra.mxu0 %v653
      %3118 = vmatprep.subr.bf16.mxu0 0
      %3119 = vmatpush1.bf16.msra.mxu0 0
      %3120 = vmatprep.subr.bf16.mxu0 0
      %3121 = vmatpush1.bf16.msra.mxu0 0
      %3122 = vmatprep.subr.bf16.mxu0 0
      %3123 = vmatpush1.bf16.msra.mxu0 0
      %3124 = vmatprep.subr.bf16.mxu0 0
      %3125 = vmatpush1.bf16.msra.mxu0 0
      %3126 = vmatprep.subr.bf16.mxu0 0
      %3127 = vmatpush1.bf16.msra.mxu0 0
      %3128 = vmatprep.subr.bf16.mxu0 0
      %3129 = vmatpush1.bf16.msra.mxu0 0
      %3130 = vmatprep.subr.bf16.mxu0 0
      %3131 = vmatpush1.bf16.msra.mxu0 0
      %3132 = vmatprep.subr.bf16.mxu0 0
      %3133 = vmatpush1.bf16.msra.mxu0 0
      %3134 = vmatprep.subr.bf16.mxu0 0
      %3135 = vmatpush1.bf16.msra.mxu0 0
      %3136 = vmatprep.subr.bf16.mxu0 0
      %3137 = vmatpush1.bf16.msra.mxu0 0
      %3138 = vmatprep.subr.bf16.mxu0 0
      %3139 = vmatpush1.bf16.msra.mxu0 0
      %3140 = vmatprep.subr.bf16.mxu0 0
      %3141 = vmatpush1.bf16.msra.mxu0 0
      %3142 = vmatprep.subr.bf16.mxu0 0
      %3143 = vmatpush1.bf16.msra.mxu0 0
      %3144 = vmatprep.subr.bf16.mxu0 0
      %3145 = vmatpush1.bf16.msra.mxu0 0
      %3146 = vmatprep.subr.bf16.mxu0 0
      %3147 = vmatpush1.bf16.msra.mxu0 0
      %3148 = vmatprep.mubr.bf16.mxu0 0
      %3149 = vmatmul.mubr.bf16.gmra.mrb[0].mxu0 %v1098
      %v3150 = vpop.f32.mrb[0].mxu0
      %v3151 = vadd.f32 0.0, %v3150
      %v3152 = vpop.f32.mrb[0].mxu0
      %v3153 = vpop.f32.mrb[0].mxu0
      %v3154 = vadd.f32 0.0, %v3153
      %v3155 = vpop.f32.mrb[0].mxu0
      %3156 = vmatprep.mubr.bf16.mxu0 0
      %3157 = vmatmul.mubr.bf16.gmra.mrb[0].mxu0 %v1101
      %v3158 = vpop.f32.mrb[0].mxu0
      %v3159 = vadd.f32 0.0, %v3158
      %v3160 = vpop.f32.mrb[0].mxu0
      %v3161 = vpop.f32.mrb[0].mxu0
      %v3162 = vadd.f32 0.0, %v3161
      %v3163 = vpop.f32.mrb[0].mxu0
      %3164 = vmatprep.mubr.bf16.mxu0 0
      %3165 = vmatmul.mubr.bf16.gmra.mrb[0].mxu0 %v1104
      %v3166 = vpop.f32.mrb[0].mxu0
      %v3167 = vadd.f32 0.0, %v3166
      %v3168 = vpop.f32.mrb[0].mxu0
      %v3169 = vpop.f32.mrb[0].mxu0
      %v3170 = vadd.f32 0.0, %v3169
      %v3171 = vpop.f32.mrb[0].mxu0
      %3172 = vmatprep.mubr.bf16.mxu0 0
      %3173 = vmatmul.mubr.bf16.gmra.mrb[0].mxu0 %v1107
      %v3174 = vpop.f32.mrb[0].mxu0
      %v3175 = vadd.f32 0.0, %v3174
      %v3176 = vpop.f32.mrb[0].mxu0
      %v3177 = vpop.f32.mrb[0].mxu0
      %v3178 = vadd.f32 0.0, %v3177
      %v3179 = vpop.f32.mrb[0].mxu0
      %3180 = vmatprep.mubr.bf16.mxu0 0
      %3181 = vmatmul.mubr.bf16.gmra.mrb[0].mxu0 %v1110
      %v3182 = vpop.f32.mrb[0].mxu0
      %v3183 = vadd.f32 0.0, %v3182
      %v3184 = vpop.f32.mrb[0].mxu0
      %v3185 = vpop.f32.mrb[0].mxu0
      %v3186 = vpop.f32.mrb[0].mxu0
      %3187 = vdwg.mxu0
      %v3188 = vadd.f32 %v3107, %v3151
      %v3189 = vadd.f32 %v3108, %v3154
      %v3190 = vadd.f32 %v3109, %v3159
      %v3191 = vadd.f32 %v3110, %v3162
      %v3192 = vadd.f32 %v3111, %v3167
      %v3193 = vadd.f32 %v3112, %v3170
      %v3194 = vadd.f32 %v3113, %v3175
      %v3195 = vadd.f32 %v3114, %v3178
      %v3196 = vadd.f32 %v3115, %v3183
      %3197 = vmatprep.subr.bf16.mxu0 0
      %3198 = vmatpush1.bf16.msra.mxu0 %v768
      %3199 = vmatprep.subr.bf16.mxu0 0
      %3200 = vmatpush1.bf16.msra.mxu0 0
      %3201 = vmatprep.subr.bf16.mxu0 0
      %3202 = vmatpush1.bf16.msra.mxu0 0
      %3203 = vmatprep.subr.bf16.mxu0 0
      %3204 = vmatpush1.bf16.msra.mxu0 0
      %3205 = vmatprep.subr.bf16.mxu0 0
      %3206 = vmatpush1.bf16.msra.mxu0 0
      %3207 = vmatprep.subr.bf16.mxu0 0
      %3208 = vmatpush1.bf16.msra.mxu0 0
      %3209 = vmatprep.subr.bf16.mxu0 0
      %3210 = vmatpush1.bf16.msra.mxu0 0
      %3211 = vmatprep.subr.bf16.mxu0 0
      %3212 = vmatpush1.bf16.msra.mxu0 0
      %3213 = vmatprep.subr.bf16.mxu0 0
      %3214 = vmatpush1.bf16.msra.mxu0 0
      %3215 = vmatprep.subr.bf16.mxu0 0
      %3216 = vmatpush1.bf16.msra.mxu0 0
      %3217 = vmatprep.subr.bf16.mxu0 0
      %3218 = vmatpush1.bf16.msra.mxu0 0
      %3219 = vmatprep.subr.bf16.mxu0 0
      %3220 = vmatpush1.bf16.msra.mxu0 0
      %3221 = vmatprep.subr.bf16.mxu0 0
      %3222 = vmatpush1.bf16.msra.mxu0 0
      %3223 = vmatprep.subr.bf16.mxu0 0
      %3224 = vmatpush1.bf16.msra.mxu0 0
      %3225 = vmatprep.subr.bf16.mxu0 0
      %3226 = vmatpush1.bf16.msra.mxu0 0
      %3227 = vmatprep.subr.bf16.mxu0 0
      %3228 = vmatpush1.bf16.msra.mxu0 0
      %3229 = vmatprep.mubr.bf16.mxu0 0
      %3230 = vmatmul.mubr.bf16.gmra.mrb[0].mxu0 %v1899
      %v3231 = vpop.f32.mrb[0].mxu0
      %v3232 = vadd.f32 0.0, %v3231
      %v3233 = vpop.f32.mrb[0].mxu0
      %v3234 = vpop.f32.mrb[0].mxu0
      %v3235 = vadd.f32 0.0, %v3234
      %v3236 = vpop.f32.mrb[0].mxu0
      %3237 = vmatprep.mubr.bf16.mxu0 0
      %3238 = vmatmul.mubr.bf16.gmra.mrb[0].mxu0 %v1902
      %v3239 = vpop.f32.mrb[0].mxu0
      %v3240 = vadd.f32 0.0, %v3239
      %v3241 = vpop.f32.mrb[0].mxu0
      %v3242 = vpop.f32.mrb[0].mxu0
      %v3243 = vadd.f32 0.0, %v3242
      %v3244 = vpop.f32.mrb[0].mxu0
      %3245 = vmatprep.mubr.bf16.mxu0 0
      %3246 = vmatmul.mubr.bf16.gmra.mrb[0].mxu0 %v1905
      %v3247 = vpop.f32.mrb[0].mxu0
      %v3248 = vadd.f32 0.0, %v3247
      %v3249 = vpop.f32.mrb[0].mxu0
      %v3250 = vpop.f32.mrb[0].mxu0
      %v3251 = vadd.f32 0.0, %v3250
      %v3252 = vpop.f32.mrb[0].mxu0
      %3253 = vmatprep.mubr.bf16.mxu0 0
      %3254 = vmatmul.mubr.bf16.gmra.mrb[0].mxu0 %v1908
      %v3255 = vpop.f32.mrb[0].mxu0
      %v3256 = vadd.f32 0.0, %v3255
      %v3257 = vpop.f32.mrb[0].mxu0
      %v3258 = vpop.f32.mrb[0].mxu0
      %v3259 = vadd.f32 0.0, %v3258
      %v3260 = vpop.f32.mrb[0].mxu0
      %3261 = vmatprep.mubr.bf16.mxu0 0
      %3262 = vmatmul.mubr.bf16.gmra.mrb[0].mxu0 %v1911
      %v3263 = vpop.f32.mrb[0].mxu0
      %v3264 = vadd.f32 0.0, %v3263
      %v3265 = vpop.f32.mrb[0].mxu0
      %v3266 = vpop.f32.mrb[0].mxu0
      %v3267 = vpop.f32.mrb[0].mxu0
      %3268 = vdwg.mxu0
      %v3269 = vadd.f32 %v3188, %v3232
      %v3270 = vadd.f32 %v3189, %v3235
      %v3271 = vadd.f32 %v3190, %v3240
      %v3272 = vadd.f32 %v3191, %v3243
      %v3273 = vadd.f32 %v3192, %v3248
      %v3274 = vadd.f32 %v3193, %v3251
      %v3275 = vadd.f32 %v3194, %v3256
      %v3276 = vadd.f32 %v3195, %v3259
      %v3277 = vadd.f32 %v3196, %v3264
      %3278 = vmatprep.subr.bf16.mxu0 0
      %3279 = vmatpush1.bf16.msra.mxu0 %v883
      %3280 = vmatprep.subr.bf16.mxu0 0
      %3281 = vmatpush1.bf16.msra.mxu0 0
      %3282 = vmatprep.subr.bf16.mxu0 0
      %3283 = vmatpush1.bf16.msra.mxu0 0
      %3284 = vmatprep.subr.bf16.mxu0 0
      %3285 = vmatpush1.bf16.msra.mxu0 0
      %3286 = vmatprep.subr.bf16.mxu0 0
      %3287 = vmatpush1.bf16.msra.mxu0 0
      %3288 = vmatprep.subr.bf16.mxu0 0
      %3289 = vmatpush1.bf16.msra.mxu0 0
      %3290 = vmatprep.subr.bf16.mxu0 0
      %3291 = vmatpush1.bf16.msra.mxu0 0
      %3292 = vmatprep.subr.bf16.mxu0 0
      %3293 = vmatpush1.bf16.msra.mxu0 0
      %3294 = vmatprep.subr.bf16.mxu0 0
      %3295 = vmatpush1.bf16.msra.mxu0 0
      %3296 = vmatprep.subr.bf16.mxu0 0
      %3297 = vmatpush1.bf16.msra.mxu0 0
      %3298 = vmatprep.subr.bf16.mxu0 0
      %3299 = vmatpush1.bf16.msra.mxu0 0
      %3300 = vmatprep.subr.bf16.mxu0 0
      %3301 = vmatpush1.bf16.msra.mxu0 0
      %3302 = vmatprep.subr.bf16.mxu0 0
      %3303 = vmatpush1.bf16.msra.mxu0 0
      %3304 = vmatprep.subr.bf16.mxu0 0
      %3305 = vmatpush1.bf16.msra.mxu0 0
      %3306 = vmatprep.subr.bf16.mxu0 0
      %3307 = vmatpush1.bf16.msra.mxu0 0
      %3308 = vmatprep.subr.bf16.mxu0 0
      %3309 = vmatpush1.bf16.msra.mxu0 0
      %3310 = vmatprep.mubr.bf16.mxu0 0
      %3311 = vmatmul.mubr.bf16.gmra.mrb[0].mxu0 %v2596
      %v3312 = vpop.f32.mrb[0].mxu0
      %v3313 = vadd.f32 0.0, %v3312
      %v3314 = vpop.f32.mrb[0].mxu0
      %v3315 = vpop.f32.mrb[0].mxu0
      %v3316 = vadd.f32 0.0, %v3315
      %v3317 = vpop.f32.mrb[0].mxu0
      %3318 = vmatprep.mubr.bf16.mxu0 0
      %3319 = vmatmul.mubr.bf16.gmra.mrb[0].mxu0 %v2599
      %v3320 = vpop.f32.mrb[0].mxu0
      %v3321 = vadd.f32 0.0, %v3320
      %v3322 = vpop.f32.mrb[0].mxu0
      %v3323 = vpop.f32.mrb[0].mxu0
      %v3324 = vadd.f32 0.0, %v3323
      %v3325 = vpop.f32.mrb[0].mxu0
      %3326 = vmatprep.mubr.bf16.mxu0 0
      %3327 = vmatmul.mubr.bf16.gmra.mrb[0].mxu0 %v2602
      %v3328 = vpop.f32.mrb[0].mxu0
      %v3329 = vadd.f32 0.0, %v3328
      %v3330 = vpop.f32.mrb[0].mxu0
      %v3331 = vpop.f32.mrb[0].mxu0
      %v3332 = vadd.f32 0.0, %v3331
      %v3333 = vpop.f32.mrb[0].mxu0
      %3334 = vmatprep.mubr.bf16.mxu0 0
      %3335 = vmatmul.mubr.bf16.gmra.mrb[0].mxu0 %v2605
      %v3336 = vpop.f32.mrb[0].mxu0
      %v3337 = vadd.f32 0.0, %v3336
      %v3338 = vpop.f32.mrb[0].mxu0
      %v3339 = vpop.f32.mrb[0].mxu0
      %v3340 = vadd.f32 0.0, %v3339
      %v3341 = vpop.f32.mrb[0].mxu0
      %3342 = vmatprep.mubr.bf16.mxu0 0
      %3343 = vmatmul.mubr.bf16.gmra.mrb[0].mxu0 %v2608
      %v3344 = vpop.f32.mrb[0].mxu0
      %v3345 = vadd.f32 0.0, %v3344
      %v3346 = vpop.f32.mrb[0].mxu0
      %v3347 = vpop.f32.mrb[0].mxu0
      %v3348 = vpop.f32.mrb[0].mxu0
      %3349 = vdwg.mxu0
      %v3350 = vadd.f32 %v3269, %v3313
      %v3351 = vadd.f32 %v3270, %v3316
      %v3352 = vadd.f32 %v3271, %v3321
      %v3353 = vadd.f32 %v3272, %v3324
      %v3354 = vadd.f32 %v3273, %v3329
      %v3355 = vadd.f32 %v3274, %v3332
      %v3356 = vadd.f32 %v3275, %v3337
      %v3357 = vadd.f32 %v3276, %v3340
      %v3358 = vadd.f32 %v3277, %v3345
      %3359 = vmatprep.subr.bf16.mxu0 0
      %3360 = vmatpush1.bf16.msra.mxu0 %v998
      %3361 = vmatprep.subr.bf16.mxu0 0
      %3362 = vmatpush1.bf16.msra.mxu0 0
      %3363 = vmatprep.subr.bf16.mxu0 0
      %3364 = vmatpush1.bf16.msra.mxu0 0
      %3365 = vmatprep.subr.bf16.mxu0 0
      %3366 = vmatpush1.bf16.msra.mxu0 0
      %3367 = vmatprep.subr.bf16.mxu0 0
      %3368 = vmatpush1.bf16.msra.mxu0 0
      %3369 = vmatprep.subr.bf16.mxu0 0
      %3370 = vmatpush1.bf16.msra.mxu0 0
      %3371 = vmatprep.subr.bf16.mxu0 0
      %3372 = vmatpush1.bf16.msra.mxu0 0
      %3373 = vmatprep.subr.bf16.mxu0 0
      %3374 = vmatpush1.bf16.msra.mxu0 0
      %3375 = vmatprep.subr.bf16.mxu0 0
      %3376 = vmatpush1.bf16.msra.mxu0 0
      %3377 = vmatprep.subr.bf16.mxu0 0
      %3378 = vmatpush1.bf16.msra.mxu0 0
      %3379 = vmatprep.subr.bf16.mxu0 0
      %3380 = vmatpush1.bf16.msra.mxu0 0
      %3381 = vmatprep.subr.bf16.mxu0 0
      %3382 = vmatpush1.bf16.msra.mxu0 0
      %3383 = vmatprep.subr.bf16.mxu0 0
      %3384 = vmatpush1.bf16.msra.mxu0 0
      %3385 = vmatprep.subr.bf16.mxu0 0
      %3386 = vmatpush1.bf16.msra.mxu0 0
      %3387 = vmatprep.subr.bf16.mxu0 0
      %3388 = vmatpush1.bf16.msra.mxu0 0
      %3389 = vmatprep.subr.bf16.mxu0 0
      %3390 = vmatpush1.bf16.msra.mxu0 0
      %3391 = vmatprep.mubr.bf16.mxu0 0
      %3392 = vmatmul.mubr.bf16.gmra.mrb[0].mxu0 %v2706
      %v3393 = vpop.f32.mrb[0].mxu0
      %v3394 = vadd.f32 0.0, %v3393
      %v3395 = vpop.f32.mrb[0].mxu0
      %v3396 = vpop.f32.mrb[0].mxu0
      %v3397 = vadd.f32 0.0, %v3396
      %v3398 = vpop.f32.mrb[0].mxu0
      %3399 = vmatprep.mubr.bf16.mxu0 0
      %3400 = vmatmul.mubr.bf16.gmra.mrb[0].mxu0 %v2709
      %v3401 = vpop.f32.mrb[0].mxu0
      %v3402 = vadd.f32 0.0, %v3401
      %v3403 = vpop.f32.mrb[0].mxu0
      %v3404 = vpop.f32.mrb[0].mxu0
      %v3405 = vadd.f32 0.0, %v3404
      %v3406 = vpop.f32.mrb[0].mxu0
      %3407 = vmatprep.mubr.bf16.mxu0 0
      %3408 = vmatmul.mubr.bf16.gmra.mrb[0].mxu0 %v2712
      %v3409 = vpop.f32.mrb[0].mxu0
      %v3410 = vadd.f32 0.0, %v3409
      %v3411 = vpop.f32.mrb[0].mxu0
      %v3412 = vpop.f32.mrb[0].mxu0
      %v3413 = vadd.f32 0.0, %v3412
      %v3414 = vpop.f32.mrb[0].mxu0
      %3415 = vmatprep.mubr.bf16.mxu0 0
      %3416 = vmatmul.mubr.bf16.gmra.mrb[0].mxu0 %v2715
      %v3417 = vpop.f32.mrb[0].mxu0
      %v3418 = vadd.f32 0.0, %v3417
      %v3419 = vpop.f32.mrb[0].mxu0
      %v3420 = vpop.f32.mrb[0].mxu0
      %v3421 = vadd.f32 0.0, %v3420
      %v3422 = vpop.f32.mrb[0].mxu0
      %3423 = vmatprep.mubr.bf16.mxu0 0
      %3424 = vmatmul.mubr.bf16.gmra.mrb[0].mxu0 %v2718
      %v3425 = vpop.f32.mrb[0].mxu0
      %v3426 = vadd.f32 0.0, %v3425
      %v3427 = vpop.f32.mrb[0].mxu0
      %v3428 = vpop.f32.mrb[0].mxu0
      %v3429 = vpop.f32.mrb[0].mxu0
      %3430 = vdwg.mxu0
      %v3431 = vadd.f32 %v3350, %v3394
      %v3432 = vadd.f32 %v3351, %v3397
      %v3433 = vadd.f32 %v3352, %v3402
      %v3434 = vadd.f32 %v3353, %v3405
      %v3435 = vadd.f32 %v3354, %v3410
      %v3436 = vadd.f32 %v3355, %v3413
      %v3437 = vadd.f32 %v3356, %v3418
      %v3438 = vadd.f32 %v3357, %v3421
      %v3439 = vadd.f32 %v3358, %v3426
      %v3440 = vld [vmem:[%s620 + $0xa] sm:$0xff]
      %v3441 = vld [vmem:[%s620 + $0x12] sm:$0xff]
      %v3442 = vld [vmem:[%s620 + $0x1a] sm:$0xff]
      %v3443 = vld [vmem:[%s620 + $0x22] sm:$0xff]
      %v3444 = vld [vmem:[%s620 + $0x2a] sm:$0xff]
      %v3445 = vld [vmem:[%s620 + $0x32] sm:$0xff]
      %v3446 = vld [vmem:[%s620 + $0x3a] sm:$0xff]
      %v3447 = vld [vmem:[%s620 + $0x42] sm:$0xff]
      %v3448 = vld [vmem:[%s620 + $0x4a] sm:$0xff]
      %v3449 = vpack.c.bf16 %v3441, %v3440
      %v3450 = vpack.c.bf16 %v3443, %v3442
      %v3451 = vpack.c.bf16 %v3445, %v3444
      %v3452 = vpack.c.bf16 %v3447, %v3446
      %v3453 = vpack.c.bf16 %v3448, %v3448
      %v3455 = vsel %vm204, %v3449, 0
      %v3458 = vsel %vm204, %v3450, 0
      %v3461 = vsel %vm204, %v3451, 0
      %v3464 = vsel %vm204, %v3452, 0
      %v3467 = vsel %vm204, %v3453, 0
      %3469 = vmatprep.subr.bf16.mxu0 0
      %3470 = vmatpush1.bf16.msra.mxu0 %v1113
      %3471 = vmatprep.subr.bf16.mxu0 0
      %3472 = vmatpush1.bf16.msra.mxu0 0
      %3473 = vmatprep.subr.bf16.mxu0 0
      %3474 = vmatpush1.bf16.msra.mxu0 0
      %3475 = vmatprep.subr.bf16.mxu0 0
      %3476 = vmatpush1.bf16.msra.mxu0 0
      %3477 = vmatprep.subr.bf16.mxu0 0
      %3478 = vmatpush1.bf16.msra.mxu0 0
      %3479 = vmatprep.subr.bf16.mxu0 0
      %3480 = vmatpush1.bf16.msra.mxu0 0
      %3481 = vmatprep.subr.bf16.mxu0 0
      %3482 = vmatpush1.bf16.msra.mxu0 0
      %3483 = vmatprep.subr.bf16.mxu0 0
      %3484 = vmatpush1.bf16.msra.mxu0 0
      %3485 = vmatprep.subr.bf16.mxu0 0
      %3486 = vmatpush1.bf16.msra.mxu0 0
      %3487 = vmatprep.subr.bf16.mxu0 0
      %3488 = vmatpush1.bf16.msra.mxu0 0
      %3489 = vmatprep.subr.bf16.mxu0 0
      %3490 = vmatpush1.bf16.msra.mxu0 0
      %3491 = vmatprep.subr.bf16.mxu0 0
      %3492 = vmatpush1.bf16.msra.mxu0 0
      %3493 = vmatprep.subr.bf16.mxu0 0
      %3494 = vmatpush1.bf16.msra.mxu0 0
      %3495 = vmatprep.subr.bf16.mxu0 0
      %3496 = vmatpush1.bf16.msra.mxu0 0
      %3497 = vmatprep.subr.bf16.mxu0 0
      %3498 = vmatpush1.bf16.msra.mxu0 0
      %3499 = vmatprep.subr.bf16.mxu0 0
      %3500 = vmatpush1.bf16.msra.mxu0 0
      %3501 = vmatprep.mubr.bf16.mxu0 0
      %3502 = vmatmul.mubr.bf16.gmra.mrb[0].mxu0 %v3455
      %v3503 = vpop.f32.mrb[0].mxu0
      %v3504 = vadd.f32 0.0, %v3503
      %v3505 = vpop.f32.mrb[0].mxu0
      %v3506 = vpop.f32.mrb[0].mxu0
      %v3507 = vadd.f32 0.0, %v3506
      %v3508 = vpop.f32.mrb[0].mxu0
      %3509 = vmatprep.mubr.bf16.mxu0 0
      %3510 = vmatmul.mubr.bf16.gmra.mrb[0].mxu0 %v3458
      %v3511 = vpop.f32.mrb[0].mxu0
      %v3512 = vadd.f32 0.0, %v3511
      %v3513 = vpop.f32.mrb[0].mxu0
      %v3514 = vpop.f32.mrb[0].mxu0
      %v3515 = vadd.f32 0.0, %v3514
      %v3516 = vpop.f32.mrb[0].mxu0
      %3517 = vmatprep.mubr.bf16.mxu0 0
      %3518 = vmatmul.mubr.bf16.gmra.mrb[0].mxu0 %v3461
      %v3519 = vpop.f32.mrb[0].mxu0
      %v3520 = vadd.f32 0.0, %v3519
      %v3521 = vpop.f32.mrb[0].mxu0
      %v3522 = vpop.f32.mrb[0].mxu0
      %v3523 = vadd.f32 0.0, %v3522
      %v3524 = vpop.f32.mrb[0].mxu0
      %3525 = vmatprep.mubr.bf16.mxu0 0
      %3526 = vmatmul.mubr.bf16.gmra.mrb[0].mxu0 %v3464
      %v3527 = vpop.f32.mrb[0].mxu0
      %v3528 = vadd.f32 0.0, %v3527
      %v3529 = vpop.f32.mrb[0].mxu0
      %v3530 = vpop.f32.mrb[0].mxu0
      %v3531 = vadd.f32 0.0, %v3530
      %v3532 = vpop.f32.mrb[0].mxu0
      %3533 = vmatprep.mubr.bf16.mxu0 0
      %3534 = vmatmul.mubr.bf16.gmra.mrb[0].mxu0 %v3467
      %v3535 = vpop.f32.mrb[0].mxu0
      %v3536 = vadd.f32 0.0, %v3535
      %v3537 = vpop.f32.mrb[0].mxu0
      %v3538 = vpop.f32.mrb[0].mxu0
      %v3539 = vpop.f32.mrb[0].mxu0
      %3540 = vdwg.mxu0
      %v3541 = vadd.f32 %v3431, %v3504
      %v3542 = vadd.f32 %v3432, %v3507
      %v3543 = vadd.f32 %v3433, %v3512
      %v3544 = vadd.f32 %v3434, %v3515
      %v3545 = vadd.f32 %v3435, %v3520
      %v3546 = vadd.f32 %v3436, %v3523
      %v3547 = vadd.f32 %v3437, %v3528
      %v3548 = vadd.f32 %v3438, %v3531
      %v3549 = vadd.f32 %v3439, %v3536
      %v3550 = vmax.f32 %v2801, %v3541
      %v3551 = vmax.f32 %v2802, %v3542
      %v3552 = vmax.f32 %v2803, %v3543
      %v3553 = vmax.f32 %v2804, %v3544
      %v3554 = vmax.f32 %v2805, %v3545
      %v3555 = vmax.f32 %v2806, %v3546
      %v3556 = vmax.f32 %v2807, %v3547
      %v3557 = vmax.f32 %v2808, %v3548
      %v3558 = vmax.f32 %v2809, %v3549
      %v3559 = vld [vmem:[%s2] sm:$0x1]
      %v3561 = vlaneseq
      %v3562 = vshrl.u32 %v3561, 7
      %v3563 = vsub.s32 0, %v3562
      %v3564 = vrot.slane %v3559, %v3563
      %v3566 = vadd.f32 %v3550, %v3564
      %v3567 = vadd.f32 %v3551, %v3564
      %v3568 = vadd.f32 %v3552, %v3564
      %v3569 = vadd.f32 %v3553, %v3564
      %v3570 = vadd.f32 %v3554, %v3564
      %v3571 = vadd.f32 %v3555, %v3564
      %v3572 = vadd.f32 %v3556, %v3564
      %v3573 = vadd.f32 %v3557, %v3564
      %v3574 = vadd.f32 %v3558, %v3564
      %v3575 = vmax.f32 %v3566, 0.0
      %v3576 = vmax.f32 %v3567, 0.0
      %v3577 = vmax.f32 %v3568, 0.0
      %v3578 = vmax.f32 %v3569, 0.0
      %v3579 = vmax.f32 %v3570, 0.0
      %v3580 = vmax.f32 %v3571, 0.0
      %v3581 = vmax.f32 %v3572, 0.0
      %v3582 = vmax.f32 %v3573, 0.0
      %v3583 = vmax.f32 %v3574, 0.0
      %vm3584 = vcmask 523264
      %3585 = vst.msk [vmem:[%s170] sm:$0xff] %vm3584, %v3575
      %3586 = vst.msk [vmem:[%s170 + $0x8] sm:$0xff] %vm3584, %v3576
      %3587 = vst.msk [vmem:[%s170 + $0x10] sm:$0xff] %vm3584, %v3577
      %3588 = vst.msk [vmem:[%s170 + $0x18] sm:$0xff] %vm3584, %v3578
      %3589 = vst.msk [vmem:[%s170 + $0x20] sm:$0xff] %vm3584, %v3579
      %3590 = vst.msk [vmem:[%s170 + $0x28] sm:$0xff] %vm3584, %v3580
      %3591 = vst.msk [vmem:[%s170 + $0x30] sm:$0xff] %vm3584, %v3581
      %3592 = vst.msk [vmem:[%s170 + $0x38] sm:$0xff] %vm3584, %v3582
      %3593 = vst.msk [vmem:[%s170 + $0x40] sm:$0xff] %vm3584, %v3583
      %p3594 = scmp.lt.s32.totalorder %s14, 1
      %s3595 = scalar_select %p3594, %s14, 1
      %s3596 = smul.addr %s3595, 9
      %s3597 = smul.addr %s3596, 8
      %s3598 = scalar_lea.vmem %s3, %s3597
      // Predicated region
      $region33: #{_device_forward.3} parent=31 // pred_check
        %p3599 = pneg %p100
      $region34: #{_device_forward.3} parent=31 // pred_check_branch
        %3601 = sbr.rel (%p3599) target = $region36
      $region35: #{_device_forward.3} parent=31 // pred_region
        _
      $region36: #{_device_forward.3} parent=31 // pred_fallthru
        _
    $region32: #{_device_forward.3} parent=5 // pred_fallthru
      _
    %p3602 = scmp.le.s32.totalorder 2, %s9
    // Predicated region
    $region37: #{_device_forward.3} parent=5 // pred_check
      %p3603 = pneg %p3602
    $region38: #{_device_forward.3} parent=5 // pred_check_branch
      %3605 = sbr.rel (%p3603) target = $region40
    $region39: #{_device_forward.3} parent=5 // pred_region
      %s3606 = ssub.s32 %s9, 2
      // Predicated region
      $region41: #{_device_forward.3} parent=39 // pred_check
        %p3607 = pneg %p106
      $region42: #{_device_forward.3} parent=39 // pred_check_branch
        %3609 = sbr.rel (%p3607) target = $region44
      $region43: #{_device_forward.3} parent=39 // pred_region
        %p3610 = scmp.lt.s32.totalorder %s15, 1
        %s3611 = scalar_select %p3610, %s15, 1
        %s3612 = smul.addr %s3611, 9
        %s3613 = smul.addr %s3612, 8
        %s3614 = scalar_lea.vmem %s3, %s3613
      $region44: #{_device_forward.3} parent=39 // pred_fallthru
        _
    $region40: #{_device_forward.3} parent=5 // pred_fallthru
      _
  $region6: #{_device_forward.3} parent=0 // loop_footer
    %s13 = sadd.s32 1, %s9
  $region7: #{_device_forward.3} parent=0 // loop_footer_branch
    %8 = sbr.rel target = $region3
  $region8: #{_device_forward.3} parent=0 // loop_exit
    _

// kernel: _device_forward.5
$region0: #{_device_forward.5}
  #allocation0 [shape = 'u32[]', space=smem, size = 0x4, offset = 0x4, fixed_abs, tag = 'smem constant byte address 0x4 - core index']
  #allocation1 [shape = 'u32[144,128]{1,0:T(1,128)}', space=vmem, size = 0x12000, scoped, tag = 'internal scratch']
  %s0 = inlined_call_operand.vmem [shape: f32[2,40,128], index: 0, kind: input, shape index: {}]
  %s1 = inlined_call_operand.vmem [shape: f32[24,1], index: 1, kind: input, shape index: {}]
  %s2 = inlined_call_operand.vmem [shape: bf16[9,128,128], index: 2, kind: input, shape index: {}]
  %s3 = inlined_call_operand.vmem [shape: f32[1,128], index: 3, kind: input, shape index: {}]
  %s4 = inlined_call_operand.vmem [shape: f32[128,18], index: 4, kind: input, shape index: {}]
  %s5 = inlined_call_operand.vmem [shape: f32[1,18], index: 5, kind: input, shape index: {}]
  %s6 = inlined_call_operand.hbm [shape: f32[2,1,18], index: 6, kind: output, shape index: {0}]
  %s7 = inlined_call_operand.hbm [shape: f32[2,1,18], index: 7, kind: output, shape index: {1}]
  %8 = xla_tuple %s6, %s7
  %s9 = sld [smem:[#allocation0]]
  $region65: #{_device_forward.5} parent=0
    _
  %s11 = ssub.s32 1, %s9
  %s12 = scalar_select 0, %s11, %s9
  $region1: #{_device_forward.5} parent=0
    #allocation2 [shape = 'u8[1024]{0}', space=vmem, size = 0x400, scoped, tag = 'output window, operand 0']
    #allocation3 [shape = 's32[2]{0}', space=sflag, size = 0x8, scoped, tag = 'scoped memory for _device_forward.5']
    #allocation4 [shape = 'u8[1024]{0}', space=vmem, size = 0x400, scoped, tag = 'output window, operand 1']
    #allocation5 [shape = 's32[2]{0}', space=sflag, size = 0x8, scoped, tag = 'scoped memory for _device_forward.5']
    %13 = vsyncpa [#allocation3], 0
    %s14 = scalar_lea.sflag [#allocation3], 1
    %15 = vsyncpa %s14, 0
    %16 = vsyncpa [#allocation5], 0
    %s17 = scalar_lea.sflag [#allocation5], 1
    %18 = vsyncpa %s17, 0
    loop: start=0, step=1, limit=4
    $region2: #{_device_forward.5} parent=1 // loop_pre_header
      _
    $region3: #{_device_forward.5} parent=1 // loop_header
      %s20 = sphi 0, %s24
      %p21 = scmp.ge.s32.totalorder %s20, 4
      %s30 = sphi 0, %s32
      %s33 = sphi 0, %s30
      %s34 = sphi 0, %s33
      %s50 = sphi 0, %s34
      %s54 = sphi 0, %s54
      %s56 = sphi 0, %s54
      %s57 = sphi 0, %s56
      %s71 = sphi 0, %s57
      %s75 = sphi 0, %s75
      %s77 = sphi 0, %s75
      %s78 = sphi 0, %s77
      %s92 = sphi 0, %s78
      %s96 = sphi 0, %s96
      %s98 = sphi 0, %s96
      %s99 = sphi 0, %s98
      %s113 = sphi 0, %s99
      %s117 = sphi 0, %s117
      %s119 = sphi 0, %s117
      %s120 = sphi 0, %s119
      %s134 = sphi 0, %s120
      %s138 = sphi 0, %s138
      %s140 = sphi 0, %s138
      %s141 = sphi 0, %s140
      %s155 = sphi 0, %s141
      %s161 = sphi 0, %s163
      %s164 = sphi 0, %s161
      %s165 = sphi 0, %s164
      %s181 = sphi 0, %s165
      %s187 = sphi 0, %s189
      %s190 = sphi 0, %s187
      %s191 = sphi 0, %s190
      %s207 = sphi 0, %s191
    $region4: #{_device_forward.5} parent=1 // loop_header_branch
      %23 = sbr.rel (%p21) target = $region8
    $region5: #{_device_forward.5} parent=1 // loop_body
      %s25 = ssub.s32 %s20, 1
      %s26 = ssub.s32 %s20, 2
      %s27 = sadd.s32 %s20, 1
      %s28 = ssub.s32 %s20, %s27
      %p29 = scmp.eq.s32.totalorder %s28, 0
      %s31 = sadd.s32 %s30, 1
      %s32 = scalar_select %p29, %s30, %s31
      %p35 = pneg %p29
      %p36 = scmp.eq.s32.totalorder %s20, 1
      %p37 = por %p35, %p36
      %p38 = scmp.ne.s32.totalorder %s30, %s33
      %p39 = scmp.eq.s32.totalorder %s20, 0
      %p40 = por %p38, %p39
      %p41 = scmp.ne.s32.totalorder %s30, %s33
      %p42 = scmp.eq.s32.totalorder %s25, 1
      %p43 = por %p41, %p42
      %p44 = scmp.ne.s32.totalorder %s33, %s34
      %p45 = scmp.eq.s32.totalorder %s25, 0
      %p46 = por %p44, %p45
      %p47 = scmp.ne.s32.totalorder %s33, %s34
      %p48 = scmp.eq.s32.totalorder %s26, 1
      %p49 = por %p47, %p48
      %p51 = scmp.ne.s32.totalorder %s34, %s50
      %p52 = scmp.eq.s32.totalorder %s26, 0
      %p53 = por %p51, %p52
      %s55 = sadd.s32 %s54, 1
      %p58 = scmp.eq.s32.totalorder %s20, 1
      %p59 = scmp.ne.s32.totalorder %s54, %s56
      %p60 = scmp.eq.s32.totalorder %s20, 0
      %p61 = por %p59, %p60
      %p62 = scmp.ne.s32.totalorder %s54, %s56
      %p63 = scmp.eq.s32.totalorder %s25, 1
      %p64 = por %p62, %p63
      %p65 = scmp.ne.s32.totalorder %s56, %s57
      %p66 = scmp.eq.s32.totalorder %s25, 0
      %p67 = por %p65, %p66
      %p68 = scmp.ne.s32.totalorder %s56, %s57
      %p69 = scmp.eq.s32.totalorder %s26, 1
      %p70 = por %p68, %p69
      %p72 = scmp.ne.s32.totalorder %s57, %s71
      %p73 = scmp.eq.s32.totalorder %s26, 0
      %p74 = por %p72, %p73
      %s76 = sadd.s32 %s75, 1
      %p79 = scmp.eq.s32.totalorder %s20, 1
      %p80 = scmp.ne.s32.totalorder %s75, %s77
      %p81 = scmp.eq.s32.totalorder %s20, 0
      %p82 = por %p80, %p81
      %p83 = scmp.ne.s32.totalorder %s75, %s77
      %p84 = scmp.eq.s32.totalorder %s25, 1
      %p85 = por %p83, %p84
      %p86 = scmp.ne.s32.totalorder %s77, %s78
      %p87 = scmp.eq.s32.totalorder %s25, 0
      %p88 = por %p86, %p87
      %p89 = scmp.ne.s32.totalorder %s77, %s78
      %p90 = scmp.eq.s32.totalorder %s26, 1
      %p91 = por %p89, %p90
      %p93 = scmp.ne.s32.totalorder %s78, %s92
      %p94 = scmp.eq.s32.totalorder %s26, 0
      %p95 = por %p93, %p94
      %s97 = sadd.s32 %s96, 1
      %p100 = scmp.eq.s32.totalorder %s20, 1
      %p101 = scmp.ne.s32.totalorder %s96, %s98
      %p102 = scmp.eq.s32.totalorder %s20, 0
      %p103 = por %p101, %p102
      %p104 = scmp.ne.s32.totalorder %s96, %s98
      %p105 = scmp.eq.s32.totalorder %s25, 1
      %p106 = por %p104, %p105
      %p107 = scmp.ne.s32.totalorder %s98, %s99
      %p108 = scmp.eq.s32.totalorder %s25, 0
      %p109 = por %p107, %p108
      %p110 = scmp.ne.s32.totalorder %s98, %s99
      %p111 = scmp.eq.s32.totalorder %s26, 1
      %p112 = por %p110, %p111
      %p114 = scmp.ne.s32.totalorder %s99, %s113
      %p115 = scmp.eq.s32.totalorder %s26, 0
      %p116 = por %p114, %p115
      %s118 = sadd.s32 %s117, 1
      %p121 = scmp.eq.s32.totalorder %s20, 1
      %p122 = scmp.ne.s32.totalorder %s117, %s119
      %p123 = scmp.eq.s32.totalorder %s20, 0
      %p124 = por %p122, %p123
      %p125 = scmp.ne.s32.totalorder %s117, %s119
      %p126 = scmp.eq.s32.totalorder %s25, 1
      %p127 = por %p125, %p126
      %p128 = scmp.ne.s32.totalorder %s119, %s120
      %p129 = scmp.eq.s32.totalorder %s25, 0
      %p130 = por %p128, %p129
      %p131 = scmp.ne.s32.totalorder %s119, %s120
      %p132 = scmp.eq.s32.totalorder %s26, 1
      %p133 = por %p131, %p132
      %p135 = scmp.ne.s32.totalorder %s120, %s134
      %p136 = scmp.eq.s32.totalorder %s26, 0
      %p137 = por %p135, %p136
      %s139 = sadd.s32 %s138, 1
      %p142 = scmp.eq.s32.totalorder %s20, 1
      %p143 = scmp.ne.s32.totalorder %s138, %s140
      %p144 = scmp.eq.s32.totalorder %s20, 0
      %p145 = por %p143, %p144
      %p146 = scmp.ne.s32.totalorder %s138, %s140
      %p147 = scmp.eq.s32.totalorder %s25, 1
      %p148 = por %p146, %p147
      %p149 = scmp.ne.s32.totalorder %s140, %s141
      %p150 = scmp.eq.s32.totalorder %s25, 0
      %p151 = por %p149, %p150
      %p152 = scmp.ne.s32.totalorder %s140, %s141
      %p153 = scmp.eq.s32.totalorder %s26, 1
      %p154 = por %p152, %p153
      %p156 = scmp.ne.s32.totalorder %s141, %s155
      %p157 = scmp.eq.s32.totalorder %s26, 0
      %p158 = por %p156, %p157
      %s159 = ssub.s32 %s20, %s27
      %p160 = scmp.eq.s32.totalorder %s159, 0
      %s162 = sadd.s32 %s161, 1
      %s163 = scalar_select %p160, %s161, %s162
      %p166 = pneg %p160
      %p167 = scmp.eq.s32.totalorder %s20, 1
      %p168 = por %p166, %p167
      %p169 = scmp.ne.s32.totalorder %s161, %s164
      %p170 = scmp.eq.s32.totalorder %s20, 0
      %p171 = por %p169, %p170
      %p172 = scmp.ne.s32.totalorder %s161, %s164
      %p173 = scmp.eq.s32.totalorder %s25, 1
      %p174 = por %p172, %p173
      %p175 = scmp.ne.s32.totalorder %s164, %s165
      %p176 = scmp.eq.s32.totalorder %s25, 0
      %p177 = por %p175, %p176
      %p178 = scmp.ne.s32.totalorder %s164, %s165
      %p179 = scmp.eq.s32.totalorder %s26, 1
      %p180 = por %p178, %p179
      %p182 = scmp.ne.s32.totalorder %s165, %s181
      %p183 = scmp.eq.s32.totalorder %s26, 0
      %p184 = por %p182, %p183
      %s185 = ssub.s32 %s20, %s27
      %p186 = scmp.eq.s32.totalorder %s185, 0
      %s188 = sadd.s32 %s187, 1
      %s189 = scalar_select %p186, %s187, %s188
      %p192 = pneg %p186
      %p193 = scmp.eq.s32.totalorder %s20, 1
      %p194 = por %p192, %p193
      %p195 = scmp.ne.s32.totalorder %s187, %s190
      %p196 = scmp.eq.s32.totalorder %s20, 0
      %p197 = por %p195, %p196
      %p198 = scmp.ne.s32.totalorder %s187, %s190
      %p199 = scmp.eq.s32.totalorder %s25, 1
      %p200 = por %p198, %p199
      %p201 = scmp.ne.s32.totalorder %s190, %s191
      %p202 = scmp.eq.s32.totalorder %s25, 0
      %p203 = por %p201, %p202
      %p204 = scmp.ne.s32.totalorder %s190, %s191
      %p205 = scmp.eq.s32.totalorder %s26, 1
      %p206 = por %p204, %p205
      %p208 = scmp.ne.s32.totalorder %s191, %s207
      %p209 = scmp.eq.s32.totalorder %s26, 0
      %p210 = por %p208, %p209
      %p211 = scmp.le.s32.totalorder 1, %s20
      %p212 = scmp.lt.s32.totalorder %s20, 3
      %p213 = pnand %p211, %p212
      %p214 = pneg %p213
      // Predicated region
      $region9: #{_device_forward.5} parent=5 // pred_check
        _
      $region10: #{_device_forward.5} parent=5 // pred_check_branch
        %216 = sbr.rel (%p213) target = $region12
      $region11: #{_device_forward.5} parent=5 // pred_region
        %s217 = ssub.s32 %s20, 1
        // Predicated region
        $region13: #{_device_forward.5} parent=11 // pred_check
          %p218 = pneg %p67
        $region14: #{_device_forward.5} parent=11 // pred_check_branch
          %220 = sbr.rel (%p218) target = $region16
        $region15: #{_device_forward.5} parent=11 // pred_region
          _
        $region16: #{_device_forward.5} parent=11 // pred_fallthru
          _
        // Predicated region
        $region17: #{_device_forward.5} parent=11 // pred_check
          %p221 = pneg %p88
        $region18: #{_device_forward.5} parent=11 // pred_check_branch
          %223 = sbr.rel (%p221) target = $region20
        $region19: #{_device_forward.5} parent=11 // pred_region
          _
        $region20: #{_device_forward.5} parent=11 // pred_fallthru
          _
        // Predicated region
        $region21: #{_device_forward.5} parent=11 // pred_check
          %p224 = pneg %p109
        $region22: #{_device_forward.5} parent=11 // pred_check_branch
          %226 = sbr.rel (%p224) target = $region24
        $region23: #{_device_forward.5} parent=11 // pred_region
          _
        $region24: #{_device_forward.5} parent=11 // pred_fallthru
          _
        // Predicated region
        $region25: #{_device_forward.5} parent=11 // pred_check
          %p227 = pneg %p130
        $region26: #{_device_forward.5} parent=11 // pred_check_branch
          %229 = sbr.rel (%p227) target = $region28
        $region27: #{_device_forward.5} parent=11 // pred_region
          _
        $region28: #{_device_forward.5} parent=11 // pred_fallthru
          _
        // Predicated region
        $region29: #{_device_forward.5} parent=11 // pred_check
          %p230 = pneg %p151
        $region30: #{_device_forward.5} parent=11 // pred_check_branch
          %232 = sbr.rel (%p230) target = $region32
        $region31: #{_device_forward.5} parent=11 // pred_region
          _
        $region32: #{_device_forward.5} parent=11 // pred_fallthru
          _
      $region12: #{_device_forward.5} parent=5 // pred_fallthru
        _
      %p233 = scmp.lt.s32.totalorder %s20, 2
      // Predicated region
      $region33: #{_device_forward.5} parent=5 // pred_check
        %p234 = pneg %p233
      $region34: #{_device_forward.5} parent=5 // pred_check_branch
        %236 = sbr.rel (%p234) target = $region36
      $region35: #{_device_forward.5} parent=5 // pred_region
        // Predicated region
        $region37: #{_device_forward.5} parent=35 // pred_check
          %p237 = pneg %p40
        $region38: #{_device_forward.5} parent=35 // pred_check_branch
          %239 = sbr.rel (%p237) target = $region40
        $region39: #{_device_forward.5} parent=35 // pred_region
          %p240 = scmp.lt.s32.totalorder %s20, 1
          %s241 = scalar_select %p240, %s20, 1
          %s242 = smul.addr %s241, 5
          %s243 = smul.addr %s242, 8
          %s244 = scalar_lea.vmem %s0, %s243
        $region40: #{_device_forward.5} parent=35 // pred_fallthru
          _
      $region36: #{_device_forward.5} parent=5 // pred_fallthru
        _
      %p245 = scmp.le.s32.totalorder 1, %s20
      %p246 = scmp.lt.s32.totalorder %s20, 3
      %p247 = pnand %p245, %p246
      %p248 = pneg %p247
      // Predicated region
      $region41: #{_device_forward.5} parent=5 // pred_check
        _
      $region42: #{_device_forward.5} parent=5 // pred_check_branch
        %250 = sbr.rel (%p247) target = $region44
      $region43: #{_device_forward.5} parent=5 // pred_region
        %s251 = ssub.s32 %s20, 1
        %p252 = scmp.lt.s32.totalorder %s25, 1
        %s253 = scalar_select %p252, %s25, 1
        %s254 = smul.addr %s253, 5
        %s255 = smul.addr %s254, 8
        %s256 = scalar_lea.vmem %s0, %s255
        %p257 = pneg %p46
        %p258 = pneg %p43
        %p259 = pneg %p67
        %p260 = pneg %p64
        %p261 = pneg %p88
        %p262 = pneg %p85
        %p263 = pneg %p109
        %p264 = pneg %p106
        %p265 = pneg %p130
        %p266 = pneg %p127
        %p267 = pneg %p151
        %p268 = pneg %p148
        %p269 = pneg %p177
        %p270 = pneg %p174
        %s271 = sand.u32 %s164, 1
        %s272 = scalar_lea.sflag [#allocation3], %s271
        %s273 = sand.u32 %s164, 1
        %s274 = scalar_lea.vmem [#allocation2], %s273
        %p275 = pneg %p203
        %p276 = pneg %p200
        %s277 = sand.u32 %s190, 1
        %s278 = scalar_lea.sflag [#allocation5], %s277
        %s279 = sand.u32 %s190, 1
        %s280 = scalar_lea.vmem [#allocation4], %s279
        %p281 = scmp.lt.s32.totalorder %s25, 1
        %s282 = scalar_select %p281, %s25, 1
        %s283 = smul.addr %s282, 5
        %s284 = smul.addr %s283, 8
        %s285 = scalar_lea.vmem %s0, %s284
        %v287 = vld [vmem:[%s285] sm:$0xff]
        %v288 = vld [vmem:[%s285 + $0x8] sm:$0xff]
        %v289 = vld [vmem:[%s285 + $0x10] sm:$0xff]
        %v290 = vpack.c.bf16 %v288, %v287
        %v291 = vpack.c.bf16 %v289, %v289
        %v292 = vld [vmem:[%s2] sm:$0xf]
        %v293 = vld [vmem:[%s2 + $0x4] sm:$0xf]
        %v294 = vld [vmem:[%s2 + $0x8] sm:$0xf]
        %v295 = vld [vmem:[%s2 + $0xc] sm:$0xf]
        %v296 = vld [vmem:[%s2 + $0x10] sm:$0xf]
        %v297 = vld [vmem:[%s2 + $0x14] sm:$0xf]
        %v298 = vld [vmem:[%s2 + $0x18] sm:$0xf]
        %v299 = vld [vmem:[%s2 + $0x1c] sm:$0xf]
        %v300 = vld [vmem:[%s2 + $0x20] sm:$0xf]
        %v301 = vld [vmem:[%s2 + $0x24] sm:$0xf]
        %v302 = vld [vmem:[%s2 + $0x28] sm:$0xf]
        %v303 = vld [vmem:[%s2 + $0x2c] sm:$0xf]
        %v304 = vld [vmem:[%s2 + $0x30] sm:$0xf]
        %v305 = vld [vmem:[%s2 + $0x34] sm:$0xf]
        %v306 = vld [vmem:[%s2 + $0x38] sm:$0xf]
        %v307 = vld [vmem:[%s2 + $0x3c] sm:$0xf]
        %v308 = vld [vmem:[%s285 + $0x1] sm:$0xff]
        %v309 = vld [vmem:[%s285 + $0x9] sm:$0xff]
        %v310 = vld [vmem:[%s285 + $0x11] sm:$0xff]
        %v311 = vpack.c.bf16 %v309, %v308
        %v312 = vpack.c.bf16 %v310, %v310
        %s313 = scalar_lea.vmem %s2, 64
        %v314 = vld [vmem:[%s313] sm:$0xf]
        %v315 = vld [vmem:[%s313 + $0x4] sm:$0xf]
        %v316 = vld [vmem:[%s313 + $0x8] sm:$0xf]
        %v317 = vld [vmem:[%s313 + $0xc] sm:$0xf]
        %v318 = vld [vmem:[%s313 + $0x10] sm:$0xf]
        %v319 = vld [vmem:[%s313 + $0x14] sm:$0xf]
        %v320 = vld [vmem:[%s313 + $0x18] sm:$0xf]
        %v321 = vld [vmem:[%s313 + $0x1c] sm:$0xf]
        %v322 = vld [vmem:[%s313 + $0x20] sm:$0xf]
        %v323 = vld [vmem:[%s313 + $0x24] sm:$0xf]
        %v324 = vld [vmem:[%s313 + $0x28] sm:$0xf]
        %v325 = vld [vmem:[%s313 + $0x2c] sm:$0xf]
        %v326 = vld [vmem:[%s313 + $0x30] sm:$0xf]
        %v327 = vld [vmem:[%s313 + $0x34] sm:$0xf]
        %v328 = vld [vmem:[%s313 + $0x38] sm:$0xf]
        %v329 = vld [vmem:[%s313 + $0x3c] sm:$0xf]
        %v346 = vunpack.c.l.b16 %v314
        %v347 = vunpack.c.l.b16 %v315
        %v348 = vunpack.c.l.b16 %v316
        %v349 = vunpack.c.l.b16 %v317
        %v350 = vunpack.c.l.b16 %v318
        %v351 = vunpack.c.l.b16 %v319
        %v352 = vunpack.c.l.b16 %v320
        %v353 = vunpack.c.l.b16 %v321
        %v354 = vunpack.c.l.b16 %v322
        %v355 = vunpack.c.l.b16 %v323
        %v356 = vunpack.c.l.b16 %v324
        %v357 = vunpack.c.l.b16 %v325
        %v358 = vunpack.c.l.b16 %v326
        %v359 = vunpack.c.l.b16 %v327
        %v360 = vunpack.c.l.b16 %v328
        %v361 = vunpack.c.l.b16 %v329
        %v362 = vpack.c.b16 %v347, %v346
        %v363 = vpack.c.b16 %v349, %v348
        %v364 = vpack.c.b16 %v351, %v350
        %v365 = vpack.c.b16 %v353, %v352
        %v366 = vpack.c.b16 %v355, %v354
        %v367 = vpack.c.b16 %v357, %v356
        %v368 = vpack.c.b16 %v359, %v358
        %v369 = vpack.c.b16 %v361, %v360
        %378 = vmatprep.subr.bf16.mxu0 0
        %379 = vmatpush1.bf16.msra.mxu0 %v362
        %380 = vmatprep.subr.bf16.mxu0 0
        %381 = vmatpush1.bf16.msra.mxu0 %v363
        %382 = vmatprep.subr.bf16.mxu0 0
        %383 = vmatpush1.bf16.msra.mxu0 %v364
        %384 = vmatprep.subr.bf16.mxu0 0
        %385 = vmatpush1.bf16.msra.mxu0 %v365
        %386 = vmatprep.subr.bf16.mxu0 0
        %387 = vmatpush1.bf16.msra.mxu0 %v366
        %388 = vmatprep.subr.bf16.mxu0 0
        %389 = vmatpush1.bf16.msra.mxu0 %v367
        %390 = vmatprep.subr.bf16.mxu0 0
        %391 = vmatpush1.bf16.msra.mxu0 %v368
        %392 = vmatprep.subr.bf16.mxu0 0
        %393 = vmatpush1.bf16.msra.mxu0 %v369
        %394 = vmatprep.subr.bf16.mxu0 0
        %395 = vmatpush1.bf16.msra.mxu0 0
        %396 = vmatprep.subr.bf16.mxu0 0
        %397 = vmatpush1.bf16.msra.mxu0 0
        %398 = vmatprep.subr.bf16.mxu0 0
        %399 = vmatpush1.bf16.msra.mxu0 0
        %400 = vmatprep.subr.bf16.mxu0 0
        %401 = vmatpush1.bf16.msra.mxu0 0
        %402 = vmatprep.subr.bf16.mxu0 0
        %403 = vmatpush1.bf16.msra.mxu0 0
        %404 = vmatprep.subr.bf16.mxu0 0
        %405 = vmatpush1.bf16.msra.mxu0 0
        %406 = vmatprep.subr.bf16.mxu0 0
        %407 = vmatpush1.bf16.msra.mxu0 0
        %408 = vmatprep.subr.bf16.mxu0 0
        %409 = vmatpush1.bf16.msra.mxu0 0
        %410 = vmatprep.mubr.bf16.mxu0 0
        %411 = vmatmul.mubr.bf16.gmra.mrb[0].mxu0 %v311
        %v412 = vpop.f32.mrb[0].mxu0
        %v413 = vadd.f32 0.0, %v412
        %v414 = vpop.f32.mrb[0].mxu0
        %v415 = vpop.f32.mrb[0].mxu0
        %v416 = vadd.f32 0.0, %v415
        %v417 = vpop.f32.mrb[0].mxu0
        %418 = vmatprep.mubr.bf16.mxu0 0
        %419 = vmatmul.mubr.bf16.gmra.mrb[0].mxu0 %v312
        %v420 = vpop.f32.mrb[0].mxu0
        %v421 = vadd.f32 0.0, %v420
        %v422 = vpop.f32.mrb[0].mxu0
        %v423 = vpop.f32.mrb[0].mxu0
        %v424 = vpop.f32.mrb[0].mxu0
        %425 = vdwg.mxu0
        %v442 = vunpack.c.l.b16 %v292
        %v443 = vunpack.c.l.b16 %v293
        %v444 = vunpack.c.l.b16 %v294
        %v445 = vunpack.c.l.b16 %v295
        %v446 = vunpack.c.l.b16 %v296
        %v447 = vunpack.c.l.b16 %v297
        %v448 = vunpack.c.l.b16 %v298
        %v449 = vunpack.c.l.b16 %v299
        %v450 = vunpack.c.l.b16 %v300
        %v451 = vunpack.c.l.b16 %v301
        %v452 = vunpack.c.l.b16 %v302
        %v453 = vunpack.c.l.b16 %v303
        %v454 = vunpack.c.l.b16 %v304
        %v455 = vunpack.c.l.b16 %v305
        %v456 = vunpack.c.l.b16 %v306
        %v457 = vunpack.c.l.b16 %v307
        %v458 = vpack.c.b16 %v443, %v442
        %v459 = vpack.c.b16 %v445, %v444
        %v460 = vpack.c.b16 %v447, %v446
        %v461 = vpack.c.b16 %v449, %v448
        %v462 = vpack.c.b16 %v451, %v450
        %v463 = vpack.c.b16 %v453, %v452
        %v464 = vpack.c.b16 %v455, %v454
        %v465 = vpack.c.b16 %v457, %v456
        %474 = vmatprep.subr.bf16.mxu0 0
        %475 = vmatpush1.bf16.msra.mxu0 %v458
        %476 = vmatprep.subr.bf16.mxu0 0
        %477 = vmatpush1.bf16.msra.mxu0 %v459
        %478 = vmatprep.subr.bf16.mxu0 0
        %479 = vmatpush1.bf16.msra.mxu0 %v460
        %480 = vmatprep.subr.bf16.mxu0 0
        %481 = vmatpush1.bf16.msra.mxu0 %v461
        %482 = vmatprep.subr.bf16.mxu0 0
        %483 = vmatpush1.bf16.msra.mxu0 %v462
        %484 = vmatprep.subr.bf16.mxu0 0
        %485 = vmatpush1.bf16.msra.mxu0 %v463
        %486 = vmatprep.subr.bf16.mxu0 0
        %487 = vmatpush1.bf16.msra.mxu0 %v464
        %488 = vmatprep.subr.bf16.mxu0 0
        %489 = vmatpush1.bf16.msra.mxu0 %v465
        %490 = vmatprep.subr.bf16.mxu0 0
        %491 = vmatpush1.bf16.msra.mxu0 0
        %492 = vmatprep.subr.bf16.mxu0 0
        %493 = vmatpush1.bf16.msra.mxu0 0
        %494 = vmatprep.subr.bf16.mxu0 0
        %495 = vmatpush1.bf16.msra.mxu0 0
        %496 = vmatprep.subr.bf16.mxu0 0
        %497 = vmatpush1.bf16.msra.mxu0 0
        %498 = vmatprep.subr.bf16.mxu0 0
        %499 = vmatpush1.bf16.msra.mxu0 0
        %500 = vmatprep.subr.bf16.mxu0 0
        %501 = vmatpush1.bf16.msra.mxu0 0
        %502 = vmatprep.subr.bf16.mxu0 0
        %503 = vmatpush1.bf16.msra.mxu0 0
        %504 = vmatprep.subr.bf16.mxu0 0
        %505 = vmatpush1.bf16.msra.mxu0 0
        %506 = vmatprep.mubr.bf16.mxu0 0
        %507 = vmatmul.mubr.bf16.gmra.mrb[0].mxu0 %v290
        %v508 = vpop.f32.mrb[0].mxu0
        %v509 = vadd.f32 %v413, %v508
        %v510 = vpop.f32.mrb[0].mxu0
        %v511 = vpop.f32.mrb[0].mxu0
        %v512 = vadd.f32 %v416, %v511
        %v513 = vpop.f32.mrb[0].mxu0
        %514 = vmatprep.mubr.bf16.mxu0 0
        %515 = vmatmul.mubr.bf16.gmra.mrb[0].mxu0 %v291
        %v516 = vpop.f32.mrb[0].mxu0
        %v517 = vadd.f32 %v421, %v516
        %v518 = vpop.f32.mrb[0].mxu0
        %v519 = vpop.f32.mrb[0].mxu0
        %v520 = vpop.f32.mrb[0].mxu0
        %521 = vdwg.mxu0
        %v522 = vld [vmem:[%s285 + $0x2] sm:$0xff]
        %v523 = vld [vmem:[%s285 + $0xa] sm:$0xff]
        %v524 = vld [vmem:[%s285 + $0x12] sm:$0xff]
        %v525 = vpack.c.bf16 %v523, %v522
        %v526 = vpack.c.bf16 %v524, %v524
        %s527 = scalar_lea.vmem %s2, 128
        %v528 = vld [vmem:[%s527] sm:$0xf]
        %v529 = vld [vmem:[%s527 + $0x4] sm:$0xf]
        %v530 = vld [vmem:[%s527 + $0x8] sm:$0xf]
        %v531 = vld [vmem:[%s527 + $0xc] sm:$0xf]
        %v532 = vld [vmem:[%s527 + $0x10] sm:$0xf]
        %v533 = vld [vmem:[%s527 + $0x14] sm:$0xf]
        %v534 = vld [vmem:[%s527 + $0x18] sm:$0xf]
        %v535 = vld [vmem:[%s527 + $0x1c] sm:$0xf]
        %v536 = vld [vmem:[%s527 + $0x20] sm:$0xf]
        %v537 = vld [vmem:[%s527 + $0x24] sm:$0xf]
        %v538 = vld [vmem:[%s527 + $0x28] sm:$0xf]
        %v539 = vld [vmem:[%s527 + $0x2c] sm:$0xf]
        %v540 = vld [vmem:[%s527 + $0x30] sm:$0xf]
        %v541 = vld [vmem:[%s527 + $0x34] sm:$0xf]
        %v542 = vld [vmem:[%s527 + $0x38] sm:$0xf]
        %v543 = vld [vmem:[%s527 + $0x3c] sm:$0xf]
        %v560 = vunpack.c.l.b16 %v528
        %v561 = vunpack.c.l.b16 %v529
        %v562 = vunpack.c.l.b16 %v530
        %v563 = vunpack.c.l.b16 %v531
        %v564 = vunpack.c.l.b16 %v532
        %v565 = vunpack.c.l.b16 %v533
        %v566 = vunpack.c.l.b16 %v534
        %v567 = vunpack.c.l.b16 %v535
        %v568 = vunpack.c.l.b16 %v536
        %v569 = vunpack.c.l.b16 %v537
        %v570 = vunpack.c.l.b16 %v538
        %v571 = vunpack.c.l.b16 %v539
        %v572 = vunpack.c.l.b16 %v540
        %v573 = vunpack.c.l.b16 %v541
        %v574 = vunpack.c.l.b16 %v542
        %v575 = vunpack.c.l.b16 %v543
        %v576 = vpack.c.b16 %v561, %v560
        %v577 = vpack.c.b16 %v563, %v562
        %v578 = vpack.c.b16 %v565, %v564
        %v579 = vpack.c.b16 %v567, %v566
        %v580 = vpack.c.b16 %v569, %v568
        %v581 = vpack.c.b16 %v571, %v570
        %v582 = vpack.c.b16 %v573, %v572
        %v583 = vpack.c.b16 %v575, %v574
        %592 = vmatprep.subr.bf16.mxu0 0
        %593 = vmatpush1.bf16.msra.mxu0 %v576
        %594 = vmatprep.subr.bf16.mxu0 0
        %595 = vmatpush1.bf16.msra.mxu0 %v577
        %596 = vmatprep.subr.bf16.mxu0 0
        %597 = vmatpush1.bf16.msra.mxu0 %v578
        %598 = vmatprep.subr.bf16.mxu0 0
        %599 = vmatpush1.bf16.msra.mxu0 %v579
        %600 = vmatprep.subr.bf16.mxu0 0
        %601 = vmatpush1.bf16.msra.mxu0 %v580
        %602 = vmatprep.subr.bf16.mxu0 0
        %603 = vmatpush1.bf16.msra.mxu0 %v581
        %604 = vmatprep.subr.bf16.mxu0 0
        %605 = vmatpush1.bf16.msra.mxu0 %v582
        %606 = vmatprep.subr.bf16.mxu0 0
        %607 = vmatpush1.bf16.msra.mxu0 %v583
        %608 = vmatprep.subr.bf16.mxu0 0
        %609 = vmatpush1.bf16.msra.mxu0 0
        %610 = vmatprep.subr.bf16.mxu0 0
        %611 = vmatpush1.bf16.msra.mxu0 0
        %612 = vmatprep.subr.bf16.mxu0 0
        %613 = vmatpush1.bf16.msra.mxu0 0
        %614 = vmatprep.subr.bf16.mxu0 0
        %615 = vmatpush1.bf16.msra.mxu0 0
        %616 = vmatprep.subr.bf16.mxu0 0
        %617 = vmatpush1.bf16.msra.mxu0 0
        %618 = vmatprep.subr.bf16.mxu0 0
        %619 = vmatpush1.bf16.msra.mxu0 0
        %620 = vmatprep.subr.bf16.mxu0 0
        %621 = vmatpush1.bf16.msra.mxu0 0
        %622 = vmatprep.subr.bf16.mxu0 0
        %623 = vmatpush1.bf16.msra.mxu0 0
        %624 = vmatprep.mubr.bf16.mxu0 0
        %625 = vmatmul.mubr.bf16.gmra.mrb[0].mxu0 %v525
        %v626 = vpop.f32.mrb[0].mxu0
        %v627 = vadd.f32 0.0, %v626
        %v628 = vpop.f32.mrb[0].mxu0
        %v629 = vpop.f32.mrb[0].mxu0
        %v630 = vadd.f32 0.0, %v629
        %v631 = vpop.f32.mrb[0].mxu0
        %632 = vmatprep.mubr.bf16.mxu0 0
        %633 = vmatmul.mubr.bf16.gmra.mrb[0].mxu0 %v526
        %v634 = vpop.f32.mrb[0].mxu0
        %v635 = vadd.f32 0.0, %v634
        %v636 = vpop.f32.mrb[0].mxu0
        %v637 = vpop.f32.mrb[0].mxu0
        %v638 = vpop.f32.mrb[0].mxu0
        %639 = vdwg.mxu0
        %v640 = vadd.f32 %v509, %v627
        %v641 = vadd.f32 %v512, %v630
        %v642 = vadd.f32 %v517, %v635
        %v643 = vld [vmem:[%s285 + $0x6] sm:$0xff]
        %v644 = vld [vmem:[%s285 + $0xe] sm:$0xff]
        %v645 = vld [vmem:[%s285 + $0x16] sm:$0xff]
        %v646 = vpack.c.bf16 %v644, %v643
        %v647 = vpack.c.bf16 %v645, %v645
        %s648 = scalar_lea.vmem %s2, 192
        %v649 = vld [vmem:[%s648] sm:$0xf]
        %v650 = vld [vmem:[%s648 + $0x4] sm:$0xf]
        %v651 = vld [vmem:[%s648 + $0x8] sm:$0xf]
        %v652 = vld [vmem:[%s648 + $0xc] sm:$0xf]
        %v653 = vld [vmem:[%s648 + $0x10] sm:$0xf]
        %v654 = vld [vmem:[%s648 + $0x14] sm:$0xf]
        %v655 = vld [vmem:[%s648 + $0x18] sm:$0xf]
        %v656 = vld [vmem:[%s648 + $0x1c] sm:$0xf]
        %v657 = vld [vmem:[%s648 + $0x20] sm:$0xf]
        %v658 = vld [vmem:[%s648 + $0x24] sm:$0xf]
        %v659 = vld [vmem:[%s648 + $0x28] sm:$0xf]
        %v660 = vld [vmem:[%s648 + $0x2c] sm:$0xf]
        %v661 = vld [vmem:[%s648 + $0x30] sm:$0xf]
        %v662 = vld [vmem:[%s648 + $0x34] sm:$0xf]
        %v663 = vld [vmem:[%s648 + $0x38] sm:$0xf]
        %v664 = vld [vmem:[%s648 + $0x3c] sm:$0xf]
        %v681 = vunpack.c.l.b16 %v649
        %v682 = vunpack.c.l.b16 %v650
        %v683 = vunpack.c.l.b16 %v651
        %v684 = vunpack.c.l.b16 %v652
        %v685 = vunpack.c.l.b16 %v653
        %v686 = vunpack.c.l.b16 %v654
        %v687 = vunpack.c.l.b16 %v655
        %v688 = vunpack.c.l.b16 %v656
        %v689 = vunpack.c.l.b16 %v657
        %v690 = vunpack.c.l.b16 %v658
        %v691 = vunpack.c.l.b16 %v659
        %v692 = vunpack.c.l.b16 %v660
        %v693 = vunpack.c.l.b16 %v661
        %v694 = vunpack.c.l.b16 %v662
        %v695 = vunpack.c.l.b16 %v663
        %v696 = vunpack.c.l.b16 %v664
        %v697 = vpack.c.b16 %v682, %v681
        %v698 = vpack.c.b16 %v684, %v683
        %v699 = vpack.c.b16 %v686, %v685
        %v700 = vpack.c.b16 %v688, %v687
        %v701 = vpack.c.b16 %v690, %v689
        %v702 = vpack.c.b16 %v692, %v691
        %v703 = vpack.c.b16 %v694, %v693
        %v704 = vpack.c.b16 %v696, %v695
        %713 = vmatprep.subr.bf16.mxu0 0
        %714 = vmatpush1.bf16.msra.mxu0 %v697
        %715 = vmatprep.subr.bf16.mxu0 0
        %716 = vmatpush1.bf16.msra.mxu0 %v698
        %717 = vmatprep.subr.bf16.mxu0 0
        %718 = vmatpush1.bf16.msra.mxu0 %v699
        %719 = vmatprep.subr.bf16.mxu0 0
        %720 = vmatpush1.bf16.msra.mxu0 %v700
        %721 = vmatprep.subr.bf16.mxu0 0
        %722 = vmatpush1.bf16.msra.mxu0 %v701
        %723 = vmatprep.subr.bf16.mxu0 0
        %724 = vmatpush1.bf16.msra.mxu0 %v702
        %725 = vmatprep.subr.bf16.mxu0 0
        %726 = vmatpush1.bf16.msra.mxu0 %v703
        %727 = vmatprep.subr.bf16.mxu0 0
        %728 = vmatpush1.bf16.msra.mxu0 %v704
        %729 = vmatprep.subr.bf16.mxu0 0
        %730 = vmatpush1.bf16.msra.mxu0 0
        %731 = vmatprep.subr.bf16.mxu0 0
        %732 = vmatpush1.bf16.msra.mxu0 0
        %733 = vmatprep.subr.bf16.mxu0 0
        %734 = vmatpush1.bf16.msra.mxu0 0
        %735 = vmatprep.subr.bf16.mxu0 0
        %736 = vmatpush1.bf16.msra.mxu0 0
        %737 = vmatprep.subr.bf16.mxu0 0
        %738 = vmatpush1.bf16.msra.mxu0 0
        %739 = vmatprep.subr.bf16.mxu0 0
        %740 = vmatpush1.bf16.msra.mxu0 0
        %741 = vmatprep.subr.bf16.mxu0 0
        %742 = vmatpush1.bf16.msra.mxu0 0
        %743 = vmatprep.subr.bf16.mxu0 0
        %744 = vmatpush1.bf16.msra.mxu0 0
        %745 = vmatprep.mubr.bf16.mxu0 0
        %746 = vmatmul.mubr.bf16.gmra.mrb[0].mxu0 %v646
        %v747 = vpop.f32.mrb[0].mxu0
        %v748 = vadd.f32 0.0, %v747
        %v749 = vpop.f32.mrb[0].mxu0
        %v750 = vpop.f32.mrb[0].mxu0
        %v751 = vadd.f32 0.0, %v750
        %v752 = vpop.f32.mrb[0].mxu0
        %753 = vmatprep.mubr.bf16.mxu0 0
        %754 = vmatmul.mubr.bf16.gmra.mrb[0].mxu0 %v647
        %v755 = vpop.f32.mrb[0].mxu0
        %v756 = vadd.f32 0.0, %v755
        %v757 = vpop.f32.mrb[0].mxu0
        %v758 = vpop.f32.mrb[0].mxu0
        %v759 = vpop.f32.mrb[0].mxu0
        %760 = vdwg.mxu0
        %v761 = vadd.f32 %v640, %v748
        %v762 = vadd.f32 %v641, %v751
        %v763 = vadd.f32 %v642, %v756
        %v764 = vld [vmem:[%s285 + $0x7] sm:$0xff]
        %v765 = vld [vmem:[%s285 + $0xf] sm:$0xff]
        %v766 = vld [vmem:[%s285 + $0x17] sm:$0xff]
        %v767 = vpack.c.bf16 %v765, %v764
        %v768 = vpack.c.bf16 %v766, %v766
        %s769 = scalar_lea.vmem %s2, 256
        %v770 = vld [vmem:[%s769] sm:$0xf]
        %v771 = vld [vmem:[%s769 + $0x4] sm:$0xf]
        %v772 = vld [vmem:[%s769 + $0x8] sm:$0xf]
        %v773 = vld [vmem:[%s769 + $0xc] sm:$0xf]
        %v774 = vld [vmem:[%s769 + $0x10] sm:$0xf]
        %v775 = vld [vmem:[%s769 + $0x14] sm:$0xf]
        %v776 = vld [vmem:[%s769 + $0x18] sm:$0xf]
        %v777 = vld [vmem:[%s769 + $0x1c] sm:$0xf]
        %v778 = vld [vmem:[%s769 + $0x20] sm:$0xf]
        %v779 = vld [vmem:[%s769 + $0x24] sm:$0xf]
        %v780 = vld [vmem:[%s769 + $0x28] sm:$0xf]
        %v781 = vld [vmem:[%s769 + $0x2c] sm:$0xf]
        %v782 = vld [vmem:[%s769 + $0x30] sm:$0xf]
        %v783 = vld [vmem:[%s769 + $0x34] sm:$0xf]
        %v784 = vld [vmem:[%s769 + $0x38] sm:$0xf]
        %v785 = vld [vmem:[%s769 + $0x3c] sm:$0xf]
        %v802 = vunpack.c.l.b16 %v770
        %v803 = vunpack.c.l.b16 %v771
        %v804 = vunpack.c.l.b16 %v772
        %v805 = vunpack.c.l.b16 %v773
        %v806 = vunpack.c.l.b16 %v774
        %v807 = vunpack.c.l.b16 %v775
        %v808 = vunpack.c.l.b16 %v776
        %v809 = vunpack.c.l.b16 %v777
        %v810 = vunpack.c.l.b16 %v778
        %v811 = vunpack.c.l.b16 %v779
        %v812 = vunpack.c.l.b16 %v780
        %v813 = vunpack.c.l.b16 %v781
        %v814 = vunpack.c.l.b16 %v782
        %v815 = vunpack.c.l.b16 %v783
        %v816 = vunpack.c.l.b16 %v784
        %v817 = vunpack.c.l.b16 %v785
        %v818 = vpack.c.b16 %v803, %v802
        %v819 = vpack.c.b16 %v805, %v804
        %v820 = vpack.c.b16 %v807, %v806
        %v821 = vpack.c.b16 %v809, %v808
        %v822 = vpack.c.b16 %v811, %v810
        %v823 = vpack.c.b16 %v813, %v812
        %v824 = vpack.c.b16 %v815, %v814
        %v825 = vpack.c.b16 %v817, %v816
        %834 = vmatprep.subr.bf16.mxu0 0
        %835 = vmatpush1.bf16.msra.mxu0 %v818
        %836 = vmatprep.subr.bf16.mxu0 0
        %837 = vmatpush1.bf16.msra.mxu0 %v819
        %838 = vmatprep.subr.bf16.mxu0 0
        %839 = vmatpush1.bf16.msra.mxu0 %v820
        %840 = vmatprep.subr.bf16.mxu0 0
        %841 = vmatpush1.bf16.msra.mxu0 %v821
        %842 = vmatprep.subr.bf16.mxu0 0
        %843 = vmatpush1.bf16.msra.mxu0 %v822
        %844 = vmatprep.subr.bf16.mxu0 0
        %845 = vmatpush1.bf16.msra.mxu0 %v823
        %846 = vmatprep.subr.bf16.mxu0 0
        %847 = vmatpush1.bf16.msra.mxu0 %v824
        %848 = vmatprep.subr.bf16.mxu0 0
        %849 = vmatpush1.bf16.msra.mxu0 %v825
        %850 = vmatprep.subr.bf16.mxu0 0
        %851 = vmatpush1.bf16.msra.mxu0 0
        %852 = vmatprep.subr.bf16.mxu0 0
        %853 = vmatpush1.bf16.msra.mxu0 0
        %854 = vmatprep.subr.bf16.mxu0 0
        %855 = vmatpush1.bf16.msra.mxu0 0
        %856 = vmatprep.subr.bf16.mxu0 0
        %857 = vmatpush1.bf16.msra.mxu0 0
        %858 = vmatprep.subr.bf16.mxu0 0
        %859 = vmatpush1.bf16.msra.mxu0 0
        %860 = vmatprep.subr.bf16.mxu0 0
        %861 = vmatpush1.bf16.msra.mxu0 0
        %862 = vmatprep.subr.bf16.mxu0 0
        %863 = vmatpush1.bf16.msra.mxu0 0
        %864 = vmatprep.subr.bf16.mxu0 0
        %865 = vmatpush1.bf16.msra.mxu0 0
        %866 = vmatprep.mubr.bf16.mxu0 0
        %867 = vmatmul.mubr.bf16.gmra.mrb[0].mxu0 %v767
        %v868 = vpop.f32.mrb[0].mxu0
        %v869 = vadd.f32 0.0, %v868
        %v870 = vpop.f32.mrb[0].mxu0
        %v871 = vpop.f32.mrb[0].mxu0
        %v872 = vadd.f32 0.0, %v871
        %v873 = vpop.f32.mrb[0].mxu0
        %874 = vmatprep.mubr.bf16.mxu0 0
        %875 = vmatmul.mubr.bf16.gmra.mrb[0].mxu0 %v768
        %v876 = vpop.f32.mrb[0].mxu0
        %v877 = vadd.f32 0.0, %v876
        %v878 = vpop.f32.mrb[0].mxu0
        %v879 = vpop.f32.mrb[0].mxu0
        %v880 = vpop.f32.mrb[0].mxu0
        %881 = vdwg.mxu0
        %v882 = vadd.f32 %v761, %v869
        %v883 = vadd.f32 %v762, %v872
        %v884 = vadd.f32 %v763, %v877
        %v885 = vld [vmem:[%s285 + $0x8] sm:$0xff]
        %v886 = vld [vmem:[%s285 + $0x10] sm:$0xff]
        %v887 = vld [vmem:[%s285 + $0x18] sm:$0xff]
        %v888 = vpack.c.bf16 %v886, %v885
        %v889 = vpack.c.bf16 %v887, %v887
        %s890 = scalar_lea.vmem %s2, 320
        %v891 = vld [vmem:[%s890] sm:$0xf]
        %v892 = vld [vmem:[%s890 + $0x4] sm:$0xf]
        %v893 = vld [vmem:[%s890 + $0x8] sm:$0xf]
        %v894 = vld [vmem:[%s890 + $0xc] sm:$0xf]
        %v895 = vld [vmem:[%s890 + $0x10] sm:$0xf]
        %v896 = vld [vmem:[%s890 + $0x14] sm:$0xf]
        %v897 = vld [vmem:[%s890 + $0x18] sm:$0xf]
        %v898 = vld [vmem:[%s890 + $0x1c] sm:$0xf]
        %v899 = vld [vmem:[%s890 + $0x20] sm:$0xf]
        %v900 = vld [vmem:[%s890 + $0x24] sm:$0xf]
        %v901 = vld [vmem:[%s890 + $0x28] sm:$0xf]
        %v902 = vld [vmem:[%s890 + $0x2c] sm:$0xf]
        %v903 = vld [vmem:[%s890 + $0x30] sm:$0xf]
        %v904 = vld [vmem:[%s890 + $0x34] sm:$0xf]
        %v905 = vld [vmem:[%s890 + $0x38] sm:$0xf]
        %v906 = vld [vmem:[%s890 + $0x3c] sm:$0xf]
        %v923 = vunpack.c.l.b16 %v891
        %v924 = vunpack.c.l.b16 %v892
        %v925 = vunpack.c.l.b16 %v893
        %v926 = vunpack.c.l.b16 %v894
        %v927 = vunpack.c.l.b16 %v895
        %v928 = vunpack.c.l.b16 %v896
        %v929 = vunpack.c.l.b16 %v897
        %v930 = vunpack.c.l.b16 %v898
        %v931 = vunpack.c.l.b16 %v899
        %v932 = vunpack.c.l.b16 %v900
        %v933 = vunpack.c.l.b16 %v901
        %v934 = vunpack.c.l.b16 %v902
        %v935 = vunpack.c.l.b16 %v903
        %v936 = vunpack.c.l.b16 %v904
        %v937 = vunpack.c.l.b16 %v905
        %v938 = vunpack.c.l.b16 %v906
        %v939 = vpack.c.b16 %v924, %v923
        %v940 = vpack.c.b16 %v926, %v925
        %v941 = vpack.c.b16 %v928, %v927
        %v942 = vpack.c.b16 %v930, %v929
        %v943 = vpack.c.b16 %v932, %v931
        %v944 = vpack.c.b16 %v934, %v933
        %v945 = vpack.c.b16 %v936, %v935
        %v946 = vpack.c.b16 %v938, %v937
        %955 = vmatprep.subr.bf16.mxu0 0
        %956 = vmatpush1.bf16.msra.mxu0 %v939
        %957 = vmatprep.subr.bf16.mxu0 0
        %958 = vmatpush1.bf16.msra.mxu0 %v940
        %959 = vmatprep.subr.bf16.mxu0 0
        %960 = vmatpush1.bf16.msra.mxu0 %v941
        %961 = vmatprep.subr.bf16.mxu0 0
        %962 = vmatpush1.bf16.msra.mxu0 %v942
        %963 = vmatprep.subr.bf16.mxu0 0
        %964 = vmatpush1.bf16.msra.mxu0 %v943
        %965 = vmatprep.subr.bf16.mxu0 0
        %966 = vmatpush1.bf16.msra.mxu0 %v944
        %967 = vmatprep.subr.bf16.mxu0 0
        %968 = vmatpush1.bf16.msra.mxu0 %v945
        %969 = vmatprep.subr.bf16.mxu0 0
        %970 = vmatpush1.bf16.msra.mxu0 %v946
        %971 = vmatprep.subr.bf16.mxu0 0
        %972 = vmatpush1.bf16.msra.mxu0 0
        %973 = vmatprep.subr.bf16.mxu0 0
        %974 = vmatpush1.bf16.msra.mxu0 0
        %975 = vmatprep.subr.bf16.mxu0 0
        %976 = vmatpush1.bf16.msra.mxu0 0
        %977 = vmatprep.subr.bf16.mxu0 0
        %978 = vmatpush1.bf16.msra.mxu0 0
        %979 = vmatprep.subr.bf16.mxu0 0
        %980 = vmatpush1.bf16.msra.mxu0 0
        %981 = vmatprep.subr.bf16.mxu0 0
        %982 = vmatpush1.bf16.msra.mxu0 0
        %983 = vmatprep.subr.bf16.mxu0 0
        %984 = vmatpush1.bf16.msra.mxu0 0
        %985 = vmatprep.subr.bf16.mxu0 0
        %986 = vmatpush1.bf16.msra.mxu0 0
        %987 = vmatprep.mubr.bf16.mxu0 0
        %988 = vmatmul.mubr.bf16.gmra.mrb[0].mxu0 %v888
        %v989 = vpop.f32.mrb[0].mxu0
        %v990 = vadd.f32 0.0, %v989
        %v991 = vpop.f32.mrb[0].mxu0
        %v992 = vpop.f32.mrb[0].mxu0
        %v993 = vadd.f32 0.0, %v992
        %v994 = vpop.f32.mrb[0].mxu0
        %995 = vmatprep.mubr.bf16.mxu0 0
        %996 = vmatmul.mubr.bf16.gmra.mrb[0].mxu0 %v889
        %v997 = vpop.f32.mrb[0].mxu0
        %v998 = vadd.f32 0.0, %v997
        %v999 = vpop.f32.mrb[0].mxu0
        %v1000 = vpop.f32.mrb[0].mxu0
        %v1001 = vpop.f32.mrb[0].mxu0
        %1002 = vdwg.mxu0
        %v1003 = vadd.f32 %v882, %v990
        %v1004 = vadd.f32 %v883, %v993
        %v1005 = vadd.f32 %v884, %v998
        %v1006 = vld [vmem:[%s285 + $0xc] sm:$0xff]
        %v1007 = vld [vmem:[%s285 + $0x14] sm:$0xff]
        %v1008 = vld [vmem:[%s285 + $0x1c] sm:$0xff]
        %v1009 = vpack.c.bf16 %v1007, %v1006
        %v1010 = vpack.c.bf16 %v1008, %v1008
        %s1011 = scalar_lea.vmem %s2, 384
        %v1012 = vld [vmem:[%s1011] sm:$0xf]
        %v1013 = vld [vmem:[%s1011 + $0x4] sm:$0xf]
        %v1014 = vld [vmem:[%s1011 + $0x8] sm:$0xf]
        %v1015 = vld [vmem:[%s1011 + $0xc] sm:$0xf]
        %v1016 = vld [vmem:[%s1011 + $0x10] sm:$0xf]
        %v1017 = vld [vmem:[%s1011 + $0x14] sm:$0xf]
        %v1018 = vld [vmem:[%s1011 + $0x18] sm:$0xf]
        %v1019 = vld [vmem:[%s1011 + $0x1c] sm:$0xf]
        %v1020 = vld [vmem:[%s1011 + $0x20] sm:$0xf]
        %v1021 = vld [vmem:[%s1011 + $0x24] sm:$0xf]
        %v1022 = vld [vmem:[%s1011 + $0x28] sm:$0xf]
        %v1023 = vld [vmem:[%s1011 + $0x2c] sm:$0xf]
        %v1024 = vld [vmem:[%s1011 + $0x30] sm:$0xf]
        %v1025 = vld [vmem:[%s1011 + $0x34] sm:$0xf]
        %v1026 = vld [vmem:[%s1011 + $0x38] sm:$0xf]
        %v1027 = vld [vmem:[%s1011 + $0x3c] sm:$0xf]
        %v1044 = vunpack.c.l.b16 %v1012
        %v1045 = vunpack.c.l.b16 %v1013
        %v1046 = vunpack.c.l.b16 %v1014
        %v1047 = vunpack.c.l.b16 %v1015
        %v1048 = vunpack.c.l.b16 %v1016
        %v1049 = vunpack.c.l.b16 %v1017
        %v1050 = vunpack.c.l.b16 %v1018
        %v1051 = vunpack.c.l.b16 %v1019
        %v1052 = vunpack.c.l.b16 %v1020
        %v1053 = vunpack.c.l.b16 %v1021
        %v1054 = vunpack.c.l.b16 %v1022
        %v1055 = vunpack.c.l.b16 %v1023
        %v1056 = vunpack.c.l.b16 %v1024
        %v1057 = vunpack.c.l.b16 %v1025
        %v1058 = vunpack.c.l.b16 %v1026
        %v1059 = vunpack.c.l.b16 %v1027
        %v1060 = vpack.c.b16 %v1045, %v1044
        %v1061 = vpack.c.b16 %v1047, %v1046
        %v1062 = vpack.c.b16 %v1049, %v1048
        %v1063 = vpack.c.b16 %v1051, %v1050
        %v1064 = vpack.c.b16 %v1053, %v1052
        %v1065 = vpack.c.b16 %v1055, %v1054
        %v1066 = vpack.c.b16 %v1057, %v1056
        %v1067 = vpack.c.b16 %v1059, %v1058
        %1076 = vmatprep.subr.bf16.mxu0 0
        %1077 = vmatpush1.bf16.msra.mxu0 %v1060
        %1078 = vmatprep.subr.bf16.mxu0 0
        %1079 = vmatpush1.bf16.msra.mxu0 %v1061
        %1080 = vmatprep.subr.bf16.mxu0 0
        %1081 = vmatpush1.bf16.msra.mxu0 %v1062
        %1082 = vmatprep.subr.bf16.mxu0 0
        %1083 = vmatpush1.bf16.msra.mxu0 %v1063
        %1084 = vmatprep.subr.bf16.mxu0 0
        %1085 = vmatpush1.bf16.msra.mxu0 %v1064
        %1086 = vmatprep.subr.bf16.mxu0 0
        %1087 = vmatpush1.bf16.msra.mxu0 %v1065
        %1088 = vmatprep.subr.bf16.mxu0 0
        %1089 = vmatpush1.bf16.msra.mxu0 %v1066
        %1090 = vmatprep.subr.bf16.mxu0 0
        %1091 = vmatpush1.bf16.msra.mxu0 %v1067
        %1092 = vmatprep.subr.bf16.mxu0 0
        %1093 = vmatpush1.bf16.msra.mxu0 0
        %1094 = vmatprep.subr.bf16.mxu0 0
        %1095 = vmatpush1.bf16.msra.mxu0 0
        %1096 = vmatprep.subr.bf16.mxu0 0
        %1097 = vmatpush1.bf16.msra.mxu0 0
        %1098 = vmatprep.subr.bf16.mxu0 0
        %1099 = vmatpush1.bf16.msra.mxu0 0
        %1100 = vmatprep.subr.bf16.mxu0 0
        %1101 = vmatpush1.bf16.msra.mxu0 0
        %1102 = vmatprep.subr.bf16.mxu0 0
        %1103 = vmatpush1.bf16.msra.mxu0 0
        %1104 = vmatprep.subr.bf16.mxu0 0
        %1105 = vmatpush1.bf16.msra.mxu0 0
        %1106 = vmatprep.subr.bf16.mxu0 0
        %1107 = vmatpush1.bf16.msra.mxu0 0
        %1108 = vmatprep.mubr.bf16.mxu0 0
        %1109 = vmatmul.mubr.bf16.gmra.mrb[0].mxu0 %v1009
        %v1110 = vpop.f32.mrb[0].mxu0
        %v1111 = vadd.f32 0.0, %v1110
        %v1112 = vpop.f32.mrb[0].mxu0
        %v1113 = vpop.f32.mrb[0].mxu0
        %v1114 = vadd.f32 0.0, %v1113
        %v1115 = vpop.f32.mrb[0].mxu0
        %1116 = vmatprep.mubr.bf16.mxu0 0
        %1117 = vmatmul.mubr.bf16.gmra.mrb[0].mxu0 %v1010
        %v1118 = vpop.f32.mrb[0].mxu0
        %v1119 = vadd.f32 0.0, %v1118
        %v1120 = vpop.f32.mrb[0].mxu0
        %v1121 = vpop.f32.mrb[0].mxu0
        %v1122 = vpop.f32.mrb[0].mxu0
        %1123 = vdwg.mxu0
        %v1124 = vadd.f32 %v1003, %v1111
        %v1125 = vadd.f32 %v1004, %v1114
        %v1126 = vadd.f32 %v1005, %v1119
        %v1127 = vld [vmem:[%s285 + $0xd] sm:$0xff]
        %v1128 = vld [vmem:[%s285 + $0x15] sm:$0xff]
        %v1129 = vld [vmem:[%s285 + $0x1d] sm:$0xff]
        %v1130 = vpack.c.bf16 %v1128, %v1127
        %v1131 = vpack.c.bf16 %v1129, %v1129
        %s1132 = scalar_lea.vmem %s2, 448
        %v1133 = vld [vmem:[%s1132] sm:$0xf]
        %v1134 = vld [vmem:[%s1132 + $0x4] sm:$0xf]
        %v1135 = vld [vmem:[%s1132 + $0x8] sm:$0xf]
        %v1136 = vld [vmem:[%s1132 + $0xc] sm:$0xf]
        %v1137 = vld [vmem:[%s1132 + $0x10] sm:$0xf]
        %v1138 = vld [vmem:[%s1132 + $0x14] sm:$0xf]
        %v1139 = vld [vmem:[%s1132 + $0x18] sm:$0xf]
        %v1140 = vld [vmem:[%s1132 + $0x1c] sm:$0xf]
        %v1141 = vld [vmem:[%s1132 + $0x20] sm:$0xf]
        %v1142 = vld [vmem:[%s1132 + $0x24] sm:$0xf]
        %v1143 = vld [vmem:[%s1132 + $0x28] sm:$0xf]
        %v1144 = vld [vmem:[%s1132 + $0x2c] sm:$0xf]
        %v1145 = vld [vmem:[%s1132 + $0x30] sm:$0xf]
        %v1146 = vld [vmem:[%s1132 + $0x34] sm:$0xf]
        %v1147 = vld [vmem:[%s1132 + $0x38] sm:$0xf]
        %v1148 = vld [vmem:[%s1132 + $0x3c] sm:$0xf]
        %v1165 = vunpack.c.l.b16 %v1133
        %v1166 = vunpack.c.l.b16 %v1134
        %v1167 = vunpack.c.l.b16 %v1135
        %v1168 = vunpack.c.l.b16 %v1136
        %v1169 = vunpack.c.l.b16 %v1137
        %v1170 = vunpack.c.l.b16 %v1138
        %v1171 = vunpack.c.l.b16 %v1139
        %v1172 = vunpack.c.l.b16 %v1140
        %v1173 = vunpack.c.l.b16 %v1141
        %v1174 = vunpack.c.l.b16 %v1142
        %v1175 = vunpack.c.l.b16 %v1143
        %v1176 = vunpack.c.l.b16 %v1144
        %v1177 = vunpack.c.l.b16 %v1145
        %v1178 = vunpack.c.l.b16 %v1146
        %v1179 = vunpack.c.l.b16 %v1147
        %v1180 = vunpack.c.l.b16 %v1148
        %v1181 = vpack.c.b16 %v1166, %v1165
        %v1182 = vpack.c.b16 %v1168, %v1167
        %v1183 = vpack.c.b16 %v1170, %v1169
        %v1184 = vpack.c.b16 %v1172, %v1171
        %v1185 = vpack.c.b16 %v1174, %v1173
        %v1186 = vpack.c.b16 %v1176, %v1175
        %v1187 = vpack.c.b16 %v1178, %v1177
        %v1188 = vpack.c.b16 %v1180, %v1179
        %1197 = vmatprep.subr.bf16.mxu0 0
        %1198 = vmatpush1.bf16.msra.mxu0 %v1181
        %1199 = vmatprep.subr.bf16.mxu0 0
        %1200 = vmatpush1.bf16.msra.mxu0 %v1182
        %1201 = vmatprep.subr.bf16.mxu0 0
        %1202 = vmatpush1.bf16.msra.mxu0 %v1183
        %1203 = vmatprep.subr.bf16.mxu0 0
        %1204 = vmatpush1.bf16.msra.mxu0 %v1184
        %1205 = vmatprep.subr.bf16.mxu0 0
        %1206 = vmatpush1.bf16.msra.mxu0 %v1185
        %1207 = vmatprep.subr.bf16.mxu0 0
        %1208 = vmatpush1.bf16.msra.mxu0 %v1186
        %1209 = vmatprep.subr.bf16.mxu0 0
        %1210 = vmatpush1.bf16.msra.mxu0 %v1187
        %1211 = vmatprep.subr.bf16.mxu0 0
        %1212 = vmatpush1.bf16.msra.mxu0 %v1188
        %1213 = vmatprep.subr.bf16.mxu0 0
        %1214 = vmatpush1.bf16.msra.mxu0 0
        %1215 = vmatprep.subr.bf16.mxu0 0
        %1216 = vmatpush1.bf16.msra.mxu0 0
        %1217 = vmatprep.subr.bf16.mxu0 0
        %1218 = vmatpush1.bf16.msra.mxu0 0
        %1219 = vmatprep.subr.bf16.mxu0 0
        %1220 = vmatpush1.bf16.msra.mxu0 0
        %1221 = vmatprep.subr.bf16.mxu0 0
        %1222 = vmatpush1.bf16.msra.mxu0 0
        %1223 = vmatprep.subr.bf16.mxu0 0
        %1224 = vmatpush1.bf16.msra.mxu0 0
        %1225 = vmatprep.subr.bf16.mxu0 0
        %1226 = vmatpush1.bf16.msra.mxu0 0
        %1227 = vmatprep.subr.bf16.mxu0 0
        %1228 = vmatpush1.bf16.msra.mxu0 0
        %1229 = vmatprep.mubr.bf16.mxu0 0
        %1230 = vmatmul.mubr.bf16.gmra.mrb[0].mxu0 %v1130
        %v1231 = vpop.f32.mrb[0].mxu0
        %v1232 = vadd.f32 0.0, %v1231
        %v1233 = vpop.f32.mrb[0].mxu0
        %v1234 = vpop.f32.mrb[0].mxu0
        %v1235 = vadd.f32 0.0, %v1234
        %v1236 = vpop.f32.mrb[0].mxu0
        %1237 = vmatprep.mubr.bf16.mxu0 0
        %1238 = vmatmul.mubr.bf16.gmra.mrb[0].mxu0 %v1131
        %v1239 = vpop.f32.mrb[0].mxu0
        %v1240 = vadd.f32 0.0, %v1239
        %v1241 = vpop.f32.mrb[0].mxu0
        %v1242 = vpop.f32.mrb[0].mxu0
        %v1243 = vpop.f32.mrb[0].mxu0
        %1244 = vdwg.mxu0
        %v1245 = vadd.f32 %v1124, %v1232
        %v1246 = vadd.f32 %v1125, %v1235
        %v1247 = vadd.f32 %v1126, %v1240
        %v1248 = vld [vmem:[%s285 + $0xe] sm:$0xff]
        %v1249 = vld [vmem:[%s285 + $0x16] sm:$0xff]
        %v1250 = vld [vmem:[%s285 + $0x1e] sm:$0xff]
        %v1251 = vpack.c.bf16 %v1249, %v1248
        %v1252 = vpack.c.bf16 %v1250, %v1250
        %s1253 = scalar_lea.vmem %s2, 512
        %v1254 = vld [vmem:[%s1253] sm:$0xf]
        %v1255 = vld [vmem:[%s1253 + $0x4] sm:$0xf]
        %v1256 = vld [vmem:[%s1253 + $0x8] sm:$0xf]
        %v1257 = vld [vmem:[%s1253 + $0xc] sm:$0xf]
        %v1258 = vld [vmem:[%s1253 + $0x10] sm:$0xf]
        %v1259 = vld [vmem:[%s1253 + $0x14] sm:$0xf]
        %v1260 = vld [vmem:[%s1253 + $0x18] sm:$0xf]
        %v1261 = vld [vmem:[%s1253 + $0x1c] sm:$0xf]
        %v1262 = vld [vmem:[%s1253 + $0x20] sm:$0xf]
        %v1263 = vld [vmem:[%s1253 + $0x24] sm:$0xf]
        %v1264 = vld [vmem:[%s1253 + $0x28] sm:$0xf]
        %v1265 = vld [vmem:[%s1253 + $0x2c] sm:$0xf]
        %v1266 = vld [vmem:[%s1253 + $0x30] sm:$0xf]
        %v1267 = vld [vmem:[%s1253 + $0x34] sm:$0xf]
        %v1268 = vld [vmem:[%s1253 + $0x38] sm:$0xf]
        %v1269 = vld [vmem:[%s1253 + $0x3c] sm:$0xf]
        %v1286 = vunpack.c.l.b16 %v1254
        %v1287 = vunpack.c.l.b16 %v1255
        %v1288 = vunpack.c.l.b16 %v1256
        %v1289 = vunpack.c.l.b16 %v1257
        %v1290 = vunpack.c.l.b16 %v1258
        %v1291 = vunpack.c.l.b16 %v1259
        %v1292 = vunpack.c.l.b16 %v1260
        %v1293 = vunpack.c.l.b16 %v1261
        %v1294 = vunpack.c.l.b16 %v1262
        %v1295 = vunpack.c.l.b16 %v1263
        %v1296 = vunpack.c.l.b16 %v1264
        %v1297 = vunpack.c.l.b16 %v1265
        %v1298 = vunpack.c.l.b16 %v1266
        %v1299 = vunpack.c.l.b16 %v1267
        %v1300 = vunpack.c.l.b16 %v1268
        %v1301 = vunpack.c.l.b16 %v1269
        %v1302 = vpack.c.b16 %v1287, %v1286
        %v1303 = vpack.c.b16 %v1289, %v1288
        %v1304 = vpack.c.b16 %v1291, %v1290
        %v1305 = vpack.c.b16 %v1293, %v1292
        %v1306 = vpack.c.b16 %v1295, %v1294
        %v1307 = vpack.c.b16 %v1297, %v1296
        %v1308 = vpack.c.b16 %v1299, %v1298
        %v1309 = vpack.c.b16 %v1301, %v1300
        %1318 = vmatprep.subr.bf16.mxu0 0
        %1319 = vmatpush1.bf16.msra.mxu0 %v1302
        %1320 = vmatprep.subr.bf16.mxu0 0
        %1321 = vmatpush1.bf16.msra.mxu0 %v1303
        %1322 = vmatprep.subr.bf16.mxu0 0
        %1323 = vmatpush1.bf16.msra.mxu0 %v1304
        %1324 = vmatprep.subr.bf16.mxu0 0
        %1325 = vmatpush1.bf16.msra.mxu0 %v1305
        %1326 = vmatprep.subr.bf16.mxu0 0
        %1327 = vmatpush1.bf16.msra.mxu0 %v1306
        %1328 = vmatprep.subr.bf16.mxu0 0
        %1329 = vmatpush1.bf16.msra.mxu0 %v1307
        %1330 = vmatprep.subr.bf16.mxu0 0
        %1331 = vmatpush1.bf16.msra.mxu0 %v1308
        %1332 = vmatprep.subr.bf16.mxu0 0
        %1333 = vmatpush1.bf16.msra.mxu0 %v1309
        %1334 = vmatprep.subr.bf16.mxu0 0
        %1335 = vmatpush1.bf16.msra.mxu0 0
        %1336 = vmatprep.subr.bf16.mxu0 0
        %1337 = vmatpush1.bf16.msra.mxu0 0
        %1338 = vmatprep.subr.bf16.mxu0 0
        %1339 = vmatpush1.bf16.msra.mxu0 0
        %1340 = vmatprep.subr.bf16.mxu0 0
        %1341 = vmatpush1.bf16.msra.mxu0 0
        %1342 = vmatprep.subr.bf16.mxu0 0
        %1343 = vmatpush1.bf16.msra.mxu0 0
        %1344 = vmatprep.subr.bf16.mxu0 0
        %1345 = vmatpush1.bf16.msra.mxu0 0
        %1346 = vmatprep.subr.bf16.mxu0 0
        %1347 = vmatpush1.bf16.msra.mxu0 0
        %1348 = vmatprep.subr.bf16.mxu0 0
        %1349 = vmatpush1.bf16.msra.mxu0 0
        %1350 = vmatprep.mubr.bf16.mxu0 0
        %1351 = vmatmul.mubr.bf16.gmra.mrb[0].mxu0 %v1251
        %v1352 = vpop.f32.mrb[0].mxu0
        %v1353 = vadd.f32 0.0, %v1352
        %v1354 = vpop.f32.mrb[0].mxu0
        %v1355 = vpop.f32.mrb[0].mxu0
        %v1356 = vadd.f32 0.0, %v1355
        %v1357 = vpop.f32.mrb[0].mxu0
        %1358 = vmatprep.mubr.bf16.mxu0 0
        %1359 = vmatmul.mubr.bf16.gmra.mrb[0].mxu0 %v1252
        %v1360 = vpop.f32.mrb[0].mxu0
        %v1361 = vadd.f32 0.0, %v1360
        %v1362 = vpop.f32.mrb[0].mxu0
        %v1363 = vpop.f32.mrb[0].mxu0
        %v1364 = vpop.f32.mrb[0].mxu0
        %1365 = vdwg.mxu0
        %v1366 = vadd.f32 %v1245, %v1353
        %v1367 = vadd.f32 %v1246, %v1356
        %v1368 = vadd.f32 %v1247, %v1361
        %v1369 = vld [vmem:[%s3] sm:$0x1]
        %v1371 = vlaneseq
        %v1372 = vshrl.u32 %v1371, 7
        %v1373 = vsub.s32 0, %v1372
        %v1374 = vrot.slane %v1369, %v1373
        %v1376 = vadd.f32 %v1366, %v1374
        %v1377 = vadd.f32 %v1367, %v1374
        %v1378 = vadd.f32 %v1368, %v1374
        %v1379 = vmax.f32 %v1376, 0.0
        %v1380 = vmax.f32 %v1377, 0.0
        %v1381 = vmax.f32 %v1378, 0.0
        %v1382 = vld [vmem:[%s1] sm:$0xff]
        %v1383 = vld [vmem:[%s1 + $0x8] sm:$0xff]
        %v1384 = vld [vmem:[%s1 + $0x10] sm:$0xff]
        %1386 = vset.pattern.permute.xlu0 0
        %1387 = vperm.xlu0 %1386, %v1382
        %v1388 = vpop.permute.xlu0 %1387
        %1391 = vset.pattern.permute.xlu0 0
        %1392 = vperm.xlu0 %1391, %v1383
        %v1393 = vpop.permute.xlu0 %1392
        %1396 = vset.pattern.permute.xlu0 0
        %1397 = vperm.xlu0 %1396, %v1384
        %v1398 = vpop.permute.xlu0 %1397
        %v1400 = vmul.f32 %v1379, %v1388
        %v1401 = vmul.f32 %v1380, %v1393
        %v1402 = vmul.f32 %v1381, %v1398
        %v1403 = vadd.f32 %v1400, %v1401
        %v1404 = vadd.f32 %v1403, %v1402
        %v1405 = vrot.slane %v1404, 4
        %v1406 = vadd.f32 %v1404, %v1405
        %v1407 = vrot.slane %v1406, 2
        %v1408 = vadd.f32 %v1406, %v1407
        %v1409 = vrot.slane %v1408, 1
        %v1410 = vadd.f32 %v1408, %v1409
        %v1411 = vld [vmem:[%s4] sm:$0xff]
        %v1412 = vld [vmem:[%s4 + $0x8] sm:$0xff]
        %v1413 = vld [vmem:[%s4 + $0x10] sm:$0xff]
        %v1414 = vld [vmem:[%s4 + $0x18] sm:$0xff]
        %v1415 = vld [vmem:[%s4 + $0x20] sm:$0xff]
        %v1416 = vld [vmem:[%s4 + $0x28] sm:$0xff]
        %v1417 = vld [vmem:[%s4 + $0x30] sm:$0xff]
        %v1418 = vld [vmem:[%s4 + $0x38] sm:$0xff]
        %v1419 = vld [vmem:[%s4 + $0x40] sm:$0xff]
        %v1420 = vld [vmem:[%s4 + $0x48] sm:$0xff]
        %v1421 = vld [vmem:[%s4 + $0x50] sm:$0xff]
        %v1422 = vld [vmem:[%s4 + $0x58] sm:$0xff]
        %v1423 = vld [vmem:[%s4 + $0x60] sm:$0xff]
        %v1424 = vld [vmem:[%s4 + $0x68] sm:$0xff]
        %v1425 = vld [vmem:[%s4 + $0x70] sm:$0xff]
        %v1426 = vld [vmem:[%s4 + $0x78] sm:$0xff]
        %v1427 = vld [vmem:[%s5] sm:$0x1]
        %1428 = vmatprep.subr.mxu0 0.0
        %1429 = vmatpush1.msra.mxu0 %v1411
        %1430 = vmatprep.subr.mxu0 0.0
        %1431 = vmatpush1.msra.mxu0 %v1412
        %1432 = vmatprep.subr.mxu0 0.0
        %1433 = vmatpush1.msra.mxu0 %v1413
        %1434 = vmatprep.subr.mxu0 0.0
        %1435 = vmatpush1.msra.mxu0 %v1414
        %1436 = vmatprep.subr.mxu0 0.0
        %1437 = vmatpush1.msra.mxu0 %v1415
        %1438 = vmatprep.subr.mxu0 0.0
        %1439 = vmatpush1.msra.mxu0 %v1416
        %1440 = vmatprep.subr.mxu0 0.0
        %1441 = vmatpush1.msra.mxu0 %v1417
        %1442 = vmatprep.subr.mxu0 0.0
        %1443 = vmatpush1.msra.mxu0 %v1418
        %1444 = vmatprep.subr.mxu0 0.0
        %1445 = vmatpush1.msra.mxu0 %v1419
        %1446 = vmatprep.subr.mxu0 0.0
        %1447 = vmatpush1.msra.mxu0 %v1420
        %1448 = vmatprep.subr.mxu0 0.0
        %1449 = vmatpush1.msra.mxu0 %v1421
        %1450 = vmatprep.subr.mxu0 0.0
        %1451 = vmatpush1.msra.mxu0 %v1422
        %1452 = vmatprep.subr.mxu0 0.0
        %1453 = vmatpush1.msra.mxu0 %v1423
        %1454 = vmatprep.subr.mxu0 0.0
        %1455 = vmatpush1.msra.mxu0 %v1424
        %1456 = vmatprep.subr.mxu0 0.0
        %1457 = vmatpush1.msra.mxu0 %v1425
        %1458 = vmatprep.subr.mxu0 0.0
        %1459 = vmatpush1.msra.mxu0 %v1426
        %1460 = vmatprep.subr.mxu0 0.0
        %1461 = vmatpush1.msra.mxu0 0.0
        %1462 = vmatprep.subr.mxu0 0.0
        %1463 = vmatpush1.msra.mxu0 0.0
        %1464 = vmatprep.subr.mxu0 0.0
        %1465 = vmatpush1.msra.mxu0 0.0
        %1466 = vmatprep.subr.mxu0 0.0
        %1467 = vmatpush1.msra.mxu0 0.0
        %1468 = vmatprep.subr.mxu0 0.0
        %1469 = vmatpush1.msra.mxu0 0.0
        %1470 = vmatprep.subr.mxu0 0.0
        %1471 = vmatpush1.msra.mxu0 0.0
        %1472 = vmatprep.subr.mxu0 0.0
        %1473 = vmatpush1.msra.mxu0 0.0
        %1474 = vmatprep.subr.mxu0 0.0
        %1475 = vmatpush1.msra.mxu0 0.0
        %1476 = vmatprep.subr.mxu0 0.0
        %1477 = vmatpush1.msra.mxu0 0.0
        %1478 = vmatprep.subr.mxu0 0.0
        %1479 = vmatpush1.msra.mxu0 0.0
        %1480 = vmatprep.subr.mxu0 0.0
        %1481 = vmatpush1.msra.mxu0 0.0
        %1482 = vmatprep.subr.mxu0 0.0
        %1483 = vmatpush1.msra.mxu0 0.0
        %1484 = vmatprep.subr.mxu0 0.0
        %1485 = vmatpush1.msra.mxu0 0.0
        %1486 = vmatprep.subr.mxu0 0.0
        %1487 = vmatpush1.msra.mxu0 0.0
        %1488 = vmatprep.subr.mxu0 0.0
        %1489 = vmatpush1.msra.mxu0 0.0
        %1490 = vmatprep.subr.mxu0 0.0
        %1491 = vmatpush1.msra.mxu0 0.0
        %1492 = vmatprep.mubr.f32.mxu0 0.0
        %1493 = vmatmul.mubr.f32.gmra.mrb[0].mxu0 %v1410
        %v1494 = vpop.f32.mrb[0].mxu0
        %v1495 = vadd.f32 %v1427, %v1494
        %v1496 = vpop.f32.mrb[0].mxu0
        %1497 = vdwg.mxu0
        %vm1498 = vcmask 139264
        %1499 = vst.msk [vmem:[%s274] sm:$0x1] %vm1498, %v1495
        %v1500 = vsub.f32 0.0, %v1495
        %v1501 = vmul.f32 %v1500, 1.442695
        %v1502 = vpow.pop %v1501
        %v1503 = vadd.f32 %v1502, 1.0
        %v1504 = vrcp.pop %v1503
        %v1505 = vmul.f32 1.0, %v1504
        %1506 = vst.msk [vmem:[%s280] sm:$0x1] %vm1498, %v1505
        %s1507 = sand.u32 %s164, 1
        %s1508 = scalar_lea.sflag [#allocation3], %s1507
        %s1509 = sand.u32 %s164, 1
        %s1510 = scalar_lea.vmem [#allocation2], %s1509
        %s1511 = sand.u32 %s190, 1
        %s1512 = scalar_lea.sflag [#allocation5], %s1511
        %s1513 = sand.u32 %s190, 1
        %s1514 = scalar_lea.vmem [#allocation4], %s1513
        // Predicated region
        $region45: #{_device_forward.5} parent=43 // pred_check
          %p1515 = pneg %p174
        $region46: #{_device_forward.5} parent=43 // pred_check_branch
          %1517 = sbr.rel (%p1515) target = $region48
        $region47: #{_device_forward.5} parent=43 // pred_region
          %s1519 = ssub.s32 16, 16
          %1520 = vsyncadd %s1508, %s1519
          %s1521 = smul.addr %s25, 16
          %s1522 = scalar_lea.hbm %s6, %s1521
          %s1524 = sshll.u32 %s1510, 4
          %s1525 = int_to_ptr.vmem [resolvable:$true] %s1524
          %1527 = dma.vmem_to_hbm [thread:$0]  %s1525, 16, %s1522, %s1508
        $region48: #{_device_forward.5} parent=43 // pred_fallthru
          _
        // Predicated region
        $region49: #{_device_forward.5} parent=43 // pred_check
          %p1528 = pneg %p200
        $region50: #{_device_forward.5} parent=43 // pred_check_branch
          %1530 = sbr.rel (%p1528) target = $region52
        $region51: #{_device_forward.5} parent=43 // pred_region
          %s1532 = ssub.s32 16, 16
          %1533 = vsyncadd %s1512, %s1532
          %s1534 = smul.addr %s25, 16
          %s1535 = scalar_lea.hbm %s7, %s1534
          %s1537 = sshll.u32 %s1514, 4
          %s1538 = int_to_ptr.vmem [resolvable:$true] %s1537
          %1540 = dma.vmem_to_hbm [thread:$0]  %s1538, 16, %s1535, %s1512
        $region52: #{_device_forward.5} parent=43 // pred_fallthru
          _
      $region44: #{_device_forward.5} parent=5 // pred_fallthru
        _
      %p1541 = scmp.le.s32.totalorder 2, %s20
      // Predicated region
      $region53: #{_device_forward.5} parent=5 // pred_check
        %p1542 = pneg %p1541
      $region54: #{_device_forward.5} parent=5 // pred_check_branch
        %1544 = sbr.rel (%p1542) target = $region56
      $region55: #{_device_forward.5} parent=5 // pred_region
        %s1545 = ssub.s32 %s20, 2
        // Predicated region
        $region57: #{_device_forward.5} parent=55 // pred_check
          %p1546 = pneg %p180
        $region58: #{_device_forward.5} parent=55 // pred_check_branch
          %1548 = sbr.rel (%p1546) target = $region60
        $region59: #{_device_forward.5} parent=55 // pred_region
          %s1549 = sand.u32 %s165, 1
          %s1550 = scalar_lea.sflag [#allocation3], %s1549
          %s1551 = sand.u32 %s165, 1
          %s1552 = scalar_lea.vmem [#allocation2], %s1551
          %1553 = dma.done %s1550, 16
        $region60: #{_device_forward.5} parent=55 // pred_fallthru
          _
        // Predicated region
        $region61: #{_device_forward.5} parent=55 // pred_check
          %p1554 = pneg %p206
        $region62: #{_device_forward.5} parent=55 // pred_check_branch
          %1556 = sbr.rel (%p1554) target = $region64
        $region63: #{_device_forward.5} parent=55 // pred_region
          %s1557 = sand.u32 %s191, 1
          %s1558 = scalar_lea.sflag [#allocation5], %s1557
          %s1559 = sand.u32 %s191, 1
          %s1560 = scalar_lea.vmem [#allocation4], %s1559
          %1561 = dma.done %s1558, 16
        $region64: #{_device_forward.5} parent=55 // pred_fallthru
          _
      $region56: #{_device_forward.5} parent=5 // pred_fallthru
        _
    $region6: #{_device_forward.5} parent=1 // loop_footer
      %s24 = sadd.s32 1, %s20
    $region7: #{_device_forward.5} parent=1 // loop_footer_branch
      %19 = sbr.rel target = $region3
    $region8: #{_device_forward.5} parent=1 // loop_exit
      _
    %1562 = vsyncpa [#allocation3], 1
    %s1563 = scalar_lea.sflag [#allocation3], 1
    %1564 = vsyncpa %s1563, 1
    %1565 = vsyncpa [#allocation5], 1
    %s1566 = scalar_lea.sflag [#allocation5], 1
    %1567 = vsyncpa %s1566, 1

</llo_original>
